<compile_context>
chip_gen: v7x
topology: tpu7x:2x2x1
jax: 0.10.0
libtpu: 0.0.40
codegen_flags: <defaults>
</compile_context>

<pallas_src>
import numpy as np

import jax
import jax.numpy as jnp
from jax.experimental import pallas as pl
from jax.experimental.pallas import tpu as pltpu

_VMEM_LIMIT = 32 * 1024 * 1024  # < 64 MiB physical on v7x; >> actual ~12 MiB use


# ------------------------------- fused kernel ------------------------------- #

def _cnn_fused_kernel(xe_ref, xo_ref, a1_ref, b1t_ref, a2_ref, b3t_ref,
                      w5_ref, b5_ref, w6_ref, b6_ref, o_ref, p_ref):
    # ---- layer1: Conv2d(1,64,k3,s2,p1) + ReLU --------------------------------
    # LHS rows for tap ky are padded-image rows 2*oy+ky (oy=0..13): ky=0 -> even
    # rows 0..26, ky=1 -> odd rows 1..27, ky=2 -> even rows 2..28.  The kx taps
    # and W zero-padding are folded into a1[ky] (28 x 1024).  Output lane layout:
    # even ox blocks at [px*64, +64) in lanes [0,448), odd ox blocks at
    # [512+px*64, +64); lanes [448,512) and [960,1024) are structural zeros.
    h1 = jnp.dot(xe_ref[0, 0:14, :], a1_ref[0], preferred_element_type=jnp.float32)
    h1 = h1 + jnp.dot(xo_ref[0, 0:14, :], a1_ref[1], preferred_element_type=jnp.float32)
    h1 = h1 + jnp.dot(xe_ref[0, 1:15, :], a1_ref[2], preferred_element_type=jnp.float32)
    h1 = jnp.maximum(h1 + b1t_ref[...], 0.0)                       # (14, 1024) f32

    # ---- layer2: MaxPool2d(2,2) ----------------------------------------------
    # TODO(synk): Dropout(p=0.4) is identity here (inference mode).
    mw = jnp.maximum(h1[:, 0:512], h1[:, 512:1024])                 # W-pool -> (14, 512)
    p_ref[...] = jnp.zeros((9, 512), jnp.float32)                   # zero H pad rows for conv2
    for py in range(7):                                             # H-pool, dense 512-lane stores
        p_ref[pl.ds(py + 1, 1), :] = jnp.maximum(mw[2 * py:2 * py + 1, :],
                                                 mw[2 * py + 1:2 * py + 2, :])

    # ---- layer3: Conv2d(64,128,k3,s1,p1) + ReLU ------------------------------
    # p_ref holds the H-padded pooled map: row r (0..8), lane px*64+ci (px=0..6,
    # lanes 448:512 zero).  kx taps + W padding are folded into a2[ky] (512x896),
    # so conv2 is exactly 3 MXU dots; one bf16 cast per assembled LHS.
    h2 = jnp.dot(p_ref[pl.ds(0, 7), :].astype(jnp.bfloat16), a2_ref[0],
                 preferred_element_type=jnp.float32)
    h2 = h2 + jnp.dot(p_ref[pl.ds(1, 7), :].astype(jnp.bfloat16), a2_ref[1],
                      preferred_element_type=jnp.float32)
    h2 = h2 + jnp.dot(p_ref[pl.ds(2, 7), :].astype(jnp.bfloat16), a2_ref[2],
                      preferred_element_type=jnp.float32)
    h2 = jnp.maximum(h2 + b3t_ref[...], 0.0)                        # (7, 896), lane = ox*128+co

    # ---- layer4: MaxPool2d(2,2,pad=1) ----------------------------------------
    # TODO(synk): Dropout(p=0.4) is identity here (inference mode).
    # Windows {0},{1,2},{3,4},{5,6} per dim; ReLU output >= 0 so zero pad == -inf pad.
    j0 = h2[:, 0:128]
    j1 = jnp.maximum(h2[:, 128:256], h2[:, 256:384])
    j2 = jnp.maximum(h2[:, 384:512], h2[:, 512:640])
    j3 = jnp.maximum(h2[:, 640:768], h2[:, 768:896])
    pw = jnp.concatenate([j0, j1, j2, j3], axis=1)                  # (7, 512), lane = j*128+co
    r0 = pw[0:1, :]
    r1 = jnp.maximum(pw[1:2, :], pw[2:3, :])
    r2 = jnp.maximum(pw[3:4, :], pw[4:5, :])
    r3 = jnp.maximum(pw[5:6, :], pw[6:7, :])
    flat = jnp.concatenate([r0, r1, r2, r3], axis=1).astype(jnp.bfloat16)  # (1, 2048)

    # ---- layer5 + layer6: Linear(2048,625) -> Linear(625,10) ------------------
    # w5 rows pre-permuted to this (i,j,co) flatten order; outputs lane-padded
    # to 640/128 with zero weights/biases (padding cannot pollute real logits).
    z = jnp.dot(flat, w5_ref[...], preferred_element_type=jnp.float32) + b5_ref[...]
    logits = jnp.dot(z.astype(jnp.bfloat16), w6_ref[...],
                     preferred_element_type=jnp.float32) + b6_ref[...]
    o_ref[0] = logits.astype(o_ref.dtype)                           # (1, 128) lane-dense store


# --------------------------------- wrapper ---------------------------------- #

def cnn_forward(params, x_nchw):
    n = x_nchw.shape[0]
    # Tiny host glue: squeeze channel, pad H by 1, split even/odd padded rows.
    x2d = x_nchw[:, 0]                                               # (N,28,28)
    xh = jnp.pad(x2d, ((0, 0), (1, 1), (0, 0))).astype(jnp.bfloat16)  # (N,30,28)
    xe = xh[:, 0::2, :]                                              # (N,15,28) even padded rows
    xo = xh[:, 1::2, :]                                              # (N,15,28) odd padded rows

    out = pl.pallas_call(
        _cnn_fused_kernel,
        out_shape=jax.ShapeDtypeStruct((n, 1, 128), jnp.float32),
        grid=(n,),
        in_specs=[
            pl.BlockSpec((1, 15, 28), lambda i: (i, 0, 0)),          # xe
            pl.BlockSpec((1, 15, 28), lambda i: (i, 0, 0)),          # xo
            pl.BlockSpec((3, 28, 1024), lambda i: (0, 0, 0)),        # conv1 folded weights
            pl.BlockSpec((1, 1024), lambda i: (0, 0)),               # conv1 bias (tiled)
            pl.BlockSpec((3, 512, 896), lambda i: (0, 0, 0)),        # conv2 folded weights
            pl.BlockSpec((1, 896), lambda i: (0, 0)),                # conv2 bias (tiled)
            pl.BlockSpec((2048, 640), lambda i: (0, 0)),             # fc1 weights (permuted, padded)
            pl.BlockSpec((1, 640), lambda i: (0, 0)),                # fc1 bias (padded)
            pl.BlockSpec((640, 128), lambda i: (0, 0)),              # fc2 weights (padded)
            pl.BlockSpec((1, 128), lambda i: (0, 0)),                # fc2 bias (padded)
        ],
        out_specs=pl.BlockSpec((1, 1, 128), lambda i: (i, 0, 0)),
        scratch_shapes=[pltpu.VMEM((9, 512), jnp.float32)],          # H-padded pooled map
        compiler_params=pltpu.CompilerParams(
            dimension_semantics=("parallel",),
            vmem_limit_bytes=_VMEM_LIMIT),
    )(xe, xo, params["a1"], params["b1t"], params["a2"], params["b3t"],
      params["w5"], params["b5"], params["w6"], params["b6"])
    return out[:, 0, :10]


# ------------------------------ parameter init ------------------------------ #

def init_params(key):
    ks = jax.random.split(key, 4)

    def xavier(k, fan_in, fan_out, shape):
        lim = float(np.sqrt(6.0 / (fan_in + fan_out)))
        return np.asarray(jax.random.uniform(k, shape, jnp.float32, -lim, lim))

    # Model weights in natural layout.
    w1 = xavier(ks[0], 9, 64, (3, 3, 64))               # [ky, kx, cout]
    w3 = xavier(ks[1], 9 * 64, 128, (3, 3, 64, 128))    # [ky, kx, cin, cout]
    w5 = xavier(ks[2], 2048, 625, (2048, 625))          # [in (torch flatten order), out]
    w6 = xavier(ks[3], 625, 10, (625, 10))              # [in, out]
    # TODO(synk): PyTorch default Conv/Linear bias init is nonzero uniform; zeros kept here.
    b1 = np.zeros((64,), np.float32)
    b3 = np.zeros((128,), np.float32)
    b5 = np.zeros((625,), np.float32)
    b6 = np.zeros((10,), np.float32)

    # conv1 folded weights: a1[ky][s, lane(ox,c)] = w1[ky,kx,c] where s = 2*ox+kx-1
    # (unpadded input column; out-of-range s = zero padding drops out).
    # lane(ox,c): even ox=2px -> px*64+c, odd ox=2px+1 -> 512+px*64+c.
    a1 = np.zeros((3, 28, 1024), np.float32)
    b1t = np.zeros((1, 1024), np.float32)
    for ox in range(14):
        base = (ox % 2) * 512 + (ox // 2) * 64
        b1t[0, base:base + 64] = b1
        for ky in range(3):
            for kx in range(3):
                s = 2 * ox + kx - 1
                if 0 <= s < 28:
                    a1[ky, s, base:base + 64] = w1[ky, kx, :]

    # conv2 folded weights: a2[ky][px*64+ci, ox*128+co] = w3[ky, px+1-ox, ci, co]
    # when 0 <= px+1-ox <= 2 (W padding contributes zero and is dropped).
    a2 = np.zeros((3, 512, 896), np.float32)
    b3t = np.zeros((1, 896), np.float32)
    for ox in range(7):
        b3t[0, ox * 128:ox * 128 + 128] = b3
        for ky in range(3):
            for kx in range(3):
                px = ox + kx - 1
                if 0 <= px < 7:
                    a2[ky, px * 64:px * 64 + 64, ox * 128:ox * 128 + 128] = w3[ky, kx]

    # fc1: permute rows from torch flatten order (c*16 + i*4 + j) to the kernel's
    # lane order (i*512 + j*128 + c); pad 625 -> 640 output columns with zeros.
    lane = np.arange(2048)
    i_idx = lane // 512
    j_idx = (lane % 512) // 128
    c_idx = lane % 128
    f_idx = c_idx * 16 + i_idx * 4 + j_idx
    w5k = np.zeros((2048, 640), np.float32)
    w5k[:, :625] = w5[f_idx, :]
    b5p = np.zeros((1, 640), np.float32)
    b5p[0, :625] = b5

    # fc2: zero-pad to (640, 128); padded rows/cols are zero so padding is exact.
    w6k = np.zeros((640, 128), np.float32)
    w6k[:625, :10] = w6
    b6p = np.zeros((1, 128), np.float32)
    b6p[0, :10] = b6

    return {
        "a1": jnp.asarray(a1, jnp.bfloat16), "b1t": jnp.asarray(b1t),
        "a2": jnp.asarray(a2, jnp.bfloat16), "b3t": jnp.asarray(b3t),
        "w5": jnp.asarray(w5k, jnp.bfloat16), "b5": jnp.asarray(b5p),
        "w6": jnp.asarray(w6k, jnp.bfloat16), "b6": jnp.asarray(b6p),
    }


if __name__ == "__main__":
    key = jax.random.PRNGKey(0)
    pkey, xkey = jax.random.split(key)
    params = init_params(pkey)
    # 28x28 single-channel input is required by Linear(4*4*128, 625); batch=2.
    x = jax.random.normal(xkey, (2, 1, 28, 28), dtype=jnp.float32)
    logits = jax.jit(cnn_forward)(params, x)
    jax.block_until_ready(logits)
    assert logits.shape == (2, 10), logits.shape
    assert bool(jnp.isfinite(logits).all())
    print("KERNEL_OK")
</pallas_src>

<mosaic_0001>
module attributes {stable_mosaic.version = 11 : i64} {
  func.func @_cnn_fused_kernel(%arg0: i32, %arg1: memref<1x15x28xbf16, #tpu.memory_space<vmem>>, %arg2: memref<1x15x28xbf16, #tpu.memory_space<vmem>>, %arg3: memref<3x28x1024xbf16, #tpu.memory_space<vmem>>, %arg4: memref<1x1024xf32, #tpu.memory_space<vmem>>, %arg5: memref<3x512x896xbf16, #tpu.memory_space<vmem>>, %arg6: memref<1x896xf32, #tpu.memory_space<vmem>>, %arg7: memref<2048x640xbf16, #tpu.memory_space<vmem>>, %arg8: memref<1x640xf32, #tpu.memory_space<vmem>>, %arg9: memref<640x128xbf16, #tpu.memory_space<vmem>>, %arg10: memref<1x128xf32, #tpu.memory_space<vmem>>, %arg11: memref<1x1x128xf32, #tpu.memory_space<vmem>>, %arg12: memref<9x512xf32, #tpu.memory_space<vmem>>) attributes {dimension_semantics = [#tpu.dimension_semantics<parallel>], iteration_bounds = array<i64: 2>, scalar_prefetch = 0 : i64, scratch_operands = 1 : i64, tpu.core_type = #tpu.core_type<tc>, window_params = [{transform_indices = @transform_0, window_bounds = array<i64: 1, 15, 28>}, {transform_indices = @transform_1, window_bounds = array<i64: 1, 15, 28>}, {pipeline_mode = #tpu.pipeline_mode<synchronous>, transform_indices = @transform_2, window_bounds = array<i64: 3, 28, 1024>}, {pipeline_mode = #tpu.pipeline_mode<synchronous>, transform_indices = @transform_3, window_bounds = array<i64: 1, 1024>}, {pipeline_mode = #tpu.pipeline_mode<synchronous>, transform_indices = @transform_4, window_bounds = array<i64: 3, 512, 896>}, {pipeline_mode = #tpu.pipeline_mode<synchronous>, transform_indices = @transform_5, window_bounds = array<i64: 1, 896>}, {pipeline_mode = #tpu.pipeline_mode<synchronous>, transform_indices = @transform_6, window_bounds = array<i64: 2048, 640>}, {pipeline_mode = #tpu.pipeline_mode<synchronous>, transform_indices = @transform_7, window_bounds = array<i64: 1, 640>}, {pipeline_mode = #tpu.pipeline_mode<synchronous>, transform_indices = @transform_8, window_bounds = array<i64: 640, 128>}, {pipeline_mode = #tpu.pipeline_mode<synchronous>, transform_indices = @transform_9, window_bounds = array<i64: 1, 128>}, {transform_indices = @transform_10, window_bounds = array<i64: 1, 1, 128>}]} {
    %c0 = arith.constant 0 : index
    %c0_0 = arith.constant 0 : index
    %c0_1 = arith.constant 0 : index
    %0 = vector.load %arg1[%c0, %c0_0, %c0_1] : memref<1x15x28xbf16, #tpu.memory_space<vmem>>, vector<1x14x28xbf16>
    %1 = vector.shape_cast %0 : vector<1x14x28xbf16> to vector<14x28xbf16>
    %c0_2 = arith.constant 0 : index
    %c0_3 = arith.constant 0 : index
    %c0_4 = arith.constant 0 : index
    %2 = vector.load %arg3[%c0_2, %c0_3, %c0_4] : memref<3x28x1024xbf16, #tpu.memory_space<vmem>>, vector<1x28x1024xbf16>
    %3 = vector.shape_cast %2 : vector<1x28x1024xbf16> to vector<28x1024xbf16>
    %cst = arith.constant dense<0.000000e+00> : vector<14x1024xf32>
    %4 = tpu.matmul %1, %3, %cst {dimension_numbers = #tpu.dot_dimension_numbers<[1], [0], [0], [1], [0, 0, 1, 1], [], []>} : vector<14x28xbf16>, vector<28x1024xbf16>, vector<14x1024xf32> -> vector<14x1024xf32>
    %c0_5 = arith.constant 0 : index
    %c0_6 = arith.constant 0 : index
    %c0_7 = arith.constant 0 : index
    %5 = vector.load %arg2[%c0_5, %c0_6, %c0_7] : memref<1x15x28xbf16, #tpu.memory_space<vmem>>, vector<1x14x28xbf16>
    %6 = vector.shape_cast %5 : vector<1x14x28xbf16> to vector<14x28xbf16>
    %c1 = arith.constant 1 : index
    %c0_8 = arith.constant 0 : index
    %c0_9 = arith.constant 0 : index
    %7 = vector.load %arg3[%c1, %c0_8, %c0_9] : memref<3x28x1024xbf16, #tpu.memory_space<vmem>>, vector<1x28x1024xbf16>
    %8 = vector.shape_cast %7 : vector<1x28x1024xbf16> to vector<28x1024xbf16>
    %cst_10 = arith.constant dense<0.000000e+00> : vector<14x1024xf32>
    %9 = tpu.matmul %6, %8, %cst_10 {dimension_numbers = #tpu.dot_dimension_numbers<[1], [0], [0], [1], [0, 0, 1, 1], [], []>} : vector<14x28xbf16>, vector<28x1024xbf16>, vector<14x1024xf32> -> vector<14x1024xf32>
    %10 = arith.addf %4, %9 : vector<14x1024xf32>
    %c0_11 = arith.constant 0 : index
    %c1_12 = arith.constant 1 : index
    %c0_13 = arith.constant 0 : index
    %11 = vector.load %arg1[%c0_11, %c1_12, %c0_13] : memref<1x15x28xbf16, #tpu.memory_space<vmem>>, vector<1x14x28xbf16>
    %12 = vector.shape_cast %11 : vector<1x14x28xbf16> to vector<14x28xbf16>
    %c2 = arith.constant 2 : index
    %c0_14 = arith.constant 0 : index
    %c0_15 = arith.constant 0 : index
    %13 = vector.load %arg3[%c2, %c0_14, %c0_15] : memref<3x28x1024xbf16, #tpu.memory_space<vmem>>, vector<1x28x1024xbf16>
    %14 = vector.shape_cast %13 : vector<1x28x1024xbf16> to vector<28x1024xbf16>
    %cst_16 = arith.constant dense<0.000000e+00> : vector<14x1024xf32>
    %15 = tpu.matmul %12, %14, %cst_16 {dimension_numbers = #tpu.dot_dimension_numbers<[1], [0], [0], [1], [0, 0, 1, 1], [], []>} : vector<14x28xbf16>, vector<28x1024xbf16>, vector<14x1024xf32> -> vector<14x1024xf32>
    %16 = arith.addf %10, %15 : vector<14x1024xf32>
    %c0_17 = arith.constant 0 : index
    %c0_18 = arith.constant 0 : index
    %17 = vector.load %arg4[%c0_17, %c0_18] : memref<1x1024xf32, #tpu.memory_space<vmem>>, vector<1x1024xf32>
    %18 = vector.broadcast %17 : vector<1x1024xf32> to vector<14x1024xf32>
    %19 = arith.addf %16, %18 : vector<14x1024xf32>
    %cst_19 = arith.constant 0.000000e+00 : f32
    %20 = vector.broadcast %cst_19 : f32 to vector<14x1024xf32>
    %21 = arith.maximumf %19, %20 : vector<14x1024xf32>
    %22 = vector.extract_strided_slice %21 {offsets = [0, 0], sizes = [14, 512], strides = [1, 1]} : vector<14x1024xf32> to vector<14x512xf32>
    %23 = vector.extract_strided_slice %21 {offsets = [0, 512], sizes = [14, 512], strides = [1, 1]} : vector<14x1024xf32> to vector<14x512xf32>
    %24 = arith.maximumf %22, %23 : vector<14x512xf32>
    %cst_20 = arith.constant 0.000000e+00 : f32
    %25 = vector.broadcast %cst_20 : f32 to vector<9x512xf32>
    %c0_21 = arith.constant 0 : index
    %c0_22 = arith.constant 0 : index
    %26 = vector.load %arg12[%c0_21, %c0_22] : memref<9x512xf32, #tpu.memory_space<vmem>>, vector<9x512xf32>
    tpu.vector_store %arg12[%c0_21, %c0_22], %25 {strides = array<i32>} : memref<9x512xf32, #tpu.memory_space<vmem>>, vector<9x512xf32>,
    %27 = vector.extract_strided_slice %24 {offsets = [0, 0], sizes = [1, 512], strides = [1, 1]} : vector<14x512xf32> to vector<1x512xf32>
    %28 = vector.extract_strided_slice %24 {offsets = [1, 0], sizes = [1, 512], strides = [1, 1]} : vector<14x512xf32> to vector<1x512xf32>
    %29 = arith.maximumf %27, %28 : vector<1x512xf32>
    %c1_23 = arith.constant 1 : index
    %c0_24 = arith.constant 0 : index
    %30 = vector.load %arg12[%c1_23, %c0_24] : memref<9x512xf32, #tpu.memory_space<vmem>>, vector<1x512xf32>
    tpu.vector_store %arg12[%c1_23, %c0_24], %29 {strides = array<i32>} : memref<9x512xf32, #tpu.memory_space<vmem>>, vector<1x512xf32>,
    %31 = vector.extract_strided_slice %24 {offsets = [2, 0], sizes = [1, 512], strides = [1, 1]} : vector<14x512xf32> to vector<1x512xf32>
    %32 = vector.extract_strided_slice %24 {offsets = [3, 0], sizes = [1, 512], strides = [1, 1]} : vector<14x512xf32> to vector<1x512xf32>
    %33 = arith.maximumf %31, %32 : vector<1x512xf32>
    %c2_25 = arith.constant 2 : index
    %c0_26 = arith.constant 0 : index
    %34 = vector.load %arg12[%c2_25, %c0_26] : memref<9x512xf32, #tpu.memory_space<vmem>>, vector<1x512xf32>
    tpu.vector_store %arg12[%c2_25, %c0_26], %33 {strides = array<i32>} : memref<9x512xf32, #tpu.memory_space<vmem>>, vector<1x512xf32>,
    %35 = vector.extract_strided_slice %24 {offsets = [4, 0], sizes = [1, 512], strides = [1, 1]} : vector<14x512xf32> to vector<1x512xf32>
    %36 = vector.extract_strided_slice %24 {offsets = [5, 0], sizes = [1, 512], strides = [1, 1]} : vector<14x512xf32> to vector<1x512xf32>
    %37 = arith.maximumf %35, %36 : vector<1x512xf32>
    %c3 = arith.constant 3 : index
    %c0_27 = arith.constant 0 : index
    %38 = vector.load %arg12[%c3, %c0_27] : memref<9x512xf32, #tpu.memory_space<vmem>>, vector<1x512xf32>
    tpu.vector_store %arg12[%c3, %c0_27], %37 {strides = array<i32>} : memref<9x512xf32, #tpu.memory_space<vmem>>, vector<1x512xf32>,
    %39 = vector.extract_strided_slice %24 {offsets = [6, 0], sizes = [1, 512], strides = [1, 1]} : vector<14x512xf32> to vector<1x512xf32>
    %40 = vector.extract_strided_slice %24 {offsets = [7, 0], sizes = [1, 512], strides = [1, 1]} : vector<14x512xf32> to vector<1x512xf32>
    %41 = arith.maximumf %39, %40 : vector<1x512xf32>
    %c4 = arith.constant 4 : index
    %c0_28 = arith.constant 0 : index
    %42 = vector.load %arg12[%c4, %c0_28] : memref<9x512xf32, #tpu.memory_space<vmem>>, vector<1x512xf32>
    tpu.vector_store %arg12[%c4, %c0_28], %41 {strides = array<i32>} : memref<9x512xf32, #tpu.memory_space<vmem>>, vector<1x512xf32>,
    %43 = vector.extract_strided_slice %24 {offsets = [8, 0], sizes = [1, 512], strides = [1, 1]} : vector<14x512xf32> to vector<1x512xf32>
    %44 = vector.extract_strided_slice %24 {offsets = [9, 0], sizes = [1, 512], strides = [1, 1]} : vector<14x512xf32> to vector<1x512xf32>
    %45 = arith.maximumf %43, %44 : vector<1x512xf32>
    %c5 = arith.constant 5 : index
    %c0_29 = arith.constant 0 : index
    %46 = vector.load %arg12[%c5, %c0_29] : memref<9x512xf32, #tpu.memory_space<vmem>>, vector<1x512xf32>
    tpu.vector_store %arg12[%c5, %c0_29], %45 {strides = array<i32>} : memref<9x512xf32, #tpu.memory_space<vmem>>, vector<1x512xf32>,
    %47 = vector.extract_strided_slice %24 {offsets = [10, 0], sizes = [1, 512], strides = [1, 1]} : vector<14x512xf32> to vector<1x512xf32>
    %48 = vector.extract_strided_slice %24 {offsets = [11, 0], sizes = [1, 512], strides = [1, 1]} : vector<14x512xf32> to vector<1x512xf32>
    %49 = arith.maximumf %47, %48 : vector<1x512xf32>
    %c6 = arith.constant 6 : index
    %c0_30 = arith.constant 0 : index
    %50 = vector.load %arg12[%c6, %c0_30] : memref<9x512xf32, #tpu.memory_space<vmem>>, vector<1x512xf32>
    tpu.vector_store %arg12[%c6, %c0_30], %49 {strides = array<i32>} : memref<9x512xf32, #tpu.memory_space<vmem>>, vector<1x512xf32>,
    %51 = vector.extract_strided_slice %24 {offsets = [12, 0], sizes = [1, 512], strides = [1, 1]} : vector<14x512xf32> to vector<1x512xf32>
    %52 = vector.extract_strided_slice %24 {offsets = [13, 0], sizes = [1, 512], strides = [1, 1]} : vector<14x512xf32> to vector<1x512xf32>
    %53 = arith.maximumf %51, %52 : vector<1x512xf32>
    %c7 = arith.constant 7 : index
    %c0_31 = arith.constant 0 : index
    %54 = vector.load %arg12[%c7, %c0_31] : memref<9x512xf32, #tpu.memory_space<vmem>>, vector<1x512xf32>
    tpu.vector_store %arg12[%c7, %c0_31], %53 {strides = array<i32>} : memref<9x512xf32, #tpu.memory_space<vmem>>, vector<1x512xf32>,
    %c0_32 = arith.constant 0 : index
    %c0_33 = arith.constant 0 : index
    %55 = vector.load %arg12[%c0_32, %c0_33] : memref<9x512xf32, #tpu.memory_space<vmem>>, vector<7x512xf32>
    %56 = arith.truncf %55 : vector<7x512xf32> to vector<7x512xbf16>
    %c0_34 = arith.constant 0 : index
    %c0_35 = arith.constant 0 : index
    %c0_36 = arith.constant 0 : index
    %57 = vector.load %arg5[%c0_34, %c0_35, %c0_36] : memref<3x512x896xbf16, #tpu.memory_space<vmem>>, vector<1x512x896xbf16>
    %58 = vector.shape_cast %57 : vector<1x512x896xbf16> to vector<512x896xbf16>
    %cst_37 = arith.constant dense<0.000000e+00> : vector<7x896xf32>
    %59 = tpu.matmul %56, %58, %cst_37 {dimension_numbers = #tpu.dot_dimension_numbers<[1], [0], [0], [1], [0, 0, 1, 1], [], []>} : vector<7x512xbf16>, vector<512x896xbf16>, vector<7x896xf32> -> vector<7x896xf32>
    %c1_38 = arith.constant 1 : index
    %c0_39 = arith.constant 0 : index
    %60 = vector.load %arg12[%c1_38, %c0_39] : memref<9x512xf32, #tpu.memory_space<vmem>>, vector<7x512xf32>
    %61 = arith.truncf %60 : vector<7x512xf32> to vector<7x512xbf16>
    %c1_40 = arith.constant 1 : index
    %c0_41 = arith.constant 0 : index
    %c0_42 = arith.constant 0 : index
    %62 = vector.load %arg5[%c1_40, %c0_41, %c0_42] : memref<3x512x896xbf16, #tpu.memory_space<vmem>>, vector<1x512x896xbf16>
    %63 = vector.shape_cast %62 : vector<1x512x896xbf16> to vector<512x896xbf16>
    %cst_43 = arith.constant dense<0.000000e+00> : vector<7x896xf32>
    %64 = tpu.matmul %61, %63, %cst_43 {dimension_numbers = #tpu.dot_dimension_numbers<[1], [0], [0], [1], [0, 0, 1, 1], [], []>} : vector<7x512xbf16>, vector<512x896xbf16>, vector<7x896xf32> -> vector<7x896xf32>
    %65 = arith.addf %59, %64 : vector<7x896xf32>
    %c2_44 = arith.constant 2 : index
    %c0_45 = arith.constant 0 : index
    %66 = vector.load %arg12[%c2_44, %c0_45] : memref<9x512xf32, #tpu.memory_space<vmem>>, vector<7x512xf32>
    %67 = arith.truncf %66 : vector<7x512xf32> to vector<7x512xbf16>
    %c2_46 = arith.constant 2 : index
    %c0_47 = arith.constant 0 : index
    %c0_48 = arith.constant 0 : index
    %68 = vector.load %arg5[%c2_46, %c0_47, %c0_48] : memref<3x512x896xbf16, #tpu.memory_space<vmem>>, vector<1x512x896xbf16>
    %69 = vector.shape_cast %68 : vector<1x512x896xbf16> to vector<512x896xbf16>
    %cst_49 = arith.constant dense<0.000000e+00> : vector<7x896xf32>
    %70 = tpu.matmul %67, %69, %cst_49 {dimension_numbers = #tpu.dot_dimension_numbers<[1], [0], [0], [1], [0, 0, 1, 1], [], []>} : vector<7x512xbf16>, vector<512x896xbf16>, vector<7x896xf32> -> vector<7x896xf32>
    %71 = arith.addf %65, %70 : vector<7x896xf32>
    %c0_50 = arith.constant 0 : index
    %c0_51 = arith.constant 0 : index
    %72 = vector.load %arg6[%c0_50, %c0_51] : memref<1x896xf32, #tpu.memory_space<vmem>>, vector<1x896xf32>
    %73 = vector.broadcast %72 : vector<1x896xf32> to vector<7x896xf32>
    %74 = arith.addf %71, %73 : vector<7x896xf32>
    %cst_52 = arith.constant 0.000000e+00 : f32
    %75 = vector.broadcast %cst_52 : f32 to vector<7x896xf32>
    %76 = arith.maximumf %74, %75 : vector<7x896xf32>
    %77 = vector.extract_strided_slice %76 {offsets = [0, 0], sizes = [7, 128], strides = [1, 1]} : vector<7x896xf32> to vector<7x128xf32>
    %78 = vector.extract_strided_slice %76 {offsets = [0, 128], sizes = [7, 128], strides = [1, 1]} : vector<7x896xf32> to vector<7x128xf32>
    %79 = vector.extract_strided_slice %76 {offsets = [0, 256], sizes = [7, 128], strides = [1, 1]} : vector<7x896xf32> to vector<7x128xf32>
    %80 = arith.maximumf %78, %79 : vector<7x128xf32>
    %81 = vector.extract_strided_slice %76 {offsets = [0, 384], sizes = [7, 128], strides = [1, 1]} : vector<7x896xf32> to vector<7x128xf32>
    %82 = vector.extract_strided_slice %76 {offsets = [0, 512], sizes = [7, 128], strides = [1, 1]} : vector<7x896xf32> to vector<7x128xf32>
    %83 = arith.maximumf %81, %82 : vector<7x128xf32>
    %84 = vector.extract_strided_slice %76 {offsets = [0, 640], sizes = [7, 128], strides = [1, 1]} : vector<7x896xf32> to vector<7x128xf32>
    %85 = vector.extract_strided_slice %76 {offsets = [0, 768], sizes = [7, 128], strides = [1, 1]} : vector<7x896xf32> to vector<7x128xf32>
    %86 = arith.maximumf %84, %85 : vector<7x128xf32>
    %87 = tpu.concatenate %77, %80, %83, %86 in 1 : vector<7x128xf32>, vector<7x128xf32>, vector<7x128xf32>, vector<7x128xf32> -> vector<7x512xf32>
    %88 = vector.extract_strided_slice %87 {offsets = [0, 0], sizes = [1, 512], strides = [1, 1]} : vector<7x512xf32> to vector<1x512xf32>
    %89 = vector.extract_strided_slice %87 {offsets = [1, 0], sizes = [1, 512], strides = [1, 1]} : vector<7x512xf32> to vector<1x512xf32>
    %90 = vector.extract_strided_slice %87 {offsets = [2, 0], sizes = [1, 512], strides = [1, 1]} : vector<7x512xf32> to vector<1x512xf32>
    %91 = arith.maximumf %89, %90 : vector<1x512xf32>
    %92 = vector.extract_strided_slice %87 {offsets = [3, 0], sizes = [1, 512], strides = [1, 1]} : vector<7x512xf32> to vector<1x512xf32>
    %93 = vector.extract_strided_slice %87 {offsets = [4, 0], sizes = [1, 512], strides = [1, 1]} : vector<7x512xf32> to vector<1x512xf32>
    %94 = arith.maximumf %92, %93 : vector<1x512xf32>
    %95 = vector.extract_strided_slice %87 {offsets = [5, 0], sizes = [1, 512], strides = [1, 1]} : vector<7x512xf32> to vector<1x512xf32>
    %96 = vector.extract_strided_slice %87 {offsets = [6, 0], sizes = [1, 512], strides = [1, 1]} : vector<7x512xf32> to vector<1x512xf32>
    %97 = arith.maximumf %95, %96 : vector<1x512xf32>
    %98 = tpu.concatenate %88, %91, %94, %97 in 1 : vector<1x512xf32>, vector<1x512xf32>, vector<1x512xf32>, vector<1x512xf32> -> vector<1x2048xf32>
    %99 = arith.truncf %98 : vector<1x2048xf32> to vector<1x2048xbf16>
    %c0_53 = arith.constant 0 : index
    %c0_54 = arith.constant 0 : index
    %100 = vector.load %arg7[%c0_53, %c0_54] : memref<2048x640xbf16, #tpu.memory_space<vmem>>, vector<2048x640xbf16>
    %cst_55 = arith.constant dense<0.000000e+00> : vector<1x640xf32>
    %101 = tpu.matmul %99, %100, %cst_55 {dimension_numbers = #tpu.dot_dimension_numbers<[1], [0], [0], [1], [0, 0, 1, 1], [], []>} : vector<1x2048xbf16>, vector<2048x640xbf16>, vector<1x640xf32> -> vector<1x640xf32>
    %c0_56 = arith.constant 0 : index
    %c0_57 = arith.constant 0 : index
    %102 = vector.load %arg8[%c0_56, %c0_57] : memref<1x640xf32, #tpu.memory_space<vmem>>, vector<1x640xf32>
    %103 = arith.addf %101, %102 : vector<1x640xf32>
    %104 = arith.truncf %103 : vector<1x640xf32> to vector<1x640xbf16>
    %c0_58 = arith.constant 0 : index
    %c0_59 = arith.constant 0 : index
    %105 = vector.load %arg9[%c0_58, %c0_59] : memref<640x128xbf16, #tpu.memory_space<vmem>>, vector<640x128xbf16>
    %cst_60 = arith.constant dense<0.000000e+00> : vector<1x128xf32>
    %106 = tpu.matmul %104, %105, %cst_60 {dimension_numbers = #tpu.dot_dimension_numbers<[1], [0], [0], [1], [0, 0, 1, 1], [], []>} : vector<1x640xbf16>, vector<640x128xbf16>, vector<1x128xf32> -> vector<1x128xf32>
    %c0_61 = arith.constant 0 : index
    %c0_62 = arith.constant 0 : index
    %107 = vector.load %arg10[%c0_61, %c0_62] : memref<1x128xf32, #tpu.memory_space<vmem>>, vector<1x128xf32>
    %108 = arith.addf %106, %107 : vector<1x128xf32>
    %c0_63 = arith.constant 0 : index
    %c0_64 = arith.constant 0 : index
    %c0_65 = arith.constant 0 : index
    %109 = vector.load %arg11[%c0_63, %c0_64, %c0_65] : memref<1x1x128xf32, #tpu.memory_space<vmem>>, vector<1x1x128xf32>
    %110 = vector.shape_cast %109 : vector<1x1x128xf32> to vector<1x128xf32>
    %111 = vector.shape_cast %108 : vector<1x128xf32> to vector<1x1x128xf32>
    tpu.vector_store %arg11[%c0_63, %c0_64, %c0_65], %111 {strides = array<i32>} : memref<1x1x128xf32, #tpu.memory_space<vmem>>, vector<1x1x128xf32>,
    return
  }
  func.func @transform_0(%arg0: i32) -> (i32, i32, i32) {
    %c0_i32 = arith.constant 0 : i32
    %c0_i32_0 = arith.constant 0 : i32
    %c0_i32_1 = arith.constant 0 : i32
    return %arg0, %c0_i32, %c0_i32_0 : i32, i32, i32
  }
  func.func @transform_1(%arg0: i32) -> (i32, i32, i32) {
    %c0_i32 = arith.constant 0 : i32
    %c0_i32_0 = arith.constant 0 : i32
    %c0_i32_1 = arith.constant 0 : i32
    return %arg0, %c0_i32, %c0_i32_0 : i32, i32, i32
  }
  func.func @transform_2(%arg0: i32) -> (i32, i32, i32) {
    %c0_i32 = arith.constant 0 : i32
    %c0_i32_0 = arith.constant 0 : i32
    %c0_i32_1 = arith.constant 0 : i32
    %c0_i32_2 = arith.constant 0 : i32
    return %c0_i32, %c0_i32_0, %c0_i32_1 : i32, i32, i32
  }
  func.func @transform_3(%arg0: i32) -> (i32, i32) {
    %c0_i32 = arith.constant 0 : i32
    %c0_i32_0 = arith.constant 0 : i32
    %c0_i32_1 = arith.constant 0 : i32
    return %c0_i32, %c0_i32_0 : i32, i32
  }
  func.func @transform_4(%arg0: i32) -> (i32, i32, i32) {
    %c0_i32 = arith.constant 0 : i32
    %c0_i32_0 = arith.constant 0 : i32
    %c0_i32_1 = arith.constant 0 : i32
    %c0_i32_2 = arith.constant 0 : i32
    return %c0_i32, %c0_i32_0, %c0_i32_1 : i32, i32, i32
  }
  func.func @transform_5(%arg0: i32) -> (i32, i32) {
    %c0_i32 = arith.constant 0 : i32
    %c0_i32_0 = arith.constant 0 : i32
    %c0_i32_1 = arith.constant 0 : i32
    return %c0_i32, %c0_i32_0 : i32, i32
  }
  func.func @transform_6(%arg0: i32) -> (i32, i32) {
    %c0_i32 = arith.constant 0 : i32
    %c0_i32_0 = arith.constant 0 : i32
    %c0_i32_1 = arith.constant 0 : i32
    return %c0_i32, %c0_i32_0 : i32, i32
  }
  func.func @transform_7(%arg0: i32) -> (i32, i32) {
    %c0_i32 = arith.constant 0 : i32
    %c0_i32_0 = arith.constant 0 : i32
    %c0_i32_1 = arith.constant 0 : i32
    return %c0_i32, %c0_i32_0 : i32, i32
  }
  func.func @transform_8(%arg0: i32) -> (i32, i32) {
    %c0_i32 = arith.constant 0 : i32
    %c0_i32_0 = arith.constant 0 : i32
    %c0_i32_1 = arith.constant 0 : i32
    return %c0_i32, %c0_i32_0 : i32, i32
  }
  func.func @transform_9(%arg0: i32) -> (i32, i32) {
    %c0_i32 = arith.constant 0 : i32
    %c0_i32_0 = arith.constant 0 : i32
    %c0_i32_1 = arith.constant 0 : i32
    return %c0_i32, %c0_i32_0 : i32, i32
  }
  func.func @transform_10(%arg0: i32) -> (i32, i32, i32) {
    %c0_i32 = arith.constant 0 : i32
    %c0_i32_0 = arith.constant 0 : i32
    %c0_i32_1 = arith.constant 0 : i32
    return %arg0, %c0_i32, %c0_i32_0 : i32, i32, i32
  }
}

</mosaic_0001>

<llo_original>
// kernel: cnn_forward.1
$region0: #{cnn_forward.1}
  #allocation0 [shape = 'u32[]', space=smem, size = 0x4, offset = 0x4, fixed_abs, tag = 'smem constant byte address 0x4 - core index']
  #allocation1 [shape = 'u32[144,128]{1,0:T(1,128)}', space=vmem, size = 0x12000, scoped, tag = 'internal scratch']
  #allocation2 [shape = 'f32[9,512]{1,0:T(8,128)}', space=vmem, size = 0x8000, scoped, tag = 'scratch operand']
  %s0 = inlined_call_operand.vmem [shape: bf16[2,15,28], index: 0, kind: input, shape index: {}]
  %s1 = inlined_call_operand.vmem [shape: bf16[2,15,28], index: 1, kind: input, shape index: {}]
  %s2 = inlined_call_operand.hbm [shape: bf16[3,28,1024], index: 2, kind: input, shape index: {}]
  %s3 = inlined_call_operand.hbm [shape: f32[1,1024], index: 3, kind: input, shape index: {}]
  %s4 = inlined_call_operand.hbm [shape: bf16[3,512,896], index: 4, kind: input, shape index: {}]
  %s5 = inlined_call_operand.hbm [shape: f32[1,896], index: 5, kind: input, shape index: {}]
  %s6 = inlined_call_operand.hbm [shape: bf16[2048,640], index: 6, kind: input, shape index: {}]
  %s7 = inlined_call_operand.hbm [shape: f32[1,640], index: 7, kind: input, shape index: {}]
  %s8 = inlined_call_operand.hbm [shape: bf16[640,128], index: 8, kind: input, shape index: {}]
  %s9 = inlined_call_operand.hbm [shape: f32[1,128], index: 9, kind: input, shape index: {}]
  %s10 = inlined_call_operand.hbm [shape: f32[2,1,128], index: 10, kind: output, shape index: {}]
  %s11 = sld [smem:[#allocation0]]
  $region105: #{cnn_forward.1} parent=0
    _
  %s13 = ssub.s32 1, %s11
  %s14 = scalar_select 0, %s13, %s11
  $region1: #{cnn_forward.1} parent=0
    #allocation3 [shape = 'u8[196608]{0}', space=vmem, size = 0x30000, scoped, tag = 'input window, operand 2, single buffered']
    #allocation4 [shape = 's32[2]{0}', space=sflag, size = 0x8, scoped, tag = 'scoped memory for cnn_forward.1']
    #allocation5 [shape = 's32[2]{0}', space=sflag, size = 0x8, scoped, tag = 'scoped memory for cnn_forward.1']
    #allocation6 [shape = 'u8[4096]{0}', space=vmem, size = 0x1000, scoped, tag = 'input window, operand 3, single buffered']
    #allocation7 [shape = 's32[1]{0}', space=sflag, size = 0x4, scoped, tag = 'scoped memory for cnn_forward.1']
    #allocation8 [shape = 'u8[2752512]{0}', space=vmem, size = 0x2a0000, scoped, tag = 'input window, operand 4, single buffered']
    #allocation9 [shape = 'u8[3584]{0}', space=vmem, size = 0x1000, scoped, tag = 'input window, operand 5, single buffered']
    #allocation10 [shape = 's32[1]{0}', space=sflag, size = 0x4, scoped, tag = 'scoped memory for cnn_forward.1']
    #allocation11 [shape = 'u8[2621440]{0}', space=vmem, size = 0x280000, scoped, tag = 'input window, operand 6, single buffered']
    #allocation12 [shape = 'u8[2560]{0}', space=vmem, size = 0xc00, scoped, tag = 'input window, operand 7, single buffered']
    #allocation13 [shape = 's32[1]{0}', space=sflag, size = 0x4, scoped, tag = 'scoped memory for cnn_forward.1']
    #allocation14 [shape = 'u8[163840]{0}', space=vmem, size = 0x28000, scoped, tag = 'input window, operand 8, single buffered']
    #allocation15 [shape = 'u8[512]{0}', space=vmem, size = 0x400, scoped, tag = 'input window, operand 9, single buffered']
    #allocation16 [shape = 's32[1]{0}', space=sflag, size = 0x4, scoped, tag = 'scoped memory for cnn_forward.1']
    #allocation17 [shape = 'u8[1024]{0}', space=vmem, size = 0x400, scoped, tag = 'output window, operand 0']
    %15 = vsyncpa [#allocation4], 0
    %16 = vsyncpa [#allocation7], 0
    %17 = vsyncpa [#allocation10], 0
    %18 = vsyncpa [#allocation13], 0
    %19 = vsyncpa [#allocation16], 0
    %20 = vsyncpa [#allocation5], 0
    %s21 = scalar_lea.sflag [#allocation5], 1
    %22 = vsyncpa %s21, 0
    loop: start=0, step=1, limit=4
    $region2: #{cnn_forward.1} parent=1 // loop_pre_header
      _
    $region3: #{cnn_forward.1} parent=1 // loop_header
      %s24 = sphi 0, %s28
      %p25 = scmp.ge.s32.totalorder %s24, 4
      %s34 = sphi 0, %s36
      %s37 = sphi 0, %s34
      %s38 = sphi 0, %s37
      %s54 = sphi 0, %s38
      %s60 = sphi 0, %s62
      %s63 = sphi 0, %s60
      %s64 = sphi 0, %s63
      %s80 = sphi 0, %s64
      %s84 = sphi 0, %s84
      %s86 = sphi 0, %s84
      %s87 = sphi 0, %s86
      %s101 = sphi 0, %s87
      %s105 = sphi 0, %s105
      %s107 = sphi 0, %s105
      %s108 = sphi 0, %s107
      %s122 = sphi 0, %s108
      %s126 = sphi 0, %s126
      %s128 = sphi 0, %s126
      %s129 = sphi 0, %s128
      %s143 = sphi 0, %s129
      %s147 = sphi 0, %s147
      %s149 = sphi 0, %s147
      %s150 = sphi 0, %s149
      %s164 = sphi 0, %s150
      %s168 = sphi 0, %s168
      %s170 = sphi 0, %s168
      %s171 = sphi 0, %s170
      %s185 = sphi 0, %s171
      %s189 = sphi 0, %s189
      %s191 = sphi 0, %s189
      %s192 = sphi 0, %s191
      %s206 = sphi 0, %s192
      %s210 = sphi 0, %s210
      %s212 = sphi 0, %s210
      %s213 = sphi 0, %s212
      %s227 = sphi 0, %s213
      %s231 = sphi 0, %s231
      %s233 = sphi 0, %s231
      %s234 = sphi 0, %s233
      %s248 = sphi 0, %s234
      %s254 = sphi 0, %s256
      %s257 = sphi 0, %s254
      %s258 = sphi 0, %s257
      %s274 = sphi 0, %s258
    $region4: #{cnn_forward.1} parent=1 // loop_header_branch
      %27 = sbr.rel (%p25) target = $region8
    $region5: #{cnn_forward.1} parent=1 // loop_body
      %s29 = ssub.s32 %s24, 1
      %s30 = ssub.s32 %s24, 2
      %s31 = sadd.s32 %s24, 1
      %s32 = ssub.s32 %s24, %s31
      %p33 = scmp.eq.s32.totalorder %s32, 0
      %s35 = sadd.s32 %s34, 1
      %s36 = scalar_select %p33, %s34, %s35
      %p39 = pneg %p33
      %p40 = scmp.eq.s32.totalorder %s24, 1
      %p41 = por %p39, %p40
      %p42 = scmp.ne.s32.totalorder %s34, %s37
      %p43 = scmp.eq.s32.totalorder %s24, 0
      %p44 = por %p42, %p43
      %p45 = scmp.ne.s32.totalorder %s34, %s37
      %p46 = scmp.eq.s32.totalorder %s29, 1
      %p47 = por %p45, %p46
      %p48 = scmp.ne.s32.totalorder %s37, %s38
      %p49 = scmp.eq.s32.totalorder %s29, 0
      %p50 = por %p48, %p49
      %p51 = scmp.ne.s32.totalorder %s37, %s38
      %p52 = scmp.eq.s32.totalorder %s30, 1
      %p53 = por %p51, %p52
      %p55 = scmp.ne.s32.totalorder %s38, %s54
      %p56 = scmp.eq.s32.totalorder %s30, 0
      %p57 = por %p55, %p56
      %s58 = ssub.s32 %s24, %s31
      %p59 = scmp.eq.s32.totalorder %s58, 0
      %s61 = sadd.s32 %s60, 1
      %s62 = scalar_select %p59, %s60, %s61
      %p65 = pneg %p59
      %p66 = scmp.eq.s32.totalorder %s24, 1
      %p67 = por %p65, %p66
      %p68 = scmp.ne.s32.totalorder %s60, %s63
      %p69 = scmp.eq.s32.totalorder %s24, 0
      %p70 = por %p68, %p69
      %p71 = scmp.ne.s32.totalorder %s60, %s63
      %p72 = scmp.eq.s32.totalorder %s29, 1
      %p73 = por %p71, %p72
      %p74 = scmp.ne.s32.totalorder %s63, %s64
      %p75 = scmp.eq.s32.totalorder %s29, 0
      %p76 = por %p74, %p75
      %p77 = scmp.ne.s32.totalorder %s63, %s64
      %p78 = scmp.eq.s32.totalorder %s30, 1
      %p79 = por %p77, %p78
      %p81 = scmp.ne.s32.totalorder %s64, %s80
      %p82 = scmp.eq.s32.totalorder %s30, 0
      %p83 = por %p81, %p82
      %s85 = sadd.s32 %s84, 1
      %p88 = scmp.eq.s32.totalorder %s24, 1
      %p89 = scmp.ne.s32.totalorder %s84, %s86
      %p90 = scmp.eq.s32.totalorder %s24, 0
      %p91 = por %p89, %p90
      %p92 = scmp.ne.s32.totalorder %s84, %s86
      %p93 = scmp.eq.s32.totalorder %s29, 1
      %p94 = por %p92, %p93
      %p95 = scmp.ne.s32.totalorder %s86, %s87
      %p96 = scmp.eq.s32.totalorder %s29, 0
      %p97 = por %p95, %p96
      %p98 = scmp.ne.s32.totalorder %s86, %s87
      %p99 = scmp.eq.s32.totalorder %s30, 1
      %p100 = por %p98, %p99
      %p102 = scmp.ne.s32.totalorder %s87, %s101
      %p103 = scmp.eq.s32.totalorder %s30, 0
      %p104 = por %p102, %p103
      %s106 = sadd.s32 %s105, 1
      %p109 = scmp.eq.s32.totalorder %s24, 1
      %p110 = scmp.ne.s32.totalorder %s105, %s107
      %p111 = scmp.eq.s32.totalorder %s24, 0
      %p112 = por %p110, %p111
      %p113 = scmp.ne.s32.totalorder %s105, %s107
      %p114 = scmp.eq.s32.totalorder %s29, 1
      %p115 = por %p113, %p114
      %p116 = scmp.ne.s32.totalorder %s107, %s108
      %p117 = scmp.eq.s32.totalorder %s29, 0
      %p118 = por %p116, %p117
      %p119 = scmp.ne.s32.totalorder %s107, %s108
      %p120 = scmp.eq.s32.totalorder %s30, 1
      %p121 = por %p119, %p120
      %p123 = scmp.ne.s32.totalorder %s108, %s122
      %p124 = scmp.eq.s32.totalorder %s30, 0
      %p125 = por %p123, %p124
      %s127 = sadd.s32 %s126, 1
      %p130 = scmp.eq.s32.totalorder %s24, 1
      %p131 = scmp.ne.s32.totalorder %s126, %s128
      %p132 = scmp.eq.s32.totalorder %s24, 0
      %p133 = por %p131, %p132
      %p134 = scmp.ne.s32.totalorder %s126, %s128
      %p135 = scmp.eq.s32.totalorder %s29, 1
      %p136 = por %p134, %p135
      %p137 = scmp.ne.s32.totalorder %s128, %s129
      %p138 = scmp.eq.s32.totalorder %s29, 0
      %p139 = por %p137, %p138
      %p140 = scmp.ne.s32.totalorder %s128, %s129
      %p141 = scmp.eq.s32.totalorder %s30, 1
      %p142 = por %p140, %p141
      %p144 = scmp.ne.s32.totalorder %s129, %s143
      %p145 = scmp.eq.s32.totalorder %s30, 0
      %p146 = por %p144, %p145
      %s148 = sadd.s32 %s147, 1
      %p151 = scmp.eq.s32.totalorder %s24, 1
      %p152 = scmp.ne.s32.totalorder %s147, %s149
      %p153 = scmp.eq.s32.totalorder %s24, 0
      %p154 = por %p152, %p153
      %p155 = scmp.ne.s32.totalorder %s147, %s149
      %p156 = scmp.eq.s32.totalorder %s29, 1
      %p157 = por %p155, %p156
      %p158 = scmp.ne.s32.totalorder %s149, %s150
      %p159 = scmp.eq.s32.totalorder %s29, 0
      %p160 = por %p158, %p159
      %p161 = scmp.ne.s32.totalorder %s149, %s150
      %p162 = scmp.eq.s32.totalorder %s30, 1
      %p163 = por %p161, %p162
      %p165 = scmp.ne.s32.totalorder %s150, %s164
      %p166 = scmp.eq.s32.totalorder %s30, 0
      %p167 = por %p165, %p166
      %s169 = sadd.s32 %s168, 1
      %p172 = scmp.eq.s32.totalorder %s24, 1
      %p173 = scmp.ne.s32.totalorder %s168, %s170
      %p174 = scmp.eq.s32.totalorder %s24, 0
      %p175 = por %p173, %p174
      %p176 = scmp.ne.s32.totalorder %s168, %s170
      %p177 = scmp.eq.s32.totalorder %s29, 1
      %p178 = por %p176, %p177
      %p179 = scmp.ne.s32.totalorder %s170, %s171
      %p180 = scmp.eq.s32.totalorder %s29, 0
      %p181 = por %p179, %p180
      %p182 = scmp.ne.s32.totalorder %s170, %s171
      %p183 = scmp.eq.s32.totalorder %s30, 1
      %p184 = por %p182, %p183
      %p186 = scmp.ne.s32.totalorder %s171, %s185
      %p187 = scmp.eq.s32.totalorder %s30, 0
      %p188 = por %p186, %p187
      %s190 = sadd.s32 %s189, 1
      %p193 = scmp.eq.s32.totalorder %s24, 1
      %p194 = scmp.ne.s32.totalorder %s189, %s191
      %p195 = scmp.eq.s32.totalorder %s24, 0
      %p196 = por %p194, %p195
      %p197 = scmp.ne.s32.totalorder %s189, %s191
      %p198 = scmp.eq.s32.totalorder %s29, 1
      %p199 = por %p197, %p198
      %p200 = scmp.ne.s32.totalorder %s191, %s192
      %p201 = scmp.eq.s32.totalorder %s29, 0
      %p202 = por %p200, %p201
      %p203 = scmp.ne.s32.totalorder %s191, %s192
      %p204 = scmp.eq.s32.totalorder %s30, 1
      %p205 = por %p203, %p204
      %p207 = scmp.ne.s32.totalorder %s192, %s206
      %p208 = scmp.eq.s32.totalorder %s30, 0
      %p209 = por %p207, %p208
      %s211 = sadd.s32 %s210, 1
      %p214 = scmp.eq.s32.totalorder %s24, 1
      %p215 = scmp.ne.s32.totalorder %s210, %s212
      %p216 = scmp.eq.s32.totalorder %s24, 0
      %p217 = por %p215, %p216
      %p218 = scmp.ne.s32.totalorder %s210, %s212
      %p219 = scmp.eq.s32.totalorder %s29, 1
      %p220 = por %p218, %p219
      %p221 = scmp.ne.s32.totalorder %s212, %s213
      %p222 = scmp.eq.s32.totalorder %s29, 0
      %p223 = por %p221, %p222
      %p224 = scmp.ne.s32.totalorder %s212, %s213
      %p225 = scmp.eq.s32.totalorder %s30, 1
      %p226 = por %p224, %p225
      %p228 = scmp.ne.s32.totalorder %s213, %s227
      %p229 = scmp.eq.s32.totalorder %s30, 0
      %p230 = por %p228, %p229
      %s232 = sadd.s32 %s231, 1
      %p235 = scmp.eq.s32.totalorder %s24, 1
      %p236 = scmp.ne.s32.totalorder %s231, %s233
      %p237 = scmp.eq.s32.totalorder %s24, 0
      %p238 = por %p236, %p237
      %p239 = scmp.ne.s32.totalorder %s231, %s233
      %p240 = scmp.eq.s32.totalorder %s29, 1
      %p241 = por %p239, %p240
      %p242 = scmp.ne.s32.totalorder %s233, %s234
      %p243 = scmp.eq.s32.totalorder %s29, 0
      %p244 = por %p242, %p243
      %p245 = scmp.ne.s32.totalorder %s233, %s234
      %p246 = scmp.eq.s32.totalorder %s30, 1
      %p247 = por %p245, %p246
      %p249 = scmp.ne.s32.totalorder %s234, %s248
      %p250 = scmp.eq.s32.totalorder %s30, 0
      %p251 = por %p249, %p250
      %s252 = ssub.s32 %s24, %s31
      %p253 = scmp.eq.s32.totalorder %s252, 0
      %s255 = sadd.s32 %s254, 1
      %s256 = scalar_select %p253, %s254, %s255
      %p259 = pneg %p253
      %p260 = scmp.eq.s32.totalorder %s24, 1
      %p261 = por %p259, %p260
      %p262 = scmp.ne.s32.totalorder %s254, %s257
      %p263 = scmp.eq.s32.totalorder %s24, 0
      %p264 = por %p262, %p263
      %p265 = scmp.ne.s32.totalorder %s254, %s257
      %p266 = scmp.eq.s32.totalorder %s29, 1
      %p267 = por %p265, %p266
      %p268 = scmp.ne.s32.totalorder %s257, %s258
      %p269 = scmp.eq.s32.totalorder %s29, 0
      %p270 = por %p268, %p269
      %p271 = scmp.ne.s32.totalorder %s257, %s258
      %p272 = scmp.eq.s32.totalorder %s30, 1
      %p273 = por %p271, %p272
      %p275 = scmp.ne.s32.totalorder %s258, %s274
      %p276 = scmp.eq.s32.totalorder %s30, 0
      %p277 = por %p275, %p276
      %p278 = scmp.le.s32.totalorder 1, %s24
      %p279 = scmp.lt.s32.totalorder %s24, 3
      %p280 = pnand %p278, %p279
      %p281 = pneg %p280
      // Predicated region
      $region9: #{cnn_forward.1} parent=5 // pred_check
        _
      $region10: #{cnn_forward.1} parent=5 // pred_check_branch
        %283 = sbr.rel (%p280) target = $region12
      $region11: #{cnn_forward.1} parent=5 // pred_region
        %s284 = ssub.s32 %s24, 1
        // Predicated region
        $region13: #{cnn_forward.1} parent=11 // pred_check
          %p285 = pneg %p97
        $region14: #{cnn_forward.1} parent=11 // pred_check_branch
          %287 = sbr.rel (%p285) target = $region16
        $region15: #{cnn_forward.1} parent=11 // pred_region
          %s289 = ssub.s32 6144, 6144
          %290 = vsyncadd [#allocation4], %s289
          %s291 = sshll.u32 [#allocation3], 4
          %s292 = int_to_ptr.vmem [resolvable:$true] %s291
          %297 = dma.hbm_to_vmem [thread:$0]  %s2, 6144, %s292, [#allocation4], 512, 512, 32
        $region16: #{cnn_forward.1} parent=11 // pred_fallthru
          _
        // Predicated region
        $region17: #{cnn_forward.1} parent=11 // pred_check
          %p298 = pneg %p118
        $region18: #{cnn_forward.1} parent=11 // pred_check_branch
          %300 = sbr.rel (%p298) target = $region20
        $region19: #{cnn_forward.1} parent=11 // pred_region
          %s302 = ssub.s32 128, 128
          %303 = vsyncadd [#allocation7], %s302
          %s305 = sshll.u32 [#allocation6], 4
          %s306 = int_to_ptr.vmem [resolvable:$true] %s305
          %308 = dma.hbm_to_vmem [thread:$0]  %s3, 128, %s306, [#allocation7]
        $region20: #{cnn_forward.1} parent=11 // pred_fallthru
          _
        // Predicated region
        $region21: #{cnn_forward.1} parent=11 // pred_check
          %p309 = pneg %p139
        $region22: #{cnn_forward.1} parent=11 // pred_check_branch
          %311 = sbr.rel (%p309) target = $region24
        $region23: #{cnn_forward.1} parent=11 // pred_region
          %s313 = ssub.s32 86016, 86016
          %314 = vsyncadd [#allocation7], %s313
          %s315 = sshll.u32 [#allocation8], 4
          %s316 = int_to_ptr.vmem [resolvable:$true] %s315
          %321 = dma.hbm_to_vmem [thread:$0]  %s4, 86016, %s316, [#allocation7], 448, 448, 28
        $region24: #{cnn_forward.1} parent=11 // pred_fallthru
          _
        // Predicated region
        $region25: #{cnn_forward.1} parent=11 // pred_check
          %p322 = pneg %p160
        $region26: #{cnn_forward.1} parent=11 // pred_check_branch
          %324 = sbr.rel (%p322) target = $region28
        $region27: #{cnn_forward.1} parent=11 // pred_region
          %s326 = ssub.s32 112, 112
          %327 = vsyncadd [#allocation10], %s326
          %s329 = sshll.u32 [#allocation9], 4
          %s330 = int_to_ptr.vmem [resolvable:$true] %s329
          %332 = dma.hbm_to_vmem [thread:$0]  %s5, 112, %s330, [#allocation10]
        $region28: #{cnn_forward.1} parent=11 // pred_fallthru
          _
        // Predicated region
        $region29: #{cnn_forward.1} parent=11 // pred_check
          %p333 = pneg %p181
        $region30: #{cnn_forward.1} parent=11 // pred_check_branch
          %335 = sbr.rel (%p333) target = $region32
        $region31: #{cnn_forward.1} parent=11 // pred_region
          %s337 = ssub.s32 81920, 81920
          %338 = vsyncadd [#allocation10], %s337
          %s339 = sshll.u32 [#allocation11], 4
          %s340 = int_to_ptr.vmem [resolvable:$true] %s339
          %345 = dma.hbm_to_vmem [thread:$0]  %s6, 81920, %s340, [#allocation10], 320, 320, 20
        $region32: #{cnn_forward.1} parent=11 // pred_fallthru
          _
        // Predicated region
        $region33: #{cnn_forward.1} parent=11 // pred_check
          %p346 = pneg %p202
        $region34: #{cnn_forward.1} parent=11 // pred_check_branch
          %348 = sbr.rel (%p346) target = $region36
        $region35: #{cnn_forward.1} parent=11 // pred_region
          %s350 = ssub.s32 80, 80
          %351 = vsyncadd [#allocation13], %s350
          %s353 = sshll.u32 [#allocation12], 4
          %s354 = int_to_ptr.vmem [resolvable:$true] %s353
          %356 = dma.hbm_to_vmem [thread:$0]  %s7, 80, %s354, [#allocation13]
        $region36: #{cnn_forward.1} parent=11 // pred_fallthru
          _
        // Predicated region
        $region37: #{cnn_forward.1} parent=11 // pred_check
          %p357 = pneg %p223
        $region38: #{cnn_forward.1} parent=11 // pred_check_branch
          %359 = sbr.rel (%p357) target = $region40
        $region39: #{cnn_forward.1} parent=11 // pred_region
          %s361 = ssub.s32 5120, 5120
          %362 = vsyncadd [#allocation13], %s361
          %s363 = sshll.u32 [#allocation14], 4
          %s364 = int_to_ptr.vmem [resolvable:$true] %s363
          %369 = dma.hbm_to_vmem [thread:$0]  %s8, 5120, %s364, [#allocation13], 64, 64, 4
        $region40: #{cnn_forward.1} parent=11 // pred_fallthru
          _
        // Predicated region
        $region41: #{cnn_forward.1} parent=11 // pred_check
          %p370 = pneg %p244
        $region42: #{cnn_forward.1} parent=11 // pred_check_branch
          %372 = sbr.rel (%p370) target = $region44
        $region43: #{cnn_forward.1} parent=11 // pred_region
          %s374 = ssub.s32 16, 16
          %375 = vsyncadd [#allocation16], %s374
          %s377 = sshll.u32 [#allocation15], 4
          %s378 = int_to_ptr.vmem [resolvable:$true] %s377
          %380 = dma.hbm_to_vmem [thread:$0]  %s9, 16, %s378, [#allocation16]
        $region44: #{cnn_forward.1} parent=11 // pred_fallthru
          _
      $region12: #{cnn_forward.1} parent=5 // pred_fallthru
        _
      %p381 = scmp.lt.s32.totalorder %s24, 2
      // Predicated region
      $region45: #{cnn_forward.1} parent=5 // pred_check
        %p382 = pneg %p381
      $region46: #{cnn_forward.1} parent=5 // pred_check_branch
        %384 = sbr.rel (%p382) target = $region48
      $region47: #{cnn_forward.1} parent=5 // pred_region
        // Predicated region
        $region49: #{cnn_forward.1} parent=47 // pred_check
          %p385 = pneg %p44
        $region50: #{cnn_forward.1} parent=47 // pred_check_branch
          %387 = sbr.rel (%p385) target = $region52
        $region51: #{cnn_forward.1} parent=47 // pred_region
          %p388 = scmp.lt.s32.totalorder %s24, 1
          %s389 = scalar_select %p388, %s24, 1
          %s390 = smul.addr %s389, 2
          %s391 = smul.addr %s390, 4
          %s392 = scalar_lea.vmem %s0, %s391
        $region52: #{cnn_forward.1} parent=47 // pred_fallthru
          _
        // Predicated region
        $region53: #{cnn_forward.1} parent=47 // pred_check
          %p393 = pneg %p70
        $region54: #{cnn_forward.1} parent=47 // pred_check_branch
          %395 = sbr.rel (%p393) target = $region56
        $region55: #{cnn_forward.1} parent=47 // pred_region
          %p396 = scmp.lt.s32.totalorder %s24, 1
          %s397 = scalar_select %p396, %s24, 1
          %s398 = smul.addr %s397, 2
          %s399 = smul.addr %s398, 4
          %s400 = scalar_lea.vmem %s1, %s399
        $region56: #{cnn_forward.1} parent=47 // pred_fallthru
          _
      $region48: #{cnn_forward.1} parent=5 // pred_fallthru
        _
      %p401 = scmp.le.s32.totalorder 1, %s24
      %p402 = scmp.lt.s32.totalorder %s24, 3
      %p403 = pnand %p401, %p402
      %p404 = pneg %p403
      // Predicated region
      $region57: #{cnn_forward.1} parent=5 // pred_check
        _
      $region58: #{cnn_forward.1} parent=5 // pred_check_branch
        %406 = sbr.rel (%p403) target = $region60
      $region59: #{cnn_forward.1} parent=5 // pred_region
        %s407 = ssub.s32 %s24, 1
        // Predicated region
        $region61: #{cnn_forward.1} parent=59 // pred_check
          %p408 = pneg %p97
        $region62: #{cnn_forward.1} parent=59 // pred_check_branch
          %410 = sbr.rel (%p408) target = $region64
        $region63: #{cnn_forward.1} parent=59 // pred_region
          %411 = dma.done [#allocation4], 6144
        $region64: #{cnn_forward.1} parent=59 // pred_fallthru
          _
        // Predicated region
        $region65: #{cnn_forward.1} parent=59 // pred_check
          %p412 = pneg %p118
        $region66: #{cnn_forward.1} parent=59 // pred_check_branch
          %414 = sbr.rel (%p412) target = $region68
        $region67: #{cnn_forward.1} parent=59 // pred_region
          %415 = dma.done [#allocation7], 128
        $region68: #{cnn_forward.1} parent=59 // pred_fallthru
          _
        // Predicated region
        $region69: #{cnn_forward.1} parent=59 // pred_check
          %p416 = pneg %p139
        $region70: #{cnn_forward.1} parent=59 // pred_check_branch
          %418 = sbr.rel (%p416) target = $region72
        $region71: #{cnn_forward.1} parent=59 // pred_region
          %419 = dma.done [#allocation7], 86016
        $region72: #{cnn_forward.1} parent=59 // pred_fallthru
          _
        // Predicated region
        $region73: #{cnn_forward.1} parent=59 // pred_check
          %p420 = pneg %p160
        $region74: #{cnn_forward.1} parent=59 // pred_check_branch
          %422 = sbr.rel (%p420) target = $region76
        $region75: #{cnn_forward.1} parent=59 // pred_region
          %423 = dma.done [#allocation10], 112
        $region76: #{cnn_forward.1} parent=59 // pred_fallthru
          _
        // Predicated region
        $region77: #{cnn_forward.1} parent=59 // pred_check
          %p424 = pneg %p181
        $region78: #{cnn_forward.1} parent=59 // pred_check_branch
          %426 = sbr.rel (%p424) target = $region80
        $region79: #{cnn_forward.1} parent=59 // pred_region
          %427 = dma.done [#allocation10], 81920
        $region80: #{cnn_forward.1} parent=59 // pred_fallthru
          _
        // Predicated region
        $region81: #{cnn_forward.1} parent=59 // pred_check
          %p428 = pneg %p202
        $region82: #{cnn_forward.1} parent=59 // pred_check_branch
          %430 = sbr.rel (%p428) target = $region84
        $region83: #{cnn_forward.1} parent=59 // pred_region
          %431 = dma.done [#allocation13], 80
        $region84: #{cnn_forward.1} parent=59 // pred_fallthru
          _
        // Predicated region
        $region85: #{cnn_forward.1} parent=59 // pred_check
          %p432 = pneg %p223
        $region86: #{cnn_forward.1} parent=59 // pred_check_branch
          %434 = sbr.rel (%p432) target = $region88
        $region87: #{cnn_forward.1} parent=59 // pred_region
          %435 = dma.done [#allocation13], 5120
        $region88: #{cnn_forward.1} parent=59 // pred_fallthru
          _
        // Predicated region
        $region89: #{cnn_forward.1} parent=59 // pred_check
          %p436 = pneg %p244
        $region90: #{cnn_forward.1} parent=59 // pred_check_branch
          %438 = sbr.rel (%p436) target = $region92
        $region91: #{cnn_forward.1} parent=59 // pred_region
          %439 = dma.done [#allocation16], 16
        $region92: #{cnn_forward.1} parent=59 // pred_fallthru
          _
        %p440 = scmp.lt.s32.totalorder %s29, 1
        %s441 = scalar_select %p440, %s29, 1
        %s442 = smul.addr %s441, 2
        %s443 = smul.addr %s442, 4
        %s444 = scalar_lea.vmem %s0, %s443
        %p445 = pneg %p50
        %p446 = pneg %p47
        %p447 = scmp.lt.s32.totalorder %s29, 1
        %s448 = scalar_select %p447, %s29, 1
        %s449 = smul.addr %s448, 2
        %s450 = smul.addr %s449, 4
        %s451 = scalar_lea.vmem %s1, %s450
        %p452 = pneg %p76
        %p453 = pneg %p73
        %p454 = pneg %p97
        %p455 = pneg %p94
        %p456 = pneg %p118
        %p457 = pneg %p115
        %p458 = pneg %p139
        %p459 = pneg %p136
        %p460 = pneg %p160
        %p461 = pneg %p157
        %p462 = pneg %p181
        %p463 = pneg %p178
        %p464 = pneg %p202
        %p465 = pneg %p199
        %p466 = pneg %p223
        %p467 = pneg %p220
        %p468 = pneg %p244
        %p469 = pneg %p241
        %p470 = pneg %p270
        %p471 = pneg %p267
        %s472 = sand.u32 %s257, 1
        %s473 = scalar_lea.sflag [#allocation5], %s472
        %s474 = sand.u32 %s257, 1
        %s475 = scalar_lea.vmem [#allocation17], %s474
        %p476 = scmp.lt.s32.totalorder %s29, 1
        %s477 = scalar_select %p476, %s29, 1
        %s478 = smul.addr %s477, 2
        %s479 = smul.addr %s478, 4
        %s480 = scalar_lea.vmem %s0, %s479
        %p481 = scmp.lt.s32.totalorder %s29, 1
        %s482 = scalar_select %p481, %s29, 1
        %s483 = smul.addr %s482, 2
        %s484 = smul.addr %s483, 4
        %s485 = scalar_lea.vmem %s1, %s484
        %v487 = vld [vmem:[%s480] sm:$0xf]
        %v488 = vld [vmem:[%s480 + $0x4] sm:$0x7]
        %v489 = vld [vmem:[#allocation3] sm:$0xff]
        %v490 = vld [vmem:[#allocation3 + $0x8] sm:$0xff]
        %v491 = vld [vmem:[#allocation3 + $0x10] sm:$0xff]
        %v492 = vld [vmem:[#allocation3 + $0x18] sm:$0xff]
        %v493 = vld [vmem:[#allocation3 + $0x20] sm:$0xff]
        %v494 = vld [vmem:[#allocation3 + $0x28] sm:$0xff]
        %v495 = vld [vmem:[#allocation3 + $0x30] sm:$0xff]
        %v496 = vld [vmem:[#allocation3 + $0x38] sm:$0xff]
        %v497 = vld [vmem:[#allocation3 + $0x40] sm:$0xff]
        %v498 = vld [vmem:[#allocation3 + $0x48] sm:$0xff]
        %v499 = vld [vmem:[#allocation3 + $0x50] sm:$0xff]
        %v500 = vld [vmem:[#allocation3 + $0x58] sm:$0xff]
        %v501 = vld [vmem:[#allocation3 + $0x60] sm:$0x33]
        %v502 = vld [vmem:[#allocation3 + $0x68] sm:$0x33]
        %v503 = vld [vmem:[#allocation3 + $0x70] sm:$0x33]
        %v504 = vld [vmem:[#allocation3 + $0x78] sm:$0x33]
        %v505 = vld [vmem:[%s485] sm:$0xf]
        %v506 = vld [vmem:[%s485 + $0x4] sm:$0x7]
        %s507 = scalar_lea.vmem [#allocation3], 128
        %v508 = vld [vmem:[%s507] sm:$0xff]
        %v509 = vld [vmem:[%s507 + $0x8] sm:$0xff]
        %v510 = vld [vmem:[%s507 + $0x10] sm:$0xff]
        %v511 = vld [vmem:[%s507 + $0x18] sm:$0xff]
        %v512 = vld [vmem:[%s507 + $0x20] sm:$0xff]
        %v513 = vld [vmem:[%s507 + $0x28] sm:$0xff]
        %v514 = vld [vmem:[%s507 + $0x30] sm:$0xff]
        %v515 = vld [vmem:[%s507 + $0x38] sm:$0xff]
        %v516 = vld [vmem:[%s507 + $0x40] sm:$0xff]
        %v517 = vld [vmem:[%s507 + $0x48] sm:$0xff]
        %v518 = vld [vmem:[%s507 + $0x50] sm:$0xff]
        %v519 = vld [vmem:[%s507 + $0x58] sm:$0xff]
        %v520 = vld [vmem:[%s507 + $0x60] sm:$0x33]
        %v521 = vld [vmem:[%s507 + $0x68] sm:$0x33]
        %v522 = vld [vmem:[%s507 + $0x70] sm:$0x33]
        %v523 = vld [vmem:[%s507 + $0x78] sm:$0x33]
        %v526 = vunpack.c.l.b16 %v505
        %v527 = vunpack.c.l.b16 %v506
        %v528 = vpack.c.b16 %v527, %v526
        %v545 = vunpack.c.l.b16 %v508
        %v546 = vunpack.c.h.b16 %v508
        %v547 = vunpack.c.l.b16 %v509
        %v548 = vunpack.c.h.b16 %v509
        %v549 = vunpack.c.l.b16 %v510
        %v550 = vunpack.c.h.b16 %v510
        %v551 = vunpack.c.l.b16 %v511
        %v552 = vunpack.c.h.b16 %v511
        %v553 = vunpack.c.l.b16 %v512
        %v554 = vunpack.c.h.b16 %v512
        %v555 = vunpack.c.l.b16 %v513
        %v556 = vunpack.c.h.b16 %v513
        %v557 = vunpack.c.l.b16 %v514
        %v558 = vunpack.c.h.b16 %v514
        %v559 = vunpack.c.l.b16 %v515
        %v560 = vunpack.c.h.b16 %v515
        %v561 = vunpack.c.l.b16 %v516
        %v562 = vunpack.c.h.b16 %v516
        %v563 = vunpack.c.l.b16 %v517
        %v564 = vunpack.c.h.b16 %v517
        %v565 = vunpack.c.l.b16 %v518
        %v566 = vunpack.c.h.b16 %v518
        %v567 = vunpack.c.l.b16 %v519
        %v568 = vunpack.c.h.b16 %v519
        %v569 = vunpack.c.l.b16 %v520
        %v570 = vunpack.c.h.b16 %v520
        %v571 = vunpack.c.l.b16 %v521
        %v572 = vunpack.c.h.b16 %v521
        %v573 = vunpack.c.l.b16 %v522
        %v574 = vunpack.c.h.b16 %v522
        %v575 = vunpack.c.l.b16 %v523
        %v576 = vunpack.c.h.b16 %v523
        %v577 = vpack.c.b16 %v553, %v545
        %v578 = vpack.c.b16 %v554, %v546
        %v579 = vpack.c.b16 %v555, %v547
        %v580 = vpack.c.b16 %v556, %v548
        %v581 = vpack.c.b16 %v557, %v549
        %v582 = vpack.c.b16 %v558, %v550
        %v583 = vpack.c.b16 %v559, %v551
        %v584 = vpack.c.b16 %v560, %v552
        %v585 = vpack.c.b16 %v569, %v561
        %v586 = vpack.c.b16 %v570, %v562
        %v587 = vpack.c.b16 %v571, %v563
        %v588 = vpack.c.b16 %v572, %v564
        %v589 = vpack.c.b16 %v573, %v565
        %v590 = vpack.c.b16 %v574, %v566
        %v591 = vpack.c.b16 %v575, %v567
        %v592 = vpack.c.b16 %v576, %v568
        %vm601 = vcmask 228352
        %v603 = vsel %vm601, %v528, 0
        %vm605 = vcmask 1045504
        %v607 = vsel %vm605, %v585, 0
        %v610 = vsel %vm605, %v586, 0
        %v613 = vsel %vm605, %v587, 0
        %v616 = vsel %vm605, %v588, 0
        %v619 = vsel %vm605, %v589, 0
        %v622 = vsel %vm605, %v590, 0
        %v625 = vsel %vm605, %v591, 0
        %v628 = vsel %vm605, %v592, 0
        %630 = vmatprep.subr.bf16.mxu0 %v578
        %631 = vmatpush1.bf16.msra.mxu0 %v577
        %632 = vmatprep.subr.bf16.mxu0 %v610
        %633 = vmatpush1.bf16.msra.mxu0 %v607
        %634 = vmatprep.subr.bf16.mxu0 0
        %635 = vmatpush1.bf16.msra.mxu0 0
        %636 = vmatprep.subr.bf16.mxu0 0
        %637 = vmatpush1.bf16.msra.mxu0 0
        %638 = vmatprep.subr.bf16.mxu0 0
        %639 = vmatpush1.bf16.msra.mxu0 0
        %640 = vmatprep.subr.bf16.mxu0 0
        %641 = vmatpush1.bf16.msra.mxu0 0
        %642 = vmatprep.subr.bf16.mxu0 0
        %643 = vmatpush1.bf16.msra.mxu0 0
        %644 = vmatprep.subr.bf16.mxu0 0
        %645 = vmatpush1.bf16.msra.mxu0 0
        %646 = vmatprep.subr.bf16.mxu0 0
        %647 = vmatpush1.bf16.msra.mxu0 0
        %648 = vmatprep.subr.bf16.mxu0 0
        %649 = vmatpush1.bf16.msra.mxu0 0
        %650 = vmatprep.subr.bf16.mxu0 0
        %651 = vmatpush1.bf16.msra.mxu0 0
        %652 = vmatprep.subr.bf16.mxu0 0
        %653 = vmatpush1.bf16.msra.mxu0 0
        %654 = vmatprep.subr.bf16.mxu0 0
        %655 = vmatpush1.bf16.msra.mxu0 0
        %656 = vmatprep.subr.bf16.mxu0 0
        %657 = vmatpush1.bf16.msra.mxu0 0
        %658 = vmatprep.subr.bf16.mxu0 0
        %659 = vmatpush1.bf16.msra.mxu0 0
        %660 = vmatprep.subr.bf16.mxu0 0
        %661 = vmatpush1.bf16.msra.mxu0 0
        %662 = vmatprep.mubr.bf16.mxu0 0
        %663 = vmatmul.mubr.bf16.gmra.mrb[0].mxu0 %v603
        %v664 = vpop.f32.mrb[0].mxu0
        %v665 = vadd.f32 0.0, %v664
        %v666 = vpop.f32.mrb[0].mxu0
        %v667 = vadd.f32 0.0, %v666
        %v668 = vpop.f32.mrb[0].mxu0
        %v669 = vadd.f32 0.0, %v668
        %v670 = vpop.f32.mrb[0].mxu0
        %v671 = vadd.f32 0.0, %v670
        %672 = vdwg.mxu0
        %673 = vmatprep.subr.bf16.mxu0 %v580
        %674 = vmatpush1.bf16.msra.mxu0 %v579
        %675 = vmatprep.subr.bf16.mxu0 %v616
        %676 = vmatpush1.bf16.msra.mxu0 %v613
        %677 = vmatprep.subr.bf16.mxu0 0
        %678 = vmatpush1.bf16.msra.mxu0 0
        %679 = vmatprep.subr.bf16.mxu0 0
        %680 = vmatpush1.bf16.msra.mxu0 0
        %681 = vmatprep.subr.bf16.mxu0 0
        %682 = vmatpush1.bf16.msra.mxu0 0
        %683 = vmatprep.subr.bf16.mxu0 0
        %684 = vmatpush1.bf16.msra.mxu0 0
        %685 = vmatprep.subr.bf16.mxu0 0
        %686 = vmatpush1.bf16.msra.mxu0 0
        %687 = vmatprep.subr.bf16.mxu0 0
        %688 = vmatpush1.bf16.msra.mxu0 0
        %689 = vmatprep.subr.bf16.mxu0 0
        %690 = vmatpush1.bf16.msra.mxu0 0
        %691 = vmatprep.subr.bf16.mxu0 0
        %692 = vmatpush1.bf16.msra.mxu0 0
        %693 = vmatprep.subr.bf16.mxu0 0
        %694 = vmatpush1.bf16.msra.mxu0 0
        %695 = vmatprep.subr.bf16.mxu0 0
        %696 = vmatpush1.bf16.msra.mxu0 0
        %697 = vmatprep.subr.bf16.mxu0 0
        %698 = vmatpush1.bf16.msra.mxu0 0
        %699 = vmatprep.subr.bf16.mxu0 0
        %700 = vmatpush1.bf16.msra.mxu0 0
        %701 = vmatprep.subr.bf16.mxu0 0
        %702 = vmatpush1.bf16.msra.mxu0 0
        %703 = vmatprep.subr.bf16.mxu0 0
        %704 = vmatpush1.bf16.msra.mxu0 0
        %705 = vmatprep.mubr.bf16.mxu0 0
        %706 = vmatmul.mubr.bf16.gmra.mrb[0].mxu0 %v603
        %v707 = vpop.f32.mrb[0].mxu0
        %v708 = vadd.f32 0.0, %v707
        %v709 = vpop.f32.mrb[0].mxu0
        %v710 = vadd.f32 0.0, %v709
        %v711 = vpop.f32.mrb[0].mxu0
        %v712 = vadd.f32 0.0, %v711
        %v713 = vpop.f32.mrb[0].mxu0
        %v714 = vadd.f32 0.0, %v713
        %715 = vdwg.mxu0
        %716 = vmatprep.subr.bf16.mxu0 %v582
        %717 = vmatpush1.bf16.msra.mxu0 %v581
        %718 = vmatprep.subr.bf16.mxu0 %v622
        %719 = vmatpush1.bf16.msra.mxu0 %v619
        %720 = vmatprep.subr.bf16.mxu0 0
        %721 = vmatpush1.bf16.msra.mxu0 0
        %722 = vmatprep.subr.bf16.mxu0 0
        %723 = vmatpush1.bf16.msra.mxu0 0
        %724 = vmatprep.subr.bf16.mxu0 0
        %725 = vmatpush1.bf16.msra.mxu0 0
        %726 = vmatprep.subr.bf16.mxu0 0
        %727 = vmatpush1.bf16.msra.mxu0 0
        %728 = vmatprep.subr.bf16.mxu0 0
        %729 = vmatpush1.bf16.msra.mxu0 0
        %730 = vmatprep.subr.bf16.mxu0 0
        %731 = vmatpush1.bf16.msra.mxu0 0
        %732 = vmatprep.subr.bf16.mxu0 0
        %733 = vmatpush1.bf16.msra.mxu0 0
        %734 = vmatprep.subr.bf16.mxu0 0
        %735 = vmatpush1.bf16.msra.mxu0 0
        %736 = vmatprep.subr.bf16.mxu0 0
        %737 = vmatpush1.bf16.msra.mxu0 0
        %738 = vmatprep.subr.bf16.mxu0 0
        %739 = vmatpush1.bf16.msra.mxu0 0
        %740 = vmatprep.subr.bf16.mxu0 0
        %741 = vmatpush1.bf16.msra.mxu0 0
        %742 = vmatprep.subr.bf16.mxu0 0
        %743 = vmatpush1.bf16.msra.mxu0 0
        %744 = vmatprep.subr.bf16.mxu0 0
        %745 = vmatpush1.bf16.msra.mxu0 0
        %746 = vmatprep.subr.bf16.mxu0 0
        %747 = vmatpush1.bf16.msra.mxu0 0
        %748 = vmatprep.mubr.bf16.mxu0 0
        %749 = vmatmul.mubr.bf16.gmra.mrb[0].mxu0 %v603
        %v750 = vpop.f32.mrb[0].mxu0
        %v751 = vadd.f32 0.0, %v750
        %v752 = vpop.f32.mrb[0].mxu0
        %v753 = vadd.f32 0.0, %v752
        %v754 = vpop.f32.mrb[0].mxu0
        %v755 = vadd.f32 0.0, %v754
        %v756 = vpop.f32.mrb[0].mxu0
        %v757 = vadd.f32 0.0, %v756
        %758 = vdwg.mxu0
        %759 = vmatprep.subr.bf16.mxu0 %v584
        %760 = vmatpush1.bf16.msra.mxu0 %v583
        %761 = vmatprep.subr.bf16.mxu0 %v628
        %762 = vmatpush1.bf16.msra.mxu0 %v625
        %763 = vmatprep.subr.bf16.mxu0 0
        %764 = vmatpush1.bf16.msra.mxu0 0
        %765 = vmatprep.subr.bf16.mxu0 0
        %766 = vmatpush1.bf16.msra.mxu0 0
        %767 = vmatprep.subr.bf16.mxu0 0
        %768 = vmatpush1.bf16.msra.mxu0 0
        %769 = vmatprep.subr.bf16.mxu0 0
        %770 = vmatpush1.bf16.msra.mxu0 0
        %771 = vmatprep.subr.bf16.mxu0 0
        %772 = vmatpush1.bf16.msra.mxu0 0
        %773 = vmatprep.subr.bf16.mxu0 0
        %774 = vmatpush1.bf16.msra.mxu0 0
        %775 = vmatprep.subr.bf16.mxu0 0
        %776 = vmatpush1.bf16.msra.mxu0 0
        %777 = vmatprep.subr.bf16.mxu0 0
        %778 = vmatpush1.bf16.msra.mxu0 0
        %779 = vmatprep.subr.bf16.mxu0 0
        %780 = vmatpush1.bf16.msra.mxu0 0
        %781 = vmatprep.subr.bf16.mxu0 0
        %782 = vmatpush1.bf16.msra.mxu0 0
        %783 = vmatprep.subr.bf16.mxu0 0
        %784 = vmatpush1.bf16.msra.mxu0 0
        %785 = vmatprep.subr.bf16.mxu0 0
        %786 = vmatpush1.bf16.msra.mxu0 0
        %787 = vmatprep.subr.bf16.mxu0 0
        %788 = vmatpush1.bf16.msra.mxu0 0
        %789 = vmatprep.subr.bf16.mxu0 0
        %790 = vmatpush1.bf16.msra.mxu0 0
        %791 = vmatprep.mubr.bf16.mxu0 0
        %792 = vmatmul.mubr.bf16.gmra.mrb[0].mxu0 %v603
        %v793 = vpop.f32.mrb[0].mxu0
        %v794 = vadd.f32 0.0, %v793
        %v795 = vpop.f32.mrb[0].mxu0
        %v796 = vadd.f32 0.0, %v795
        %v797 = vpop.f32.mrb[0].mxu0
        %v798 = vadd.f32 0.0, %v797
        %v799 = vpop.f32.mrb[0].mxu0
        %v800 = vadd.f32 0.0, %v799
        %801 = vdwg.mxu0
        %v804 = vunpack.c.l.b16 %v487
        %v805 = vunpack.c.l.b16 %v488
        %v806 = vpack.c.b16 %v805, %v804
        %v823 = vunpack.c.l.b16 %v489
        %v824 = vunpack.c.h.b16 %v489
        %v825 = vunpack.c.l.b16 %v490
        %v826 = vunpack.c.h.b16 %v490
        %v827 = vunpack.c.l.b16 %v491
        %v828 = vunpack.c.h.b16 %v491
        %v829 = vunpack.c.l.b16 %v492
        %v830 = vunpack.c.h.b16 %v492
        %v831 = vunpack.c.l.b16 %v493
        %v832 = vunpack.c.h.b16 %v493
        %v833 = vunpack.c.l.b16 %v494
        %v834 = vunpack.c.h.b16 %v494
        %v835 = vunpack.c.l.b16 %v495
        %v836 = vunpack.c.h.b16 %v495
        %v837 = vunpack.c.l.b16 %v496
        %v838 = vunpack.c.h.b16 %v496
        %v839 = vunpack.c.l.b16 %v497
        %v840 = vunpack.c.h.b16 %v497
        %v841 = vunpack.c.l.b16 %v498
        %v842 = vunpack.c.h.b16 %v498
        %v843 = vunpack.c.l.b16 %v499
        %v844 = vunpack.c.h.b16 %v499
        %v845 = vunpack.c.l.b16 %v500
        %v846 = vunpack.c.h.b16 %v500
        %v847 = vunpack.c.l.b16 %v501
        %v848 = vunpack.c.h.b16 %v501
        %v849 = vunpack.c.l.b16 %v502
        %v850 = vunpack.c.h.b16 %v502
        %v851 = vunpack.c.l.b16 %v503
        %v852 = vunpack.c.h.b16 %v503
        %v853 = vunpack.c.l.b16 %v504
        %v854 = vunpack.c.h.b16 %v504
        %v855 = vpack.c.b16 %v831, %v823
        %v856 = vpack.c.b16 %v832, %v824
        %v857 = vpack.c.b16 %v833, %v825
        %v858 = vpack.c.b16 %v834, %v826
        %v859 = vpack.c.b16 %v835, %v827
        %v860 = vpack.c.b16 %v836, %v828
        %v861 = vpack.c.b16 %v837, %v829
        %v862 = vpack.c.b16 %v838, %v830
        %v863 = vpack.c.b16 %v847, %v839
        %v864 = vpack.c.b16 %v848, %v840
        %v865 = vpack.c.b16 %v849, %v841
        %v866 = vpack.c.b16 %v850, %v842
        %v867 = vpack.c.b16 %v851, %v843
        %v868 = vpack.c.b16 %v852, %v844
        %v869 = vpack.c.b16 %v853, %v845
        %v870 = vpack.c.b16 %v854, %v846
        %v880 = vsel %vm601, %v806, 0
        %v883 = vsel %vm605, %v863, 0
        %v886 = vsel %vm605, %v864, 0
        %v889 = vsel %vm605, %v865, 0
        %v892 = vsel %vm605, %v866, 0
        %v895 = vsel %vm605, %v867, 0
        %v898 = vsel %vm605, %v868, 0
        %v901 = vsel %vm605, %v869, 0
        %v904 = vsel %vm605, %v870, 0
        %906 = vmatprep.subr.bf16.mxu0 %v856
        %907 = vmatpush1.bf16.msra.mxu0 %v855
        %908 = vmatprep.subr.bf16.mxu0 %v886
        %909 = vmatpush1.bf16.msra.mxu0 %v883
        %910 = vmatprep.subr.bf16.mxu0 0
        %911 = vmatpush1.bf16.msra.mxu0 0
        %912 = vmatprep.subr.bf16.mxu0 0
        %913 = vmatpush1.bf16.msra.mxu0 0
        %914 = vmatprep.subr.bf16.mxu0 0
        %915 = vmatpush1.bf16.msra.mxu0 0
        %916 = vmatprep.subr.bf16.mxu0 0
        %917 = vmatpush1.bf16.msra.mxu0 0
        %918 = vmatprep.subr.bf16.mxu0 0
        %919 = vmatpush1.bf16.msra.mxu0 0
        %920 = vmatprep.subr.bf16.mxu0 0
        %921 = vmatpush1.bf16.msra.mxu0 0
        %922 = vmatprep.subr.bf16.mxu0 0
        %923 = vmatpush1.bf16.msra.mxu0 0
        %924 = vmatprep.subr.bf16.mxu0 0
        %925 = vmatpush1.bf16.msra.mxu0 0
        %926 = vmatprep.subr.bf16.mxu0 0
        %927 = vmatpush1.bf16.msra.mxu0 0
        %928 = vmatprep.subr.bf16.mxu0 0
        %929 = vmatpush1.bf16.msra.mxu0 0
        %930 = vmatprep.subr.bf16.mxu0 0
        %931 = vmatpush1.bf16.msra.mxu0 0
        %932 = vmatprep.subr.bf16.mxu0 0
        %933 = vmatpush1.bf16.msra.mxu0 0
        %934 = vmatprep.subr.bf16.mxu0 0
        %935 = vmatpush1.bf16.msra.mxu0 0
        %936 = vmatprep.subr.bf16.mxu0 0
        %937 = vmatpush1.bf16.msra.mxu0 0
        %938 = vmatprep.mubr.bf16.mxu0 0
        %939 = vmatmul.mubr.bf16.gmra.mrb[0].mxu0 %v880
        %v940 = vpop.f32.mrb[0].mxu0
        %v941 = vadd.f32 %v665, %v940
        %v942 = vpop.f32.mrb[0].mxu0
        %v943 = vadd.f32 %v667, %v942
        %v944 = vpop.f32.mrb[0].mxu0
        %v945 = vadd.f32 %v669, %v944
        %v946 = vpop.f32.mrb[0].mxu0
        %v947 = vadd.f32 %v671, %v946
        %948 = vdwg.mxu0
        %949 = vmatprep.subr.bf16.mxu0 %v858
        %950 = vmatpush1.bf16.msra.mxu0 %v857
        %951 = vmatprep.subr.bf16.mxu0 %v892
        %952 = vmatpush1.bf16.msra.mxu0 %v889
        %953 = vmatprep.subr.bf16.mxu0 0
        %954 = vmatpush1.bf16.msra.mxu0 0
        %955 = vmatprep.subr.bf16.mxu0 0
        %956 = vmatpush1.bf16.msra.mxu0 0
        %957 = vmatprep.subr.bf16.mxu0 0
        %958 = vmatpush1.bf16.msra.mxu0 0
        %959 = vmatprep.subr.bf16.mxu0 0
        %960 = vmatpush1.bf16.msra.mxu0 0
        %961 = vmatprep.subr.bf16.mxu0 0
        %962 = vmatpush1.bf16.msra.mxu0 0
        %963 = vmatprep.subr.bf16.mxu0 0
        %964 = vmatpush1.bf16.msra.mxu0 0
        %965 = vmatprep.subr.bf16.mxu0 0
        %966 = vmatpush1.bf16.msra.mxu0 0
        %967 = vmatprep.subr.bf16.mxu0 0
        %968 = vmatpush1.bf16.msra.mxu0 0
        %969 = vmatprep.subr.bf16.mxu0 0
        %970 = vmatpush1.bf16.msra.mxu0 0
        %971 = vmatprep.subr.bf16.mxu0 0
        %972 = vmatpush1.bf16.msra.mxu0 0
        %973 = vmatprep.subr.bf16.mxu0 0
        %974 = vmatpush1.bf16.msra.mxu0 0
        %975 = vmatprep.subr.bf16.mxu0 0
        %976 = vmatpush1.bf16.msra.mxu0 0
        %977 = vmatprep.subr.bf16.mxu0 0
        %978 = vmatpush1.bf16.msra.mxu0 0
        %979 = vmatprep.subr.bf16.mxu0 0
        %980 = vmatpush1.bf16.msra.mxu0 0
        %981 = vmatprep.mubr.bf16.mxu0 0
        %982 = vmatmul.mubr.bf16.gmra.mrb[0].mxu0 %v880
        %v983 = vpop.f32.mrb[0].mxu0
        %v984 = vadd.f32 %v708, %v983
        %v985 = vpop.f32.mrb[0].mxu0
        %v986 = vadd.f32 %v710, %v985
        %v987 = vpop.f32.mrb[0].mxu0
        %v988 = vadd.f32 %v712, %v987
        %v989 = vpop.f32.mrb[0].mxu0
        %v990 = vadd.f32 %v714, %v989
        %991 = vdwg.mxu0
        %992 = vmatprep.subr.bf16.mxu0 %v860
        %993 = vmatpush1.bf16.msra.mxu0 %v859
        %994 = vmatprep.subr.bf16.mxu0 %v898
        %995 = vmatpush1.bf16.msra.mxu0 %v895
        %996 = vmatprep.subr.bf16.mxu0 0
        %997 = vmatpush1.bf16.msra.mxu0 0
        %998 = vmatprep.subr.bf16.mxu0 0
        %999 = vmatpush1.bf16.msra.mxu0 0
        %1000 = vmatprep.subr.bf16.mxu0 0
        %1001 = vmatpush1.bf16.msra.mxu0 0
        %1002 = vmatprep.subr.bf16.mxu0 0
        %1003 = vmatpush1.bf16.msra.mxu0 0
        %1004 = vmatprep.subr.bf16.mxu0 0
        %1005 = vmatpush1.bf16.msra.mxu0 0
        %1006 = vmatprep.subr.bf16.mxu0 0
        %1007 = vmatpush1.bf16.msra.mxu0 0
        %1008 = vmatprep.subr.bf16.mxu0 0
        %1009 = vmatpush1.bf16.msra.mxu0 0
        %1010 = vmatprep.subr.bf16.mxu0 0
        %1011 = vmatpush1.bf16.msra.mxu0 0
        %1012 = vmatprep.subr.bf16.mxu0 0
        %1013 = vmatpush1.bf16.msra.mxu0 0
        %1014 = vmatprep.subr.bf16.mxu0 0
        %1015 = vmatpush1.bf16.msra.mxu0 0
        %1016 = vmatprep.subr.bf16.mxu0 0
        %1017 = vmatpush1.bf16.msra.mxu0 0
        %1018 = vmatprep.subr.bf16.mxu0 0
        %1019 = vmatpush1.bf16.msra.mxu0 0
        %1020 = vmatprep.subr.bf16.mxu0 0
        %1021 = vmatpush1.bf16.msra.mxu0 0
        %1022 = vmatprep.subr.bf16.mxu0 0
        %1023 = vmatpush1.bf16.msra.mxu0 0
        %1024 = vmatprep.mubr.bf16.mxu0 0
        %1025 = vmatmul.mubr.bf16.gmra.mrb[0].mxu0 %v880
        %v1026 = vpop.f32.mrb[0].mxu0
        %v1027 = vadd.f32 %v751, %v1026
        %v1028 = vpop.f32.mrb[0].mxu0
        %v1029 = vadd.f32 %v753, %v1028
        %v1030 = vpop.f32.mrb[0].mxu0
        %v1031 = vadd.f32 %v755, %v1030
        %v1032 = vpop.f32.mrb[0].mxu0
        %v1033 = vadd.f32 %v757, %v1032
        %1034 = vdwg.mxu0
        %1035 = vmatprep.subr.bf16.mxu0 %v862
        %1036 = vmatpush1.bf16.msra.mxu0 %v861
        %1037 = vmatprep.subr.bf16.mxu0 %v904
        %1038 = vmatpush1.bf16.msra.mxu0 %v901
        %1039 = vmatprep.subr.bf16.mxu0 0
        %1040 = vmatpush1.bf16.msra.mxu0 0
        %1041 = vmatprep.subr.bf16.mxu0 0
        %1042 = vmatpush1.bf16.msra.mxu0 0
        %1043 = vmatprep.subr.bf16.mxu0 0
        %1044 = vmatpush1.bf16.msra.mxu0 0
        %1045 = vmatprep.subr.bf16.mxu0 0
        %1046 = vmatpush1.bf16.msra.mxu0 0
        %1047 = vmatprep.subr.bf16.mxu0 0
        %1048 = vmatpush1.bf16.msra.mxu0 0
        %1049 = vmatprep.subr.bf16.mxu0 0
        %1050 = vmatpush1.bf16.msra.mxu0 0
        %1051 = vmatprep.subr.bf16.mxu0 0
        %1052 = vmatpush1.bf16.msra.mxu0 0
        %1053 = vmatprep.subr.bf16.mxu0 0
        %1054 = vmatpush1.bf16.msra.mxu0 0
        %1055 = vmatprep.subr.bf16.mxu0 0
        %1056 = vmatpush1.bf16.msra.mxu0 0
        %1057 = vmatprep.subr.bf16.mxu0 0
        %1058 = vmatpush1.bf16.msra.mxu0 0
        %1059 = vmatprep.subr.bf16.mxu0 0
        %1060 = vmatpush1.bf16.msra.mxu0 0
        %1061 = vmatprep.subr.bf16.mxu0 0
        %1062 = vmatpush1.bf16.msra.mxu0 0
        %1063 = vmatprep.subr.bf16.mxu0 0
        %1064 = vmatpush1.bf16.msra.mxu0 0
        %1065 = vmatprep.subr.bf16.mxu0 0
        %1066 = vmatpush1.bf16.msra.mxu0 0
        %1067 = vmatprep.mubr.bf16.mxu0 0
        %1068 = vmatmul.mubr.bf16.gmra.mrb[0].mxu0 %v880
        %v1069 = vpop.f32.mrb[0].mxu0
        %v1070 = vadd.f32 %v794, %v1069
        %v1071 = vpop.f32.mrb[0].mxu0
        %v1072 = vadd.f32 %v796, %v1071
        %v1073 = vpop.f32.mrb[0].mxu0
        %v1074 = vadd.f32 %v798, %v1073
        %v1075 = vpop.f32.mrb[0].mxu0
        %v1076 = vadd.f32 %v800, %v1075
        %1077 = vdwg.mxu0
        %v1078 = vld [vmem:[%s480 + $0x4] sm:$0xf]
        %s1079 = scalar_lea.vmem [#allocation3], 256
        %v1080 = vld [vmem:[%s1079] sm:$0xff]
        %v1081 = vld [vmem:[%s1079 + $0x8] sm:$0xff]
        %v1082 = vld [vmem:[%s1079 + $0x10] sm:$0xff]
        %v1083 = vld [vmem:[%s1079 + $0x18] sm:$0xff]
        %v1084 = vld [vmem:[%s1079 + $0x20] sm:$0xff]
        %v1085 = vld [vmem:[%s1079 + $0x28] sm:$0xff]
        %v1086 = vld [vmem:[%s1079 + $0x30] sm:$0xff]
        %v1087 = vld [vmem:[%s1079 + $0x38] sm:$0xff]
        %v1088 = vld [vmem:[%s1079 + $0x40] sm:$0xff]
        %v1089 = vld [vmem:[%s1079 + $0x48] sm:$0xff]
        %v1090 = vld [vmem:[%s1079 + $0x50] sm:$0xff]
        %v1091 = vld [vmem:[%s1079 + $0x58] sm:$0xff]
        %v1092 = vld [vmem:[%s1079 + $0x60] sm:$0x33]
        %v1093 = vld [vmem:[%s1079 + $0x68] sm:$0x33]
        %v1094 = vld [vmem:[%s1079 + $0x70] sm:$0x33]
        %v1095 = vld [vmem:[%s1079 + $0x78] sm:$0x33]
        %v1097 = vunpack.c.l.b16 %v1078
        %v1098 = vpack.c.b16 %v1097, %v804
        %v1100 = vshrl.u32 %v1098, 16
        %v1102 = vshll.u32 %v1098, 16
        %v1104 = vrot.slane %v1102, 1
        %v1105 = vor.u32 %v1100, %v1104
        %v1122 = vunpack.c.l.b16 %v1080
        %v1123 = vunpack.c.h.b16 %v1080
        %v1124 = vunpack.c.l.b16 %v1081
        %v1125 = vunpack.c.h.b16 %v1081
        %v1126 = vunpack.c.l.b16 %v1082
        %v1127 = vunpack.c.h.b16 %v1082
        %v1128 = vunpack.c.l.b16 %v1083
        %v1129 = vunpack.c.h.b16 %v1083
        %v1130 = vunpack.c.l.b16 %v1084
        %v1131 = vunpack.c.h.b16 %v1084
        %v1132 = vunpack.c.l.b16 %v1085
        %v1133 = vunpack.c.h.b16 %v1085
        %v1134 = vunpack.c.l.b16 %v1086
        %v1135 = vunpack.c.h.b16 %v1086
        %v1136 = vunpack.c.l.b16 %v1087
        %v1137 = vunpack.c.h.b16 %v1087
        %v1138 = vunpack.c.l.b16 %v1088
        %v1139 = vunpack.c.h.b16 %v1088
        %v1140 = vunpack.c.l.b16 %v1089
        %v1141 = vunpack.c.h.b16 %v1089
        %v1142 = vunpack.c.l.b16 %v1090
        %v1143 = vunpack.c.h.b16 %v1090
        %v1144 = vunpack.c.l.b16 %v1091
        %v1145 = vunpack.c.h.b16 %v1091
        %v1146 = vunpack.c.l.b16 %v1092
        %v1147 = vunpack.c.h.b16 %v1092
        %v1148 = vunpack.c.l.b16 %v1093
        %v1149 = vunpack.c.h.b16 %v1093
        %v1150 = vunpack.c.l.b16 %v1094
        %v1151 = vunpack.c.h.b16 %v1094
        %v1152 = vunpack.c.l.b16 %v1095
        %v1153 = vunpack.c.h.b16 %v1095
        %v1154 = vpack.c.b16 %v1130, %v1122
        %v1155 = vpack.c.b16 %v1131, %v1123
        %v1156 = vpack.c.b16 %v1132, %v1124
        %v1157 = vpack.c.b16 %v1133, %v1125
        %v1158 = vpack.c.b16 %v1134, %v1126
        %v1159 = vpack.c.b16 %v1135, %v1127
        %v1160 = vpack.c.b16 %v1136, %v1128
        %v1161 = vpack.c.b16 %v1137, %v1129
        %v1162 = vpack.c.b16 %v1146, %v1138
        %v1163 = vpack.c.b16 %v1147, %v1139
        %v1164 = vpack.c.b16 %v1148, %v1140
        %v1165 = vpack.c.b16 %v1149, %v1141
        %v1166 = vpack.c.b16 %v1150, %v1142
        %v1167 = vpack.c.b16 %v1151, %v1143
        %v1168 = vpack.c.b16 %v1152, %v1144
        %v1169 = vpack.c.b16 %v1153, %v1145
        %v1179 = vsel %vm601, %v1105, 0
        %v1182 = vsel %vm605, %v1162, 0
        %v1185 = vsel %vm605, %v1163, 0
        %v1188 = vsel %vm605, %v1164, 0
        %v1191 = vsel %vm605, %v1165, 0
        %v1194 = vsel %vm605, %v1166, 0
        %v1197 = vsel %vm605, %v1167, 0
        %v1200 = vsel %vm605, %v1168, 0
        %v1203 = vsel %vm605, %v1169, 0
        %1205 = vmatprep.subr.bf16.mxu0 %v1155
        %1206 = vmatpush1.bf16.msra.mxu0 %v1154
        %1207 = vmatprep.subr.bf16.mxu0 %v1185
        %1208 = vmatpush1.bf16.msra.mxu0 %v1182
        %1209 = vmatprep.subr.bf16.mxu0 0
        %1210 = vmatpush1.bf16.msra.mxu0 0
        %1211 = vmatprep.subr.bf16.mxu0 0
        %1212 = vmatpush1.bf16.msra.mxu0 0
        %1213 = vmatprep.subr.bf16.mxu0 0
        %1214 = vmatpush1.bf16.msra.mxu0 0
        %1215 = vmatprep.subr.bf16.mxu0 0
        %1216 = vmatpush1.bf16.msra.mxu0 0
        %1217 = vmatprep.subr.bf16.mxu0 0
        %1218 = vmatpush1.bf16.msra.mxu0 0
        %1219 = vmatprep.subr.bf16.mxu0 0
        %1220 = vmatpush1.bf16.msra.mxu0 0
        %1221 = vmatprep.subr.bf16.mxu0 0
        %1222 = vmatpush1.bf16.msra.mxu0 0
        %1223 = vmatprep.subr.bf16.mxu0 0
        %1224 = vmatpush1.bf16.msra.mxu0 0
        %1225 = vmatprep.subr.bf16.mxu0 0
        %1226 = vmatpush1.bf16.msra.mxu0 0
        %1227 = vmatprep.subr.bf16.mxu0 0
        %1228 = vmatpush1.bf16.msra.mxu0 0
        %1229 = vmatprep.subr.bf16.mxu0 0
        %1230 = vmatpush1.bf16.msra.mxu0 0
        %1231 = vmatprep.subr.bf16.mxu0 0
        %1232 = vmatpush1.bf16.msra.mxu0 0
        %1233 = vmatprep.subr.bf16.mxu0 0
        %1234 = vmatpush1.bf16.msra.mxu0 0
        %1235 = vmatprep.subr.bf16.mxu0 0
        %1236 = vmatpush1.bf16.msra.mxu0 0
        %1237 = vmatprep.mubr.bf16.mxu0 0
        %1238 = vmatmul.mubr.bf16.gmra.mrb[0].mxu0 %v1179
        %v1239 = vpop.f32.mrb[0].mxu0
        %v1240 = vadd.f32 0.0, %v1239
        %v1241 = vpop.f32.mrb[0].mxu0
        %v1242 = vadd.f32 0.0, %v1241
        %v1243 = vpop.f32.mrb[0].mxu0
        %v1244 = vadd.f32 0.0, %v1243
        %v1245 = vpop.f32.mrb[0].mxu0
        %v1246 = vadd.f32 0.0, %v1245
        %1247 = vdwg.mxu0
        %1248 = vmatprep.subr.bf16.mxu0 %v1157
        %1249 = vmatpush1.bf16.msra.mxu0 %v1156
        %1250 = vmatprep.subr.bf16.mxu0 %v1191
        %1251 = vmatpush1.bf16.msra.mxu0 %v1188
        %1252 = vmatprep.subr.bf16.mxu0 0
        %1253 = vmatpush1.bf16.msra.mxu0 0
        %1254 = vmatprep.subr.bf16.mxu0 0
        %1255 = vmatpush1.bf16.msra.mxu0 0
        %1256 = vmatprep.subr.bf16.mxu0 0
        %1257 = vmatpush1.bf16.msra.mxu0 0
        %1258 = vmatprep.subr.bf16.mxu0 0
        %1259 = vmatpush1.bf16.msra.mxu0 0
        %1260 = vmatprep.subr.bf16.mxu0 0
        %1261 = vmatpush1.bf16.msra.mxu0 0
        %1262 = vmatprep.subr.bf16.mxu0 0
        %1263 = vmatpush1.bf16.msra.mxu0 0
        %1264 = vmatprep.subr.bf16.mxu0 0
        %1265 = vmatpush1.bf16.msra.mxu0 0
        %1266 = vmatprep.subr.bf16.mxu0 0
        %1267 = vmatpush1.bf16.msra.mxu0 0
        %1268 = vmatprep.subr.bf16.mxu0 0
        %1269 = vmatpush1.bf16.msra.mxu0 0
        %1270 = vmatprep.subr.bf16.mxu0 0
        %1271 = vmatpush1.bf16.msra.mxu0 0
        %1272 = vmatprep.subr.bf16.mxu0 0
        %1273 = vmatpush1.bf16.msra.mxu0 0
        %1274 = vmatprep.subr.bf16.mxu0 0
        %1275 = vmatpush1.bf16.msra.mxu0 0
        %1276 = vmatprep.subr.bf16.mxu0 0
        %1277 = vmatpush1.bf16.msra.mxu0 0
        %1278 = vmatprep.subr.bf16.mxu0 0
        %1279 = vmatpush1.bf16.msra.mxu0 0
        %1280 = vmatprep.mubr.bf16.mxu0 0
        %1281 = vmatmul.mubr.bf16.gmra.mrb[0].mxu0 %v1179
        %v1282 = vpop.f32.mrb[0].mxu0
        %v1283 = vadd.f32 0.0, %v1282
        %v1284 = vpop.f32.mrb[0].mxu0
        %v1285 = vadd.f32 0.0, %v1284
        %v1286 = vpop.f32.mrb[0].mxu0
        %v1287 = vadd.f32 0.0, %v1286
        %v1288 = vpop.f32.mrb[0].mxu0
        %v1289 = vadd.f32 0.0, %v1288
        %1290 = vdwg.mxu0
        %1291 = vmatprep.subr.bf16.mxu0 %v1159
        %1292 = vmatpush1.bf16.msra.mxu0 %v1158
        %1293 = vmatprep.subr.bf16.mxu0 %v1197
        %1294 = vmatpush1.bf16.msra.mxu0 %v1194
        %1295 = vmatprep.subr.bf16.mxu0 0
        %1296 = vmatpush1.bf16.msra.mxu0 0
        %1297 = vmatprep.subr.bf16.mxu0 0
        %1298 = vmatpush1.bf16.msra.mxu0 0
        %1299 = vmatprep.subr.bf16.mxu0 0
        %1300 = vmatpush1.bf16.msra.mxu0 0
        %1301 = vmatprep.subr.bf16.mxu0 0
        %1302 = vmatpush1.bf16.msra.mxu0 0
        %1303 = vmatprep.subr.bf16.mxu0 0
        %1304 = vmatpush1.bf16.msra.mxu0 0
        %1305 = vmatprep.subr.bf16.mxu0 0
        %1306 = vmatpush1.bf16.msra.mxu0 0
        %1307 = vmatprep.subr.bf16.mxu0 0
        %1308 = vmatpush1.bf16.msra.mxu0 0
        %1309 = vmatprep.subr.bf16.mxu0 0
        %1310 = vmatpush1.bf16.msra.mxu0 0
        %1311 = vmatprep.subr.bf16.mxu0 0
        %1312 = vmatpush1.bf16.msra.mxu0 0
        %1313 = vmatprep.subr.bf16.mxu0 0
        %1314 = vmatpush1.bf16.msra.mxu0 0
        %1315 = vmatprep.subr.bf16.mxu0 0
        %1316 = vmatpush1.bf16.msra.mxu0 0
        %1317 = vmatprep.subr.bf16.mxu0 0
        %1318 = vmatpush1.bf16.msra.mxu0 0
        %1319 = vmatprep.subr.bf16.mxu0 0
        %1320 = vmatpush1.bf16.msra.mxu0 0
        %1321 = vmatprep.subr.bf16.mxu0 0
        %1322 = vmatpush1.bf16.msra.mxu0 0
        %1323 = vmatprep.mubr.bf16.mxu0 0
        %1324 = vmatmul.mubr.bf16.gmra.mrb[0].mxu0 %v1179
        %v1325 = vpop.f32.mrb[0].mxu0
        %v1326 = vadd.f32 0.0, %v1325
        %v1327 = vpop.f32.mrb[0].mxu0
        %v1328 = vadd.f32 0.0, %v1327
        %v1329 = vpop.f32.mrb[0].mxu0
        %v1330 = vadd.f32 0.0, %v1329
        %v1331 = vpop.f32.mrb[0].mxu0
        %v1332 = vadd.f32 0.0, %v1331
        %1333 = vdwg.mxu0
        %1334 = vmatprep.subr.bf16.mxu0 %v1161
        %1335 = vmatpush1.bf16.msra.mxu0 %v1160
        %1336 = vmatprep.subr.bf16.mxu0 %v1203
        %1337 = vmatpush1.bf16.msra.mxu0 %v1200
        %1338 = vmatprep.subr.bf16.mxu0 0
        %1339 = vmatpush1.bf16.msra.mxu0 0
        %1340 = vmatprep.subr.bf16.mxu0 0
        %1341 = vmatpush1.bf16.msra.mxu0 0
        %1342 = vmatprep.subr.bf16.mxu0 0
        %1343 = vmatpush1.bf16.msra.mxu0 0
        %1344 = vmatprep.subr.bf16.mxu0 0
        %1345 = vmatpush1.bf16.msra.mxu0 0
        %1346 = vmatprep.subr.bf16.mxu0 0
        %1347 = vmatpush1.bf16.msra.mxu0 0
        %1348 = vmatprep.subr.bf16.mxu0 0
        %1349 = vmatpush1.bf16.msra.mxu0 0
        %1350 = vmatprep.subr.bf16.mxu0 0
        %1351 = vmatpush1.bf16.msra.mxu0 0
        %1352 = vmatprep.subr.bf16.mxu0 0
        %1353 = vmatpush1.bf16.msra.mxu0 0
        %1354 = vmatprep.subr.bf16.mxu0 0
        %1355 = vmatpush1.bf16.msra.mxu0 0
        %1356 = vmatprep.subr.bf16.mxu0 0
        %1357 = vmatpush1.bf16.msra.mxu0 0
        %1358 = vmatprep.subr.bf16.mxu0 0
        %1359 = vmatpush1.bf16.msra.mxu0 0
        %1360 = vmatprep.subr.bf16.mxu0 0
        %1361 = vmatpush1.bf16.msra.mxu0 0
        %1362 = vmatprep.subr.bf16.mxu0 0
        %1363 = vmatpush1.bf16.msra.mxu0 0
        %1364 = vmatprep.subr.bf16.mxu0 0
        %1365 = vmatpush1.bf16.msra.mxu0 0
        %1366 = vmatprep.mubr.bf16.mxu0 0
        %1367 = vmatmul.mubr.bf16.gmra.mrb[0].mxu0 %v1179
        %v1368 = vpop.f32.mrb[0].mxu0
        %v1369 = vadd.f32 0.0, %v1368
        %v1370 = vpop.f32.mrb[0].mxu0
        %v1371 = vadd.f32 0.0, %v1370
        %v1372 = vpop.f32.mrb[0].mxu0
        %v1373 = vadd.f32 0.0, %v1372
        %v1374 = vpop.f32.mrb[0].mxu0
        %v1375 = vadd.f32 0.0, %v1374
        %1376 = vdwg.mxu0
        %v1377 = vadd.f32 %v941, %v1240
        %v1378 = vadd.f32 %v943, %v1242
        %v1379 = vadd.f32 %v984, %v1283
        %v1380 = vadd.f32 %v986, %v1285
        %v1381 = vadd.f32 %v1027, %v1326
        %v1382 = vadd.f32 %v1029, %v1328
        %v1383 = vadd.f32 %v1070, %v1369
        %v1384 = vadd.f32 %v1072, %v1371
        %v1385 = vadd.f32 %v945, %v1244
        %v1386 = vadd.f32 %v947, %v1246
        %v1387 = vadd.f32 %v988, %v1287
        %v1388 = vadd.f32 %v990, %v1289
        %v1389 = vadd.f32 %v1031, %v1330
        %v1390 = vadd.f32 %v1033, %v1332
        %v1391 = vadd.f32 %v1074, %v1373
        %v1392 = vadd.f32 %v1076, %v1375
        %v1393 = vld [vmem:[#allocation6] sm:$0xff]
        %v1395 = vlaneseq
        %v1396 = vshrl.u32 %v1395, 7
        %v1397 = vsub.s32 0, %v1396
        %v1398 = vrot.slane %v1393, %v1397
        %v1399 = vlaneseq
        %v1400 = vshrl.u32 %v1399, 7
        %v1401 = vsub.s32 1, %v1400
        %v1402 = vrot.slane %v1393, %v1401
        %v1403 = vlaneseq
        %v1404 = vshrl.u32 %v1403, 7
        %v1405 = vsub.s32 2, %v1404
        %v1406 = vrot.slane %v1393, %v1405
        %v1407 = vlaneseq
        %v1408 = vshrl.u32 %v1407, 7
        %v1409 = vsub.s32 3, %v1408
        %v1410 = vrot.slane %v1393, %v1409
        %v1411 = vlaneseq
        %v1412 = vshrl.u32 %v1411, 7
        %v1413 = vsub.s32 4, %v1412
        %v1414 = vrot.slane %v1393, %v1413
        %v1415 = vlaneseq
        %v1416 = vshrl.u32 %v1415, 7
        %v1417 = vsub.s32 5, %v1416
        %v1418 = vrot.slane %v1393, %v1417
        %v1419 = vlaneseq
        %v1420 = vshrl.u32 %v1419, 7
        %v1421 = vsub.s32 6, %v1420
        %v1422 = vrot.slane %v1393, %v1421
        %v1423 = vlaneseq
        %v1424 = vshrl.u32 %v1423, 7
        %v1425 = vsub.s32 7, %v1424
        %v1426 = vrot.slane %v1393, %v1425
        %v1435 = vadd.f32 %v1377, %v1398
        %v1436 = vadd.f32 %v1378, %v1402
        %v1437 = vadd.f32 %v1379, %v1406
        %v1438 = vadd.f32 %v1380, %v1410
        %v1439 = vadd.f32 %v1381, %v1414
        %v1440 = vadd.f32 %v1382, %v1418
        %v1441 = vadd.f32 %v1383, %v1422
        %v1442 = vadd.f32 %v1384, %v1426
        %v1443 = vadd.f32 %v1385, %v1398
        %v1444 = vadd.f32 %v1386, %v1402
        %v1445 = vadd.f32 %v1387, %v1406
        %v1446 = vadd.f32 %v1388, %v1410
        %v1447 = vadd.f32 %v1389, %v1414
        %v1448 = vadd.f32 %v1390, %v1418
        %v1449 = vadd.f32 %v1391, %v1422
        %v1450 = vadd.f32 %v1392, %v1426
        %v1451 = vmax.f32 %v1435, 0.0
        %v1452 = vmax.f32 %v1436, 0.0
        %v1453 = vmax.f32 %v1437, 0.0
        %v1454 = vmax.f32 %v1438, 0.0
        %v1455 = vmax.f32 %v1439, 0.0
        %v1456 = vmax.f32 %v1440, 0.0
        %v1457 = vmax.f32 %v1441, 0.0
        %v1458 = vmax.f32 %v1442, 0.0
        %v1459 = vmax.f32 %v1443, 0.0
        %v1460 = vmax.f32 %v1444, 0.0
        %v1461 = vmax.f32 %v1445, 0.0
        %v1462 = vmax.f32 %v1446, 0.0
        %v1463 = vmax.f32 %v1447, 0.0
        %v1464 = vmax.f32 %v1448, 0.0
        %v1465 = vmax.f32 %v1449, 0.0
        %v1466 = vmax.f32 %v1450, 0.0
        %v1467 = vmax.f32 %v1451, %v1455
        %v1468 = vmax.f32 %v1452, %v1456
        %v1469 = vmax.f32 %v1453, %v1457
        %v1470 = vmax.f32 %v1454, %v1458
        %v1471 = vmax.f32 %v1459, %v1463
        %v1472 = vmax.f32 %v1460, %v1464
        %v1473 = vmax.f32 %v1461, %v1465
        %v1474 = vmax.f32 %v1462, %v1466
        %1475 = vst [vmem:[#allocation2] sm:$0xff] 0.0
        %1476 = vst [vmem:[#allocation2 + $0x8] sm:$0xff] 0.0
        %1477 = vst [vmem:[#allocation2 + $0x10] sm:$0xff] 0.0
        %1478 = vst [vmem:[#allocation2 + $0x18] sm:$0xff] 0.0
        %1479 = vst [vmem:[#allocation2 + $0x20] sm:$0x1] 0.0
        %1480 = vst [vmem:[#allocation2 + $0x28] sm:$0x1] 0.0
        %1481 = vst [vmem:[#allocation2 + $0x30] sm:$0x1] 0.0
        %1482 = vst [vmem:[#allocation2 + $0x38] sm:$0x1] 0.0
        %v1487 = vrot.slane %v1467, 1
        %v1488 = vrot.slane %v1468, 1
        %v1489 = vrot.slane %v1469, 1
        %v1490 = vrot.slane %v1470, 1
        %v1495 = vmax.f32 %v1467, %v1487
        %v1496 = vmax.f32 %v1468, %v1488
        %v1497 = vmax.f32 %v1469, %v1489
        %v1498 = vmax.f32 %v1470, %v1490
        %v1503 = vcombine.low %v1495, %v1496
        %v1504 = vcombine.low %v1497, %v1498
        %v1506 = vunpack.c.l.s4 1966171168
        %v1507 = vunpack.c.0.s8 %v1506
        %v1508 = vlaneseq
        %v1509 = vshrl.u32 %v1508, 7
        %v1510 = vsub.s32 %v1507, %v1509
        %v1511 = vrot.slane %v1503, %v1510
        %v1513 = vunpack.c.l.s4 1966171168
        %v1514 = vunpack.c.0.s8 %v1513
        %v1515 = vlaneseq
        %v1516 = vshrl.u32 %v1515, 7
        %v1517 = vsub.s32 %v1514, %v1516
        %v1518 = vrot.slane %v1504, %v1517
        %v1519 = vcombine.low %v1511, %v1518
        %v1521 = vunpack.c.l.s4 1966171168
        %v1522 = vunpack.c.0.s8 %v1521
        %v1523 = vlaneseq
        %v1524 = vshrl.u32 %v1523, 7
        %v1525 = vsub.s32 %v1522, %v1524
        %v1526 = vrot.slane %v1519, %v1525
        %v1528 = vlaneseq
        %vm1529 = vcmp.ge.s32.totalorder %v1528, 0
        %vm1530 = vcmp.lt.s32.totalorder %v1528, 512
        %vm1531 = vmand %vm1529, %vm1530
        %s1532 = scalar_lea.vmem [#allocation2], 1
        %1533 = vst.msk [vmem:[%s1532] ss:$8 sm:$0xf] %vm1531, %v1526
        %1534 = vst.msk [vmem:[%s1532] ss:$8 sm:$0x0] %vm1531, %v1526
        %v1535 = vcombine.high %v1526, %v1526
        %s1537 = scalar_lea.vmem [#allocation2], 2
        %1538 = vst.msk [vmem:[%s1537] ss:$8 sm:$0xf] %vm1531, %v1535
        %1539 = vst.msk [vmem:[%s1537] ss:$8 sm:$0x0] %vm1531, %v1535
        %v1540 = vcombine.high %v1495, %v1496
        %v1541 = vcombine.high %v1497, %v1498
        %v1543 = vunpack.c.l.s4 1966171168
        %v1544 = vunpack.c.0.s8 %v1543
        %v1545 = vlaneseq
        %v1546 = vshrl.u32 %v1545, 7
        %v1547 = vsub.s32 %v1544, %v1546
        %v1548 = vrot.slane %v1540, %v1547
        %v1550 = vunpack.c.l.s4 1966171168
        %v1551 = vunpack.c.0.s8 %v1550
        %v1552 = vlaneseq
        %v1553 = vshrl.u32 %v1552, 7
        %v1554 = vsub.s32 %v1551, %v1553
        %v1555 = vrot.slane %v1541, %v1554
        %v1556 = vcombine.low %v1548, %v1555
        %v1558 = vunpack.c.l.s4 1966171168
        %v1559 = vunpack.c.0.s8 %v1558
        %v1560 = vlaneseq
        %v1561 = vshrl.u32 %v1560, 7
        %v1562 = vsub.s32 %v1559, %v1561
        %v1563 = vrot.slane %v1556, %v1562
        %s1565 = scalar_lea.vmem [#allocation2], 3
        %1566 = vst.msk [vmem:[%s1565] ss:$8 sm:$0xf] %vm1531, %v1563
        %1567 = vst.msk [vmem:[%s1565] ss:$8 sm:$0x0] %vm1531, %v1563
        %v1568 = vcombine.high %v1563, %v1563
        %s1570 = scalar_lea.vmem [#allocation2], 4
        %1571 = vst.msk [vmem:[%s1570] ss:$8 sm:$0xf] %vm1531, %v1568
        %1572 = vst.msk [vmem:[%s1570] ss:$8 sm:$0x0] %vm1531, %v1568
        %v1577 = vrot.slane %v1471, 1
        %v1578 = vrot.slane %v1472, 1
        %v1579 = vrot.slane %v1473, 1
        %v1580 = vrot.slane %v1474, 1
        %v1585 = vmax.f32 %v1471, %v1577
        %v1586 = vmax.f32 %v1472, %v1578
        %v1587 = vmax.f32 %v1473, %v1579
        %v1588 = vmax.f32 %v1474, %v1580
        %v1593 = vcombine.low %v1585, %v1586
        %v1594 = vcombine.low %v1587, %v1588
        %v1596 = vunpack.c.l.s4 1966171168
        %v1597 = vunpack.c.0.s8 %v1596
        %v1598 = vlaneseq
        %v1599 = vshrl.u32 %v1598, 7
        %v1600 = vsub.s32 %v1597, %v1599
        %v1601 = vrot.slane %v1593, %v1600
        %v1603 = vunpack.c.l.s4 1966171168
        %v1604 = vunpack.c.0.s8 %v1603
        %v1605 = vlaneseq
        %v1606 = vshrl.u32 %v1605, 7
        %v1607 = vsub.s32 %v1604, %v1606
        %v1608 = vrot.slane %v1594, %v1607
        %v1609 = vcombine.low %v1601, %v1608
        %v1611 = vunpack.c.l.s4 1966171168
        %v1612 = vunpack.c.0.s8 %v1611
        %v1613 = vlaneseq
        %v1614 = vshrl.u32 %v1613, 7
        %v1615 = vsub.s32 %v1612, %v1614
        %v1616 = vrot.slane %v1609, %v1615
        %s1618 = scalar_lea.vmem [#allocation2], 5
        %1619 = vst.msk [vmem:[%s1618] ss:$8 sm:$0xf] %vm1531, %v1616
        %1620 = vst.msk [vmem:[%s1618] ss:$8 sm:$0x0] %vm1531, %v1616
        %v1621 = vcombine.high %v1616, %v1616
        %s1623 = scalar_lea.vmem [#allocation2], 6
        %1624 = vst.msk [vmem:[%s1623] ss:$8 sm:$0xf] %vm1531, %v1621
        %1625 = vst.msk [vmem:[%s1623] ss:$8 sm:$0x0] %vm1531, %v1621
        %v1626 = vcombine.high %v1585, %v1586
        %v1627 = vcombine.high %v1587, %v1588
        %v1629 = vunpack.c.l.s4 1966171168
        %v1630 = vunpack.c.0.s8 %v1629
        %v1631 = vlaneseq
        %v1632 = vshrl.u32 %v1631, 7
        %v1633 = vsub.s32 %v1630, %v1632
        %v1634 = vrot.slane %v1626, %v1633
        %v1636 = vunpack.c.l.s4 1966171168
        %v1637 = vunpack.c.0.s8 %v1636
        %v1638 = vlaneseq
        %v1639 = vshrl.u32 %v1638, 7
        %v1640 = vsub.s32 %v1637, %v1639
        %v1641 = vrot.slane %v1627, %v1640
        %v1642 = vcombine.low %v1634, %v1641
        %v1644 = vunpack.c.l.s4 1966171168
        %v1645 = vunpack.c.0.s8 %v1644
        %v1646 = vlaneseq
        %v1647 = vshrl.u32 %v1646, 7
        %v1648 = vsub.s32 %v1645, %v1647
        %v1649 = vrot.slane %v1642, %v1648
        %s1651 = scalar_lea.vmem [#allocation2], 7
        %1652 = vst.msk [vmem:[%s1651] ss:$8 sm:$0xf] %vm1531, %v1649
        %1653 = vst.msk [vmem:[%s1651] ss:$8 sm:$0x0] %vm1531, %v1649
        %v1654 = vld [vmem:[#allocation2] sm:$0x7f]
        %v1655 = vld [vmem:[#allocation2 + $0x8] sm:$0x7f]
        %v1656 = vld [vmem:[#allocation2 + $0x10] sm:$0x7f]
        %v1657 = vld [vmem:[#allocation2 + $0x18] sm:$0x7f]
        %v1658 = vpack.c.bf16 %v1654, %v1654
        %v1659 = vpack.c.bf16 %v1655, %v1655
        %v1660 = vpack.c.bf16 %v1656, %v1656
        %v1661 = vpack.c.bf16 %v1657, %v1657
        %v1662 = vld [vmem:[#allocation8] sm:$0xff]
        %v1663 = vld [vmem:[#allocation8 + $0x8] sm:$0xff]
        %v1664 = vld [vmem:[#allocation8 + $0x10] sm:$0xff]
        %v1665 = vld [vmem:[#allocation8 + $0x18] sm:$0xf]
        %v1666 = vld [vmem:[#allocation8 + $0x1c] sm:$0xff]
        %v1667 = vld [vmem:[#allocation8 + $0x24] sm:$0xff]
        %v1668 = vld [vmem:[#allocation8 + $0x2c] sm:$0xff]
        %v1669 = vld [vmem:[#allocation8 + $0x34] sm:$0xf]
        %v1670 = vld [vmem:[#allocation8 + $0x38] sm:$0xff]
        %v1671 = vld [vmem:[#allocation8 + $0x40] sm:$0xff]
        %v1672 = vld [vmem:[#allocation8 + $0x48] sm:$0xff]
        %v1673 = vld [vmem:[#allocation8 + $0x50] sm:$0xf]
        %v1674 = vld [vmem:[#allocation8 + $0x54] sm:$0xff]
        %v1675 = vld [vmem:[#allocation8 + $0x5c] sm:$0xff]
        %v1676 = vld [vmem:[#allocation8 + $0x64] sm:$0xff]
        %v1677 = vld [vmem:[#allocation8 + $0x6c] sm:$0xf]
        %v1678 = vld [vmem:[#allocation8 + $0x70] sm:$0xff]
        %v1679 = vld [vmem:[#allocation8 + $0x78] sm:$0xff]
        %v1680 = vld [vmem:[#allocation8 + $0x80] sm:$0xff]
        %v1681 = vld [vmem:[#allocation8 + $0x88] sm:$0xf]
        %v1682 = vld [vmem:[#allocation8 + $0x8c] sm:$0xff]
        %v1683 = vld [vmem:[#allocation8 + $0x94] sm:$0xff]
        %v1684 = vld [vmem:[#allocation8 + $0x9c] sm:$0xff]
        %v1685 = vld [vmem:[#allocation8 + $0xa4] sm:$0xf]
        %v1686 = vld [vmem:[#allocation8 + $0xa8] sm:$0xff]
        %v1687 = vld [vmem:[#allocation8 + $0xb0] sm:$0xff]
        %v1688 = vld [vmem:[#allocation8 + $0xb8] sm:$0xff]
        %v1689 = vld [vmem:[#allocation8 + $0xc0] sm:$0xf]
        %v1690 = vld [vmem:[#allocation8 + $0xc4] sm:$0xff]
        %v1691 = vld [vmem:[#allocation8 + $0xcc] sm:$0xff]
        %v1692 = vld [vmem:[#allocation8 + $0xd4] sm:$0xff]
        %v1693 = vld [vmem:[#allocation8 + $0xdc] sm:$0xf]
        %v1694 = vld [vmem:[#allocation8 + $0xe0] sm:$0xff]
        %v1695 = vld [vmem:[#allocation8 + $0xe8] sm:$0xff]
        %v1696 = vld [vmem:[#allocation8 + $0xf0] sm:$0xff]
        %v1697 = vld [vmem:[#allocation8 + $0xf8] sm:$0xf]
        %v1698 = vld [vmem:[#allocation8 + $0xfc] sm:$0xff]
        %v1699 = vld [vmem:[#allocation8 + $0x104] sm:$0xff]
        %v1700 = vld [vmem:[#allocation8 + $0x10c] sm:$0xff]
        %v1701 = vld [vmem:[#allocation8 + $0x114] sm:$0xf]
        %v1702 = vld [vmem:[#allocation8 + $0x118] sm:$0xff]
        %v1703 = vld [vmem:[#allocation8 + $0x120] sm:$0xff]
        %v1704 = vld [vmem:[#allocation8 + $0x128] sm:$0xff]
        %v1705 = vld [vmem:[#allocation8 + $0x130] sm:$0xf]
        %v1706 = vld [vmem:[#allocation8 + $0x134] sm:$0xff]
        %v1707 = vld [vmem:[#allocation8 + $0x13c] sm:$0xff]
        %v1708 = vld [vmem:[#allocation8 + $0x144] sm:$0xff]
        %v1709 = vld [vmem:[#allocation8 + $0x14c] sm:$0xf]
        %v1710 = vld [vmem:[#allocation8 + $0x150] sm:$0xff]
        %v1711 = vld [vmem:[#allocation8 + $0x158] sm:$0xff]
        %v1712 = vld [vmem:[#allocation8 + $0x160] sm:$0xff]
        %v1713 = vld [vmem:[#allocation8 + $0x168] sm:$0xf]
        %v1714 = vld [vmem:[#allocation8 + $0x16c] sm:$0xff]
        %v1715 = vld [vmem:[#allocation8 + $0x174] sm:$0xff]
        %v1716 = vld [vmem:[#allocation8 + $0x17c] sm:$0xff]
        %v1717 = vld [vmem:[#allocation8 + $0x184] sm:$0xf]
        %v1718 = vld [vmem:[#allocation8 + $0x188] sm:$0xff]
        %v1719 = vld [vmem:[#allocation8 + $0x190] sm:$0xff]
        %v1720 = vld [vmem:[#allocation8 + $0x198] sm:$0xff]
        %v1721 = vld [vmem:[#allocation8 + $0x1a0] sm:$0xf]
        %v1722 = vld [vmem:[#allocation8 + $0x1a4] sm:$0xff]
        %v1723 = vld [vmem:[#allocation8 + $0x1ac] sm:$0xff]
        %v1724 = vld [vmem:[#allocation8 + $0x1b4] sm:$0xff]
        %v1725 = vld [vmem:[#allocation8 + $0x1bc] sm:$0xf]
        %v1726 = vld [vmem:[#allocation8 + $0x1c0] sm:$0xff]
        %v1727 = vld [vmem:[#allocation8 + $0x1c8] sm:$0xff]
        %v1728 = vld [vmem:[#allocation8 + $0x1d0] sm:$0xff]
        %v1729 = vld [vmem:[#allocation8 + $0x1d8] sm:$0xf]
        %v1730 = vld [vmem:[#allocation8 + $0x1dc] sm:$0xff]
        %v1731 = vld [vmem:[#allocation8 + $0x1e4] sm:$0xff]
        %v1732 = vld [vmem:[#allocation8 + $0x1ec] sm:$0xff]
        %v1733 = vld [vmem:[#allocation8 + $0x1f4] sm:$0xf]
        %v1734 = vld [vmem:[#allocation8 + $0x1f8] sm:$0xff]
        %v1735 = vld [vmem:[#allocation8 + $0x200] sm:$0xff]
        %v1736 = vld [vmem:[#allocation8 + $0x208] sm:$0xff]
        %v1737 = vld [vmem:[#allocation8 + $0x210] sm:$0xf]
        %v1738 = vld [vmem:[#allocation8 + $0x214] sm:$0xff]
        %v1739 = vld [vmem:[#allocation8 + $0x21c] sm:$0xff]
        %v1740 = vld [vmem:[#allocation8 + $0x224] sm:$0xff]
        %v1741 = vld [vmem:[#allocation8 + $0x22c] sm:$0xf]
        %v1742 = vld [vmem:[#allocation8 + $0x230] sm:$0xff]
        %v1743 = vld [vmem:[#allocation8 + $0x238] sm:$0xff]
        %v1744 = vld [vmem:[#allocation8 + $0x240] sm:$0xff]
        %v1745 = vld [vmem:[#allocation8 + $0x248] sm:$0xf]
        %v1746 = vld [vmem:[#allocation8 + $0x24c] sm:$0xff]
        %v1747 = vld [vmem:[#allocation8 + $0x254] sm:$0xff]
        %v1748 = vld [vmem:[#allocation8 + $0x25c] sm:$0xff]
        %v1749 = vld [vmem:[#allocation8 + $0x264] sm:$0xf]
        %v1750 = vld [vmem:[#allocation8 + $0x268] sm:$0xff]
        %v1751 = vld [vmem:[#allocation8 + $0x270] sm:$0xff]
        %v1752 = vld [vmem:[#allocation8 + $0x278] sm:$0xff]
        %v1753 = vld [vmem:[#allocation8 + $0x280] sm:$0xf]
        %v1754 = vld [vmem:[#allocation8 + $0x284] sm:$0xff]
        %v1755 = vld [vmem:[#allocation8 + $0x28c] sm:$0xff]
        %v1756 = vld [vmem:[#allocation8 + $0x294] sm:$0xff]
        %v1757 = vld [vmem:[#allocation8 + $0x29c] sm:$0xf]
        %v1758 = vld [vmem:[#allocation8 + $0x2a0] sm:$0xff]
        %v1759 = vld [vmem:[#allocation8 + $0x2a8] sm:$0xff]
        %v1760 = vld [vmem:[#allocation8 + $0x2b0] sm:$0xff]
        %v1761 = vld [vmem:[#allocation8 + $0x2b8] sm:$0xf]
        %v1762 = vld [vmem:[#allocation8 + $0x2bc] sm:$0xff]
        %v1763 = vld [vmem:[#allocation8 + $0x2c4] sm:$0xff]
        %v1764 = vld [vmem:[#allocation8 + $0x2cc] sm:$0xff]
        %v1765 = vld [vmem:[#allocation8 + $0x2d4] sm:$0xf]
        %v1766 = vld [vmem:[#allocation8 + $0x2d8] sm:$0xff]
        %v1767 = vld [vmem:[#allocation8 + $0x2e0] sm:$0xff]
        %v1768 = vld [vmem:[#allocation8 + $0x2e8] sm:$0xff]
        %v1769 = vld [vmem:[#allocation8 + $0x2f0] sm:$0xf]
        %v1770 = vld [vmem:[#allocation8 + $0x2f4] sm:$0xff]
        %v1771 = vld [vmem:[#allocation8 + $0x2fc] sm:$0xff]
        %v1772 = vld [vmem:[#allocation8 + $0x304] sm:$0xff]
        %v1773 = vld [vmem:[#allocation8 + $0x30c] sm:$0xf]
        %v1774 = vld [vmem:[#allocation8 + $0x310] sm:$0xff]
        %v1775 = vld [vmem:[#allocation8 + $0x318] sm:$0xff]
        %v1776 = vld [vmem:[#allocation8 + $0x320] sm:$0xff]
        %v1777 = vld [vmem:[#allocation8 + $0x328] sm:$0xf]
        %v1778 = vld [vmem:[#allocation8 + $0x32c] sm:$0xff]
        %v1779 = vld [vmem:[#allocation8 + $0x334] sm:$0xff]
        %v1780 = vld [vmem:[#allocation8 + $0x33c] sm:$0xff]
        %v1781 = vld [vmem:[#allocation8 + $0x344] sm:$0xf]
        %v1782 = vld [vmem:[#allocation8 + $0x348] sm:$0xff]
        %v1783 = vld [vmem:[#allocation8 + $0x350] sm:$0xff]
        %v1784 = vld [vmem:[#allocation8 + $0x358] sm:$0xff]
        %v1785 = vld [vmem:[#allocation8 + $0x360] sm:$0xf]
        %v1786 = vld [vmem:[#allocation8 + $0x364] sm:$0xff]
        %v1787 = vld [vmem:[#allocation8 + $0x36c] sm:$0xff]
        %v1788 = vld [vmem:[#allocation8 + $0x374] sm:$0xff]
        %v1789 = vld [vmem:[#allocation8 + $0x37c] sm:$0xf]
        %v1790 = vld [vmem:[#allocation8 + $0x380] sm:$0xff]
        %v1791 = vld [vmem:[#allocation8 + $0x388] sm:$0xff]
        %v1792 = vld [vmem:[#allocation8 + $0x390] sm:$0xff]
        %v1793 = vld [vmem:[#allocation8 + $0x398] sm:$0xf]
        %v1794 = vld [vmem:[#allocation8 + $0x39c] sm:$0xff]
        %v1795 = vld [vmem:[#allocation8 + $0x3a4] sm:$0xff]
        %v1796 = vld [vmem:[#allocation8 + $0x3ac] sm:$0xff]
        %v1797 = vld [vmem:[#allocation8 + $0x3b4] sm:$0xf]
        %v1798 = vld [vmem:[#allocation8 + $0x3b8] sm:$0xff]
        %v1799 = vld [vmem:[#allocation8 + $0x3c0] sm:$0xff]
        %v1800 = vld [vmem:[#allocation8 + $0x3c8] sm:$0xff]
        %v1801 = vld [vmem:[#allocation8 + $0x3d0] sm:$0xf]
        %v1802 = vld [vmem:[#allocation8 + $0x3d4] sm:$0xff]
        %v1803 = vld [vmem:[#allocation8 + $0x3dc] sm:$0xff]
        %v1804 = vld [vmem:[#allocation8 + $0x3e4] sm:$0xff]
        %v1805 = vld [vmem:[#allocation8 + $0x3ec] sm:$0xf]
        %v1806 = vld [vmem:[#allocation8 + $0x3f0] sm:$0xff]
        %v1807 = vld [vmem:[#allocation8 + $0x3f8] sm:$0xff]
        %v1808 = vld [vmem:[#allocation8 + $0x400] sm:$0xff]
        %v1809 = vld [vmem:[#allocation8 + $0x408] sm:$0xf]
        %v1810 = vld [vmem:[#allocation8 + $0x40c] sm:$0xff]
        %v1811 = vld [vmem:[#allocation8 + $0x414] sm:$0xff]
        %v1812 = vld [vmem:[#allocation8 + $0x41c] sm:$0xff]
        %v1813 = vld [vmem:[#allocation8 + $0x424] sm:$0xf]
        %v1814 = vld [vmem:[#allocation8 + $0x428] sm:$0xff]
        %v1815 = vld [vmem:[#allocation8 + $0x430] sm:$0xff]
        %v1816 = vld [vmem:[#allocation8 + $0x438] sm:$0xff]
        %v1817 = vld [vmem:[#allocation8 + $0x440] sm:$0xf]
        %v1818 = vld [vmem:[#allocation8 + $0x444] sm:$0xff]
        %v1819 = vld [vmem:[#allocation8 + $0x44c] sm:$0xff]
        %v1820 = vld [vmem:[#allocation8 + $0x454] sm:$0xff]
        %v1821 = vld [vmem:[#allocation8 + $0x45c] sm:$0xf]
        %v1822 = vld [vmem:[#allocation8 + $0x460] sm:$0xff]
        %v1823 = vld [vmem:[#allocation8 + $0x468] sm:$0xff]
        %v1824 = vld [vmem:[#allocation8 + $0x470] sm:$0xff]
        %v1825 = vld [vmem:[#allocation8 + $0x478] sm:$0xf]
        %v1826 = vld [vmem:[#allocation8 + $0x47c] sm:$0xff]
        %v1827 = vld [vmem:[#allocation8 + $0x484] sm:$0xff]
        %v1828 = vld [vmem:[#allocation8 + $0x48c] sm:$0xff]
        %v1829 = vld [vmem:[#allocation8 + $0x494] sm:$0xf]
        %v1830 = vld [vmem:[#allocation8 + $0x498] sm:$0xff]
        %v1831 = vld [vmem:[#allocation8 + $0x4a0] sm:$0xff]
        %v1832 = vld [vmem:[#allocation8 + $0x4a8] sm:$0xff]
        %v1833 = vld [vmem:[#allocation8 + $0x4b0] sm:$0xf]
        %v1834 = vld [vmem:[#allocation8 + $0x4b4] sm:$0xff]
        %v1835 = vld [vmem:[#allocation8 + $0x4bc] sm:$0xff]
        %v1836 = vld [vmem:[#allocation8 + $0x4c4] sm:$0xff]
        %v1837 = vld [vmem:[#allocation8 + $0x4cc] sm:$0xf]
        %v1838 = vld [vmem:[#allocation8 + $0x4d0] sm:$0xff]
        %v1839 = vld [vmem:[#allocation8 + $0x4d8] sm:$0xff]
        %v1840 = vld [vmem:[#allocation8 + $0x4e0] sm:$0xff]
        %v1841 = vld [vmem:[#allocation8 + $0x4e8] sm:$0xf]
        %v1842 = vld [vmem:[#allocation8 + $0x4ec] sm:$0xff]
        %v1843 = vld [vmem:[#allocation8 + $0x4f4] sm:$0xff]
        %v1844 = vld [vmem:[#allocation8 + $0x4fc] sm:$0xff]
        %v1845 = vld [vmem:[#allocation8 + $0x504] sm:$0xf]
        %v1846 = vld [vmem:[#allocation8 + $0x508] sm:$0xff]
        %v1847 = vld [vmem:[#allocation8 + $0x510] sm:$0xff]
        %v1848 = vld [vmem:[#allocation8 + $0x518] sm:$0xff]
        %v1849 = vld [vmem:[#allocation8 + $0x520] sm:$0xf]
        %v1850 = vld [vmem:[#allocation8 + $0x524] sm:$0xff]
        %v1851 = vld [vmem:[#allocation8 + $0x52c] sm:$0xff]
        %v1852 = vld [vmem:[#allocation8 + $0x534] sm:$0xff]
        %v1853 = vld [vmem:[#allocation8 + $0x53c] sm:$0xf]
        %v1854 = vld [vmem:[#allocation8 + $0x540] sm:$0xff]
        %v1855 = vld [vmem:[#allocation8 + $0x548] sm:$0xff]
        %v1856 = vld [vmem:[#allocation8 + $0x550] sm:$0xff]
        %v1857 = vld [vmem:[#allocation8 + $0x558] sm:$0xf]
        %v1858 = vld [vmem:[#allocation8 + $0x55c] sm:$0xff]
        %v1859 = vld [vmem:[#allocation8 + $0x564] sm:$0xff]
        %v1860 = vld [vmem:[#allocation8 + $0x56c] sm:$0xff]
        %v1861 = vld [vmem:[#allocation8 + $0x574] sm:$0xf]
        %v1862 = vld [vmem:[#allocation8 + $0x578] sm:$0xff]
        %v1863 = vld [vmem:[#allocation8 + $0x580] sm:$0xff]
        %v1864 = vld [vmem:[#allocation8 + $0x588] sm:$0xff]
        %v1865 = vld [vmem:[#allocation8 + $0x590] sm:$0xf]
        %v1866 = vld [vmem:[#allocation8 + $0x594] sm:$0xff]
        %v1867 = vld [vmem:[#allocation8 + $0x59c] sm:$0xff]
        %v1868 = vld [vmem:[#allocation8 + $0x5a4] sm:$0xff]
        %v1869 = vld [vmem:[#allocation8 + $0x5ac] sm:$0xf]
        %v1870 = vld [vmem:[#allocation8 + $0x5b0] sm:$0xff]
        %v1871 = vld [vmem:[#allocation8 + $0x5b8] sm:$0xff]
        %v1872 = vld [vmem:[#allocation8 + $0x5c0] sm:$0xff]
        %v1873 = vld [vmem:[#allocation8 + $0x5c8] sm:$0xf]
        %v1874 = vld [vmem:[#allocation8 + $0x5cc] sm:$0xff]
        %v1875 = vld [vmem:[#allocation8 + $0x5d4] sm:$0xff]
        %v1876 = vld [vmem:[#allocation8 + $0x5dc] sm:$0xff]
        %v1877 = vld [vmem:[#allocation8 + $0x5e4] sm:$0xf]
        %v1878 = vld [vmem:[#allocation8 + $0x5e8] sm:$0xff]
        %v1879 = vld [vmem:[#allocation8 + $0x5f0] sm:$0xff]
        %v1880 = vld [vmem:[#allocation8 + $0x5f8] sm:$0xff]
        %v1881 = vld [vmem:[#allocation8 + $0x600] sm:$0xf]
        %v1882 = vld [vmem:[#allocation8 + $0x604] sm:$0xff]
        %v1883 = vld [vmem:[#allocation8 + $0x60c] sm:$0xff]
        %v1884 = vld [vmem:[#allocation8 + $0x614] sm:$0xff]
        %v1885 = vld [vmem:[#allocation8 + $0x61c] sm:$0xf]
        %v1886 = vld [vmem:[#allocation8 + $0x620] sm:$0xff]
        %v1887 = vld [vmem:[#allocation8 + $0x628] sm:$0xff]
        %v1888 = vld [vmem:[#allocation8 + $0x630] sm:$0xff]
        %v1889 = vld [vmem:[#allocation8 + $0x638] sm:$0xf]
        %v1890 = vld [vmem:[#allocation8 + $0x63c] sm:$0xff]
        %v1891 = vld [vmem:[#allocation8 + $0x644] sm:$0xff]
        %v1892 = vld [vmem:[#allocation8 + $0x64c] sm:$0xff]
        %v1893 = vld [vmem:[#allocation8 + $0x654] sm:$0xf]
        %v1894 = vld [vmem:[#allocation8 + $0x658] sm:$0xff]
        %v1895 = vld [vmem:[#allocation8 + $0x660] sm:$0xff]
        %v1896 = vld [vmem:[#allocation8 + $0x668] sm:$0xff]
        %v1897 = vld [vmem:[#allocation8 + $0x670] sm:$0xf]
        %v1898 = vld [vmem:[#allocation8 + $0x674] sm:$0xff]
        %v1899 = vld [vmem:[#allocation8 + $0x67c] sm:$0xff]
        %v1900 = vld [vmem:[#allocation8 + $0x684] sm:$0xff]
        %v1901 = vld [vmem:[#allocation8 + $0x68c] sm:$0xf]
        %v1902 = vld [vmem:[#allocation8 + $0x690] sm:$0xff]
        %v1903 = vld [vmem:[#allocation8 + $0x698] sm:$0xff]
        %v1904 = vld [vmem:[#allocation8 + $0x6a0] sm:$0xff]
        %v1905 = vld [vmem:[#allocation8 + $0x6a8] sm:$0xf]
        %v1906 = vld [vmem:[#allocation8 + $0x6ac] sm:$0xff]
        %v1907 = vld [vmem:[#allocation8 + $0x6b4] sm:$0xff]
        %v1908 = vld [vmem:[#allocation8 + $0x6bc] sm:$0xff]
        %v1909 = vld [vmem:[#allocation8 + $0x6c4] sm:$0xf]
        %v1910 = vld [vmem:[#allocation8 + $0x6c8] sm:$0xff]
        %v1911 = vld [vmem:[#allocation8 + $0x6d0] sm:$0xff]
        %v1912 = vld [vmem:[#allocation8 + $0x6d8] sm:$0xff]
        %v1913 = vld [vmem:[#allocation8 + $0x6e0] sm:$0xf]
        %v1914 = vld [vmem:[#allocation8 + $0x6e4] sm:$0xff]
        %v1915 = vld [vmem:[#allocation8 + $0x6ec] sm:$0xff]
        %v1916 = vld [vmem:[#allocation8 + $0x6f4] sm:$0xff]
        %v1917 = vld [vmem:[#allocation8 + $0x6fc] sm:$0xf]
        %v1918 = vld [vmem:[#allocation2] sm:$0xfe]
        %v1919 = vld [vmem:[#allocation2 + $0x8] sm:$0xfe]
        %v1920 = vld [vmem:[#allocation2 + $0x10] sm:$0xfe]
        %v1921 = vld [vmem:[#allocation2 + $0x18] sm:$0xfe]
        %v1922 = vpack.c.bf16 %v1918, %v1918
        %v1923 = vpack.c.bf16 %v1919, %v1919
        %v1924 = vpack.c.bf16 %v1920, %v1920
        %v1925 = vpack.c.bf16 %v1921, %v1921
        %s1926 = scalar_lea.vmem [#allocation8], 1792
        %v1927 = vld [vmem:[%s1926] sm:$0xff]
        %v1928 = vld [vmem:[%s1926 + $0x8] sm:$0xff]
        %v1929 = vld [vmem:[%s1926 + $0x10] sm:$0xff]
        %v1930 = vld [vmem:[%s1926 + $0x18] sm:$0xf]
        %v1931 = vld [vmem:[%s1926 + $0x1c] sm:$0xff]
        %v1932 = vld [vmem:[%s1926 + $0x24] sm:$0xff]
        %v1933 = vld [vmem:[%s1926 + $0x2c] sm:$0xff]
        %v1934 = vld [vmem:[%s1926 + $0x34] sm:$0xf]
        %v1935 = vld [vmem:[%s1926 + $0x38] sm:$0xff]
        %v1936 = vld [vmem:[%s1926 + $0x40] sm:$0xff]
        %v1937 = vld [vmem:[%s1926 + $0x48] sm:$0xff]
        %v1938 = vld [vmem:[%s1926 + $0x50] sm:$0xf]
        %v1939 = vld [vmem:[%s1926 + $0x54] sm:$0xff]
        %v1940 = vld [vmem:[%s1926 + $0x5c] sm:$0xff]
        %v1941 = vld [vmem:[%s1926 + $0x64] sm:$0xff]
        %v1942 = vld [vmem:[%s1926 + $0x6c] sm:$0xf]
        %v1943 = vld [vmem:[%s1926 + $0x70] sm:$0xff]
        %v1944 = vld [vmem:[%s1926 + $0x78] sm:$0xff]
        %v1945 = vld [vmem:[%s1926 + $0x80] sm:$0xff]
        %v1946 = vld [vmem:[%s1926 + $0x88] sm:$0xf]
        %v1947 = vld [vmem:[%s1926 + $0x8c] sm:$0xff]
        %v1948 = vld [vmem:[%s1926 + $0x94] sm:$0xff]
        %v1949 = vld [vmem:[%s1926 + $0x9c] sm:$0xff]
        %v1950 = vld [vmem:[%s1926 + $0xa4] sm:$0xf]
        %v1951 = vld [vmem:[%s1926 + $0xa8] sm:$0xff]
        %v1952 = vld [vmem:[%s1926 + $0xb0] sm:$0xff]
        %v1953 = vld [vmem:[%s1926 + $0xb8] sm:$0xff]
        %v1954 = vld [vmem:[%s1926 + $0xc0] sm:$0xf]
        %v1955 = vld [vmem:[%s1926 + $0xc4] sm:$0xff]
        %v1956 = vld [vmem:[%s1926 + $0xcc] sm:$0xff]
        %v1957 = vld [vmem:[%s1926 + $0xd4] sm:$0xff]
        %v1958 = vld [vmem:[%s1926 + $0xdc] sm:$0xf]
        %v1959 = vld [vmem:[%s1926 + $0xe0] sm:$0xff]
        %v1960 = vld [vmem:[%s1926 + $0xe8] sm:$0xff]
        %v1961 = vld [vmem:[%s1926 + $0xf0] sm:$0xff]
        %v1962 = vld [vmem:[%s1926 + $0xf8] sm:$0xf]
        %v1963 = vld [vmem:[%s1926 + $0xfc] sm:$0xff]
        %v1964 = vld [vmem:[%s1926 + $0x104] sm:$0xff]
        %v1965 = vld [vmem:[%s1926 + $0x10c] sm:$0xff]
        %v1966 = vld [vmem:[%s1926 + $0x114] sm:$0xf]
        %v1967 = vld [vmem:[%s1926 + $0x118] sm:$0xff]
        %v1968 = vld [vmem:[%s1926 + $0x120] sm:$0xff]
        %v1969 = vld [vmem:[%s1926 + $0x128] sm:$0xff]
        %v1970 = vld [vmem:[%s1926 + $0x130] sm:$0xf]
        %v1971 = vld [vmem:[%s1926 + $0x134] sm:$0xff]
        %v1972 = vld [vmem:[%s1926 + $0x13c] sm:$0xff]
        %v1973 = vld [vmem:[%s1926 + $0x144] sm:$0xff]
        %v1974 = vld [vmem:[%s1926 + $0x14c] sm:$0xf]
        %v1975 = vld [vmem:[%s1926 + $0x150] sm:$0xff]
        %v1976 = vld [vmem:[%s1926 + $0x158] sm:$0xff]
        %v1977 = vld [vmem:[%s1926 + $0x160] sm:$0xff]
        %v1978 = vld [vmem:[%s1926 + $0x168] sm:$0xf]
        %v1979 = vld [vmem:[%s1926 + $0x16c] sm:$0xff]
        %v1980 = vld [vmem:[%s1926 + $0x174] sm:$0xff]
        %v1981 = vld [vmem:[%s1926 + $0x17c] sm:$0xff]
        %v1982 = vld [vmem:[%s1926 + $0x184] sm:$0xf]
        %v1983 = vld [vmem:[%s1926 + $0x188] sm:$0xff]
        %v1984 = vld [vmem:[%s1926 + $0x190] sm:$0xff]
        %v1985 = vld [vmem:[%s1926 + $0x198] sm:$0xff]
        %v1986 = vld [vmem:[%s1926 + $0x1a0] sm:$0xf]
        %v1987 = vld [vmem:[%s1926 + $0x1a4] sm:$0xff]
        %v1988 = vld [vmem:[%s1926 + $0x1ac] sm:$0xff]
        %v1989 = vld [vmem:[%s1926 + $0x1b4] sm:$0xff]
        %v1990 = vld [vmem:[%s1926 + $0x1bc] sm:$0xf]
        %v1991 = vld [vmem:[%s1926 + $0x1c0] sm:$0xff]
        %v1992 = vld [vmem:[%s1926 + $0x1c8] sm:$0xff]
        %v1993 = vld [vmem:[%s1926 + $0x1d0] sm:$0xff]
        %v1994 = vld [vmem:[%s1926 + $0x1d8] sm:$0xf]
        %v1995 = vld [vmem:[%s1926 + $0x1dc] sm:$0xff]
        %v1996 = vld [vmem:[%s1926 + $0x1e4] sm:$0xff]
        %v1997 = vld [vmem:[%s1926 + $0x1ec] sm:$0xff]
        %v1998 = vld [vmem:[%s1926 + $0x1f4] sm:$0xf]
        %v1999 = vld [vmem:[%s1926 + $0x1f8] sm:$0xff]
        %v2000 = vld [vmem:[%s1926 + $0x200] sm:$0xff]
        %v2001 = vld [vmem:[%s1926 + $0x208] sm:$0xff]
        %v2002 = vld [vmem:[%s1926 + $0x210] sm:$0xf]
        %v2003 = vld [vmem:[%s1926 + $0x214] sm:$0xff]
        %v2004 = vld [vmem:[%s1926 + $0x21c] sm:$0xff]
        %v2005 = vld [vmem:[%s1926 + $0x224] sm:$0xff]
        %v2006 = vld [vmem:[%s1926 + $0x22c] sm:$0xf]
        %v2007 = vld [vmem:[%s1926 + $0x230] sm:$0xff]
        %v2008 = vld [vmem:[%s1926 + $0x238] sm:$0xff]
        %v2009 = vld [vmem:[%s1926 + $0x240] sm:$0xff]
        %v2010 = vld [vmem:[%s1926 + $0x248] sm:$0xf]
        %v2011 = vld [vmem:[%s1926 + $0x24c] sm:$0xff]
        %v2012 = vld [vmem:[%s1926 + $0x254] sm:$0xff]
        %v2013 = vld [vmem:[%s1926 + $0x25c] sm:$0xff]
        %v2014 = vld [vmem:[%s1926 + $0x264] sm:$0xf]
        %v2015 = vld [vmem:[%s1926 + $0x268] sm:$0xff]
        %v2016 = vld [vmem:[%s1926 + $0x270] sm:$0xff]
        %v2017 = vld [vmem:[%s1926 + $0x278] sm:$0xff]
        %v2018 = vld [vmem:[%s1926 + $0x280] sm:$0xf]
        %v2019 = vld [vmem:[%s1926 + $0x284] sm:$0xff]
        %v2020 = vld [vmem:[%s1926 + $0x28c] sm:$0xff]
        %v2021 = vld [vmem:[%s1926 + $0x294] sm:$0xff]
        %v2022 = vld [vmem:[%s1926 + $0x29c] sm:$0xf]
        %v2023 = vld [vmem:[%s1926 + $0x2a0] sm:$0xff]
        %v2024 = vld [vmem:[%s1926 + $0x2a8] sm:$0xff]
        %v2025 = vld [vmem:[%s1926 + $0x2b0] sm:$0xff]
        %v2026 = vld [vmem:[%s1926 + $0x2b8] sm:$0xf]
        %v2027 = vld [vmem:[%s1926 + $0x2bc] sm:$0xff]
        %v2028 = vld [vmem:[%s1926 + $0x2c4] sm:$0xff]
        %v2029 = vld [vmem:[%s1926 + $0x2cc] sm:$0xff]
        %v2030 = vld [vmem:[%s1926 + $0x2d4] sm:$0xf]
        %v2031 = vld [vmem:[%s1926 + $0x2d8] sm:$0xff]
        %v2032 = vld [vmem:[%s1926 + $0x2e0] sm:$0xff]
        %v2033 = vld [vmem:[%s1926 + $0x2e8] sm:$0xff]
        %v2034 = vld [vmem:[%s1926 + $0x2f0] sm:$0xf]
        %v2035 = vld [vmem:[%s1926 + $0x2f4] sm:$0xff]
        %v2036 = vld [vmem:[%s1926 + $0x2fc] sm:$0xff]
        %v2037 = vld [vmem:[%s1926 + $0x304] sm:$0xff]
        %v2038 = vld [vmem:[%s1926 + $0x30c] sm:$0xf]
        %v2039 = vld [vmem:[%s1926 + $0x310] sm:$0xff]
        %v2040 = vld [vmem:[%s1926 + $0x318] sm:$0xff]
        %v2041 = vld [vmem:[%s1926 + $0x320] sm:$0xff]
        %v2042 = vld [vmem:[%s1926 + $0x328] sm:$0xf]
        %v2043 = vld [vmem:[%s1926 + $0x32c] sm:$0xff]
        %v2044 = vld [vmem:[%s1926 + $0x334] sm:$0xff]
        %v2045 = vld [vmem:[%s1926 + $0x33c] sm:$0xff]
        %v2046 = vld [vmem:[%s1926 + $0x344] sm:$0xf]
        %v2047 = vld [vmem:[%s1926 + $0x348] sm:$0xff]
        %v2048 = vld [vmem:[%s1926 + $0x350] sm:$0xff]
        %v2049 = vld [vmem:[%s1926 + $0x358] sm:$0xff]
        %v2050 = vld [vmem:[%s1926 + $0x360] sm:$0xf]
        %v2051 = vld [vmem:[%s1926 + $0x364] sm:$0xff]
        %v2052 = vld [vmem:[%s1926 + $0x36c] sm:$0xff]
        %v2053 = vld [vmem:[%s1926 + $0x374] sm:$0xff]
        %v2054 = vld [vmem:[%s1926 + $0x37c] sm:$0xf]
        %v2055 = vld [vmem:[%s1926 + $0x380] sm:$0xff]
        %v2056 = vld [vmem:[%s1926 + $0x388] sm:$0xff]
        %v2057 = vld [vmem:[%s1926 + $0x390] sm:$0xff]
        %v2058 = vld [vmem:[%s1926 + $0x398] sm:$0xf]
        %v2059 = vld [vmem:[%s1926 + $0x39c] sm:$0xff]
        %v2060 = vld [vmem:[%s1926 + $0x3a4] sm:$0xff]
        %v2061 = vld [vmem:[%s1926 + $0x3ac] sm:$0xff]
        %v2062 = vld [vmem:[%s1926 + $0x3b4] sm:$0xf]
        %v2063 = vld [vmem:[%s1926 + $0x3b8] sm:$0xff]
        %v2064 = vld [vmem:[%s1926 + $0x3c0] sm:$0xff]
        %v2065 = vld [vmem:[%s1926 + $0x3c8] sm:$0xff]
        %v2066 = vld [vmem:[%s1926 + $0x3d0] sm:$0xf]
        %v2067 = vld [vmem:[%s1926 + $0x3d4] sm:$0xff]
        %v2068 = vld [vmem:[%s1926 + $0x3dc] sm:$0xff]
        %v2069 = vld [vmem:[%s1926 + $0x3e4] sm:$0xff]
        %v2070 = vld [vmem:[%s1926 + $0x3ec] sm:$0xf]
        %v2071 = vld [vmem:[%s1926 + $0x3f0] sm:$0xff]
        %v2072 = vld [vmem:[%s1926 + $0x3f8] sm:$0xff]
        %v2073 = vld [vmem:[%s1926 + $0x400] sm:$0xff]
        %v2074 = vld [vmem:[%s1926 + $0x408] sm:$0xf]
        %v2075 = vld [vmem:[%s1926 + $0x40c] sm:$0xff]
        %v2076 = vld [vmem:[%s1926 + $0x414] sm:$0xff]
        %v2077 = vld [vmem:[%s1926 + $0x41c] sm:$0xff]
        %v2078 = vld [vmem:[%s1926 + $0x424] sm:$0xf]
        %v2079 = vld [vmem:[%s1926 + $0x428] sm:$0xff]
        %v2080 = vld [vmem:[%s1926 + $0x430] sm:$0xff]
        %v2081 = vld [vmem:[%s1926 + $0x438] sm:$0xff]
        %v2082 = vld [vmem:[%s1926 + $0x440] sm:$0xf]
        %v2083 = vld [vmem:[%s1926 + $0x444] sm:$0xff]
        %v2084 = vld [vmem:[%s1926 + $0x44c] sm:$0xff]
        %v2085 = vld [vmem:[%s1926 + $0x454] sm:$0xff]
        %v2086 = vld [vmem:[%s1926 + $0x45c] sm:$0xf]
        %v2087 = vld [vmem:[%s1926 + $0x460] sm:$0xff]
        %v2088 = vld [vmem:[%s1926 + $0x468] sm:$0xff]
        %v2089 = vld [vmem:[%s1926 + $0x470] sm:$0xff]
        %v2090 = vld [vmem:[%s1926 + $0x478] sm:$0xf]
        %v2091 = vld [vmem:[%s1926 + $0x47c] sm:$0xff]
        %v2092 = vld [vmem:[%s1926 + $0x484] sm:$0xff]
        %v2093 = vld [vmem:[%s1926 + $0x48c] sm:$0xff]
        %v2094 = vld [vmem:[%s1926 + $0x494] sm:$0xf]
        %v2095 = vld [vmem:[%s1926 + $0x498] sm:$0xff]
        %v2096 = vld [vmem:[%s1926 + $0x4a0] sm:$0xff]
        %v2097 = vld [vmem:[%s1926 + $0x4a8] sm:$0xff]
        %v2098 = vld [vmem:[%s1926 + $0x4b0] sm:$0xf]
        %v2099 = vld [vmem:[%s1926 + $0x4b4] sm:$0xff]
        %v2100 = vld [vmem:[%s1926 + $0x4bc] sm:$0xff]
        %v2101 = vld [vmem:[%s1926 + $0x4c4] sm:$0xff]
        %v2102 = vld [vmem:[%s1926 + $0x4cc] sm:$0xf]
        %v2103 = vld [vmem:[%s1926 + $0x4d0] sm:$0xff]
        %v2104 = vld [vmem:[%s1926 + $0x4d8] sm:$0xff]
        %v2105 = vld [vmem:[%s1926 + $0x4e0] sm:$0xff]
        %v2106 = vld [vmem:[%s1926 + $0x4e8] sm:$0xf]
        %v2107 = vld [vmem:[%s1926 + $0x4ec] sm:$0xff]
        %v2108 = vld [vmem:[%s1926 + $0x4f4] sm:$0xff]
        %v2109 = vld [vmem:[%s1926 + $0x4fc] sm:$0xff]
        %v2110 = vld [vmem:[%s1926 + $0x504] sm:$0xf]
        %v2111 = vld [vmem:[%s1926 + $0x508] sm:$0xff]
        %v2112 = vld [vmem:[%s1926 + $0x510] sm:$0xff]
        %v2113 = vld [vmem:[%s1926 + $0x518] sm:$0xff]
        %v2114 = vld [vmem:[%s1926 + $0x520] sm:$0xf]
        %v2115 = vld [vmem:[%s1926 + $0x524] sm:$0xff]
        %v2116 = vld [vmem:[%s1926 + $0x52c] sm:$0xff]
        %v2117 = vld [vmem:[%s1926 + $0x534] sm:$0xff]
        %v2118 = vld [vmem:[%s1926 + $0x53c] sm:$0xf]
        %v2119 = vld [vmem:[%s1926 + $0x540] sm:$0xff]
        %v2120 = vld [vmem:[%s1926 + $0x548] sm:$0xff]
        %v2121 = vld [vmem:[%s1926 + $0x550] sm:$0xff]
        %v2122 = vld [vmem:[%s1926 + $0x558] sm:$0xf]
        %v2123 = vld [vmem:[%s1926 + $0x55c] sm:$0xff]
        %v2124 = vld [vmem:[%s1926 + $0x564] sm:$0xff]
        %v2125 = vld [vmem:[%s1926 + $0x56c] sm:$0xff]
        %v2126 = vld [vmem:[%s1926 + $0x574] sm:$0xf]
        %v2127 = vld [vmem:[%s1926 + $0x578] sm:$0xff]
        %v2128 = vld [vmem:[%s1926 + $0x580] sm:$0xff]
        %v2129 = vld [vmem:[%s1926 + $0x588] sm:$0xff]
        %v2130 = vld [vmem:[%s1926 + $0x590] sm:$0xf]
        %v2131 = vld [vmem:[%s1926 + $0x594] sm:$0xff]
        %v2132 = vld [vmem:[%s1926 + $0x59c] sm:$0xff]
        %v2133 = vld [vmem:[%s1926 + $0x5a4] sm:$0xff]
        %v2134 = vld [vmem:[%s1926 + $0x5ac] sm:$0xf]
        %v2135 = vld [vmem:[%s1926 + $0x5b0] sm:$0xff]
        %v2136 = vld [vmem:[%s1926 + $0x5b8] sm:$0xff]
        %v2137 = vld [vmem:[%s1926 + $0x5c0] sm:$0xff]
        %v2138 = vld [vmem:[%s1926 + $0x5c8] sm:$0xf]
        %v2139 = vld [vmem:[%s1926 + $0x5cc] sm:$0xff]
        %v2140 = vld [vmem:[%s1926 + $0x5d4] sm:$0xff]
        %v2141 = vld [vmem:[%s1926 + $0x5dc] sm:$0xff]
        %v2142 = vld [vmem:[%s1926 + $0x5e4] sm:$0xf]
        %v2143 = vld [vmem:[%s1926 + $0x5e8] sm:$0xff]
        %v2144 = vld [vmem:[%s1926 + $0x5f0] sm:$0xff]
        %v2145 = vld [vmem:[%s1926 + $0x5f8] sm:$0xff]
        %v2146 = vld [vmem:[%s1926 + $0x600] sm:$0xf]
        %v2147 = vld [vmem:[%s1926 + $0x604] sm:$0xff]
        %v2148 = vld [vmem:[%s1926 + $0x60c] sm:$0xff]
        %v2149 = vld [vmem:[%s1926 + $0x614] sm:$0xff]
        %v2150 = vld [vmem:[%s1926 + $0x61c] sm:$0xf]
        %v2151 = vld [vmem:[%s1926 + $0x620] sm:$0xff]
        %v2152 = vld [vmem:[%s1926 + $0x628] sm:$0xff]
        %v2153 = vld [vmem:[%s1926 + $0x630] sm:$0xff]
        %v2154 = vld [vmem:[%s1926 + $0x638] sm:$0xf]
        %v2155 = vld [vmem:[%s1926 + $0x63c] sm:$0xff]
        %v2156 = vld [vmem:[%s1926 + $0x644] sm:$0xff]
        %v2157 = vld [vmem:[%s1926 + $0x64c] sm:$0xff]
        %v2158 = vld [vmem:[%s1926 + $0x654] sm:$0xf]
        %v2159 = vld [vmem:[%s1926 + $0x658] sm:$0xff]
        %v2160 = vld [vmem:[%s1926 + $0x660] sm:$0xff]
        %v2161 = vld [vmem:[%s1926 + $0x668] sm:$0xff]
        %v2162 = vld [vmem:[%s1926 + $0x670] sm:$0xf]
        %v2163 = vld [vmem:[%s1926 + $0x674] sm:$0xff]
        %v2164 = vld [vmem:[%s1926 + $0x67c] sm:$0xff]
        %v2165 = vld [vmem:[%s1926 + $0x684] sm:$0xff]
        %v2166 = vld [vmem:[%s1926 + $0x68c] sm:$0xf]
        %v2167 = vld [vmem:[%s1926 + $0x690] sm:$0xff]
        %v2168 = vld [vmem:[%s1926 + $0x698] sm:$0xff]
        %v2169 = vld [vmem:[%s1926 + $0x6a0] sm:$0xff]
        %v2170 = vld [vmem:[%s1926 + $0x6a8] sm:$0xf]
        %v2171 = vld [vmem:[%s1926 + $0x6ac] sm:$0xff]
        %v2172 = vld [vmem:[%s1926 + $0x6b4] sm:$0xff]
        %v2173 = vld [vmem:[%s1926 + $0x6bc] sm:$0xff]
        %v2174 = vld [vmem:[%s1926 + $0x6c4] sm:$0xf]
        %v2175 = vld [vmem:[%s1926 + $0x6c8] sm:$0xff]
        %v2176 = vld [vmem:[%s1926 + $0x6d0] sm:$0xff]
        %v2177 = vld [vmem:[%s1926 + $0x6d8] sm:$0xff]
        %v2178 = vld [vmem:[%s1926 + $0x6e0] sm:$0xf]
        %v2179 = vld [vmem:[%s1926 + $0x6e4] sm:$0xff]
        %v2180 = vld [vmem:[%s1926 + $0x6ec] sm:$0xff]
        %v2181 = vld [vmem:[%s1926 + $0x6f4] sm:$0xff]
        %v2182 = vld [vmem:[%s1926 + $0x6fc] sm:$0xf]
        %v2184 = vshrl.u32 %v1922, 16
        %v2186 = vshll.u32 %v1922, 16
        %v2188 = vrot.slane %v2186, 1
        %v2189 = vor.u32 %v2184, %v2188
        %v2191 = vshrl.u32 %v1923, 16
        %v2193 = vshll.u32 %v1923, 16
        %v2195 = vrot.slane %v2193, 1
        %v2196 = vor.u32 %v2191, %v2195
        %v2198 = vshrl.u32 %v1924, 16
        %v2200 = vshll.u32 %v1924, 16
        %v2202 = vrot.slane %v2200, 1
        %v2203 = vor.u32 %v2198, %v2202
        %v2205 = vshrl.u32 %v1925, 16
        %v2207 = vshll.u32 %v1925, 16
        %v2209 = vrot.slane %v2207, 1
        %v2210 = vor.u32 %v2205, %v2209
        %v2471 = vunpack.c.l.b16 %v1927
        %v2472 = vunpack.c.h.b16 %v1927
        %v2473 = vunpack.c.l.b16 %v1928
        %v2474 = vunpack.c.h.b16 %v1928
        %v2475 = vunpack.c.l.b16 %v1929
        %v2476 = vunpack.c.h.b16 %v1929
        %v2477 = vunpack.c.l.b16 %v1930
        %v2478 = vunpack.c.l.b16 %v1931
        %v2479 = vunpack.c.h.b16 %v1931
        %v2480 = vunpack.c.l.b16 %v1932
        %v2481 = vunpack.c.h.b16 %v1932
        %v2482 = vunpack.c.l.b16 %v1933
        %v2483 = vunpack.c.h.b16 %v1933
        %v2484 = vunpack.c.l.b16 %v1934
        %v2485 = vunpack.c.l.b16 %v1935
        %v2486 = vunpack.c.h.b16 %v1935
        %v2487 = vunpack.c.l.b16 %v1936
        %v2488 = vunpack.c.h.b16 %v1936
        %v2489 = vunpack.c.l.b16 %v1937
        %v2490 = vunpack.c.h.b16 %v1937
        %v2491 = vunpack.c.l.b16 %v1938
        %v2492 = vunpack.c.l.b16 %v1939
        %v2493 = vunpack.c.h.b16 %v1939
        %v2494 = vunpack.c.l.b16 %v1940
        %v2495 = vunpack.c.h.b16 %v1940
        %v2496 = vunpack.c.l.b16 %v1941
        %v2497 = vunpack.c.h.b16 %v1941
        %v2498 = vunpack.c.l.b16 %v1942
        %v2499 = vunpack.c.l.b16 %v1943
        %v2500 = vunpack.c.h.b16 %v1943
        %v2501 = vunpack.c.l.b16 %v1944
        %v2502 = vunpack.c.h.b16 %v1944
        %v2503 = vunpack.c.l.b16 %v1945
        %v2504 = vunpack.c.h.b16 %v1945
        %v2505 = vunpack.c.l.b16 %v1946
        %v2506 = vunpack.c.l.b16 %v1947
        %v2507 = vunpack.c.h.b16 %v1947
        %v2508 = vunpack.c.l.b16 %v1948
        %v2509 = vunpack.c.h.b16 %v1948
        %v2510 = vunpack.c.l.b16 %v1949
        %v2511 = vunpack.c.h.b16 %v1949
        %v2512 = vunpack.c.l.b16 %v1950
        %v2513 = vunpack.c.l.b16 %v1951
        %v2514 = vunpack.c.h.b16 %v1951
        %v2515 = vunpack.c.l.b16 %v1952
        %v2516 = vunpack.c.h.b16 %v1952
        %v2517 = vunpack.c.l.b16 %v1953
        %v2518 = vunpack.c.h.b16 %v1953
        %v2519 = vunpack.c.l.b16 %v1954
        %v2520 = vunpack.c.l.b16 %v1955
        %v2521 = vunpack.c.h.b16 %v1955
        %v2522 = vunpack.c.l.b16 %v1956
        %v2523 = vunpack.c.h.b16 %v1956
        %v2524 = vunpack.c.l.b16 %v1957
        %v2525 = vunpack.c.h.b16 %v1957
        %v2526 = vunpack.c.l.b16 %v1958
        %v2527 = vunpack.c.l.b16 %v1959
        %v2528 = vunpack.c.h.b16 %v1959
        %v2529 = vunpack.c.l.b16 %v1960
        %v2530 = vunpack.c.h.b16 %v1960
        %v2531 = vunpack.c.l.b16 %v1961
        %v2532 = vunpack.c.h.b16 %v1961
        %v2533 = vunpack.c.l.b16 %v1962
        %v2534 = vunpack.c.l.b16 %v1963
        %v2535 = vunpack.c.h.b16 %v1963
        %v2536 = vunpack.c.l.b16 %v1964
        %v2537 = vunpack.c.h.b16 %v1964
        %v2538 = vunpack.c.l.b16 %v1965
        %v2539 = vunpack.c.h.b16 %v1965
        %v2540 = vunpack.c.l.b16 %v1966
        %v2541 = vunpack.c.l.b16 %v1967
        %v2542 = vunpack.c.h.b16 %v1967
        %v2543 = vunpack.c.l.b16 %v1968
        %v2544 = vunpack.c.h.b16 %v1968
        %v2545 = vunpack.c.l.b16 %v1969
        %v2546 = vunpack.c.h.b16 %v1969
        %v2547 = vunpack.c.l.b16 %v1970
        %v2548 = vunpack.c.l.b16 %v1971
        %v2549 = vunpack.c.h.b16 %v1971
        %v2550 = vunpack.c.l.b16 %v1972
        %v2551 = vunpack.c.h.b16 %v1972
        %v2552 = vunpack.c.l.b16 %v1973
        %v2553 = vunpack.c.h.b16 %v1973
        %v2554 = vunpack.c.l.b16 %v1974
        %v2555 = vunpack.c.l.b16 %v1975
        %v2556 = vunpack.c.h.b16 %v1975
        %v2557 = vunpack.c.l.b16 %v1976
        %v2558 = vunpack.c.h.b16 %v1976
        %v2559 = vunpack.c.l.b16 %v1977
        %v2560 = vunpack.c.h.b16 %v1977
        %v2561 = vunpack.c.l.b16 %v1978
        %v2562 = vunpack.c.l.b16 %v1979
        %v2563 = vunpack.c.h.b16 %v1979
        %v2564 = vunpack.c.l.b16 %v1980
        %v2565 = vunpack.c.h.b16 %v1980
        %v2566 = vunpack.c.l.b16 %v1981
        %v2567 = vunpack.c.h.b16 %v1981
        %v2568 = vunpack.c.l.b16 %v1982
        %v2569 = vunpack.c.l.b16 %v1983
        %v2570 = vunpack.c.h.b16 %v1983
        %v2571 = vunpack.c.l.b16 %v1984
        %v2572 = vunpack.c.h.b16 %v1984
        %v2573 = vunpack.c.l.b16 %v1985
        %v2574 = vunpack.c.h.b16 %v1985
        %v2575 = vunpack.c.l.b16 %v1986
        %v2576 = vunpack.c.l.b16 %v1987
        %v2577 = vunpack.c.h.b16 %v1987
        %v2578 = vunpack.c.l.b16 %v1988
        %v2579 = vunpack.c.h.b16 %v1988
        %v2580 = vunpack.c.l.b16 %v1989
        %v2581 = vunpack.c.h.b16 %v1989
        %v2582 = vunpack.c.l.b16 %v1990
        %v2583 = vunpack.c.l.b16 %v1991
        %v2584 = vunpack.c.h.b16 %v1991
        %v2585 = vunpack.c.l.b16 %v1992
        %v2586 = vunpack.c.h.b16 %v1992
        %v2587 = vunpack.c.l.b16 %v1993
        %v2588 = vunpack.c.h.b16 %v1993
        %v2589 = vunpack.c.l.b16 %v1994
        %v2590 = vunpack.c.l.b16 %v1995
        %v2591 = vunpack.c.h.b16 %v1995
        %v2592 = vunpack.c.l.b16 %v1996
        %v2593 = vunpack.c.h.b16 %v1996
        %v2594 = vunpack.c.l.b16 %v1997
        %v2595 = vunpack.c.h.b16 %v1997
        %v2596 = vunpack.c.l.b16 %v1998
        %v2597 = vunpack.c.l.b16 %v1999
        %v2598 = vunpack.c.h.b16 %v1999
        %v2599 = vunpack.c.l.b16 %v2000
        %v2600 = vunpack.c.h.b16 %v2000
        %v2601 = vunpack.c.l.b16 %v2001
        %v2602 = vunpack.c.h.b16 %v2001
        %v2603 = vunpack.c.l.b16 %v2002
        %v2604 = vunpack.c.l.b16 %v2003
        %v2605 = vunpack.c.h.b16 %v2003
        %v2606 = vunpack.c.l.b16 %v2004
        %v2607 = vunpack.c.h.b16 %v2004
        %v2608 = vunpack.c.l.b16 %v2005
        %v2609 = vunpack.c.h.b16 %v2005
        %v2610 = vunpack.c.l.b16 %v2006
        %v2611 = vunpack.c.l.b16 %v2007
        %v2612 = vunpack.c.h.b16 %v2007
        %v2613 = vunpack.c.l.b16 %v2008
        %v2614 = vunpack.c.h.b16 %v2008
        %v2615 = vunpack.c.l.b16 %v2009
        %v2616 = vunpack.c.h.b16 %v2009
        %v2617 = vunpack.c.l.b16 %v2010
        %v2618 = vunpack.c.l.b16 %v2011
        %v2619 = vunpack.c.h.b16 %v2011
        %v2620 = vunpack.c.l.b16 %v2012
        %v2621 = vunpack.c.h.b16 %v2012
        %v2622 = vunpack.c.l.b16 %v2013
        %v2623 = vunpack.c.h.b16 %v2013
        %v2624 = vunpack.c.l.b16 %v2014
        %v2625 = vunpack.c.l.b16 %v2015
        %v2626 = vunpack.c.h.b16 %v2015
        %v2627 = vunpack.c.l.b16 %v2016
        %v2628 = vunpack.c.h.b16 %v2016
        %v2629 = vunpack.c.l.b16 %v2017
        %v2630 = vunpack.c.h.b16 %v2017
        %v2631 = vunpack.c.l.b16 %v2018
        %v2632 = vunpack.c.l.b16 %v2019
        %v2633 = vunpack.c.h.b16 %v2019
        %v2634 = vunpack.c.l.b16 %v2020
        %v2635 = vunpack.c.h.b16 %v2020
        %v2636 = vunpack.c.l.b16 %v2021
        %v2637 = vunpack.c.h.b16 %v2021
        %v2638 = vunpack.c.l.b16 %v2022
        %v2639 = vunpack.c.l.b16 %v2023
        %v2640 = vunpack.c.h.b16 %v2023
        %v2641 = vunpack.c.l.b16 %v2024
        %v2642 = vunpack.c.h.b16 %v2024
        %v2643 = vunpack.c.l.b16 %v2025
        %v2644 = vunpack.c.h.b16 %v2025
        %v2645 = vunpack.c.l.b16 %v2026
        %v2646 = vunpack.c.l.b16 %v2027
        %v2647 = vunpack.c.h.b16 %v2027
        %v2648 = vunpack.c.l.b16 %v2028
        %v2649 = vunpack.c.h.b16 %v2028
        %v2650 = vunpack.c.l.b16 %v2029
        %v2651 = vunpack.c.h.b16 %v2029
        %v2652 = vunpack.c.l.b16 %v2030
        %v2653 = vunpack.c.l.b16 %v2031
        %v2654 = vunpack.c.h.b16 %v2031
        %v2655 = vunpack.c.l.b16 %v2032
        %v2656 = vunpack.c.h.b16 %v2032
        %v2657 = vunpack.c.l.b16 %v2033
        %v2658 = vunpack.c.h.b16 %v2033
        %v2659 = vunpack.c.l.b16 %v2034
        %v2660 = vunpack.c.l.b16 %v2035
        %v2661 = vunpack.c.h.b16 %v2035
        %v2662 = vunpack.c.l.b16 %v2036
        %v2663 = vunpack.c.h.b16 %v2036
        %v2664 = vunpack.c.l.b16 %v2037
        %v2665 = vunpack.c.h.b16 %v2037
        %v2666 = vunpack.c.l.b16 %v2038
        %v2667 = vunpack.c.l.b16 %v2039
        %v2668 = vunpack.c.h.b16 %v2039
        %v2669 = vunpack.c.l.b16 %v2040
        %v2670 = vunpack.c.h.b16 %v2040
        %v2671 = vunpack.c.l.b16 %v2041
        %v2672 = vunpack.c.h.b16 %v2041
        %v2673 = vunpack.c.l.b16 %v2042
        %v2674 = vunpack.c.l.b16 %v2043
        %v2675 = vunpack.c.h.b16 %v2043
        %v2676 = vunpack.c.l.b16 %v2044
        %v2677 = vunpack.c.h.b16 %v2044
        %v2678 = vunpack.c.l.b16 %v2045
        %v2679 = vunpack.c.h.b16 %v2045
        %v2680 = vunpack.c.l.b16 %v2046
        %v2681 = vunpack.c.l.b16 %v2047
        %v2682 = vunpack.c.h.b16 %v2047
        %v2683 = vunpack.c.l.b16 %v2048
        %v2684 = vunpack.c.h.b16 %v2048
        %v2685 = vunpack.c.l.b16 %v2049
        %v2686 = vunpack.c.h.b16 %v2049
        %v2687 = vunpack.c.l.b16 %v2050
        %v2688 = vunpack.c.l.b16 %v2051
        %v2689 = vunpack.c.h.b16 %v2051
        %v2690 = vunpack.c.l.b16 %v2052
        %v2691 = vunpack.c.h.b16 %v2052
        %v2692 = vunpack.c.l.b16 %v2053
        %v2693 = vunpack.c.h.b16 %v2053
        %v2694 = vunpack.c.l.b16 %v2054
        %v2695 = vunpack.c.l.b16 %v2055
        %v2696 = vunpack.c.h.b16 %v2055
        %v2697 = vunpack.c.l.b16 %v2056
        %v2698 = vunpack.c.h.b16 %v2056
        %v2699 = vunpack.c.l.b16 %v2057
        %v2700 = vunpack.c.h.b16 %v2057
        %v2701 = vunpack.c.l.b16 %v2058
        %v2702 = vunpack.c.l.b16 %v2059
        %v2703 = vunpack.c.h.b16 %v2059
        %v2704 = vunpack.c.l.b16 %v2060
        %v2705 = vunpack.c.h.b16 %v2060
        %v2706 = vunpack.c.l.b16 %v2061
        %v2707 = vunpack.c.h.b16 %v2061
        %v2708 = vunpack.c.l.b16 %v2062
        %v2709 = vunpack.c.l.b16 %v2063
        %v2710 = vunpack.c.h.b16 %v2063
        %v2711 = vunpack.c.l.b16 %v2064
        %v2712 = vunpack.c.h.b16 %v2064
        %v2713 = vunpack.c.l.b16 %v2065
        %v2714 = vunpack.c.h.b16 %v2065
        %v2715 = vunpack.c.l.b16 %v2066
        %v2716 = vunpack.c.l.b16 %v2067
        %v2717 = vunpack.c.h.b16 %v2067
        %v2718 = vunpack.c.l.b16 %v2068
        %v2719 = vunpack.c.h.b16 %v2068
        %v2720 = vunpack.c.l.b16 %v2069
        %v2721 = vunpack.c.h.b16 %v2069
        %v2722 = vunpack.c.l.b16 %v2070
        %v2723 = vunpack.c.l.b16 %v2071
        %v2724 = vunpack.c.h.b16 %v2071
        %v2725 = vunpack.c.l.b16 %v2072
        %v2726 = vunpack.c.h.b16 %v2072
        %v2727 = vunpack.c.l.b16 %v2073
        %v2728 = vunpack.c.h.b16 %v2073
        %v2729 = vunpack.c.l.b16 %v2074
        %v2730 = vunpack.c.l.b16 %v2075
        %v2731 = vunpack.c.h.b16 %v2075
        %v2732 = vunpack.c.l.b16 %v2076
        %v2733 = vunpack.c.h.b16 %v2076
        %v2734 = vunpack.c.l.b16 %v2077
        %v2735 = vunpack.c.h.b16 %v2077
        %v2736 = vunpack.c.l.b16 %v2078
        %v2737 = vunpack.c.l.b16 %v2079
        %v2738 = vunpack.c.h.b16 %v2079
        %v2739 = vunpack.c.l.b16 %v2080
        %v2740 = vunpack.c.h.b16 %v2080
        %v2741 = vunpack.c.l.b16 %v2081
        %v2742 = vunpack.c.h.b16 %v2081
        %v2743 = vunpack.c.l.b16 %v2082
        %v2744 = vunpack.c.l.b16 %v2083
        %v2745 = vunpack.c.h.b16 %v2083
        %v2746 = vunpack.c.l.b16 %v2084
        %v2747 = vunpack.c.h.b16 %v2084
        %v2748 = vunpack.c.l.b16 %v2085
        %v2749 = vunpack.c.h.b16 %v2085
        %v2750 = vunpack.c.l.b16 %v2086
        %v2751 = vunpack.c.l.b16 %v2087
        %v2752 = vunpack.c.h.b16 %v2087
        %v2753 = vunpack.c.l.b16 %v2088
        %v2754 = vunpack.c.h.b16 %v2088
        %v2755 = vunpack.c.l.b16 %v2089
        %v2756 = vunpack.c.h.b16 %v2089
        %v2757 = vunpack.c.l.b16 %v2090
        %v2758 = vunpack.c.l.b16 %v2091
        %v2759 = vunpack.c.h.b16 %v2091
        %v2760 = vunpack.c.l.b16 %v2092
        %v2761 = vunpack.c.h.b16 %v2092
        %v2762 = vunpack.c.l.b16 %v2093
        %v2763 = vunpack.c.h.b16 %v2093
        %v2764 = vunpack.c.l.b16 %v2094
        %v2765 = vunpack.c.l.b16 %v2095
        %v2766 = vunpack.c.h.b16 %v2095
        %v2767 = vunpack.c.l.b16 %v2096
        %v2768 = vunpack.c.h.b16 %v2096
        %v2769 = vunpack.c.l.b16 %v2097
        %v2770 = vunpack.c.h.b16 %v2097
        %v2771 = vunpack.c.l.b16 %v2098
        %v2772 = vunpack.c.l.b16 %v2099
        %v2773 = vunpack.c.h.b16 %v2099
        %v2774 = vunpack.c.l.b16 %v2100
        %v2775 = vunpack.c.h.b16 %v2100
        %v2776 = vunpack.c.l.b16 %v2101
        %v2777 = vunpack.c.h.b16 %v2101
        %v2778 = vunpack.c.l.b16 %v2102
        %v2779 = vunpack.c.l.b16 %v2103
        %v2780 = vunpack.c.h.b16 %v2103
        %v2781 = vunpack.c.l.b16 %v2104
        %v2782 = vunpack.c.h.b16 %v2104
        %v2783 = vunpack.c.l.b16 %v2105
        %v2784 = vunpack.c.h.b16 %v2105
        %v2785 = vunpack.c.l.b16 %v2106
        %v2786 = vunpack.c.l.b16 %v2107
        %v2787 = vunpack.c.h.b16 %v2107
        %v2788 = vunpack.c.l.b16 %v2108
        %v2789 = vunpack.c.h.b16 %v2108
        %v2790 = vunpack.c.l.b16 %v2109
        %v2791 = vunpack.c.h.b16 %v2109
        %v2792 = vunpack.c.l.b16 %v2110
        %v2793 = vunpack.c.l.b16 %v2111
        %v2794 = vunpack.c.h.b16 %v2111
        %v2795 = vunpack.c.l.b16 %v2112
        %v2796 = vunpack.c.h.b16 %v2112
        %v2797 = vunpack.c.l.b16 %v2113
        %v2798 = vunpack.c.h.b16 %v2113
        %v2799 = vunpack.c.l.b16 %v2114
        %v2800 = vunpack.c.l.b16 %v2115
        %v2801 = vunpack.c.h.b16 %v2115
        %v2802 = vunpack.c.l.b16 %v2116
        %v2803 = vunpack.c.h.b16 %v2116
        %v2804 = vunpack.c.l.b16 %v2117
        %v2805 = vunpack.c.h.b16 %v2117
        %v2806 = vunpack.c.l.b16 %v2118
        %v2807 = vunpack.c.l.b16 %v2119
        %v2808 = vunpack.c.h.b16 %v2119
        %v2809 = vunpack.c.l.b16 %v2120
        %v2810 = vunpack.c.h.b16 %v2120
        %v2811 = vunpack.c.l.b16 %v2121
        %v2812 = vunpack.c.h.b16 %v2121
        %v2813 = vunpack.c.l.b16 %v2122
        %v2814 = vunpack.c.l.b16 %v2123
        %v2815 = vunpack.c.h.b16 %v2123
        %v2816 = vunpack.c.l.b16 %v2124
        %v2817 = vunpack.c.h.b16 %v2124
        %v2818 = vunpack.c.l.b16 %v2125
        %v2819 = vunpack.c.h.b16 %v2125
        %v2820 = vunpack.c.l.b16 %v2126
        %v2821 = vunpack.c.l.b16 %v2127
        %v2822 = vunpack.c.h.b16 %v2127
        %v2823 = vunpack.c.l.b16 %v2128
        %v2824 = vunpack.c.h.b16 %v2128
        %v2825 = vunpack.c.l.b16 %v2129
        %v2826 = vunpack.c.h.b16 %v2129
        %v2827 = vunpack.c.l.b16 %v2130
        %v2828 = vunpack.c.l.b16 %v2131
        %v2829 = vunpack.c.h.b16 %v2131
        %v2830 = vunpack.c.l.b16 %v2132
        %v2831 = vunpack.c.h.b16 %v2132
        %v2832 = vunpack.c.l.b16 %v2133
        %v2833 = vunpack.c.h.b16 %v2133
        %v2834 = vunpack.c.l.b16 %v2134
        %v2835 = vunpack.c.l.b16 %v2135
        %v2836 = vunpack.c.h.b16 %v2135
        %v2837 = vunpack.c.l.b16 %v2136
        %v2838 = vunpack.c.h.b16 %v2136
        %v2839 = vunpack.c.l.b16 %v2137
        %v2840 = vunpack.c.h.b16 %v2137
        %v2841 = vunpack.c.l.b16 %v2138
        %v2842 = vunpack.c.l.b16 %v2139
        %v2843 = vunpack.c.h.b16 %v2139
        %v2844 = vunpack.c.l.b16 %v2140
        %v2845 = vunpack.c.h.b16 %v2140
        %v2846 = vunpack.c.l.b16 %v2141
        %v2847 = vunpack.c.h.b16 %v2141
        %v2848 = vunpack.c.l.b16 %v2142
        %v2849 = vunpack.c.l.b16 %v2143
        %v2850 = vunpack.c.h.b16 %v2143
        %v2851 = vunpack.c.l.b16 %v2144
        %v2852 = vunpack.c.h.b16 %v2144
        %v2853 = vunpack.c.l.b16 %v2145
        %v2854 = vunpack.c.h.b16 %v2145
        %v2855 = vunpack.c.l.b16 %v2146
        %v2856 = vunpack.c.l.b16 %v2147
        %v2857 = vunpack.c.h.b16 %v2147
        %v2858 = vunpack.c.l.b16 %v2148
        %v2859 = vunpack.c.h.b16 %v2148
        %v2860 = vunpack.c.l.b16 %v2149
        %v2861 = vunpack.c.h.b16 %v2149
        %v2862 = vunpack.c.l.b16 %v2150
        %v2863 = vunpack.c.l.b16 %v2151
        %v2864 = vunpack.c.h.b16 %v2151
        %v2865 = vunpack.c.l.b16 %v2152
        %v2866 = vunpack.c.h.b16 %v2152
        %v2867 = vunpack.c.l.b16 %v2153
        %v2868 = vunpack.c.h.b16 %v2153
        %v2869 = vunpack.c.l.b16 %v2154
        %v2870 = vunpack.c.l.b16 %v2155
        %v2871 = vunpack.c.h.b16 %v2155
        %v2872 = vunpack.c.l.b16 %v2156
        %v2873 = vunpack.c.h.b16 %v2156
        %v2874 = vunpack.c.l.b16 %v2157
        %v2875 = vunpack.c.h.b16 %v2157
        %v2876 = vunpack.c.l.b16 %v2158
        %v2877 = vunpack.c.l.b16 %v2159
        %v2878 = vunpack.c.h.b16 %v2159
        %v2879 = vunpack.c.l.b16 %v2160
        %v2880 = vunpack.c.h.b16 %v2160
        %v2881 = vunpack.c.l.b16 %v2161
        %v2882 = vunpack.c.h.b16 %v2161
        %v2883 = vunpack.c.l.b16 %v2162
        %v2884 = vunpack.c.l.b16 %v2163
        %v2885 = vunpack.c.h.b16 %v2163
        %v2886 = vunpack.c.l.b16 %v2164
        %v2887 = vunpack.c.h.b16 %v2164
        %v2888 = vunpack.c.l.b16 %v2165
        %v2889 = vunpack.c.h.b16 %v2165
        %v2890 = vunpack.c.l.b16 %v2166
        %v2891 = vunpack.c.l.b16 %v2167
        %v2892 = vunpack.c.h.b16 %v2167
        %v2893 = vunpack.c.l.b16 %v2168
        %v2894 = vunpack.c.h.b16 %v2168
        %v2895 = vunpack.c.l.b16 %v2169
        %v2896 = vunpack.c.h.b16 %v2169
        %v2897 = vunpack.c.l.b16 %v2170
        %v2898 = vunpack.c.l.b16 %v2171
        %v2899 = vunpack.c.h.b16 %v2171
        %v2900 = vunpack.c.l.b16 %v2172
        %v2901 = vunpack.c.h.b16 %v2172
        %v2902 = vunpack.c.l.b16 %v2173
        %v2903 = vunpack.c.h.b16 %v2173
        %v2904 = vunpack.c.l.b16 %v2174
        %v2905 = vunpack.c.l.b16 %v2175
        %v2906 = vunpack.c.h.b16 %v2175
        %v2907 = vunpack.c.l.b16 %v2176
        %v2908 = vunpack.c.h.b16 %v2176
        %v2909 = vunpack.c.l.b16 %v2177
        %v2910 = vunpack.c.h.b16 %v2177
        %v2911 = vunpack.c.l.b16 %v2178
        %v2912 = vunpack.c.l.b16 %v2179
        %v2913 = vunpack.c.h.b16 %v2179
        %v2914 = vunpack.c.l.b16 %v2180
        %v2915 = vunpack.c.h.b16 %v2180
        %v2916 = vunpack.c.l.b16 %v2181
        %v2917 = vunpack.c.h.b16 %v2181
        %v2918 = vunpack.c.l.b16 %v2182
        %v2919 = vpack.c.b16 %v2478, %v2471
        %v2920 = vpack.c.b16 %v2479, %v2472
        %v2921 = vpack.c.b16 %v2480, %v2473
        %v2922 = vpack.c.b16 %v2481, %v2474
        %v2923 = vpack.c.b16 %v2482, %v2475
        %v2924 = vpack.c.b16 %v2483, %v2476
        %v2925 = vpack.c.b16 %v2484, %v2477
        %v2926 = vpack.c.b16 %v2492, %v2485
        %v2927 = vpack.c.b16 %v2493, %v2486
        %v2928 = vpack.c.b16 %v2494, %v2487
        %v2929 = vpack.c.b16 %v2495, %v2488
        %v2930 = vpack.c.b16 %v2496, %v2489
        %v2931 = vpack.c.b16 %v2497, %v2490
        %v2932 = vpack.c.b16 %v2498, %v2491
        %v2933 = vpack.c.b16 %v2506, %v2499
        %v2934 = vpack.c.b16 %v2507, %v2500
        %v2935 = vpack.c.b16 %v2508, %v2501
        %v2936 = vpack.c.b16 %v2509, %v2502
        %v2937 = vpack.c.b16 %v2510, %v2503
        %v2938 = vpack.c.b16 %v2511, %v2504
        %v2939 = vpack.c.b16 %v2512, %v2505
        %v2940 = vpack.c.b16 %v2520, %v2513
        %v2941 = vpack.c.b16 %v2521, %v2514
        %v2942 = vpack.c.b16 %v2522, %v2515
        %v2943 = vpack.c.b16 %v2523, %v2516
        %v2944 = vpack.c.b16 %v2524, %v2517
        %v2945 = vpack.c.b16 %v2525, %v2518
        %v2946 = vpack.c.b16 %v2526, %v2519
        %v2947 = vpack.c.b16 %v2534, %v2527
        %v2948 = vpack.c.b16 %v2535, %v2528
        %v2949 = vpack.c.b16 %v2536, %v2529
        %v2950 = vpack.c.b16 %v2537, %v2530
        %v2951 = vpack.c.b16 %v2538, %v2531
        %v2952 = vpack.c.b16 %v2539, %v2532
        %v2953 = vpack.c.b16 %v2540, %v2533
        %v2954 = vpack.c.b16 %v2548, %v2541
        %v2955 = vpack.c.b16 %v2549, %v2542
        %v2956 = vpack.c.b16 %v2550, %v2543
        %v2957 = vpack.c.b16 %v2551, %v2544
        %v2958 = vpack.c.b16 %v2552, %v2545
        %v2959 = vpack.c.b16 %v2553, %v2546
        %v2960 = vpack.c.b16 %v2554, %v2547
        %v2961 = vpack.c.b16 %v2562, %v2555
        %v2962 = vpack.c.b16 %v2563, %v2556
        %v2963 = vpack.c.b16 %v2564, %v2557
        %v2964 = vpack.c.b16 %v2565, %v2558
        %v2965 = vpack.c.b16 %v2566, %v2559
        %v2966 = vpack.c.b16 %v2567, %v2560
        %v2967 = vpack.c.b16 %v2568, %v2561
        %v2968 = vpack.c.b16 %v2576, %v2569
        %v2969 = vpack.c.b16 %v2577, %v2570
        %v2970 = vpack.c.b16 %v2578, %v2571
        %v2971 = vpack.c.b16 %v2579, %v2572
        %v2972 = vpack.c.b16 %v2580, %v2573
        %v2973 = vpack.c.b16 %v2581, %v2574
        %v2974 = vpack.c.b16 %v2582, %v2575
        %v2975 = vpack.c.b16 %v2590, %v2583
        %v2976 = vpack.c.b16 %v2591, %v2584
        %v2977 = vpack.c.b16 %v2592, %v2585
        %v2978 = vpack.c.b16 %v2593, %v2586
        %v2979 = vpack.c.b16 %v2594, %v2587
        %v2980 = vpack.c.b16 %v2595, %v2588
        %v2981 = vpack.c.b16 %v2596, %v2589
        %v2982 = vpack.c.b16 %v2604, %v2597
        %v2983 = vpack.c.b16 %v2605, %v2598
        %v2984 = vpack.c.b16 %v2606, %v2599
        %v2985 = vpack.c.b16 %v2607, %v2600
        %v2986 = vpack.c.b16 %v2608, %v2601
        %v2987 = vpack.c.b16 %v2609, %v2602
        %v2988 = vpack.c.b16 %v2610, %v2603
        %v2989 = vpack.c.b16 %v2618, %v2611
        %v2990 = vpack.c.b16 %v2619, %v2612
        %v2991 = vpack.c.b16 %v2620, %v2613
        %v2992 = vpack.c.b16 %v2621, %v2614
        %v2993 = vpack.c.b16 %v2622, %v2615
        %v2994 = vpack.c.b16 %v2623, %v2616
        %v2995 = vpack.c.b16 %v2624, %v2617
        %v2996 = vpack.c.b16 %v2632, %v2625
        %v2997 = vpack.c.b16 %v2633, %v2626
        %v2998 = vpack.c.b16 %v2634, %v2627
        %v2999 = vpack.c.b16 %v2635, %v2628
        %v3000 = vpack.c.b16 %v2636, %v2629
        %v3001 = vpack.c.b16 %v2637, %v2630
        %v3002 = vpack.c.b16 %v2638, %v2631
        %v3003 = vpack.c.b16 %v2646, %v2639
        %v3004 = vpack.c.b16 %v2647, %v2640
        %v3005 = vpack.c.b16 %v2648, %v2641
        %v3006 = vpack.c.b16 %v2649, %v2642
        %v3007 = vpack.c.b16 %v2650, %v2643
        %v3008 = vpack.c.b16 %v2651, %v2644
        %v3009 = vpack.c.b16 %v2652, %v2645
        %v3010 = vpack.c.b16 %v2660, %v2653
        %v3011 = vpack.c.b16 %v2661, %v2654
        %v3012 = vpack.c.b16 %v2662, %v2655
        %v3013 = vpack.c.b16 %v2663, %v2656
        %v3014 = vpack.c.b16 %v2664, %v2657
        %v3015 = vpack.c.b16 %v2665, %v2658
        %v3016 = vpack.c.b16 %v2666, %v2659
        %v3017 = vpack.c.b16 %v2674, %v2667
        %v3018 = vpack.c.b16 %v2675, %v2668
        %v3019 = vpack.c.b16 %v2676, %v2669
        %v3020 = vpack.c.b16 %v2677, %v2670
        %v3021 = vpack.c.b16 %v2678, %v2671
        %v3022 = vpack.c.b16 %v2679, %v2672
        %v3023 = vpack.c.b16 %v2680, %v2673
        %v3024 = vpack.c.b16 %v2688, %v2681
        %v3025 = vpack.c.b16 %v2689, %v2682
        %v3026 = vpack.c.b16 %v2690, %v2683
        %v3027 = vpack.c.b16 %v2691, %v2684
        %v3028 = vpack.c.b16 %v2692, %v2685
        %v3029 = vpack.c.b16 %v2693, %v2686
        %v3030 = vpack.c.b16 %v2694, %v2687
        %v3031 = vpack.c.b16 %v2702, %v2695
        %v3032 = vpack.c.b16 %v2703, %v2696
        %v3033 = vpack.c.b16 %v2704, %v2697
        %v3034 = vpack.c.b16 %v2705, %v2698
        %v3035 = vpack.c.b16 %v2706, %v2699
        %v3036 = vpack.c.b16 %v2707, %v2700
        %v3037 = vpack.c.b16 %v2708, %v2701
        %v3038 = vpack.c.b16 %v2716, %v2709
        %v3039 = vpack.c.b16 %v2717, %v2710
        %v3040 = vpack.c.b16 %v2718, %v2711
        %v3041 = vpack.c.b16 %v2719, %v2712
        %v3042 = vpack.c.b16 %v2720, %v2713
        %v3043 = vpack.c.b16 %v2721, %v2714
        %v3044 = vpack.c.b16 %v2722, %v2715
        %v3045 = vpack.c.b16 %v2730, %v2723
        %v3046 = vpack.c.b16 %v2731, %v2724
        %v3047 = vpack.c.b16 %v2732, %v2725
        %v3048 = vpack.c.b16 %v2733, %v2726
        %v3049 = vpack.c.b16 %v2734, %v2727
        %v3050 = vpack.c.b16 %v2735, %v2728
        %v3051 = vpack.c.b16 %v2736, %v2729
        %v3052 = vpack.c.b16 %v2744, %v2737
        %v3053 = vpack.c.b16 %v2745, %v2738
        %v3054 = vpack.c.b16 %v2746, %v2739
        %v3055 = vpack.c.b16 %v2747, %v2740
        %v3056 = vpack.c.b16 %v2748, %v2741
        %v3057 = vpack.c.b16 %v2749, %v2742
        %v3058 = vpack.c.b16 %v2750, %v2743
        %v3059 = vpack.c.b16 %v2758, %v2751
        %v3060 = vpack.c.b16 %v2759, %v2752
        %v3061 = vpack.c.b16 %v2760, %v2753
        %v3062 = vpack.c.b16 %v2761, %v2754
        %v3063 = vpack.c.b16 %v2762, %v2755
        %v3064 = vpack.c.b16 %v2763, %v2756
        %v3065 = vpack.c.b16 %v2764, %v2757
        %v3066 = vpack.c.b16 %v2772, %v2765
        %v3067 = vpack.c.b16 %v2773, %v2766
        %v3068 = vpack.c.b16 %v2774, %v2767
        %v3069 = vpack.c.b16 %v2775, %v2768
        %v3070 = vpack.c.b16 %v2776, %v2769
        %v3071 = vpack.c.b16 %v2777, %v2770
        %v3072 = vpack.c.b16 %v2778, %v2771
        %v3073 = vpack.c.b16 %v2786, %v2779
        %v3074 = vpack.c.b16 %v2787, %v2780
        %v3075 = vpack.c.b16 %v2788, %v2781
        %v3076 = vpack.c.b16 %v2789, %v2782
        %v3077 = vpack.c.b16 %v2790, %v2783
        %v3078 = vpack.c.b16 %v2791, %v2784
        %v3079 = vpack.c.b16 %v2792, %v2785
        %v3080 = vpack.c.b16 %v2800, %v2793
        %v3081 = vpack.c.b16 %v2801, %v2794
        %v3082 = vpack.c.b16 %v2802, %v2795
        %v3083 = vpack.c.b16 %v2803, %v2796
        %v3084 = vpack.c.b16 %v2804, %v2797
        %v3085 = vpack.c.b16 %v2805, %v2798
        %v3086 = vpack.c.b16 %v2806, %v2799
        %v3087 = vpack.c.b16 %v2814, %v2807
        %v3088 = vpack.c.b16 %v2815, %v2808
        %v3089 = vpack.c.b16 %v2816, %v2809
        %v3090 = vpack.c.b16 %v2817, %v2810
        %v3091 = vpack.c.b16 %v2818, %v2811
        %v3092 = vpack.c.b16 %v2819, %v2812
        %v3093 = vpack.c.b16 %v2820, %v2813
        %v3094 = vpack.c.b16 %v2828, %v2821
        %v3095 = vpack.c.b16 %v2829, %v2822
        %v3096 = vpack.c.b16 %v2830, %v2823
        %v3097 = vpack.c.b16 %v2831, %v2824
        %v3098 = vpack.c.b16 %v2832, %v2825
        %v3099 = vpack.c.b16 %v2833, %v2826
        %v3100 = vpack.c.b16 %v2834, %v2827
        %v3101 = vpack.c.b16 %v2842, %v2835
        %v3102 = vpack.c.b16 %v2843, %v2836
        %v3103 = vpack.c.b16 %v2844, %v2837
        %v3104 = vpack.c.b16 %v2845, %v2838
        %v3105 = vpack.c.b16 %v2846, %v2839
        %v3106 = vpack.c.b16 %v2847, %v2840
        %v3107 = vpack.c.b16 %v2848, %v2841
        %v3108 = vpack.c.b16 %v2856, %v2849
        %v3109 = vpack.c.b16 %v2857, %v2850
        %v3110 = vpack.c.b16 %v2858, %v2851
        %v3111 = vpack.c.b16 %v2859, %v2852
        %v3112 = vpack.c.b16 %v2860, %v2853
        %v3113 = vpack.c.b16 %v2861, %v2854
        %v3114 = vpack.c.b16 %v2862, %v2855
        %v3115 = vpack.c.b16 %v2870, %v2863
        %v3116 = vpack.c.b16 %v2871, %v2864
        %v3117 = vpack.c.b16 %v2872, %v2865
        %v3118 = vpack.c.b16 %v2873, %v2866
        %v3119 = vpack.c.b16 %v2874, %v2867
        %v3120 = vpack.c.b16 %v2875, %v2868
        %v3121 = vpack.c.b16 %v2876, %v2869
        %v3122 = vpack.c.b16 %v2884, %v2877
        %v3123 = vpack.c.b16 %v2885, %v2878
        %v3124 = vpack.c.b16 %v2886, %v2879
        %v3125 = vpack.c.b16 %v2887, %v2880
        %v3126 = vpack.c.b16 %v2888, %v2881
        %v3127 = vpack.c.b16 %v2889, %v2882
        %v3128 = vpack.c.b16 %v2890, %v2883
        %v3129 = vpack.c.b16 %v2898, %v2891
        %v3130 = vpack.c.b16 %v2899, %v2892
        %v3131 = vpack.c.b16 %v2900, %v2893
        %v3132 = vpack.c.b16 %v2901, %v2894
        %v3133 = vpack.c.b16 %v2902, %v2895
        %v3134 = vpack.c.b16 %v2903, %v2896
        %v3135 = vpack.c.b16 %v2904, %v2897
        %v3136 = vpack.c.b16 %v2912, %v2905
        %v3137 = vpack.c.b16 %v2913, %v2906
        %v3138 = vpack.c.b16 %v2914, %v2907
        %v3139 = vpack.c.b16 %v2915, %v2908
        %v3140 = vpack.c.b16 %v2916, %v2909
        %v3141 = vpack.c.b16 %v2917, %v2910
        %v3142 = vpack.c.b16 %v2918, %v2911
        %3367 = vmatprep.subr.bf16.mxu0 %v2920
        %3368 = vmatpush1.bf16.msra.mxu0 %v2919
        %3369 = vmatprep.subr.bf16.mxu0 %v2927
        %3370 = vmatpush1.bf16.msra.mxu0 %v2926
        %3371 = vmatprep.subr.bf16.mxu0 %v2934
        %3372 = vmatpush1.bf16.msra.mxu0 %v2933
        %3373 = vmatprep.subr.bf16.mxu0 %v2941
        %3374 = vmatpush1.bf16.msra.mxu0 %v2940
        %3375 = vmatprep.subr.bf16.mxu0 %v2948
        %3376 = vmatpush1.bf16.msra.mxu0 %v2947
        %3377 = vmatprep.subr.bf16.mxu0 %v2955
        %3378 = vmatpush1.bf16.msra.mxu0 %v2954
        %3379 = vmatprep.subr.bf16.mxu0 %v2962
        %3380 = vmatpush1.bf16.msra.mxu0 %v2961
        %3381 = vmatprep.subr.bf16.mxu0 %v2969
        %3382 = vmatpush1.bf16.msra.mxu0 %v2968
        %3383 = vmatprep.subr.bf16.mxu0 %v2976
        %3384 = vmatpush1.bf16.msra.mxu0 %v2975
        %3385 = vmatprep.subr.bf16.mxu0 %v2983
        %3386 = vmatpush1.bf16.msra.mxu0 %v2982
        %3387 = vmatprep.subr.bf16.mxu0 %v2990
        %3388 = vmatpush1.bf16.msra.mxu0 %v2989
        %3389 = vmatprep.subr.bf16.mxu0 %v2997
        %3390 = vmatpush1.bf16.msra.mxu0 %v2996
        %3391 = vmatprep.subr.bf16.mxu0 %v3004
        %3392 = vmatpush1.bf16.msra.mxu0 %v3003
        %3393 = vmatprep.subr.bf16.mxu0 %v3011
        %3394 = vmatpush1.bf16.msra.mxu0 %v3010
        %3395 = vmatprep.subr.bf16.mxu0 %v3018
        %3396 = vmatpush1.bf16.msra.mxu0 %v3017
        %3397 = vmatprep.subr.bf16.mxu0 %v3025
        %3398 = vmatpush1.bf16.msra.mxu0 %v3024
        %3399 = vmatprep.mubr.bf16.mxu0 %v2196
        %3400 = vmatmul.mubr.bf16.gmra.mrb[0].mxu0 %v2189
        %v3401 = vpop.f32.mrb[0].mxu0
        %v3402 = vadd.f32 0.0, %v3401
        %v3403 = vpop.f32.mrb[0].mxu0
        %v3404 = vadd.f32 0.0, %v3403
        %v3405 = vpop.f32.mrb[0].mxu0
        %v3406 = vpop.f32.mrb[0].mxu0
        %3407 = vdwg.mxu0
        %3408 = vmatprep.subr.bf16.mxu0 %v3032
        %3409 = vmatpush1.bf16.msra.mxu0 %v3031
        %3410 = vmatprep.subr.bf16.mxu0 %v3039
        %3411 = vmatpush1.bf16.msra.mxu0 %v3038
        %3412 = vmatprep.subr.bf16.mxu0 %v3046
        %3413 = vmatpush1.bf16.msra.mxu0 %v3045
        %3414 = vmatprep.subr.bf16.mxu0 %v3053
        %3415 = vmatpush1.bf16.msra.mxu0 %v3052
        %3416 = vmatprep.subr.bf16.mxu0 %v3060
        %3417 = vmatpush1.bf16.msra.mxu0 %v3059
        %3418 = vmatprep.subr.bf16.mxu0 %v3067
        %3419 = vmatpush1.bf16.msra.mxu0 %v3066
        %3420 = vmatprep.subr.bf16.mxu0 %v3074
        %3421 = vmatpush1.bf16.msra.mxu0 %v3073
        %3422 = vmatprep.subr.bf16.mxu0 %v3081
        %3423 = vmatpush1.bf16.msra.mxu0 %v3080
        %3424 = vmatprep.subr.bf16.mxu0 %v3088
        %3425 = vmatpush1.bf16.msra.mxu0 %v3087
        %3426 = vmatprep.subr.bf16.mxu0 %v3095
        %3427 = vmatpush1.bf16.msra.mxu0 %v3094
        %3428 = vmatprep.subr.bf16.mxu0 %v3102
        %3429 = vmatpush1.bf16.msra.mxu0 %v3101
        %3430 = vmatprep.subr.bf16.mxu0 %v3109
        %3431 = vmatpush1.bf16.msra.mxu0 %v3108
        %3432 = vmatprep.subr.bf16.mxu0 %v3116
        %3433 = vmatpush1.bf16.msra.mxu0 %v3115
        %3434 = vmatprep.subr.bf16.mxu0 %v3123
        %3435 = vmatpush1.bf16.msra.mxu0 %v3122
        %3436 = vmatprep.subr.bf16.mxu0 %v3130
        %3437 = vmatpush1.bf16.msra.mxu0 %v3129
        %3438 = vmatprep.subr.bf16.mxu0 %v3137
        %3439 = vmatpush1.bf16.msra.mxu0 %v3136
        %3440 = vmatprep.mubr.bf16.mxu0 %v2210
        %3441 = vmatmul.mubr.bf16.gmra.mrb[0].mxu0 %v2203
        %v3442 = vpop.f32.mrb[0].mxu0
        %v3443 = vadd.f32 %v3402, %v3442
        %v3444 = vpop.f32.mrb[0].mxu0
        %v3445 = vadd.f32 %v3404, %v3444
        %v3446 = vpop.f32.mrb[0].mxu0
        %v3447 = vpop.f32.mrb[0].mxu0
        %3448 = vdwg.mxu0
        %3449 = vmatprep.subr.bf16.mxu0 %v2922
        %3450 = vmatpush1.bf16.msra.mxu0 %v2921
        %3451 = vmatprep.subr.bf16.mxu0 %v2929
        %3452 = vmatpush1.bf16.msra.mxu0 %v2928
        %3453 = vmatprep.subr.bf16.mxu0 %v2936
        %3454 = vmatpush1.bf16.msra.mxu0 %v2935
        %3455 = vmatprep.subr.bf16.mxu0 %v2943
        %3456 = vmatpush1.bf16.msra.mxu0 %v2942
        %3457 = vmatprep.subr.bf16.mxu0 %v2950
        %3458 = vmatpush1.bf16.msra.mxu0 %v2949
        %3459 = vmatprep.subr.bf16.mxu0 %v2957
        %3460 = vmatpush1.bf16.msra.mxu0 %v2956
        %3461 = vmatprep.subr.bf16.mxu0 %v2964
        %3462 = vmatpush1.bf16.msra.mxu0 %v2963
        %3463 = vmatprep.subr.bf16.mxu0 %v2971
        %3464 = vmatpush1.bf16.msra.mxu0 %v2970
        %3465 = vmatprep.subr.bf16.mxu0 %v2978
        %3466 = vmatpush1.bf16.msra.mxu0 %v2977
        %3467 = vmatprep.subr.bf16.mxu0 %v2985
        %3468 = vmatpush1.bf16.msra.mxu0 %v2984
        %3469 = vmatprep.subr.bf16.mxu0 %v2992
        %3470 = vmatpush1.bf16.msra.mxu0 %v2991
        %3471 = vmatprep.subr.bf16.mxu0 %v2999
        %3472 = vmatpush1.bf16.msra.mxu0 %v2998
        %3473 = vmatprep.subr.bf16.mxu0 %v3006
        %3474 = vmatpush1.bf16.msra.mxu0 %v3005
        %3475 = vmatprep.subr.bf16.mxu0 %v3013
        %3476 = vmatpush1.bf16.msra.mxu0 %v3012
        %3477 = vmatprep.subr.bf16.mxu0 %v3020
        %3478 = vmatpush1.bf16.msra.mxu0 %v3019
        %3479 = vmatprep.subr.bf16.mxu0 %v3027
        %3480 = vmatpush1.bf16.msra.mxu0 %v3026
        %3481 = vmatprep.mubr.bf16.mxu0 %v2196
        %3482 = vmatmul.mubr.bf16.gmra.mrb[0].mxu0 %v2189
        %v3483 = vpop.f32.mrb[0].mxu0
        %v3484 = vadd.f32 0.0, %v3483
        %v3485 = vpop.f32.mrb[0].mxu0
        %v3486 = vadd.f32 0.0, %v3485
        %v3487 = vpop.f32.mrb[0].mxu0
        %v3488 = vpop.f32.mrb[0].mxu0
        %3489 = vdwg.mxu0
        %3490 = vmatprep.subr.bf16.mxu0 %v3034
        %3491 = vmatpush1.bf16.msra.mxu0 %v3033
        %3492 = vmatprep.subr.bf16.mxu0 %v3041
        %3493 = vmatpush1.bf16.msra.mxu0 %v3040
        %3494 = vmatprep.subr.bf16.mxu0 %v3048
        %3495 = vmatpush1.bf16.msra.mxu0 %v3047
        %3496 = vmatprep.subr.bf16.mxu0 %v3055
        %3497 = vmatpush1.bf16.msra.mxu0 %v3054
        %3498 = vmatprep.subr.bf16.mxu0 %v3062
        %3499 = vmatpush1.bf16.msra.mxu0 %v3061
        %3500 = vmatprep.subr.bf16.mxu0 %v3069
        %3501 = vmatpush1.bf16.msra.mxu0 %v3068
        %3502 = vmatprep.subr.bf16.mxu0 %v3076
        %3503 = vmatpush1.bf16.msra.mxu0 %v3075
        %3504 = vmatprep.subr.bf16.mxu0 %v3083
        %3505 = vmatpush1.bf16.msra.mxu0 %v3082
        %3506 = vmatprep.subr.bf16.mxu0 %v3090
        %3507 = vmatpush1.bf16.msra.mxu0 %v3089
        %3508 = vmatprep.subr.bf16.mxu0 %v3097
        %3509 = vmatpush1.bf16.msra.mxu0 %v3096
        %3510 = vmatprep.subr.bf16.mxu0 %v3104
        %3511 = vmatpush1.bf16.msra.mxu0 %v3103
        %3512 = vmatprep.subr.bf16.mxu0 %v3111
        %3513 = vmatpush1.bf16.msra.mxu0 %v3110
        %3514 = vmatprep.subr.bf16.mxu0 %v3118
        %3515 = vmatpush1.bf16.msra.mxu0 %v3117
        %3516 = vmatprep.subr.bf16.mxu0 %v3125
        %3517 = vmatpush1.bf16.msra.mxu0 %v3124
        %3518 = vmatprep.subr.bf16.mxu0 %v3132
        %3519 = vmatpush1.bf16.msra.mxu0 %v3131
        %3520 = vmatprep.subr.bf16.mxu0 %v3139
        %3521 = vmatpush1.bf16.msra.mxu0 %v3138
        %3522 = vmatprep.mubr.bf16.mxu0 %v2210
        %3523 = vmatmul.mubr.bf16.gmra.mrb[0].mxu0 %v2203
        %v3524 = vpop.f32.mrb[0].mxu0
        %v3525 = vadd.f32 %v3484, %v3524
        %v3526 = vpop.f32.mrb[0].mxu0
        %v3527 = vadd.f32 %v3486, %v3526
        %v3528 = vpop.f32.mrb[0].mxu0
        %v3529 = vpop.f32.mrb[0].mxu0
        %3530 = vdwg.mxu0
        %3531 = vmatprep.subr.bf16.mxu0 %v2924
        %3532 = vmatpush1.bf16.msra.mxu0 %v2923
        %3533 = vmatprep.subr.bf16.mxu0 %v2931
        %3534 = vmatpush1.bf16.msra.mxu0 %v2930
        %3535 = vmatprep.subr.bf16.mxu0 %v2938
        %3536 = vmatpush1.bf16.msra.mxu0 %v2937
        %3537 = vmatprep.subr.bf16.mxu0 %v2945
        %3538 = vmatpush1.bf16.msra.mxu0 %v2944
        %3539 = vmatprep.subr.bf16.mxu0 %v2952
        %3540 = vmatpush1.bf16.msra.mxu0 %v2951
        %3541 = vmatprep.subr.bf16.mxu0 %v2959
        %3542 = vmatpush1.bf16.msra.mxu0 %v2958
        %3543 = vmatprep.subr.bf16.mxu0 %v2966
        %3544 = vmatpush1.bf16.msra.mxu0 %v2965
        %3545 = vmatprep.subr.bf16.mxu0 %v2973
        %3546 = vmatpush1.bf16.msra.mxu0 %v2972
        %3547 = vmatprep.subr.bf16.mxu0 %v2980
        %3548 = vmatpush1.bf16.msra.mxu0 %v2979
        %3549 = vmatprep.subr.bf16.mxu0 %v2987
        %3550 = vmatpush1.bf16.msra.mxu0 %v2986
        %3551 = vmatprep.subr.bf16.mxu0 %v2994
        %3552 = vmatpush1.bf16.msra.mxu0 %v2993
        %3553 = vmatprep.subr.bf16.mxu0 %v3001
        %3554 = vmatpush1.bf16.msra.mxu0 %v3000
        %3555 = vmatprep.subr.bf16.mxu0 %v3008
        %3556 = vmatpush1.bf16.msra.mxu0 %v3007
        %3557 = vmatprep.subr.bf16.mxu0 %v3015
        %3558 = vmatpush1.bf16.msra.mxu0 %v3014
        %3559 = vmatprep.subr.bf16.mxu0 %v3022
        %3560 = vmatpush1.bf16.msra.mxu0 %v3021
        %3561 = vmatprep.subr.bf16.mxu0 %v3029
        %3562 = vmatpush1.bf16.msra.mxu0 %v3028
        %3563 = vmatprep.mubr.bf16.mxu0 %v2196
        %3564 = vmatmul.mubr.bf16.gmra.mrb[0].mxu0 %v2189
        %v3565 = vpop.f32.mrb[0].mxu0
        %v3566 = vadd.f32 0.0, %v3565
        %v3567 = vpop.f32.mrb[0].mxu0
        %v3568 = vadd.f32 0.0, %v3567
        %v3569 = vpop.f32.mrb[0].mxu0
        %v3570 = vpop.f32.mrb[0].mxu0
        %3571 = vdwg.mxu0
        %3572 = vmatprep.subr.bf16.mxu0 %v3036
        %3573 = vmatpush1.bf16.msra.mxu0 %v3035
        %3574 = vmatprep.subr.bf16.mxu0 %v3043
        %3575 = vmatpush1.bf16.msra.mxu0 %v3042
        %3576 = vmatprep.subr.bf16.mxu0 %v3050
        %3577 = vmatpush1.bf16.msra.mxu0 %v3049
        %3578 = vmatprep.subr.bf16.mxu0 %v3057
        %3579 = vmatpush1.bf16.msra.mxu0 %v3056
        %3580 = vmatprep.subr.bf16.mxu0 %v3064
        %3581 = vmatpush1.bf16.msra.mxu0 %v3063
        %3582 = vmatprep.subr.bf16.mxu0 %v3071
        %3583 = vmatpush1.bf16.msra.mxu0 %v3070
        %3584 = vmatprep.subr.bf16.mxu0 %v3078
        %3585 = vmatpush1.bf16.msra.mxu0 %v3077
        %3586 = vmatprep.subr.bf16.mxu0 %v3085
        %3587 = vmatpush1.bf16.msra.mxu0 %v3084
        %3588 = vmatprep.subr.bf16.mxu0 %v3092
        %3589 = vmatpush1.bf16.msra.mxu0 %v3091
        %3590 = vmatprep.subr.bf16.mxu0 %v3099
        %3591 = vmatpush1.bf16.msra.mxu0 %v3098
        %3592 = vmatprep.subr.bf16.mxu0 %v3106
        %3593 = vmatpush1.bf16.msra.mxu0 %v3105
        %3594 = vmatprep.subr.bf16.mxu0 %v3113
        %3595 = vmatpush1.bf16.msra.mxu0 %v3112
        %3596 = vmatprep.subr.bf16.mxu0 %v3120
        %3597 = vmatpush1.bf16.msra.mxu0 %v3119
        %3598 = vmatprep.subr.bf16.mxu0 %v3127
        %3599 = vmatpush1.bf16.msra.mxu0 %v3126
        %3600 = vmatprep.subr.bf16.mxu0 %v3134
        %3601 = vmatpush1.bf16.msra.mxu0 %v3133
        %3602 = vmatprep.subr.bf16.mxu0 %v3141
        %3603 = vmatpush1.bf16.msra.mxu0 %v3140
        %3604 = vmatprep.mubr.bf16.mxu0 %v2210
        %3605 = vmatmul.mubr.bf16.gmra.mrb[0].mxu0 %v2203
        %v3606 = vpop.f32.mrb[0].mxu0
        %v3607 = vadd.f32 %v3566, %v3606
        %v3608 = vpop.f32.mrb[0].mxu0
        %v3609 = vadd.f32 %v3568, %v3608
        %v3610 = vpop.f32.mrb[0].mxu0
        %v3611 = vpop.f32.mrb[0].mxu0
        %3612 = vdwg.mxu0
        %3613 = vmatprep.subr.bf16.mxu0 0
        %3614 = vmatpush1.bf16.msra.mxu0 %v2925
        %3615 = vmatprep.subr.bf16.mxu0 0
        %3616 = vmatpush1.bf16.msra.mxu0 %v2932
        %3617 = vmatprep.subr.bf16.mxu0 0
        %3618 = vmatpush1.bf16.msra.mxu0 %v2939
        %3619 = vmatprep.subr.bf16.mxu0 0
        %3620 = vmatpush1.bf16.msra.mxu0 %v2946
        %3621 = vmatprep.subr.bf16.mxu0 0
        %3622 = vmatpush1.bf16.msra.mxu0 %v2953
        %3623 = vmatprep.subr.bf16.mxu0 0
        %3624 = vmatpush1.bf16.msra.mxu0 %v2960
        %3625 = vmatprep.subr.bf16.mxu0 0
        %3626 = vmatpush1.bf16.msra.mxu0 %v2967
        %3627 = vmatprep.subr.bf16.mxu0 0
        %3628 = vmatpush1.bf16.msra.mxu0 %v2974
        %3629 = vmatprep.subr.bf16.mxu0 0
        %3630 = vmatpush1.bf16.msra.mxu0 %v2981
        %3631 = vmatprep.subr.bf16.mxu0 0
        %3632 = vmatpush1.bf16.msra.mxu0 %v2988
        %3633 = vmatprep.subr.bf16.mxu0 0
        %3634 = vmatpush1.bf16.msra.mxu0 %v2995
        %3635 = vmatprep.subr.bf16.mxu0 0
        %3636 = vmatpush1.bf16.msra.mxu0 %v3002
        %3637 = vmatprep.subr.bf16.mxu0 0
        %3638 = vmatpush1.bf16.msra.mxu0 %v3009
        %3639 = vmatprep.subr.bf16.mxu0 0
        %3640 = vmatpush1.bf16.msra.mxu0 %v3016
        %3641 = vmatprep.subr.bf16.mxu0 0
        %3642 = vmatpush1.bf16.msra.mxu0 %v3023
        %3643 = vmatprep.subr.bf16.mxu0 0
        %3644 = vmatpush1.bf16.msra.mxu0 %v3030
        %3645 = vmatprep.mubr.bf16.mxu0 %v2196
        %3646 = vmatmul.mubr.bf16.gmra.mrb[0].mxu0 %v2189
        %v3647 = vpop.f32.mrb[0].mxu0
        %v3648 = vadd.f32 0.0, %v3647
        %v3649 = vpop.f32.mrb[0].mxu0
        %v3650 = vpop.f32.mrb[0].mxu0
        %v3651 = vpop.f32.mrb[0].mxu0
        %3652 = vdwg.mxu0
        %3653 = vmatprep.subr.bf16.mxu0 0
        %3654 = vmatpush1.bf16.msra.mxu0 %v3037
        %3655 = vmatprep.subr.bf16.mxu0 0
        %3656 = vmatpush1.bf16.msra.mxu0 %v3044
        %3657 = vmatprep.subr.bf16.mxu0 0
        %3658 = vmatpush1.bf16.msra.mxu0 %v3051
        %3659 = vmatprep.subr.bf16.mxu0 0
        %3660 = vmatpush1.bf16.msra.mxu0 %v3058
        %3661 = vmatprep.subr.bf16.mxu0 0
        %3662 = vmatpush1.bf16.msra.mxu0 %v3065
        %3663 = vmatprep.subr.bf16.mxu0 0
        %3664 = vmatpush1.bf16.msra.mxu0 %v3072
        %3665 = vmatprep.subr.bf16.mxu0 0
        %3666 = vmatpush1.bf16.msra.mxu0 %v3079
        %3667 = vmatprep.subr.bf16.mxu0 0
        %3668 = vmatpush1.bf16.msra.mxu0 %v3086
        %3669 = vmatprep.subr.bf16.mxu0 0
        %3670 = vmatpush1.bf16.msra.mxu0 %v3093
        %3671 = vmatprep.subr.bf16.mxu0 0
        %3672 = vmatpush1.bf16.msra.mxu0 %v3100
        %3673 = vmatprep.subr.bf16.mxu0 0
        %3674 = vmatpush1.bf16.msra.mxu0 %v3107
        %3675 = vmatprep.subr.bf16.mxu0 0
        %3676 = vmatpush1.bf16.msra.mxu0 %v3114
        %3677 = vmatprep.subr.bf16.mxu0 0
        %3678 = vmatpush1.bf16.msra.mxu0 %v3121
        %3679 = vmatprep.subr.bf16.mxu0 0
        %3680 = vmatpush1.bf16.msra.mxu0 %v3128
        %3681 = vmatprep.subr.bf16.mxu0 0
        %3682 = vmatpush1.bf16.msra.mxu0 %v3135
        %3683 = vmatprep.subr.bf16.mxu0 0
        %3684 = vmatpush1.bf16.msra.mxu0 %v3142
        %3685 = vmatprep.mubr.bf16.mxu0 %v2210
        %3686 = vmatmul.mubr.bf16.gmra.mrb[0].mxu0 %v2203
        %v3687 = vpop.f32.mrb[0].mxu0
        %v3688 = vadd.f32 %v3648, %v3687
        %v3689 = vpop.f32.mrb[0].mxu0
        %v3690 = vpop.f32.mrb[0].mxu0
        %v3691 = vpop.f32.mrb[0].mxu0
        %3692 = vdwg.mxu0
        %v3949 = vunpack.c.l.b16 %v1662
        %v3950 = vunpack.c.h.b16 %v1662
        %v3951 = vunpack.c.l.b16 %v1663
        %v3952 = vunpack.c.h.b16 %v1663
        %v3953 = vunpack.c.l.b16 %v1664
        %v3954 = vunpack.c.h.b16 %v1664
        %v3955 = vunpack.c.l.b16 %v1665
        %v3956 = vunpack.c.l.b16 %v1666
        %v3957 = vunpack.c.h.b16 %v1666
        %v3958 = vunpack.c.l.b16 %v1667
        %v3959 = vunpack.c.h.b16 %v1667
        %v3960 = vunpack.c.l.b16 %v1668
        %v3961 = vunpack.c.h.b16 %v1668
        %v3962 = vunpack.c.l.b16 %v1669
        %v3963 = vunpack.c.l.b16 %v1670
        %v3964 = vunpack.c.h.b16 %v1670
        %v3965 = vunpack.c.l.b16 %v1671
        %v3966 = vunpack.c.h.b16 %v1671
        %v3967 = vunpack.c.l.b16 %v1672
        %v3968 = vunpack.c.h.b16 %v1672
        %v3969 = vunpack.c.l.b16 %v1673
        %v3970 = vunpack.c.l.b16 %v1674
        %v3971 = vunpack.c.h.b16 %v1674
        %v3972 = vunpack.c.l.b16 %v1675
        %v3973 = vunpack.c.h.b16 %v1675
        %v3974 = vunpack.c.l.b16 %v1676
        %v3975 = vunpack.c.h.b16 %v1676
        %v3976 = vunpack.c.l.b16 %v1677
        %v3977 = vunpack.c.l.b16 %v1678
        %v3978 = vunpack.c.h.b16 %v1678
        %v3979 = vunpack.c.l.b16 %v1679
        %v3980 = vunpack.c.h.b16 %v1679
        %v3981 = vunpack.c.l.b16 %v1680
        %v3982 = vunpack.c.h.b16 %v1680
        %v3983 = vunpack.c.l.b16 %v1681
        %v3984 = vunpack.c.l.b16 %v1682
        %v3985 = vunpack.c.h.b16 %v1682
        %v3986 = vunpack.c.l.b16 %v1683
        %v3987 = vunpack.c.h.b16 %v1683
        %v3988 = vunpack.c.l.b16 %v1684
        %v3989 = vunpack.c.h.b16 %v1684
        %v3990 = vunpack.c.l.b16 %v1685
        %v3991 = vunpack.c.l.b16 %v1686
        %v3992 = vunpack.c.h.b16 %v1686
        %v3993 = vunpack.c.l.b16 %v1687
        %v3994 = vunpack.c.h.b16 %v1687
        %v3995 = vunpack.c.l.b16 %v1688
        %v3996 = vunpack.c.h.b16 %v1688
        %v3997 = vunpack.c.l.b16 %v1689
        %v3998 = vunpack.c.l.b16 %v1690
        %v3999 = vunpack.c.h.b16 %v1690
        %v4000 = vunpack.c.l.b16 %v1691
        %v4001 = vunpack.c.h.b16 %v1691
        %v4002 = vunpack.c.l.b16 %v1692
        %v4003 = vunpack.c.h.b16 %v1692
        %v4004 = vunpack.c.l.b16 %v1693
        %v4005 = vunpack.c.l.b16 %v1694
        %v4006 = vunpack.c.h.b16 %v1694
        %v4007 = vunpack.c.l.b16 %v1695
        %v4008 = vunpack.c.h.b16 %v1695
        %v4009 = vunpack.c.l.b16 %v1696
        %v4010 = vunpack.c.h.b16 %v1696
        %v4011 = vunpack.c.l.b16 %v1697
        %v4012 = vunpack.c.l.b16 %v1698
        %v4013 = vunpack.c.h.b16 %v1698
        %v4014 = vunpack.c.l.b16 %v1699
        %v4015 = vunpack.c.h.b16 %v1699
        %v4016 = vunpack.c.l.b16 %v1700
        %v4017 = vunpack.c.h.b16 %v1700
        %v4018 = vunpack.c.l.b16 %v1701
        %v4019 = vunpack.c.l.b16 %v1702
        %v4020 = vunpack.c.h.b16 %v1702
        %v4021 = vunpack.c.l.b16 %v1703
        %v4022 = vunpack.c.h.b16 %v1703
        %v4023 = vunpack.c.l.b16 %v1704
        %v4024 = vunpack.c.h.b16 %v1704
        %v4025 = vunpack.c.l.b16 %v1705
        %v4026 = vunpack.c.l.b16 %v1706
        %v4027 = vunpack.c.h.b16 %v1706
        %v4028 = vunpack.c.l.b16 %v1707
        %v4029 = vunpack.c.h.b16 %v1707
        %v4030 = vunpack.c.l.b16 %v1708
        %v4031 = vunpack.c.h.b16 %v1708
        %v4032 = vunpack.c.l.b16 %v1709
        %v4033 = vunpack.c.l.b16 %v1710
        %v4034 = vunpack.c.h.b16 %v1710
        %v4035 = vunpack.c.l.b16 %v1711
        %v4036 = vunpack.c.h.b16 %v1711
        %v4037 = vunpack.c.l.b16 %v1712
        %v4038 = vunpack.c.h.b16 %v1712
        %v4039 = vunpack.c.l.b16 %v1713
        %v4040 = vunpack.c.l.b16 %v1714
        %v4041 = vunpack.c.h.b16 %v1714
        %v4042 = vunpack.c.l.b16 %v1715
        %v4043 = vunpack.c.h.b16 %v1715
        %v4044 = vunpack.c.l.b16 %v1716
        %v4045 = vunpack.c.h.b16 %v1716
        %v4046 = vunpack.c.l.b16 %v1717
        %v4047 = vunpack.c.l.b16 %v1718
        %v4048 = vunpack.c.h.b16 %v1718
        %v4049 = vunpack.c.l.b16 %v1719
        %v4050 = vunpack.c.h.b16 %v1719
        %v4051 = vunpack.c.l.b16 %v1720
        %v4052 = vunpack.c.h.b16 %v1720
        %v4053 = vunpack.c.l.b16 %v1721
        %v4054 = vunpack.c.l.b16 %v1722
        %v4055 = vunpack.c.h.b16 %v1722
        %v4056 = vunpack.c.l.b16 %v1723
        %v4057 = vunpack.c.h.b16 %v1723
        %v4058 = vunpack.c.l.b16 %v1724
        %v4059 = vunpack.c.h.b16 %v1724
        %v4060 = vunpack.c.l.b16 %v1725
        %v4061 = vunpack.c.l.b16 %v1726
        %v4062 = vunpack.c.h.b16 %v1726
        %v4063 = vunpack.c.l.b16 %v1727
        %v4064 = vunpack.c.h.b16 %v1727
        %v4065 = vunpack.c.l.b16 %v1728
        %v4066 = vunpack.c.h.b16 %v1728
        %v4067 = vunpack.c.l.b16 %v1729
        %v4068 = vunpack.c.l.b16 %v1730
        %v4069 = vunpack.c.h.b16 %v1730
        %v4070 = vunpack.c.l.b16 %v1731
        %v4071 = vunpack.c.h.b16 %v1731
        %v4072 = vunpack.c.l.b16 %v1732
        %v4073 = vunpack.c.h.b16 %v1732
        %v4074 = vunpack.c.l.b16 %v1733
        %v4075 = vunpack.c.l.b16 %v1734
        %v4076 = vunpack.c.h.b16 %v1734
        %v4077 = vunpack.c.l.b16 %v1735
        %v4078 = vunpack.c.h.b16 %v1735
        %v4079 = vunpack.c.l.b16 %v1736
        %v4080 = vunpack.c.h.b16 %v1736
        %v4081 = vunpack.c.l.b16 %v1737
        %v4082 = vunpack.c.l.b16 %v1738
        %v4083 = vunpack.c.h.b16 %v1738
        %v4084 = vunpack.c.l.b16 %v1739
        %v4085 = vunpack.c.h.b16 %v1739
        %v4086 = vunpack.c.l.b16 %v1740
        %v4087 = vunpack.c.h.b16 %v1740
        %v4088 = vunpack.c.l.b16 %v1741
        %v4089 = vunpack.c.l.b16 %v1742
        %v4090 = vunpack.c.h.b16 %v1742
        %v4091 = vunpack.c.l.b16 %v1743
        %v4092 = vunpack.c.h.b16 %v1743
        %v4093 = vunpack.c.l.b16 %v1744
        %v4094 = vunpack.c.h.b16 %v1744
        %v4095 = vunpack.c.l.b16 %v1745
        %v4096 = vunpack.c.l.b16 %v1746
        %v4097 = vunpack.c.h.b16 %v1746
        %v4098 = vunpack.c.l.b16 %v1747
        %v4099 = vunpack.c.h.b16 %v1747
        %v4100 = vunpack.c.l.b16 %v1748
        %v4101 = vunpack.c.h.b16 %v1748
        %v4102 = vunpack.c.l.b16 %v1749
        %v4103 = vunpack.c.l.b16 %v1750
        %v4104 = vunpack.c.h.b16 %v1750
        %v4105 = vunpack.c.l.b16 %v1751
        %v4106 = vunpack.c.h.b16 %v1751
        %v4107 = vunpack.c.l.b16 %v1752
        %v4108 = vunpack.c.h.b16 %v1752
        %v4109 = vunpack.c.l.b16 %v1753
        %v4110 = vunpack.c.l.b16 %v1754
        %v4111 = vunpack.c.h.b16 %v1754
        %v4112 = vunpack.c.l.b16 %v1755
        %v4113 = vunpack.c.h.b16 %v1755
        %v4114 = vunpack.c.l.b16 %v1756
        %v4115 = vunpack.c.h.b16 %v1756
        %v4116 = vunpack.c.l.b16 %v1757
        %v4117 = vunpack.c.l.b16 %v1758
        %v4118 = vunpack.c.h.b16 %v1758
        %v4119 = vunpack.c.l.b16 %v1759
        %v4120 = vunpack.c.h.b16 %v1759
        %v4121 = vunpack.c.l.b16 %v1760
        %v4122 = vunpack.c.h.b16 %v1760
        %v4123 = vunpack.c.l.b16 %v1761
        %v4124 = vunpack.c.l.b16 %v1762
        %v4125 = vunpack.c.h.b16 %v1762
        %v4126 = vunpack.c.l.b16 %v1763
        %v4127 = vunpack.c.h.b16 %v1763
        %v4128 = vunpack.c.l.b16 %v1764
        %v4129 = vunpack.c.h.b16 %v1764
        %v4130 = vunpack.c.l.b16 %v1765
        %v4131 = vunpack.c.l.b16 %v1766
        %v4132 = vunpack.c.h.b16 %v1766
        %v4133 = vunpack.c.l.b16 %v1767
        %v4134 = vunpack.c.h.b16 %v1767
        %v4135 = vunpack.c.l.b16 %v1768
        %v4136 = vunpack.c.h.b16 %v1768
        %v4137 = vunpack.c.l.b16 %v1769
        %v4138 = vunpack.c.l.b16 %v1770
        %v4139 = vunpack.c.h.b16 %v1770
        %v4140 = vunpack.c.l.b16 %v1771
        %v4141 = vunpack.c.h.b16 %v1771
        %v4142 = vunpack.c.l.b16 %v1772
        %v4143 = vunpack.c.h.b16 %v1772
        %v4144 = vunpack.c.l.b16 %v1773
        %v4145 = vunpack.c.l.b16 %v1774
        %v4146 = vunpack.c.h.b16 %v1774
        %v4147 = vunpack.c.l.b16 %v1775
        %v4148 = vunpack.c.h.b16 %v1775
        %v4149 = vunpack.c.l.b16 %v1776
        %v4150 = vunpack.c.h.b16 %v1776
        %v4151 = vunpack.c.l.b16 %v1777
        %v4152 = vunpack.c.l.b16 %v1778
        %v4153 = vunpack.c.h.b16 %v1778
        %v4154 = vunpack.c.l.b16 %v1779
        %v4155 = vunpack.c.h.b16 %v1779
        %v4156 = vunpack.c.l.b16 %v1780
        %v4157 = vunpack.c.h.b16 %v1780
        %v4158 = vunpack.c.l.b16 %v1781
        %v4159 = vunpack.c.l.b16 %v1782
        %v4160 = vunpack.c.h.b16 %v1782
        %v4161 = vunpack.c.l.b16 %v1783
        %v4162 = vunpack.c.h.b16 %v1783
        %v4163 = vunpack.c.l.b16 %v1784
        %v4164 = vunpack.c.h.b16 %v1784
        %v4165 = vunpack.c.l.b16 %v1785
        %v4166 = vunpack.c.l.b16 %v1786
        %v4167 = vunpack.c.h.b16 %v1786
        %v4168 = vunpack.c.l.b16 %v1787
        %v4169 = vunpack.c.h.b16 %v1787
        %v4170 = vunpack.c.l.b16 %v1788
        %v4171 = vunpack.c.h.b16 %v1788
        %v4172 = vunpack.c.l.b16 %v1789
        %v4173 = vunpack.c.l.b16 %v1790
        %v4174 = vunpack.c.h.b16 %v1790
        %v4175 = vunpack.c.l.b16 %v1791
        %v4176 = vunpack.c.h.b16 %v1791
        %v4177 = vunpack.c.l.b16 %v1792
        %v4178 = vunpack.c.h.b16 %v1792
        %v4179 = vunpack.c.l.b16 %v1793
        %v4180 = vunpack.c.l.b16 %v1794
        %v4181 = vunpack.c.h.b16 %v1794
        %v4182 = vunpack.c.l.b16 %v1795
        %v4183 = vunpack.c.h.b16 %v1795
        %v4184 = vunpack.c.l.b16 %v1796
        %v4185 = vunpack.c.h.b16 %v1796
        %v4186 = vunpack.c.l.b16 %v1797
        %v4187 = vunpack.c.l.b16 %v1798
        %v4188 = vunpack.c.h.b16 %v1798
        %v4189 = vunpack.c.l.b16 %v1799
        %v4190 = vunpack.c.h.b16 %v1799
        %v4191 = vunpack.c.l.b16 %v1800
        %v4192 = vunpack.c.h.b16 %v1800
        %v4193 = vunpack.c.l.b16 %v1801
        %v4194 = vunpack.c.l.b16 %v1802
        %v4195 = vunpack.c.h.b16 %v1802
        %v4196 = vunpack.c.l.b16 %v1803
        %v4197 = vunpack.c.h.b16 %v1803
        %v4198 = vunpack.c.l.b16 %v1804
        %v4199 = vunpack.c.h.b16 %v1804
        %v4200 = vunpack.c.l.b16 %v1805
        %v4201 = vunpack.c.l.b16 %v1806
        %v4202 = vunpack.c.h.b16 %v1806
        %v4203 = vunpack.c.l.b16 %v1807
        %v4204 = vunpack.c.h.b16 %v1807
        %v4205 = vunpack.c.l.b16 %v1808
        %v4206 = vunpack.c.h.b16 %v1808
        %v4207 = vunpack.c.l.b16 %v1809
        %v4208 = vunpack.c.l.b16 %v1810
        %v4209 = vunpack.c.h.b16 %v1810
        %v4210 = vunpack.c.l.b16 %v1811
        %v4211 = vunpack.c.h.b16 %v1811
        %v4212 = vunpack.c.l.b16 %v1812
        %v4213 = vunpack.c.h.b16 %v1812
        %v4214 = vunpack.c.l.b16 %v1813
        %v4215 = vunpack.c.l.b16 %v1814
        %v4216 = vunpack.c.h.b16 %v1814
        %v4217 = vunpack.c.l.b16 %v1815
        %v4218 = vunpack.c.h.b16 %v1815
        %v4219 = vunpack.c.l.b16 %v1816
        %v4220 = vunpack.c.h.b16 %v1816
        %v4221 = vunpack.c.l.b16 %v1817
        %v4222 = vunpack.c.l.b16 %v1818
        %v4223 = vunpack.c.h.b16 %v1818
        %v4224 = vunpack.c.l.b16 %v1819
        %v4225 = vunpack.c.h.b16 %v1819
        %v4226 = vunpack.c.l.b16 %v1820
        %v4227 = vunpack.c.h.b16 %v1820
        %v4228 = vunpack.c.l.b16 %v1821
        %v4229 = vunpack.c.l.b16 %v1822
        %v4230 = vunpack.c.h.b16 %v1822
        %v4231 = vunpack.c.l.b16 %v1823
        %v4232 = vunpack.c.h.b16 %v1823
        %v4233 = vunpack.c.l.b16 %v1824
        %v4234 = vunpack.c.h.b16 %v1824
        %v4235 = vunpack.c.l.b16 %v1825
        %v4236 = vunpack.c.l.b16 %v1826
        %v4237 = vunpack.c.h.b16 %v1826
        %v4238 = vunpack.c.l.b16 %v1827
        %v4239 = vunpack.c.h.b16 %v1827
        %v4240 = vunpack.c.l.b16 %v1828
        %v4241 = vunpack.c.h.b16 %v1828
        %v4242 = vunpack.c.l.b16 %v1829
        %v4243 = vunpack.c.l.b16 %v1830
        %v4244 = vunpack.c.h.b16 %v1830
        %v4245 = vunpack.c.l.b16 %v1831
        %v4246 = vunpack.c.h.b16 %v1831
        %v4247 = vunpack.c.l.b16 %v1832
        %v4248 = vunpack.c.h.b16 %v1832
        %v4249 = vunpack.c.l.b16 %v1833
        %v4250 = vunpack.c.l.b16 %v1834
        %v4251 = vunpack.c.h.b16 %v1834
        %v4252 = vunpack.c.l.b16 %v1835
        %v4253 = vunpack.c.h.b16 %v1835
        %v4254 = vunpack.c.l.b16 %v1836
        %v4255 = vunpack.c.h.b16 %v1836
        %v4256 = vunpack.c.l.b16 %v1837
        %v4257 = vunpack.c.l.b16 %v1838
        %v4258 = vunpack.c.h.b16 %v1838
        %v4259 = vunpack.c.l.b16 %v1839
        %v4260 = vunpack.c.h.b16 %v1839
        %v4261 = vunpack.c.l.b16 %v1840
        %v4262 = vunpack.c.h.b16 %v1840
        %v4263 = vunpack.c.l.b16 %v1841
        %v4264 = vunpack.c.l.b16 %v1842
        %v4265 = vunpack.c.h.b16 %v1842
        %v4266 = vunpack.c.l.b16 %v1843
        %v4267 = vunpack.c.h.b16 %v1843
        %v4268 = vunpack.c.l.b16 %v1844
        %v4269 = vunpack.c.h.b16 %v1844
        %v4270 = vunpack.c.l.b16 %v1845
        %v4271 = vunpack.c.l.b16 %v1846
        %v4272 = vunpack.c.h.b16 %v1846
        %v4273 = vunpack.c.l.b16 %v1847
        %v4274 = vunpack.c.h.b16 %v1847
        %v4275 = vunpack.c.l.b16 %v1848
        %v4276 = vunpack.c.h.b16 %v1848
        %v4277 = vunpack.c.l.b16 %v1849
        %v4278 = vunpack.c.l.b16 %v1850
        %v4279 = vunpack.c.h.b16 %v1850
        %v4280 = vunpack.c.l.b16 %v1851
        %v4281 = vunpack.c.h.b16 %v1851
        %v4282 = vunpack.c.l.b16 %v1852
        %v4283 = vunpack.c.h.b16 %v1852
        %v4284 = vunpack.c.l.b16 %v1853
        %v4285 = vunpack.c.l.b16 %v1854
        %v4286 = vunpack.c.h.b16 %v1854
        %v4287 = vunpack.c.l.b16 %v1855
        %v4288 = vunpack.c.h.b16 %v1855
        %v4289 = vunpack.c.l.b16 %v1856
        %v4290 = vunpack.c.h.b16 %v1856
        %v4291 = vunpack.c.l.b16 %v1857
        %v4292 = vunpack.c.l.b16 %v1858
        %v4293 = vunpack.c.h.b16 %v1858
        %v4294 = vunpack.c.l.b16 %v1859
        %v4295 = vunpack.c.h.b16 %v1859
        %v4296 = vunpack.c.l.b16 %v1860
        %v4297 = vunpack.c.h.b16 %v1860
        %v4298 = vunpack.c.l.b16 %v1861
        %v4299 = vunpack.c.l.b16 %v1862
        %v4300 = vunpack.c.h.b16 %v1862
        %v4301 = vunpack.c.l.b16 %v1863
        %v4302 = vunpack.c.h.b16 %v1863
        %v4303 = vunpack.c.l.b16 %v1864
        %v4304 = vunpack.c.h.b16 %v1864
        %v4305 = vunpack.c.l.b16 %v1865
        %v4306 = vunpack.c.l.b16 %v1866
        %v4307 = vunpack.c.h.b16 %v1866
        %v4308 = vunpack.c.l.b16 %v1867
        %v4309 = vunpack.c.h.b16 %v1867
        %v4310 = vunpack.c.l.b16 %v1868
        %v4311 = vunpack.c.h.b16 %v1868
        %v4312 = vunpack.c.l.b16 %v1869
        %v4313 = vunpack.c.l.b16 %v1870
        %v4314 = vunpack.c.h.b16 %v1870
        %v4315 = vunpack.c.l.b16 %v1871
        %v4316 = vunpack.c.h.b16 %v1871
        %v4317 = vunpack.c.l.b16 %v1872
        %v4318 = vunpack.c.h.b16 %v1872
        %v4319 = vunpack.c.l.b16 %v1873
        %v4320 = vunpack.c.l.b16 %v1874
        %v4321 = vunpack.c.h.b16 %v1874
        %v4322 = vunpack.c.l.b16 %v1875
        %v4323 = vunpack.c.h.b16 %v1875
        %v4324 = vunpack.c.l.b16 %v1876
        %v4325 = vunpack.c.h.b16 %v1876
        %v4326 = vunpack.c.l.b16 %v1877
        %v4327 = vunpack.c.l.b16 %v1878
        %v4328 = vunpack.c.h.b16 %v1878
        %v4329 = vunpack.c.l.b16 %v1879
        %v4330 = vunpack.c.h.b16 %v1879
        %v4331 = vunpack.c.l.b16 %v1880
        %v4332 = vunpack.c.h.b16 %v1880
        %v4333 = vunpack.c.l.b16 %v1881
        %v4334 = vunpack.c.l.b16 %v1882
        %v4335 = vunpack.c.h.b16 %v1882
        %v4336 = vunpack.c.l.b16 %v1883
        %v4337 = vunpack.c.h.b16 %v1883
        %v4338 = vunpack.c.l.b16 %v1884
        %v4339 = vunpack.c.h.b16 %v1884
        %v4340 = vunpack.c.l.b16 %v1885
        %v4341 = vunpack.c.l.b16 %v1886
        %v4342 = vunpack.c.h.b16 %v1886
        %v4343 = vunpack.c.l.b16 %v1887
        %v4344 = vunpack.c.h.b16 %v1887
        %v4345 = vunpack.c.l.b16 %v1888
        %v4346 = vunpack.c.h.b16 %v1888
        %v4347 = vunpack.c.l.b16 %v1889
        %v4348 = vunpack.c.l.b16 %v1890
        %v4349 = vunpack.c.h.b16 %v1890
        %v4350 = vunpack.c.l.b16 %v1891
        %v4351 = vunpack.c.h.b16 %v1891
        %v4352 = vunpack.c.l.b16 %v1892
        %v4353 = vunpack.c.h.b16 %v1892
        %v4354 = vunpack.c.l.b16 %v1893
        %v4355 = vunpack.c.l.b16 %v1894
        %v4356 = vunpack.c.h.b16 %v1894
        %v4357 = vunpack.c.l.b16 %v1895
        %v4358 = vunpack.c.h.b16 %v1895
        %v4359 = vunpack.c.l.b16 %v1896
        %v4360 = vunpack.c.h.b16 %v1896
        %v4361 = vunpack.c.l.b16 %v1897
        %v4362 = vunpack.c.l.b16 %v1898
        %v4363 = vunpack.c.h.b16 %v1898
        %v4364 = vunpack.c.l.b16 %v1899
        %v4365 = vunpack.c.h.b16 %v1899
        %v4366 = vunpack.c.l.b16 %v1900
        %v4367 = vunpack.c.h.b16 %v1900
        %v4368 = vunpack.c.l.b16 %v1901
        %v4369 = vunpack.c.l.b16 %v1902
        %v4370 = vunpack.c.h.b16 %v1902
        %v4371 = vunpack.c.l.b16 %v1903
        %v4372 = vunpack.c.h.b16 %v1903
        %v4373 = vunpack.c.l.b16 %v1904
        %v4374 = vunpack.c.h.b16 %v1904
        %v4375 = vunpack.c.l.b16 %v1905
        %v4376 = vunpack.c.l.b16 %v1906
        %v4377 = vunpack.c.h.b16 %v1906
        %v4378 = vunpack.c.l.b16 %v1907
        %v4379 = vunpack.c.h.b16 %v1907
        %v4380 = vunpack.c.l.b16 %v1908
        %v4381 = vunpack.c.h.b16 %v1908
        %v4382 = vunpack.c.l.b16 %v1909
        %v4383 = vunpack.c.l.b16 %v1910
        %v4384 = vunpack.c.h.b16 %v1910
        %v4385 = vunpack.c.l.b16 %v1911
        %v4386 = vunpack.c.h.b16 %v1911
        %v4387 = vunpack.c.l.b16 %v1912
        %v4388 = vunpack.c.h.b16 %v1912
        %v4389 = vunpack.c.l.b16 %v1913
        %v4390 = vunpack.c.l.b16 %v1914
        %v4391 = vunpack.c.h.b16 %v1914
        %v4392 = vunpack.c.l.b16 %v1915
        %v4393 = vunpack.c.h.b16 %v1915
        %v4394 = vunpack.c.l.b16 %v1916
        %v4395 = vunpack.c.h.b16 %v1916
        %v4396 = vunpack.c.l.b16 %v1917
        %v4397 = vpack.c.b16 %v3956, %v3949
        %v4398 = vpack.c.b16 %v3957, %v3950
        %v4399 = vpack.c.b16 %v3958, %v3951
        %v4400 = vpack.c.b16 %v3959, %v3952
        %v4401 = vpack.c.b16 %v3960, %v3953
        %v4402 = vpack.c.b16 %v3961, %v3954
        %v4403 = vpack.c.b16 %v3962, %v3955
        %v4404 = vpack.c.b16 %v3970, %v3963
        %v4405 = vpack.c.b16 %v3971, %v3964
        %v4406 = vpack.c.b16 %v3972, %v3965
        %v4407 = vpack.c.b16 %v3973, %v3966
        %v4408 = vpack.c.b16 %v3974, %v3967
        %v4409 = vpack.c.b16 %v3975, %v3968
        %v4410 = vpack.c.b16 %v3976, %v3969
        %v4411 = vpack.c.b16 %v3984, %v3977
        %v4412 = vpack.c.b16 %v3985, %v3978
        %v4413 = vpack.c.b16 %v3986, %v3979
        %v4414 = vpack.c.b16 %v3987, %v3980
        %v4415 = vpack.c.b16 %v3988, %v3981
        %v4416 = vpack.c.b16 %v3989, %v3982
        %v4417 = vpack.c.b16 %v3990, %v3983
        %v4418 = vpack.c.b16 %v3998, %v3991
        %v4419 = vpack.c.b16 %v3999, %v3992
        %v4420 = vpack.c.b16 %v4000, %v3993
        %v4421 = vpack.c.b16 %v4001, %v3994
        %v4422 = vpack.c.b16 %v4002, %v3995
        %v4423 = vpack.c.b16 %v4003, %v3996
        %v4424 = vpack.c.b16 %v4004, %v3997
        %v4425 = vpack.c.b16 %v4012, %v4005
        %v4426 = vpack.c.b16 %v4013, %v4006
        %v4427 = vpack.c.b16 %v4014, %v4007
        %v4428 = vpack.c.b16 %v4015, %v4008
        %v4429 = vpack.c.b16 %v4016, %v4009
        %v4430 = vpack.c.b16 %v4017, %v4010
        %v4431 = vpack.c.b16 %v4018, %v4011
        %v4432 = vpack.c.b16 %v4026, %v4019
        %v4433 = vpack.c.b16 %v4027, %v4020
        %v4434 = vpack.c.b16 %v4028, %v4021
        %v4435 = vpack.c.b16 %v4029, %v4022
        %v4436 = vpack.c.b16 %v4030, %v4023
        %v4437 = vpack.c.b16 %v4031, %v4024
        %v4438 = vpack.c.b16 %v4032, %v4025
        %v4439 = vpack.c.b16 %v4040, %v4033
        %v4440 = vpack.c.b16 %v4041, %v4034
        %v4441 = vpack.c.b16 %v4042, %v4035
        %v4442 = vpack.c.b16 %v4043, %v4036
        %v4443 = vpack.c.b16 %v4044, %v4037
        %v4444 = vpack.c.b16 %v4045, %v4038
        %v4445 = vpack.c.b16 %v4046, %v4039
        %v4446 = vpack.c.b16 %v4054, %v4047
        %v4447 = vpack.c.b16 %v4055, %v4048
        %v4448 = vpack.c.b16 %v4056, %v4049
        %v4449 = vpack.c.b16 %v4057, %v4050
        %v4450 = vpack.c.b16 %v4058, %v4051
        %v4451 = vpack.c.b16 %v4059, %v4052
        %v4452 = vpack.c.b16 %v4060, %v4053
        %v4453 = vpack.c.b16 %v4068, %v4061
        %v4454 = vpack.c.b16 %v4069, %v4062
        %v4455 = vpack.c.b16 %v4070, %v4063
        %v4456 = vpack.c.b16 %v4071, %v4064
        %v4457 = vpack.c.b16 %v4072, %v4065
        %v4458 = vpack.c.b16 %v4073, %v4066
        %v4459 = vpack.c.b16 %v4074, %v4067
        %v4460 = vpack.c.b16 %v4082, %v4075
        %v4461 = vpack.c.b16 %v4083, %v4076
        %v4462 = vpack.c.b16 %v4084, %v4077
        %v4463 = vpack.c.b16 %v4085, %v4078
        %v4464 = vpack.c.b16 %v4086, %v4079
        %v4465 = vpack.c.b16 %v4087, %v4080
        %v4466 = vpack.c.b16 %v4088, %v4081
        %v4467 = vpack.c.b16 %v4096, %v4089
        %v4468 = vpack.c.b16 %v4097, %v4090
        %v4469 = vpack.c.b16 %v4098, %v4091
        %v4470 = vpack.c.b16 %v4099, %v4092
        %v4471 = vpack.c.b16 %v4100, %v4093
        %v4472 = vpack.c.b16 %v4101, %v4094
        %v4473 = vpack.c.b16 %v4102, %v4095
        %v4474 = vpack.c.b16 %v4110, %v4103
        %v4475 = vpack.c.b16 %v4111, %v4104
        %v4476 = vpack.c.b16 %v4112, %v4105
        %v4477 = vpack.c.b16 %v4113, %v4106
        %v4478 = vpack.c.b16 %v4114, %v4107
        %v4479 = vpack.c.b16 %v4115, %v4108
        %v4480 = vpack.c.b16 %v4116, %v4109
        %v4481 = vpack.c.b16 %v4124, %v4117
        %v4482 = vpack.c.b16 %v4125, %v4118
        %v4483 = vpack.c.b16 %v4126, %v4119
        %v4484 = vpack.c.b16 %v4127, %v4120
        %v4485 = vpack.c.b16 %v4128, %v4121
        %v4486 = vpack.c.b16 %v4129, %v4122
        %v4487 = vpack.c.b16 %v4130, %v4123
        %v4488 = vpack.c.b16 %v4138, %v4131
        %v4489 = vpack.c.b16 %v4139, %v4132
        %v4490 = vpack.c.b16 %v4140, %v4133
        %v4491 = vpack.c.b16 %v4141, %v4134
        %v4492 = vpack.c.b16 %v4142, %v4135
        %v4493 = vpack.c.b16 %v4143, %v4136
        %v4494 = vpack.c.b16 %v4144, %v4137
        %v4495 = vpack.c.b16 %v4152, %v4145
        %v4496 = vpack.c.b16 %v4153, %v4146
        %v4497 = vpack.c.b16 %v4154, %v4147
        %v4498 = vpack.c.b16 %v4155, %v4148
        %v4499 = vpack.c.b16 %v4156, %v4149
        %v4500 = vpack.c.b16 %v4157, %v4150
        %v4501 = vpack.c.b16 %v4158, %v4151
        %v4502 = vpack.c.b16 %v4166, %v4159
        %v4503 = vpack.c.b16 %v4167, %v4160
        %v4504 = vpack.c.b16 %v4168, %v4161
        %v4505 = vpack.c.b16 %v4169, %v4162
        %v4506 = vpack.c.b16 %v4170, %v4163
        %v4507 = vpack.c.b16 %v4171, %v4164
        %v4508 = vpack.c.b16 %v4172, %v4165
        %v4509 = vpack.c.b16 %v4180, %v4173
        %v4510 = vpack.c.b16 %v4181, %v4174
        %v4511 = vpack.c.b16 %v4182, %v4175
        %v4512 = vpack.c.b16 %v4183, %v4176
        %v4513 = vpack.c.b16 %v4184, %v4177
        %v4514 = vpack.c.b16 %v4185, %v4178
        %v4515 = vpack.c.b16 %v4186, %v4179
        %v4516 = vpack.c.b16 %v4194, %v4187
        %v4517 = vpack.c.b16 %v4195, %v4188
        %v4518 = vpack.c.b16 %v4196, %v4189
        %v4519 = vpack.c.b16 %v4197, %v4190
        %v4520 = vpack.c.b16 %v4198, %v4191
        %v4521 = vpack.c.b16 %v4199, %v4192
        %v4522 = vpack.c.b16 %v4200, %v4193
        %v4523 = vpack.c.b16 %v4208, %v4201
        %v4524 = vpack.c.b16 %v4209, %v4202
        %v4525 = vpack.c.b16 %v4210, %v4203
        %v4526 = vpack.c.b16 %v4211, %v4204
        %v4527 = vpack.c.b16 %v4212, %v4205
        %v4528 = vpack.c.b16 %v4213, %v4206
        %v4529 = vpack.c.b16 %v4214, %v4207
        %v4530 = vpack.c.b16 %v4222, %v4215
        %v4531 = vpack.c.b16 %v4223, %v4216
        %v4532 = vpack.c.b16 %v4224, %v4217
        %v4533 = vpack.c.b16 %v4225, %v4218
        %v4534 = vpack.c.b16 %v4226, %v4219
        %v4535 = vpack.c.b16 %v4227, %v4220
        %v4536 = vpack.c.b16 %v4228, %v4221
        %v4537 = vpack.c.b16 %v4236, %v4229
        %v4538 = vpack.c.b16 %v4237, %v4230
        %v4539 = vpack.c.b16 %v4238, %v4231
        %v4540 = vpack.c.b16 %v4239, %v4232
        %v4541 = vpack.c.b16 %v4240, %v4233
        %v4542 = vpack.c.b16 %v4241, %v4234
        %v4543 = vpack.c.b16 %v4242, %v4235
        %v4544 = vpack.c.b16 %v4250, %v4243
        %v4545 = vpack.c.b16 %v4251, %v4244
        %v4546 = vpack.c.b16 %v4252, %v4245
        %v4547 = vpack.c.b16 %v4253, %v4246
        %v4548 = vpack.c.b16 %v4254, %v4247
        %v4549 = vpack.c.b16 %v4255, %v4248
        %v4550 = vpack.c.b16 %v4256, %v4249
        %v4551 = vpack.c.b16 %v4264, %v4257
        %v4552 = vpack.c.b16 %v4265, %v4258
        %v4553 = vpack.c.b16 %v4266, %v4259
        %v4554 = vpack.c.b16 %v4267, %v4260
        %v4555 = vpack.c.b16 %v4268, %v4261
        %v4556 = vpack.c.b16 %v4269, %v4262
        %v4557 = vpack.c.b16 %v4270, %v4263
        %v4558 = vpack.c.b16 %v4278, %v4271
        %v4559 = vpack.c.b16 %v4279, %v4272
        %v4560 = vpack.c.b16 %v4280, %v4273
        %v4561 = vpack.c.b16 %v4281, %v4274
        %v4562 = vpack.c.b16 %v4282, %v4275
        %v4563 = vpack.c.b16 %v4283, %v4276
        %v4564 = vpack.c.b16 %v4284, %v4277
        %v4565 = vpack.c.b16 %v4292, %v4285
        %v4566 = vpack.c.b16 %v4293, %v4286
        %v4567 = vpack.c.b16 %v4294, %v4287
        %v4568 = vpack.c.b16 %v4295, %v4288
        %v4569 = vpack.c.b16 %v4296, %v4289
        %v4570 = vpack.c.b16 %v4297, %v4290
        %v4571 = vpack.c.b16 %v4298, %v4291
        %v4572 = vpack.c.b16 %v4306, %v4299
        %v4573 = vpack.c.b16 %v4307, %v4300
        %v4574 = vpack.c.b16 %v4308, %v4301
        %v4575 = vpack.c.b16 %v4309, %v4302
        %v4576 = vpack.c.b16 %v4310, %v4303
        %v4577 = vpack.c.b16 %v4311, %v4304
        %v4578 = vpack.c.b16 %v4312, %v4305
        %v4579 = vpack.c.b16 %v4320, %v4313
        %v4580 = vpack.c.b16 %v4321, %v4314
        %v4581 = vpack.c.b16 %v4322, %v4315
        %v4582 = vpack.c.b16 %v4323, %v4316
        %v4583 = vpack.c.b16 %v4324, %v4317
        %v4584 = vpack.c.b16 %v4325, %v4318
        %v4585 = vpack.c.b16 %v4326, %v4319
        %v4586 = vpack.c.b16 %v4334, %v4327
        %v4587 = vpack.c.b16 %v4335, %v4328
        %v4588 = vpack.c.b16 %v4336, %v4329
        %v4589 = vpack.c.b16 %v4337, %v4330
        %v4590 = vpack.c.b16 %v4338, %v4331
        %v4591 = vpack.c.b16 %v4339, %v4332
        %v4592 = vpack.c.b16 %v4340, %v4333
        %v4593 = vpack.c.b16 %v4348, %v4341
        %v4594 = vpack.c.b16 %v4349, %v4342
        %v4595 = vpack.c.b16 %v4350, %v4343
        %v4596 = vpack.c.b16 %v4351, %v4344
        %v4597 = vpack.c.b16 %v4352, %v4345
        %v4598 = vpack.c.b16 %v4353, %v4346
        %v4599 = vpack.c.b16 %v4354, %v4347
        %v4600 = vpack.c.b16 %v4362, %v4355
        %v4601 = vpack.c.b16 %v4363, %v4356
        %v4602 = vpack.c.b16 %v4364, %v4357
        %v4603 = vpack.c.b16 %v4365, %v4358
        %v4604 = vpack.c.b16 %v4366, %v4359
        %v4605 = vpack.c.b16 %v4367, %v4360
        %v4606 = vpack.c.b16 %v4368, %v4361
        %v4607 = vpack.c.b16 %v4376, %v4369
        %v4608 = vpack.c.b16 %v4377, %v4370
        %v4609 = vpack.c.b16 %v4378, %v4371
        %v4610 = vpack.c.b16 %v4379, %v4372
        %v4611 = vpack.c.b16 %v4380, %v4373
        %v4612 = vpack.c.b16 %v4381, %v4374
        %v4613 = vpack.c.b16 %v4382, %v4375
        %v4614 = vpack.c.b16 %v4390, %v4383
        %v4615 = vpack.c.b16 %v4391, %v4384
        %v4616 = vpack.c.b16 %v4392, %v4385
        %v4617 = vpack.c.b16 %v4393, %v4386
        %v4618 = vpack.c.b16 %v4394, %v4387
        %v4619 = vpack.c.b16 %v4395, %v4388
        %v4620 = vpack.c.b16 %v4396, %v4389
        %4845 = vmatprep.subr.bf16.mxu0 %v4398
        %4846 = vmatpush1.bf16.msra.mxu0 %v4397
        %4847 = vmatprep.subr.bf16.mxu0 %v4405
        %4848 = vmatpush1.bf16.msra.mxu0 %v4404
        %4849 = vmatprep.subr.bf16.mxu0 %v4412
        %4850 = vmatpush1.bf16.msra.mxu0 %v4411
        %4851 = vmatprep.subr.bf16.mxu0 %v4419
        %4852 = vmatpush1.bf16.msra.mxu0 %v4418
        %4853 = vmatprep.subr.bf16.mxu0 %v4426
        %4854 = vmatpush1.bf16.msra.mxu0 %v4425
        %4855 = vmatprep.subr.bf16.mxu0 %v4433
        %4856 = vmatpush1.bf16.msra.mxu0 %v4432
        %4857 = vmatprep.subr.bf16.mxu0 %v4440
        %4858 = vmatpush1.bf16.msra.mxu0 %v4439
        %4859 = vmatprep.subr.bf16.mxu0 %v4447
        %4860 = vmatpush1.bf16.msra.mxu0 %v4446
        %4861 = vmatprep.subr.bf16.mxu0 %v4454
        %4862 = vmatpush1.bf16.msra.mxu0 %v4453
        %4863 = vmatprep.subr.bf16.mxu0 %v4461
        %4864 = vmatpush1.bf16.msra.mxu0 %v4460
        %4865 = vmatprep.subr.bf16.mxu0 %v4468
        %4866 = vmatpush1.bf16.msra.mxu0 %v4467
        %4867 = vmatprep.subr.bf16.mxu0 %v4475
        %4868 = vmatpush1.bf16.msra.mxu0 %v4474
        %4869 = vmatprep.subr.bf16.mxu0 %v4482
        %4870 = vmatpush1.bf16.msra.mxu0 %v4481
        %4871 = vmatprep.subr.bf16.mxu0 %v4489
        %4872 = vmatpush1.bf16.msra.mxu0 %v4488
        %4873 = vmatprep.subr.bf16.mxu0 %v4496
        %4874 = vmatpush1.bf16.msra.mxu0 %v4495
        %4875 = vmatprep.subr.bf16.mxu0 %v4503
        %4876 = vmatpush1.bf16.msra.mxu0 %v4502
        %4877 = vmatprep.mubr.bf16.mxu0 %v1659
        %4878 = vmatmul.mubr.bf16.gmra.mrb[0].mxu0 %v1658
        %v4879 = vpop.f32.mrb[0].mxu0
        %v4880 = vadd.f32 %v3443, %v4879
        %v4881 = vpop.f32.mrb[0].mxu0
        %v4882 = vadd.f32 %v3445, %v4881
        %v4883 = vpop.f32.mrb[0].mxu0
        %v4884 = vpop.f32.mrb[0].mxu0
        %4885 = vdwg.mxu0
        %4886 = vmatprep.subr.bf16.mxu0 %v4510
        %4887 = vmatpush1.bf16.msra.mxu0 %v4509
        %4888 = vmatprep.subr.bf16.mxu0 %v4517
        %4889 = vmatpush1.bf16.msra.mxu0 %v4516
        %4890 = vmatprep.subr.bf16.mxu0 %v4524
        %4891 = vmatpush1.bf16.msra.mxu0 %v4523
        %4892 = vmatprep.subr.bf16.mxu0 %v4531
        %4893 = vmatpush1.bf16.msra.mxu0 %v4530
        %4894 = vmatprep.subr.bf16.mxu0 %v4538
        %4895 = vmatpush1.bf16.msra.mxu0 %v4537
        %4896 = vmatprep.subr.bf16.mxu0 %v4545
        %4897 = vmatpush1.bf16.msra.mxu0 %v4544
        %4898 = vmatprep.subr.bf16.mxu0 %v4552
        %4899 = vmatpush1.bf16.msra.mxu0 %v4551
        %4900 = vmatprep.subr.bf16.mxu0 %v4559
        %4901 = vmatpush1.bf16.msra.mxu0 %v4558
        %4902 = vmatprep.subr.bf16.mxu0 %v4566
        %4903 = vmatpush1.bf16.msra.mxu0 %v4565
        %4904 = vmatprep.subr.bf16.mxu0 %v4573
        %4905 = vmatpush1.bf16.msra.mxu0 %v4572
        %4906 = vmatprep.subr.bf16.mxu0 %v4580
        %4907 = vmatpush1.bf16.msra.mxu0 %v4579
        %4908 = vmatprep.subr.bf16.mxu0 %v4587
        %4909 = vmatpush1.bf16.msra.mxu0 %v4586
        %4910 = vmatprep.subr.bf16.mxu0 %v4594
        %4911 = vmatpush1.bf16.msra.mxu0 %v4593
        %4912 = vmatprep.subr.bf16.mxu0 %v4601
        %4913 = vmatpush1.bf16.msra.mxu0 %v4600
        %4914 = vmatprep.subr.bf16.mxu0 %v4608
        %4915 = vmatpush1.bf16.msra.mxu0 %v4607
        %4916 = vmatprep.subr.bf16.mxu0 %v4615
        %4917 = vmatpush1.bf16.msra.mxu0 %v4614
        %4918 = vmatprep.mubr.bf16.mxu0 %v1661
        %4919 = vmatmul.mubr.bf16.gmra.mrb[0].mxu0 %v1660
        %v4920 = vpop.f32.mrb[0].mxu0
        %v4921 = vadd.f32 %v4880, %v4920
        %v4922 = vpop.f32.mrb[0].mxu0
        %v4923 = vadd.f32 %v4882, %v4922
        %v4924 = vpop.f32.mrb[0].mxu0
        %v4925 = vpop.f32.mrb[0].mxu0
        %4926 = vdwg.mxu0
        %4927 = vmatprep.subr.bf16.mxu0 %v4400
        %4928 = vmatpush1.bf16.msra.mxu0 %v4399
        %4929 = vmatprep.subr.bf16.mxu0 %v4407
        %4930 = vmatpush1.bf16.msra.mxu0 %v4406
        %4931 = vmatprep.subr.bf16.mxu0 %v4414
        %4932 = vmatpush1.bf16.msra.mxu0 %v4413
        %4933 = vmatprep.subr.bf16.mxu0 %v4421
        %4934 = vmatpush1.bf16.msra.mxu0 %v4420
        %4935 = vmatprep.subr.bf16.mxu0 %v4428
        %4936 = vmatpush1.bf16.msra.mxu0 %v4427
        %4937 = vmatprep.subr.bf16.mxu0 %v4435
        %4938 = vmatpush1.bf16.msra.mxu0 %v4434
        %4939 = vmatprep.subr.bf16.mxu0 %v4442
        %4940 = vmatpush1.bf16.msra.mxu0 %v4441
        %4941 = vmatprep.subr.bf16.mxu0 %v4449
        %4942 = vmatpush1.bf16.msra.mxu0 %v4448
        %4943 = vmatprep.subr.bf16.mxu0 %v4456
        %4944 = vmatpush1.bf16.msra.mxu0 %v4455
        %4945 = vmatprep.subr.bf16.mxu0 %v4463
        %4946 = vmatpush1.bf16.msra.mxu0 %v4462
        %4947 = vmatprep.subr.bf16.mxu0 %v4470
        %4948 = vmatpush1.bf16.msra.mxu0 %v4469
        %4949 = vmatprep.subr.bf16.mxu0 %v4477
        %4950 = vmatpush1.bf16.msra.mxu0 %v4476
        %4951 = vmatprep.subr.bf16.mxu0 %v4484
        %4952 = vmatpush1.bf16.msra.mxu0 %v4483
        %4953 = vmatprep.subr.bf16.mxu0 %v4491
        %4954 = vmatpush1.bf16.msra.mxu0 %v4490
        %4955 = vmatprep.subr.bf16.mxu0 %v4498
        %4956 = vmatpush1.bf16.msra.mxu0 %v4497
        %4957 = vmatprep.subr.bf16.mxu0 %v4505
        %4958 = vmatpush1.bf16.msra.mxu0 %v4504
        %4959 = vmatprep.mubr.bf16.mxu0 %v1659
        %4960 = vmatmul.mubr.bf16.gmra.mrb[0].mxu0 %v1658
        %v4961 = vpop.f32.mrb[0].mxu0
        %v4962 = vadd.f32 %v3525, %v4961
        %v4963 = vpop.f32.mrb[0].mxu0
        %v4964 = vadd.f32 %v3527, %v4963
        %v4965 = vpop.f32.mrb[0].mxu0
        %v4966 = vpop.f32.mrb[0].mxu0
        %4967 = vdwg.mxu0
        %4968 = vmatprep.subr.bf16.mxu0 %v4512
        %4969 = vmatpush1.bf16.msra.mxu0 %v4511
        %4970 = vmatprep.subr.bf16.mxu0 %v4519
        %4971 = vmatpush1.bf16.msra.mxu0 %v4518
        %4972 = vmatprep.subr.bf16.mxu0 %v4526
        %4973 = vmatpush1.bf16.msra.mxu0 %v4525
        %4974 = vmatprep.subr.bf16.mxu0 %v4533
        %4975 = vmatpush1.bf16.msra.mxu0 %v4532
        %4976 = vmatprep.subr.bf16.mxu0 %v4540
        %4977 = vmatpush1.bf16.msra.mxu0 %v4539
        %4978 = vmatprep.subr.bf16.mxu0 %v4547
        %4979 = vmatpush1.bf16.msra.mxu0 %v4546
        %4980 = vmatprep.subr.bf16.mxu0 %v4554
        %4981 = vmatpush1.bf16.msra.mxu0 %v4553
        %4982 = vmatprep.subr.bf16.mxu0 %v4561
        %4983 = vmatpush1.bf16.msra.mxu0 %v4560
        %4984 = vmatprep.subr.bf16.mxu0 %v4568
        %4985 = vmatpush1.bf16.msra.mxu0 %v4567
        %4986 = vmatprep.subr.bf16.mxu0 %v4575
        %4987 = vmatpush1.bf16.msra.mxu0 %v4574
        %4988 = vmatprep.subr.bf16.mxu0 %v4582
        %4989 = vmatpush1.bf16.msra.mxu0 %v4581
        %4990 = vmatprep.subr.bf16.mxu0 %v4589
        %4991 = vmatpush1.bf16.msra.mxu0 %v4588
        %4992 = vmatprep.subr.bf16.mxu0 %v4596
        %4993 = vmatpush1.bf16.msra.mxu0 %v4595
        %4994 = vmatprep.subr.bf16.mxu0 %v4603
        %4995 = vmatpush1.bf16.msra.mxu0 %v4602
        %4996 = vmatprep.subr.bf16.mxu0 %v4610
        %4997 = vmatpush1.bf16.msra.mxu0 %v4609
        %4998 = vmatprep.subr.bf16.mxu0 %v4617
        %4999 = vmatpush1.bf16.msra.mxu0 %v4616
        %5000 = vmatprep.mubr.bf16.mxu0 %v1661
        %5001 = vmatmul.mubr.bf16.gmra.mrb[0].mxu0 %v1660
        %v5002 = vpop.f32.mrb[0].mxu0
        %v5003 = vadd.f32 %v4962, %v5002
        %v5004 = vpop.f32.mrb[0].mxu0
        %v5005 = vadd.f32 %v4964, %v5004
        %v5006 = vpop.f32.mrb[0].mxu0
        %v5007 = vpop.f32.mrb[0].mxu0
        %5008 = vdwg.mxu0
        %5009 = vmatprep.subr.bf16.mxu0 %v4402
        %5010 = vmatpush1.bf16.msra.mxu0 %v4401
        %5011 = vmatprep.subr.bf16.mxu0 %v4409
        %5012 = vmatpush1.bf16.msra.mxu0 %v4408
        %5013 = vmatprep.subr.bf16.mxu0 %v4416
        %5014 = vmatpush1.bf16.msra.mxu0 %v4415
        %5015 = vmatprep.subr.bf16.mxu0 %v4423
        %5016 = vmatpush1.bf16.msra.mxu0 %v4422
        %5017 = vmatprep.subr.bf16.mxu0 %v4430
        %5018 = vmatpush1.bf16.msra.mxu0 %v4429
        %5019 = vmatprep.subr.bf16.mxu0 %v4437
        %5020 = vmatpush1.bf16.msra.mxu0 %v4436
        %5021 = vmatprep.subr.bf16.mxu0 %v4444
        %5022 = vmatpush1.bf16.msra.mxu0 %v4443
        %5023 = vmatprep.subr.bf16.mxu0 %v4451
        %5024 = vmatpush1.bf16.msra.mxu0 %v4450
        %5025 = vmatprep.subr.bf16.mxu0 %v4458
        %5026 = vmatpush1.bf16.msra.mxu0 %v4457
        %5027 = vmatprep.subr.bf16.mxu0 %v4465
        %5028 = vmatpush1.bf16.msra.mxu0 %v4464
        %5029 = vmatprep.subr.bf16.mxu0 %v4472
        %5030 = vmatpush1.bf16.msra.mxu0 %v4471
        %5031 = vmatprep.subr.bf16.mxu0 %v4479
        %5032 = vmatpush1.bf16.msra.mxu0 %v4478
        %5033 = vmatprep.subr.bf16.mxu0 %v4486
        %5034 = vmatpush1.bf16.msra.mxu0 %v4485
        %5035 = vmatprep.subr.bf16.mxu0 %v4493
        %5036 = vmatpush1.bf16.msra.mxu0 %v4492
        %5037 = vmatprep.subr.bf16.mxu0 %v4500
        %5038 = vmatpush1.bf16.msra.mxu0 %v4499
        %5039 = vmatprep.subr.bf16.mxu0 %v4507
        %5040 = vmatpush1.bf16.msra.mxu0 %v4506
        %5041 = vmatprep.mubr.bf16.mxu0 %v1659
        %5042 = vmatmul.mubr.bf16.gmra.mrb[0].mxu0 %v1658
        %v5043 = vpop.f32.mrb[0].mxu0
        %v5044 = vadd.f32 %v3607, %v5043
        %v5045 = vpop.f32.mrb[0].mxu0
        %v5046 = vadd.f32 %v3609, %v5045
        %v5047 = vpop.f32.mrb[0].mxu0
        %v5048 = vpop.f32.mrb[0].mxu0
        %5049 = vdwg.mxu0
        %5050 = vmatprep.subr.bf16.mxu0 %v4514
        %5051 = vmatpush1.bf16.msra.mxu0 %v4513
        %5052 = vmatprep.subr.bf16.mxu0 %v4521
        %5053 = vmatpush1.bf16.msra.mxu0 %v4520
        %5054 = vmatprep.subr.bf16.mxu0 %v4528
        %5055 = vmatpush1.bf16.msra.mxu0 %v4527
        %5056 = vmatprep.subr.bf16.mxu0 %v4535
        %5057 = vmatpush1.bf16.msra.mxu0 %v4534
        %5058 = vmatprep.subr.bf16.mxu0 %v4542
        %5059 = vmatpush1.bf16.msra.mxu0 %v4541
        %5060 = vmatprep.subr.bf16.mxu0 %v4549
        %5061 = vmatpush1.bf16.msra.mxu0 %v4548
        %5062 = vmatprep.subr.bf16.mxu0 %v4556
        %5063 = vmatpush1.bf16.msra.mxu0 %v4555
        %5064 = vmatprep.subr.bf16.mxu0 %v4563
        %5065 = vmatpush1.bf16.msra.mxu0 %v4562
        %5066 = vmatprep.subr.bf16.mxu0 %v4570
        %5067 = vmatpush1.bf16.msra.mxu0 %v4569
        %5068 = vmatprep.subr.bf16.mxu0 %v4577
        %5069 = vmatpush1.bf16.msra.mxu0 %v4576
        %5070 = vmatprep.subr.bf16.mxu0 %v4584
        %5071 = vmatpush1.bf16.msra.mxu0 %v4583
        %5072 = vmatprep.subr.bf16.mxu0 %v4591
        %5073 = vmatpush1.bf16.msra.mxu0 %v4590
        %5074 = vmatprep.subr.bf16.mxu0 %v4598
        %5075 = vmatpush1.bf16.msra.mxu0 %v4597
        %5076 = vmatprep.subr.bf16.mxu0 %v4605
        %5077 = vmatpush1.bf16.msra.mxu0 %v4604
        %5078 = vmatprep.subr.bf16.mxu0 %v4612
        %5079 = vmatpush1.bf16.msra.mxu0 %v4611
        %5080 = vmatprep.subr.bf16.mxu0 %v4619
        %5081 = vmatpush1.bf16.msra.mxu0 %v4618
        %5082 = vmatprep.mubr.bf16.mxu0 %v1661
        %5083 = vmatmul.mubr.bf16.gmra.mrb[0].mxu0 %v1660
        %v5084 = vpop.f32.mrb[0].mxu0
        %v5085 = vadd.f32 %v5044, %v5084
        %v5086 = vpop.f32.mrb[0].mxu0
        %v5087 = vadd.f32 %v5046, %v5086
        %v5088 = vpop.f32.mrb[0].mxu0
        %v5089 = vpop.f32.mrb[0].mxu0
        %5090 = vdwg.mxu0
        %5091 = vmatprep.subr.bf16.mxu0 0
        %5092 = vmatpush1.bf16.msra.mxu0 %v4403
        %5093 = vmatprep.subr.bf16.mxu0 0
        %5094 = vmatpush1.bf16.msra.mxu0 %v4410
        %5095 = vmatprep.subr.bf16.mxu0 0
        %5096 = vmatpush1.bf16.msra.mxu0 %v4417
        %5097 = vmatprep.subr.bf16.mxu0 0
        %5098 = vmatpush1.bf16.msra.mxu0 %v4424
        %5099 = vmatprep.subr.bf16.mxu0 0
        %5100 = vmatpush1.bf16.msra.mxu0 %v4431
        %5101 = vmatprep.subr.bf16.mxu0 0
        %5102 = vmatpush1.bf16.msra.mxu0 %v4438
        %5103 = vmatprep.subr.bf16.mxu0 0
        %5104 = vmatpush1.bf16.msra.mxu0 %v4445
        %5105 = vmatprep.subr.bf16.mxu0 0
        %5106 = vmatpush1.bf16.msra.mxu0 %v4452
        %5107 = vmatprep.subr.bf16.mxu0 0
        %5108 = vmatpush1.bf16.msra.mxu0 %v4459
        %5109 = vmatprep.subr.bf16.mxu0 0
        %5110 = vmatpush1.bf16.msra.mxu0 %v4466
        %5111 = vmatprep.subr.bf16.mxu0 0
        %5112 = vmatpush1.bf16.msra.mxu0 %v4473
        %5113 = vmatprep.subr.bf16.mxu0 0
        %5114 = vmatpush1.bf16.msra.mxu0 %v4480
        %5115 = vmatprep.subr.bf16.mxu0 0
        %5116 = vmatpush1.bf16.msra.mxu0 %v4487
        %5117 = vmatprep.subr.bf16.mxu0 0
        %5118 = vmatpush1.bf16.msra.mxu0 %v4494
        %5119 = vmatprep.subr.bf16.mxu0 0
        %5120 = vmatpush1.bf16.msra.mxu0 %v4501
        %5121 = vmatprep.subr.bf16.mxu0 0
        %5122 = vmatpush1.bf16.msra.mxu0 %v4508
        %5123 = vmatprep.mubr.bf16.mxu0 %v1659
        %5124 = vmatmul.mubr.bf16.gmra.mrb[0].mxu0 %v1658
        %v5125 = vpop.f32.mrb[0].mxu0
        %v5126 = vadd.f32 %v3688, %v5125
        %v5127 = vpop.f32.mrb[0].mxu0
        %v5128 = vpop.f32.mrb[0].mxu0
        %v5129 = vpop.f32.mrb[0].mxu0
        %5130 = vdwg.mxu0
        %5131 = vmatprep.subr.bf16.mxu0 0
        %5132 = vmatpush1.bf16.msra.mxu0 %v4515
        %5133 = vmatprep.subr.bf16.mxu0 0
        %5134 = vmatpush1.bf16.msra.mxu0 %v4522
        %5135 = vmatprep.subr.bf16.mxu0 0
        %5136 = vmatpush1.bf16.msra.mxu0 %v4529
        %5137 = vmatprep.subr.bf16.mxu0 0
        %5138 = vmatpush1.bf16.msra.mxu0 %v4536
        %5139 = vmatprep.subr.bf16.mxu0 0
        %5140 = vmatpush1.bf16.msra.mxu0 %v4543
        %5141 = vmatprep.subr.bf16.mxu0 0
        %5142 = vmatpush1.bf16.msra.mxu0 %v4550
        %5143 = vmatprep.subr.bf16.mxu0 0
        %5144 = vmatpush1.bf16.msra.mxu0 %v4557
        %5145 = vmatprep.subr.bf16.mxu0 0
        %5146 = vmatpush1.bf16.msra.mxu0 %v4564
        %5147 = vmatprep.subr.bf16.mxu0 0
        %5148 = vmatpush1.bf16.msra.mxu0 %v4571
        %5149 = vmatprep.subr.bf16.mxu0 0
        %5150 = vmatpush1.bf16.msra.mxu0 %v4578
        %5151 = vmatprep.subr.bf16.mxu0 0
        %5152 = vmatpush1.bf16.msra.mxu0 %v4585
        %5153 = vmatprep.subr.bf16.mxu0 0
        %5154 = vmatpush1.bf16.msra.mxu0 %v4592
        %5155 = vmatprep.subr.bf16.mxu0 0
        %5156 = vmatpush1.bf16.msra.mxu0 %v4599
        %5157 = vmatprep.subr.bf16.mxu0 0
        %5158 = vmatpush1.bf16.msra.mxu0 %v4606
        %5159 = vmatprep.subr.bf16.mxu0 0
        %5160 = vmatpush1.bf16.msra.mxu0 %v4613
        %5161 = vmatprep.subr.bf16.mxu0 0
        %5162 = vmatpush1.bf16.msra.mxu0 %v4620
        %5163 = vmatprep.mubr.bf16.mxu0 %v1661
        %5164 = vmatmul.mubr.bf16.gmra.mrb[0].mxu0 %v1660
        %v5165 = vpop.f32.mrb[0].mxu0
        %v5166 = vadd.f32 %v5126, %v5165
        %v5167 = vpop.f32.mrb[0].mxu0
        %v5168 = vpop.f32.mrb[0].mxu0
        %v5169 = vpop.f32.mrb[0].mxu0
        %5170 = vdwg.mxu0
        %v5171 = vld [vmem:[#allocation2] sm:$0xfc]
        %v5172 = vld [vmem:[#allocation2 + $0x8] sm:$0xfc]
        %v5173 = vld [vmem:[#allocation2 + $0x10] sm:$0xfc]
        %v5174 = vld [vmem:[#allocation2 + $0x18] sm:$0xfc]
        %v5175 = vld [vmem:[#allocation2 + $0x20] sm:$0x1]
        %v5176 = vld [vmem:[#allocation2 + $0x28] sm:$0x1]
        %v5177 = vld [vmem:[#allocation2 + $0x30] sm:$0x1]
        %v5178 = vld [vmem:[#allocation2 + $0x38] sm:$0x1]
        %v5179 = vpack.c.bf16 %v5175, %v5171
        %v5180 = vpack.c.bf16 %v5176, %v5172
        %v5181 = vpack.c.bf16 %v5177, %v5173
        %v5182 = vpack.c.bf16 %v5178, %v5174
        %s5183 = scalar_lea.vmem [#allocation8], 3584
        %v5184 = vld [vmem:[%s5183] sm:$0xff]
        %v5185 = vld [vmem:[%s5183 + $0x8] sm:$0xff]
        %v5186 = vld [vmem:[%s5183 + $0x10] sm:$0xff]
        %v5187 = vld [vmem:[%s5183 + $0x18] sm:$0xf]
        %v5188 = vld [vmem:[%s5183 + $0x1c] sm:$0xff]
        %v5189 = vld [vmem:[%s5183 + $0x24] sm:$0xff]
        %v5190 = vld [vmem:[%s5183 + $0x2c] sm:$0xff]
        %v5191 = vld [vmem:[%s5183 + $0x34] sm:$0xf]
        %v5192 = vld [vmem:[%s5183 + $0x38] sm:$0xff]
        %v5193 = vld [vmem:[%s5183 + $0x40] sm:$0xff]
        %v5194 = vld [vmem:[%s5183 + $0x48] sm:$0xff]
        %v5195 = vld [vmem:[%s5183 + $0x50] sm:$0xf]
        %v5196 = vld [vmem:[%s5183 + $0x54] sm:$0xff]
        %v5197 = vld [vmem:[%s5183 + $0x5c] sm:$0xff]
        %v5198 = vld [vmem:[%s5183 + $0x64] sm:$0xff]
        %v5199 = vld [vmem:[%s5183 + $0x6c] sm:$0xf]
        %v5200 = vld [vmem:[%s5183 + $0x70] sm:$0xff]
        %v5201 = vld [vmem:[%s5183 + $0x78] sm:$0xff]
        %v5202 = vld [vmem:[%s5183 + $0x80] sm:$0xff]
        %v5203 = vld [vmem:[%s5183 + $0x88] sm:$0xf]
        %v5204 = vld [vmem:[%s5183 + $0x8c] sm:$0xff]
        %v5205 = vld [vmem:[%s5183 + $0x94] sm:$0xff]
        %v5206 = vld [vmem:[%s5183 + $0x9c] sm:$0xff]
        %v5207 = vld [vmem:[%s5183 + $0xa4] sm:$0xf]
        %v5208 = vld [vmem:[%s5183 + $0xa8] sm:$0xff]
        %v5209 = vld [vmem:[%s5183 + $0xb0] sm:$0xff]
        %v5210 = vld [vmem:[%s5183 + $0xb8] sm:$0xff]
        %v5211 = vld [vmem:[%s5183 + $0xc0] sm:$0xf]
        %v5212 = vld [vmem:[%s5183 + $0xc4] sm:$0xff]
        %v5213 = vld [vmem:[%s5183 + $0xcc] sm:$0xff]
        %v5214 = vld [vmem:[%s5183 + $0xd4] sm:$0xff]
        %v5215 = vld [vmem:[%s5183 + $0xdc] sm:$0xf]
        %v5216 = vld [vmem:[%s5183 + $0xe0] sm:$0xff]
        %v5217 = vld [vmem:[%s5183 + $0xe8] sm:$0xff]
        %v5218 = vld [vmem:[%s5183 + $0xf0] sm:$0xff]
        %v5219 = vld [vmem:[%s5183 + $0xf8] sm:$0xf]
        %v5220 = vld [vmem:[%s5183 + $0xfc] sm:$0xff]
        %v5221 = vld [vmem:[%s5183 + $0x104] sm:$0xff]
        %v5222 = vld [vmem:[%s5183 + $0x10c] sm:$0xff]
        %v5223 = vld [vmem:[%s5183 + $0x114] sm:$0xf]
        %v5224 = vld [vmem:[%s5183 + $0x118] sm:$0xff]
        %v5225 = vld [vmem:[%s5183 + $0x120] sm:$0xff]
        %v5226 = vld [vmem:[%s5183 + $0x128] sm:$0xff]
        %v5227 = vld [vmem:[%s5183 + $0x130] sm:$0xf]
        %v5228 = vld [vmem:[%s5183 + $0x134] sm:$0xff]
        %v5229 = vld [vmem:[%s5183 + $0x13c] sm:$0xff]
        %v5230 = vld [vmem:[%s5183 + $0x144] sm:$0xff]
        %v5231 = vld [vmem:[%s5183 + $0x14c] sm:$0xf]
        %v5232 = vld [vmem:[%s5183 + $0x150] sm:$0xff]
        %v5233 = vld [vmem:[%s5183 + $0x158] sm:$0xff]
        %v5234 = vld [vmem:[%s5183 + $0x160] sm:$0xff]
        %v5235 = vld [vmem:[%s5183 + $0x168] sm:$0xf]
        %v5236 = vld [vmem:[%s5183 + $0x16c] sm:$0xff]
        %v5237 = vld [vmem:[%s5183 + $0x174] sm:$0xff]
        %v5238 = vld [vmem:[%s5183 + $0x17c] sm:$0xff]
        %v5239 = vld [vmem:[%s5183 + $0x184] sm:$0xf]
        %v5240 = vld [vmem:[%s5183 + $0x188] sm:$0xff]
        %v5241 = vld [vmem:[%s5183 + $0x190] sm:$0xff]
        %v5242 = vld [vmem:[%s5183 + $0x198] sm:$0xff]
        %v5243 = vld [vmem:[%s5183 + $0x1a0] sm:$0xf]
        %v5244 = vld [vmem:[%s5183 + $0x1a4] sm:$0xff]
        %v5245 = vld [vmem:[%s5183 + $0x1ac] sm:$0xff]
        %v5246 = vld [vmem:[%s5183 + $0x1b4] sm:$0xff]
        %v5247 = vld [vmem:[%s5183 + $0x1bc] sm:$0xf]
        %v5248 = vld [vmem:[%s5183 + $0x1c0] sm:$0xff]
        %v5249 = vld [vmem:[%s5183 + $0x1c8] sm:$0xff]
        %v5250 = vld [vmem:[%s5183 + $0x1d0] sm:$0xff]
        %v5251 = vld [vmem:[%s5183 + $0x1d8] sm:$0xf]
        %v5252 = vld [vmem:[%s5183 + $0x1dc] sm:$0xff]
        %v5253 = vld [vmem:[%s5183 + $0x1e4] sm:$0xff]
        %v5254 = vld [vmem:[%s5183 + $0x1ec] sm:$0xff]
        %v5255 = vld [vmem:[%s5183 + $0x1f4] sm:$0xf]
        %v5256 = vld [vmem:[%s5183 + $0x1f8] sm:$0xff]
        %v5257 = vld [vmem:[%s5183 + $0x200] sm:$0xff]
        %v5258 = vld [vmem:[%s5183 + $0x208] sm:$0xff]
        %v5259 = vld [vmem:[%s5183 + $0x210] sm:$0xf]
        %v5260 = vld [vmem:[%s5183 + $0x214] sm:$0xff]
        %v5261 = vld [vmem:[%s5183 + $0x21c] sm:$0xff]
        %v5262 = vld [vmem:[%s5183 + $0x224] sm:$0xff]
        %v5263 = vld [vmem:[%s5183 + $0x22c] sm:$0xf]
        %v5264 = vld [vmem:[%s5183 + $0x230] sm:$0xff]
        %v5265 = vld [vmem:[%s5183 + $0x238] sm:$0xff]
        %v5266 = vld [vmem:[%s5183 + $0x240] sm:$0xff]
        %v5267 = vld [vmem:[%s5183 + $0x248] sm:$0xf]
        %v5268 = vld [vmem:[%s5183 + $0x24c] sm:$0xff]
        %v5269 = vld [vmem:[%s5183 + $0x254] sm:$0xff]
        %v5270 = vld [vmem:[%s5183 + $0x25c] sm:$0xff]
        %v5271 = vld [vmem:[%s5183 + $0x264] sm:$0xf]
        %v5272 = vld [vmem:[%s5183 + $0x268] sm:$0xff]
        %v5273 = vld [vmem:[%s5183 + $0x270] sm:$0xff]
        %v5274 = vld [vmem:[%s5183 + $0x278] sm:$0xff]
        %v5275 = vld [vmem:[%s5183 + $0x280] sm:$0xf]
        %v5276 = vld [vmem:[%s5183 + $0x284] sm:$0xff]
        %v5277 = vld [vmem:[%s5183 + $0x28c] sm:$0xff]
        %v5278 = vld [vmem:[%s5183 + $0x294] sm:$0xff]
        %v5279 = vld [vmem:[%s5183 + $0x29c] sm:$0xf]
        %v5280 = vld [vmem:[%s5183 + $0x2a0] sm:$0xff]
        %v5281 = vld [vmem:[%s5183 + $0x2a8] sm:$0xff]
        %v5282 = vld [vmem:[%s5183 + $0x2b0] sm:$0xff]
        %v5283 = vld [vmem:[%s5183 + $0x2b8] sm:$0xf]
        %v5284 = vld [vmem:[%s5183 + $0x2bc] sm:$0xff]
        %v5285 = vld [vmem:[%s5183 + $0x2c4] sm:$0xff]
        %v5286 = vld [vmem:[%s5183 + $0x2cc] sm:$0xff]
        %v5287 = vld [vmem:[%s5183 + $0x2d4] sm:$0xf]
        %v5288 = vld [vmem:[%s5183 + $0x2d8] sm:$0xff]
        %v5289 = vld [vmem:[%s5183 + $0x2e0] sm:$0xff]
        %v5290 = vld [vmem:[%s5183 + $0x2e8] sm:$0xff]
        %v5291 = vld [vmem:[%s5183 + $0x2f0] sm:$0xf]
        %v5292 = vld [vmem:[%s5183 + $0x2f4] sm:$0xff]
        %v5293 = vld [vmem:[%s5183 + $0x2fc] sm:$0xff]
        %v5294 = vld [vmem:[%s5183 + $0x304] sm:$0xff]
        %v5295 = vld [vmem:[%s5183 + $0x30c] sm:$0xf]
        %v5296 = vld [vmem:[%s5183 + $0x310] sm:$0xff]
        %v5297 = vld [vmem:[%s5183 + $0x318] sm:$0xff]
        %v5298 = vld [vmem:[%s5183 + $0x320] sm:$0xff]
        %v5299 = vld [vmem:[%s5183 + $0x328] sm:$0xf]
        %v5300 = vld [vmem:[%s5183 + $0x32c] sm:$0xff]
        %v5301 = vld [vmem:[%s5183 + $0x334] sm:$0xff]
        %v5302 = vld [vmem:[%s5183 + $0x33c] sm:$0xff]
        %v5303 = vld [vmem:[%s5183 + $0x344] sm:$0xf]
        %v5304 = vld [vmem:[%s5183 + $0x348] sm:$0xff]
        %v5305 = vld [vmem:[%s5183 + $0x350] sm:$0xff]
        %v5306 = vld [vmem:[%s5183 + $0x358] sm:$0xff]
        %v5307 = vld [vmem:[%s5183 + $0x360] sm:$0xf]
        %v5308 = vld [vmem:[%s5183 + $0x364] sm:$0xff]
        %v5309 = vld [vmem:[%s5183 + $0x36c] sm:$0xff]
        %v5310 = vld [vmem:[%s5183 + $0x374] sm:$0xff]
        %v5311 = vld [vmem:[%s5183 + $0x37c] sm:$0xf]
        %v5312 = vld [vmem:[%s5183 + $0x380] sm:$0xff]
        %v5313 = vld [vmem:[%s5183 + $0x388] sm:$0xff]
        %v5314 = vld [vmem:[%s5183 + $0x390] sm:$0xff]
        %v5315 = vld [vmem:[%s5183 + $0x398] sm:$0xf]
        %v5316 = vld [vmem:[%s5183 + $0x39c] sm:$0xff]
        %v5317 = vld [vmem:[%s5183 + $0x3a4] sm:$0xff]
        %v5318 = vld [vmem:[%s5183 + $0x3ac] sm:$0xff]
        %v5319 = vld [vmem:[%s5183 + $0x3b4] sm:$0xf]
        %v5320 = vld [vmem:[%s5183 + $0x3b8] sm:$0xff]
        %v5321 = vld [vmem:[%s5183 + $0x3c0] sm:$0xff]
        %v5322 = vld [vmem:[%s5183 + $0x3c8] sm:$0xff]
        %v5323 = vld [vmem:[%s5183 + $0x3d0] sm:$0xf]
        %v5324 = vld [vmem:[%s5183 + $0x3d4] sm:$0xff]
        %v5325 = vld [vmem:[%s5183 + $0x3dc] sm:$0xff]
        %v5326 = vld [vmem:[%s5183 + $0x3e4] sm:$0xff]
        %v5327 = vld [vmem:[%s5183 + $0x3ec] sm:$0xf]
        %v5328 = vld [vmem:[%s5183 + $0x3f0] sm:$0xff]
        %v5329 = vld [vmem:[%s5183 + $0x3f8] sm:$0xff]
        %v5330 = vld [vmem:[%s5183 + $0x400] sm:$0xff]
        %v5331 = vld [vmem:[%s5183 + $0x408] sm:$0xf]
        %v5332 = vld [vmem:[%s5183 + $0x40c] sm:$0xff]
        %v5333 = vld [vmem:[%s5183 + $0x414] sm:$0xff]
        %v5334 = vld [vmem:[%s5183 + $0x41c] sm:$0xff]
        %v5335 = vld [vmem:[%s5183 + $0x424] sm:$0xf]
        %v5336 = vld [vmem:[%s5183 + $0x428] sm:$0xff]
        %v5337 = vld [vmem:[%s5183 + $0x430] sm:$0xff]
        %v5338 = vld [vmem:[%s5183 + $0x438] sm:$0xff]
        %v5339 = vld [vmem:[%s5183 + $0x440] sm:$0xf]
        %v5340 = vld [vmem:[%s5183 + $0x444] sm:$0xff]
        %v5341 = vld [vmem:[%s5183 + $0x44c] sm:$0xff]
        %v5342 = vld [vmem:[%s5183 + $0x454] sm:$0xff]
        %v5343 = vld [vmem:[%s5183 + $0x45c] sm:$0xf]
        %v5344 = vld [vmem:[%s5183 + $0x460] sm:$0xff]
        %v5345 = vld [vmem:[%s5183 + $0x468] sm:$0xff]
        %v5346 = vld [vmem:[%s5183 + $0x470] sm:$0xff]
        %v5347 = vld [vmem:[%s5183 + $0x478] sm:$0xf]
        %v5348 = vld [vmem:[%s5183 + $0x47c] sm:$0xff]
        %v5349 = vld [vmem:[%s5183 + $0x484] sm:$0xff]
        %v5350 = vld [vmem:[%s5183 + $0x48c] sm:$0xff]
        %v5351 = vld [vmem:[%s5183 + $0x494] sm:$0xf]
        %v5352 = vld [vmem:[%s5183 + $0x498] sm:$0xff]
        %v5353 = vld [vmem:[%s5183 + $0x4a0] sm:$0xff]
        %v5354 = vld [vmem:[%s5183 + $0x4a8] sm:$0xff]
        %v5355 = vld [vmem:[%s5183 + $0x4b0] sm:$0xf]
        %v5356 = vld [vmem:[%s5183 + $0x4b4] sm:$0xff]
        %v5357 = vld [vmem:[%s5183 + $0x4bc] sm:$0xff]
        %v5358 = vld [vmem:[%s5183 + $0x4c4] sm:$0xff]
        %v5359 = vld [vmem:[%s5183 + $0x4cc] sm:$0xf]
        %v5360 = vld [vmem:[%s5183 + $0x4d0] sm:$0xff]
        %v5361 = vld [vmem:[%s5183 + $0x4d8] sm:$0xff]
        %v5362 = vld [vmem:[%s5183 + $0x4e0] sm:$0xff]
        %v5363 = vld [vmem:[%s5183 + $0x4e8] sm:$0xf]
        %v5364 = vld [vmem:[%s5183 + $0x4ec] sm:$0xff]
        %v5365 = vld [vmem:[%s5183 + $0x4f4] sm:$0xff]
        %v5366 = vld [vmem:[%s5183 + $0x4fc] sm:$0xff]
        %v5367 = vld [vmem:[%s5183 + $0x504] sm:$0xf]
        %v5368 = vld [vmem:[%s5183 + $0x508] sm:$0xff]
        %v5369 = vld [vmem:[%s5183 + $0x510] sm:$0xff]
        %v5370 = vld [vmem:[%s5183 + $0x518] sm:$0xff]
        %v5371 = vld [vmem:[%s5183 + $0x520] sm:$0xf]
        %v5372 = vld [vmem:[%s5183 + $0x524] sm:$0xff]
        %v5373 = vld [vmem:[%s5183 + $0x52c] sm:$0xff]
        %v5374 = vld [vmem:[%s5183 + $0x534] sm:$0xff]
        %v5375 = vld [vmem:[%s5183 + $0x53c] sm:$0xf]
        %v5376 = vld [vmem:[%s5183 + $0x540] sm:$0xff]
        %v5377 = vld [vmem:[%s5183 + $0x548] sm:$0xff]
        %v5378 = vld [vmem:[%s5183 + $0x550] sm:$0xff]
        %v5379 = vld [vmem:[%s5183 + $0x558] sm:$0xf]
        %v5380 = vld [vmem:[%s5183 + $0x55c] sm:$0xff]
        %v5381 = vld [vmem:[%s5183 + $0x564] sm:$0xff]
        %v5382 = vld [vmem:[%s5183 + $0x56c] sm:$0xff]
        %v5383 = vld [vmem:[%s5183 + $0x574] sm:$0xf]
        %v5384 = vld [vmem:[%s5183 + $0x578] sm:$0xff]
        %v5385 = vld [vmem:[%s5183 + $0x580] sm:$0xff]
        %v5386 = vld [vmem:[%s5183 + $0x588] sm:$0xff]
        %v5387 = vld [vmem:[%s5183 + $0x590] sm:$0xf]
        %v5388 = vld [vmem:[%s5183 + $0x594] sm:$0xff]
        %v5389 = vld [vmem:[%s5183 + $0x59c] sm:$0xff]
        %v5390 = vld [vmem:[%s5183 + $0x5a4] sm:$0xff]
        %v5391 = vld [vmem:[%s5183 + $0x5ac] sm:$0xf]
        %v5392 = vld [vmem:[%s5183 + $0x5b0] sm:$0xff]
        %v5393 = vld [vmem:[%s5183 + $0x5b8] sm:$0xff]
        %v5394 = vld [vmem:[%s5183 + $0x5c0] sm:$0xff]
        %v5395 = vld [vmem:[%s5183 + $0x5c8] sm:$0xf]
        %v5396 = vld [vmem:[%s5183 + $0x5cc] sm:$0xff]
        %v5397 = vld [vmem:[%s5183 + $0x5d4] sm:$0xff]
        %v5398 = vld [vmem:[%s5183 + $0x5dc] sm:$0xff]
        %v5399 = vld [vmem:[%s5183 + $0x5e4] sm:$0xf]
        %v5400 = vld [vmem:[%s5183 + $0x5e8] sm:$0xff]
        %v5401 = vld [vmem:[%s5183 + $0x5f0] sm:$0xff]
        %v5402 = vld [vmem:[%s5183 + $0x5f8] sm:$0xff]
        %v5403 = vld [vmem:[%s5183 + $0x600] sm:$0xf]
        %v5404 = vld [vmem:[%s5183 + $0x604] sm:$0xff]
        %v5405 = vld [vmem:[%s5183 + $0x60c] sm:$0xff]
        %v5406 = vld [vmem:[%s5183 + $0x614] sm:$0xff]
        %v5407 = vld [vmem:[%s5183 + $0x61c] sm:$0xf]
        %v5408 = vld [vmem:[%s5183 + $0x620] sm:$0xff]
        %v5409 = vld [vmem:[%s5183 + $0x628] sm:$0xff]
        %v5410 = vld [vmem:[%s5183 + $0x630] sm:$0xff]
        %v5411 = vld [vmem:[%s5183 + $0x638] sm:$0xf]
        %v5412 = vld [vmem:[%s5183 + $0x63c] sm:$0xff]
        %v5413 = vld [vmem:[%s5183 + $0x644] sm:$0xff]
        %v5414 = vld [vmem:[%s5183 + $0x64c] sm:$0xff]
        %v5415 = vld [vmem:[%s5183 + $0x654] sm:$0xf]
        %v5416 = vld [vmem:[%s5183 + $0x658] sm:$0xff]
        %v5417 = vld [vmem:[%s5183 + $0x660] sm:$0xff]
        %v5418 = vld [vmem:[%s5183 + $0x668] sm:$0xff]
        %v5419 = vld [vmem:[%s5183 + $0x670] sm:$0xf]
        %v5420 = vld [vmem:[%s5183 + $0x674] sm:$0xff]
        %v5421 = vld [vmem:[%s5183 + $0x67c] sm:$0xff]
        %v5422 = vld [vmem:[%s5183 + $0x684] sm:$0xff]
        %v5423 = vld [vmem:[%s5183 + $0x68c] sm:$0xf]
        %v5424 = vld [vmem:[%s5183 + $0x690] sm:$0xff]
        %v5425 = vld [vmem:[%s5183 + $0x698] sm:$0xff]
        %v5426 = vld [vmem:[%s5183 + $0x6a0] sm:$0xff]
        %v5427 = vld [vmem:[%s5183 + $0x6a8] sm:$0xf]
        %v5428 = vld [vmem:[%s5183 + $0x6ac] sm:$0xff]
        %v5429 = vld [vmem:[%s5183 + $0x6b4] sm:$0xff]
        %v5430 = vld [vmem:[%s5183 + $0x6bc] sm:$0xff]
        %v5431 = vld [vmem:[%s5183 + $0x6c4] sm:$0xf]
        %v5432 = vld [vmem:[%s5183 + $0x6c8] sm:$0xff]
        %v5433 = vld [vmem:[%s5183 + $0x6d0] sm:$0xff]
        %v5434 = vld [vmem:[%s5183 + $0x6d8] sm:$0xff]
        %v5435 = vld [vmem:[%s5183 + $0x6e0] sm:$0xf]
        %v5436 = vld [vmem:[%s5183 + $0x6e4] sm:$0xff]
        %v5437 = vld [vmem:[%s5183 + $0x6ec] sm:$0xff]
        %v5438 = vld [vmem:[%s5183 + $0x6f4] sm:$0xff]
        %v5439 = vld [vmem:[%s5183 + $0x6fc] sm:$0xf]
        %v5444 = vrot.slane %v5179, 1
        %v5445 = vrot.slane %v5180, 1
        %v5446 = vrot.slane %v5181, 1
        %v5447 = vrot.slane %v5182, 1
        %v5708 = vunpack.c.l.b16 %v5184
        %v5709 = vunpack.c.h.b16 %v5184
        %v5710 = vunpack.c.l.b16 %v5185
        %v5711 = vunpack.c.h.b16 %v5185
        %v5712 = vunpack.c.l.b16 %v5186
        %v5713 = vunpack.c.h.b16 %v5186
        %v5714 = vunpack.c.l.b16 %v5187
        %v5715 = vunpack.c.l.b16 %v5188
        %v5716 = vunpack.c.h.b16 %v5188
        %v5717 = vunpack.c.l.b16 %v5189
        %v5718 = vunpack.c.h.b16 %v5189
        %v5719 = vunpack.c.l.b16 %v5190
        %v5720 = vunpack.c.h.b16 %v5190
        %v5721 = vunpack.c.l.b16 %v5191
        %v5722 = vunpack.c.l.b16 %v5192
        %v5723 = vunpack.c.h.b16 %v5192
        %v5724 = vunpack.c.l.b16 %v5193
        %v5725 = vunpack.c.h.b16 %v5193
        %v5726 = vunpack.c.l.b16 %v5194
        %v5727 = vunpack.c.h.b16 %v5194
        %v5728 = vunpack.c.l.b16 %v5195
        %v5729 = vunpack.c.l.b16 %v5196
        %v5730 = vunpack.c.h.b16 %v5196
        %v5731 = vunpack.c.l.b16 %v5197
        %v5732 = vunpack.c.h.b16 %v5197
        %v5733 = vunpack.c.l.b16 %v5198
        %v5734 = vunpack.c.h.b16 %v5198
        %v5735 = vunpack.c.l.b16 %v5199
        %v5736 = vunpack.c.l.b16 %v5200
        %v5737 = vunpack.c.h.b16 %v5200
        %v5738 = vunpack.c.l.b16 %v5201
        %v5739 = vunpack.c.h.b16 %v5201
        %v5740 = vunpack.c.l.b16 %v5202
        %v5741 = vunpack.c.h.b16 %v5202
        %v5742 = vunpack.c.l.b16 %v5203
        %v5743 = vunpack.c.l.b16 %v5204
        %v5744 = vunpack.c.h.b16 %v5204
        %v5745 = vunpack.c.l.b16 %v5205
        %v5746 = vunpack.c.h.b16 %v5205
        %v5747 = vunpack.c.l.b16 %v5206
        %v5748 = vunpack.c.h.b16 %v5206
        %v5749 = vunpack.c.l.b16 %v5207
        %v5750 = vunpack.c.l.b16 %v5208
        %v5751 = vunpack.c.h.b16 %v5208
        %v5752 = vunpack.c.l.b16 %v5209
        %v5753 = vunpack.c.h.b16 %v5209
        %v5754 = vunpack.c.l.b16 %v5210
        %v5755 = vunpack.c.h.b16 %v5210
        %v5756 = vunpack.c.l.b16 %v5211
        %v5757 = vunpack.c.l.b16 %v5212
        %v5758 = vunpack.c.h.b16 %v5212
        %v5759 = vunpack.c.l.b16 %v5213
        %v5760 = vunpack.c.h.b16 %v5213
        %v5761 = vunpack.c.l.b16 %v5214
        %v5762 = vunpack.c.h.b16 %v5214
        %v5763 = vunpack.c.l.b16 %v5215
        %v5764 = vunpack.c.l.b16 %v5216
        %v5765 = vunpack.c.h.b16 %v5216
        %v5766 = vunpack.c.l.b16 %v5217
        %v5767 = vunpack.c.h.b16 %v5217
        %v5768 = vunpack.c.l.b16 %v5218
        %v5769 = vunpack.c.h.b16 %v5218
        %v5770 = vunpack.c.l.b16 %v5219
        %v5771 = vunpack.c.l.b16 %v5220
        %v5772 = vunpack.c.h.b16 %v5220
        %v5773 = vunpack.c.l.b16 %v5221
        %v5774 = vunpack.c.h.b16 %v5221
        %v5775 = vunpack.c.l.b16 %v5222
        %v5776 = vunpack.c.h.b16 %v5222
        %v5777 = vunpack.c.l.b16 %v5223
        %v5778 = vunpack.c.l.b16 %v5224
        %v5779 = vunpack.c.h.b16 %v5224
        %v5780 = vunpack.c.l.b16 %v5225
        %v5781 = vunpack.c.h.b16 %v5225
        %v5782 = vunpack.c.l.b16 %v5226
        %v5783 = vunpack.c.h.b16 %v5226
        %v5784 = vunpack.c.l.b16 %v5227
        %v5785 = vunpack.c.l.b16 %v5228
        %v5786 = vunpack.c.h.b16 %v5228
        %v5787 = vunpack.c.l.b16 %v5229
        %v5788 = vunpack.c.h.b16 %v5229
        %v5789 = vunpack.c.l.b16 %v5230
        %v5790 = vunpack.c.h.b16 %v5230
        %v5791 = vunpack.c.l.b16 %v5231
        %v5792 = vunpack.c.l.b16 %v5232
        %v5793 = vunpack.c.h.b16 %v5232
        %v5794 = vunpack.c.l.b16 %v5233
        %v5795 = vunpack.c.h.b16 %v5233
        %v5796 = vunpack.c.l.b16 %v5234
        %v5797 = vunpack.c.h.b16 %v5234
        %v5798 = vunpack.c.l.b16 %v5235
        %v5799 = vunpack.c.l.b16 %v5236
        %v5800 = vunpack.c.h.b16 %v5236
        %v5801 = vunpack.c.l.b16 %v5237
        %v5802 = vunpack.c.h.b16 %v5237
        %v5803 = vunpack.c.l.b16 %v5238
        %v5804 = vunpack.c.h.b16 %v5238
        %v5805 = vunpack.c.l.b16 %v5239
        %v5806 = vunpack.c.l.b16 %v5240
        %v5807 = vunpack.c.h.b16 %v5240
        %v5808 = vunpack.c.l.b16 %v5241
        %v5809 = vunpack.c.h.b16 %v5241
        %v5810 = vunpack.c.l.b16 %v5242
        %v5811 = vunpack.c.h.b16 %v5242
        %v5812 = vunpack.c.l.b16 %v5243
        %v5813 = vunpack.c.l.b16 %v5244
        %v5814 = vunpack.c.h.b16 %v5244
        %v5815 = vunpack.c.l.b16 %v5245
        %v5816 = vunpack.c.h.b16 %v5245
        %v5817 = vunpack.c.l.b16 %v5246
        %v5818 = vunpack.c.h.b16 %v5246
        %v5819 = vunpack.c.l.b16 %v5247
        %v5820 = vunpack.c.l.b16 %v5248
        %v5821 = vunpack.c.h.b16 %v5248
        %v5822 = vunpack.c.l.b16 %v5249
        %v5823 = vunpack.c.h.b16 %v5249
        %v5824 = vunpack.c.l.b16 %v5250
        %v5825 = vunpack.c.h.b16 %v5250
        %v5826 = vunpack.c.l.b16 %v5251
        %v5827 = vunpack.c.l.b16 %v5252
        %v5828 = vunpack.c.h.b16 %v5252
        %v5829 = vunpack.c.l.b16 %v5253
        %v5830 = vunpack.c.h.b16 %v5253
        %v5831 = vunpack.c.l.b16 %v5254
        %v5832 = vunpack.c.h.b16 %v5254
        %v5833 = vunpack.c.l.b16 %v5255
        %v5834 = vunpack.c.l.b16 %v5256
        %v5835 = vunpack.c.h.b16 %v5256
        %v5836 = vunpack.c.l.b16 %v5257
        %v5837 = vunpack.c.h.b16 %v5257
        %v5838 = vunpack.c.l.b16 %v5258
        %v5839 = vunpack.c.h.b16 %v5258
        %v5840 = vunpack.c.l.b16 %v5259
        %v5841 = vunpack.c.l.b16 %v5260
        %v5842 = vunpack.c.h.b16 %v5260
        %v5843 = vunpack.c.l.b16 %v5261
        %v5844 = vunpack.c.h.b16 %v5261
        %v5845 = vunpack.c.l.b16 %v5262
        %v5846 = vunpack.c.h.b16 %v5262
        %v5847 = vunpack.c.l.b16 %v5263
        %v5848 = vunpack.c.l.b16 %v5264
        %v5849 = vunpack.c.h.b16 %v5264
        %v5850 = vunpack.c.l.b16 %v5265
        %v5851 = vunpack.c.h.b16 %v5265
        %v5852 = vunpack.c.l.b16 %v5266
        %v5853 = vunpack.c.h.b16 %v5266
        %v5854 = vunpack.c.l.b16 %v5267
        %v5855 = vunpack.c.l.b16 %v5268
        %v5856 = vunpack.c.h.b16 %v5268
        %v5857 = vunpack.c.l.b16 %v5269
        %v5858 = vunpack.c.h.b16 %v5269
        %v5859 = vunpack.c.l.b16 %v5270
        %v5860 = vunpack.c.h.b16 %v5270
        %v5861 = vunpack.c.l.b16 %v5271
        %v5862 = vunpack.c.l.b16 %v5272
        %v5863 = vunpack.c.h.b16 %v5272
        %v5864 = vunpack.c.l.b16 %v5273
        %v5865 = vunpack.c.h.b16 %v5273
        %v5866 = vunpack.c.l.b16 %v5274
        %v5867 = vunpack.c.h.b16 %v5274
        %v5868 = vunpack.c.l.b16 %v5275
        %v5869 = vunpack.c.l.b16 %v5276
        %v5870 = vunpack.c.h.b16 %v5276
        %v5871 = vunpack.c.l.b16 %v5277
        %v5872 = vunpack.c.h.b16 %v5277
        %v5873 = vunpack.c.l.b16 %v5278
        %v5874 = vunpack.c.h.b16 %v5278
        %v5875 = vunpack.c.l.b16 %v5279
        %v5876 = vunpack.c.l.b16 %v5280
        %v5877 = vunpack.c.h.b16 %v5280
        %v5878 = vunpack.c.l.b16 %v5281
        %v5879 = vunpack.c.h.b16 %v5281
        %v5880 = vunpack.c.l.b16 %v5282
        %v5881 = vunpack.c.h.b16 %v5282
        %v5882 = vunpack.c.l.b16 %v5283
        %v5883 = vunpack.c.l.b16 %v5284
        %v5884 = vunpack.c.h.b16 %v5284
        %v5885 = vunpack.c.l.b16 %v5285
        %v5886 = vunpack.c.h.b16 %v5285
        %v5887 = vunpack.c.l.b16 %v5286
        %v5888 = vunpack.c.h.b16 %v5286
        %v5889 = vunpack.c.l.b16 %v5287
        %v5890 = vunpack.c.l.b16 %v5288
        %v5891 = vunpack.c.h.b16 %v5288
        %v5892 = vunpack.c.l.b16 %v5289
        %v5893 = vunpack.c.h.b16 %v5289
        %v5894 = vunpack.c.l.b16 %v5290
        %v5895 = vunpack.c.h.b16 %v5290
        %v5896 = vunpack.c.l.b16 %v5291
        %v5897 = vunpack.c.l.b16 %v5292
        %v5898 = vunpack.c.h.b16 %v5292
        %v5899 = vunpack.c.l.b16 %v5293
        %v5900 = vunpack.c.h.b16 %v5293
        %v5901 = vunpack.c.l.b16 %v5294
        %v5902 = vunpack.c.h.b16 %v5294
        %v5903 = vunpack.c.l.b16 %v5295
        %v5904 = vunpack.c.l.b16 %v5296
        %v5905 = vunpack.c.h.b16 %v5296
        %v5906 = vunpack.c.l.b16 %v5297
        %v5907 = vunpack.c.h.b16 %v5297
        %v5908 = vunpack.c.l.b16 %v5298
        %v5909 = vunpack.c.h.b16 %v5298
        %v5910 = vunpack.c.l.b16 %v5299
        %v5911 = vunpack.c.l.b16 %v5300
        %v5912 = vunpack.c.h.b16 %v5300
        %v5913 = vunpack.c.l.b16 %v5301
        %v5914 = vunpack.c.h.b16 %v5301
        %v5915 = vunpack.c.l.b16 %v5302
        %v5916 = vunpack.c.h.b16 %v5302
        %v5917 = vunpack.c.l.b16 %v5303
        %v5918 = vunpack.c.l.b16 %v5304
        %v5919 = vunpack.c.h.b16 %v5304
        %v5920 = vunpack.c.l.b16 %v5305
        %v5921 = vunpack.c.h.b16 %v5305
        %v5922 = vunpack.c.l.b16 %v5306
        %v5923 = vunpack.c.h.b16 %v5306
        %v5924 = vunpack.c.l.b16 %v5307
        %v5925 = vunpack.c.l.b16 %v5308
        %v5926 = vunpack.c.h.b16 %v5308
        %v5927 = vunpack.c.l.b16 %v5309
        %v5928 = vunpack.c.h.b16 %v5309
        %v5929 = vunpack.c.l.b16 %v5310
        %v5930 = vunpack.c.h.b16 %v5310
        %v5931 = vunpack.c.l.b16 %v5311
        %v5932 = vunpack.c.l.b16 %v5312
        %v5933 = vunpack.c.h.b16 %v5312
        %v5934 = vunpack.c.l.b16 %v5313
        %v5935 = vunpack.c.h.b16 %v5313
        %v5936 = vunpack.c.l.b16 %v5314
        %v5937 = vunpack.c.h.b16 %v5314
        %v5938 = vunpack.c.l.b16 %v5315
        %v5939 = vunpack.c.l.b16 %v5316
        %v5940 = vunpack.c.h.b16 %v5316
        %v5941 = vunpack.c.l.b16 %v5317
        %v5942 = vunpack.c.h.b16 %v5317
        %v5943 = vunpack.c.l.b16 %v5318
        %v5944 = vunpack.c.h.b16 %v5318
        %v5945 = vunpack.c.l.b16 %v5319
        %v5946 = vunpack.c.l.b16 %v5320
        %v5947 = vunpack.c.h.b16 %v5320
        %v5948 = vunpack.c.l.b16 %v5321
        %v5949 = vunpack.c.h.b16 %v5321
        %v5950 = vunpack.c.l.b16 %v5322
        %v5951 = vunpack.c.h.b16 %v5322
        %v5952 = vunpack.c.l.b16 %v5323
        %v5953 = vunpack.c.l.b16 %v5324
        %v5954 = vunpack.c.h.b16 %v5324
        %v5955 = vunpack.c.l.b16 %v5325
        %v5956 = vunpack.c.h.b16 %v5325
        %v5957 = vunpack.c.l.b16 %v5326
        %v5958 = vunpack.c.h.b16 %v5326
        %v5959 = vunpack.c.l.b16 %v5327
        %v5960 = vunpack.c.l.b16 %v5328
        %v5961 = vunpack.c.h.b16 %v5328
        %v5962 = vunpack.c.l.b16 %v5329
        %v5963 = vunpack.c.h.b16 %v5329
        %v5964 = vunpack.c.l.b16 %v5330
        %v5965 = vunpack.c.h.b16 %v5330
        %v5966 = vunpack.c.l.b16 %v5331
        %v5967 = vunpack.c.l.b16 %v5332
        %v5968 = vunpack.c.h.b16 %v5332
        %v5969 = vunpack.c.l.b16 %v5333
        %v5970 = vunpack.c.h.b16 %v5333
        %v5971 = vunpack.c.l.b16 %v5334
        %v5972 = vunpack.c.h.b16 %v5334
        %v5973 = vunpack.c.l.b16 %v5335
        %v5974 = vunpack.c.l.b16 %v5336
        %v5975 = vunpack.c.h.b16 %v5336
        %v5976 = vunpack.c.l.b16 %v5337
        %v5977 = vunpack.c.h.b16 %v5337
        %v5978 = vunpack.c.l.b16 %v5338
        %v5979 = vunpack.c.h.b16 %v5338
        %v5980 = vunpack.c.l.b16 %v5339
        %v5981 = vunpack.c.l.b16 %v5340
        %v5982 = vunpack.c.h.b16 %v5340
        %v5983 = vunpack.c.l.b16 %v5341
        %v5984 = vunpack.c.h.b16 %v5341
        %v5985 = vunpack.c.l.b16 %v5342
        %v5986 = vunpack.c.h.b16 %v5342
        %v5987 = vunpack.c.l.b16 %v5343
        %v5988 = vunpack.c.l.b16 %v5344
        %v5989 = vunpack.c.h.b16 %v5344
        %v5990 = vunpack.c.l.b16 %v5345
        %v5991 = vunpack.c.h.b16 %v5345
        %v5992 = vunpack.c.l.b16 %v5346
        %v5993 = vunpack.c.h.b16 %v5346
        %v5994 = vunpack.c.l.b16 %v5347
        %v5995 = vunpack.c.l.b16 %v5348
        %v5996 = vunpack.c.h.b16 %v5348
        %v5997 = vunpack.c.l.b16 %v5349
        %v5998 = vunpack.c.h.b16 %v5349
        %v5999 = vunpack.c.l.b16 %v5350
        %v6000 = vunpack.c.h.b16 %v5350
        %v6001 = vunpack.c.l.b16 %v5351
        %v6002 = vunpack.c.l.b16 %v5352
        %v6003 = vunpack.c.h.b16 %v5352
        %v6004 = vunpack.c.l.b16 %v5353
        %v6005 = vunpack.c.h.b16 %v5353
        %v6006 = vunpack.c.l.b16 %v5354
        %v6007 = vunpack.c.h.b16 %v5354
        %v6008 = vunpack.c.l.b16 %v5355
        %v6009 = vunpack.c.l.b16 %v5356
        %v6010 = vunpack.c.h.b16 %v5356
        %v6011 = vunpack.c.l.b16 %v5357
        %v6012 = vunpack.c.h.b16 %v5357
        %v6013 = vunpack.c.l.b16 %v5358
        %v6014 = vunpack.c.h.b16 %v5358
        %v6015 = vunpack.c.l.b16 %v5359
        %v6016 = vunpack.c.l.b16 %v5360
        %v6017 = vunpack.c.h.b16 %v5360
        %v6018 = vunpack.c.l.b16 %v5361
        %v6019 = vunpack.c.h.b16 %v5361
        %v6020 = vunpack.c.l.b16 %v5362
        %v6021 = vunpack.c.h.b16 %v5362
        %v6022 = vunpack.c.l.b16 %v5363
        %v6023 = vunpack.c.l.b16 %v5364
        %v6024 = vunpack.c.h.b16 %v5364
        %v6025 = vunpack.c.l.b16 %v5365
        %v6026 = vunpack.c.h.b16 %v5365
        %v6027 = vunpack.c.l.b16 %v5366
        %v6028 = vunpack.c.h.b16 %v5366
        %v6029 = vunpack.c.l.b16 %v5367
        %v6030 = vunpack.c.l.b16 %v5368
        %v6031 = vunpack.c.h.b16 %v5368
        %v6032 = vunpack.c.l.b16 %v5369
        %v6033 = vunpack.c.h.b16 %v5369
        %v6034 = vunpack.c.l.b16 %v5370
        %v6035 = vunpack.c.h.b16 %v5370
        %v6036 = vunpack.c.l.b16 %v5371
        %v6037 = vunpack.c.l.b16 %v5372
        %v6038 = vunpack.c.h.b16 %v5372
        %v6039 = vunpack.c.l.b16 %v5373
        %v6040 = vunpack.c.h.b16 %v5373
        %v6041 = vunpack.c.l.b16 %v5374
        %v6042 = vunpack.c.h.b16 %v5374
        %v6043 = vunpack.c.l.b16 %v5375
        %v6044 = vunpack.c.l.b16 %v5376
        %v6045 = vunpack.c.h.b16 %v5376
        %v6046 = vunpack.c.l.b16 %v5377
        %v6047 = vunpack.c.h.b16 %v5377
        %v6048 = vunpack.c.l.b16 %v5378
        %v6049 = vunpack.c.h.b16 %v5378
        %v6050 = vunpack.c.l.b16 %v5379
        %v6051 = vunpack.c.l.b16 %v5380
        %v6052 = vunpack.c.h.b16 %v5380
        %v6053 = vunpack.c.l.b16 %v5381
        %v6054 = vunpack.c.h.b16 %v5381
        %v6055 = vunpack.c.l.b16 %v5382
        %v6056 = vunpack.c.h.b16 %v5382
        %v6057 = vunpack.c.l.b16 %v5383
        %v6058 = vunpack.c.l.b16 %v5384
        %v6059 = vunpack.c.h.b16 %v5384
        %v6060 = vunpack.c.l.b16 %v5385
        %v6061 = vunpack.c.h.b16 %v5385
        %v6062 = vunpack.c.l.b16 %v5386
        %v6063 = vunpack.c.h.b16 %v5386
        %v6064 = vunpack.c.l.b16 %v5387
        %v6065 = vunpack.c.l.b16 %v5388
        %v6066 = vunpack.c.h.b16 %v5388
        %v6067 = vunpack.c.l.b16 %v5389
        %v6068 = vunpack.c.h.b16 %v5389
        %v6069 = vunpack.c.l.b16 %v5390
        %v6070 = vunpack.c.h.b16 %v5390
        %v6071 = vunpack.c.l.b16 %v5391
        %v6072 = vunpack.c.l.b16 %v5392
        %v6073 = vunpack.c.h.b16 %v5392
        %v6074 = vunpack.c.l.b16 %v5393
        %v6075 = vunpack.c.h.b16 %v5393
        %v6076 = vunpack.c.l.b16 %v5394
        %v6077 = vunpack.c.h.b16 %v5394
        %v6078 = vunpack.c.l.b16 %v5395
        %v6079 = vunpack.c.l.b16 %v5396
        %v6080 = vunpack.c.h.b16 %v5396
        %v6081 = vunpack.c.l.b16 %v5397
        %v6082 = vunpack.c.h.b16 %v5397
        %v6083 = vunpack.c.l.b16 %v5398
        %v6084 = vunpack.c.h.b16 %v5398
        %v6085 = vunpack.c.l.b16 %v5399
        %v6086 = vunpack.c.l.b16 %v5400
        %v6087 = vunpack.c.h.b16 %v5400
        %v6088 = vunpack.c.l.b16 %v5401
        %v6089 = vunpack.c.h.b16 %v5401
        %v6090 = vunpack.c.l.b16 %v5402
        %v6091 = vunpack.c.h.b16 %v5402
        %v6092 = vunpack.c.l.b16 %v5403
        %v6093 = vunpack.c.l.b16 %v5404
        %v6094 = vunpack.c.h.b16 %v5404
        %v6095 = vunpack.c.l.b16 %v5405
        %v6096 = vunpack.c.h.b16 %v5405
        %v6097 = vunpack.c.l.b16 %v5406
        %v6098 = vunpack.c.h.b16 %v5406
        %v6099 = vunpack.c.l.b16 %v5407
        %v6100 = vunpack.c.l.b16 %v5408
        %v6101 = vunpack.c.h.b16 %v5408
        %v6102 = vunpack.c.l.b16 %v5409
        %v6103 = vunpack.c.h.b16 %v5409
        %v6104 = vunpack.c.l.b16 %v5410
        %v6105 = vunpack.c.h.b16 %v5410
        %v6106 = vunpack.c.l.b16 %v5411
        %v6107 = vunpack.c.l.b16 %v5412
        %v6108 = vunpack.c.h.b16 %v5412
        %v6109 = vunpack.c.l.b16 %v5413
        %v6110 = vunpack.c.h.b16 %v5413
        %v6111 = vunpack.c.l.b16 %v5414
        %v6112 = vunpack.c.h.b16 %v5414
        %v6113 = vunpack.c.l.b16 %v5415
        %v6114 = vunpack.c.l.b16 %v5416
        %v6115 = vunpack.c.h.b16 %v5416
        %v6116 = vunpack.c.l.b16 %v5417
        %v6117 = vunpack.c.h.b16 %v5417
        %v6118 = vunpack.c.l.b16 %v5418
        %v6119 = vunpack.c.h.b16 %v5418
        %v6120 = vunpack.c.l.b16 %v5419
        %v6121 = vunpack.c.l.b16 %v5420
        %v6122 = vunpack.c.h.b16 %v5420
        %v6123 = vunpack.c.l.b16 %v5421
        %v6124 = vunpack.c.h.b16 %v5421
        %v6125 = vunpack.c.l.b16 %v5422
        %v6126 = vunpack.c.h.b16 %v5422
        %v6127 = vunpack.c.l.b16 %v5423
        %v6128 = vunpack.c.l.b16 %v5424
        %v6129 = vunpack.c.h.b16 %v5424
        %v6130 = vunpack.c.l.b16 %v5425
        %v6131 = vunpack.c.h.b16 %v5425
        %v6132 = vunpack.c.l.b16 %v5426
        %v6133 = vunpack.c.h.b16 %v5426
        %v6134 = vunpack.c.l.b16 %v5427
        %v6135 = vunpack.c.l.b16 %v5428
        %v6136 = vunpack.c.h.b16 %v5428
        %v6137 = vunpack.c.l.b16 %v5429
        %v6138 = vunpack.c.h.b16 %v5429
        %v6139 = vunpack.c.l.b16 %v5430
        %v6140 = vunpack.c.h.b16 %v5430
        %v6141 = vunpack.c.l.b16 %v5431
        %v6142 = vunpack.c.l.b16 %v5432
        %v6143 = vunpack.c.h.b16 %v5432
        %v6144 = vunpack.c.l.b16 %v5433
        %v6145 = vunpack.c.h.b16 %v5433
        %v6146 = vunpack.c.l.b16 %v5434
        %v6147 = vunpack.c.h.b16 %v5434
        %v6148 = vunpack.c.l.b16 %v5435
        %v6149 = vunpack.c.l.b16 %v5436
        %v6150 = vunpack.c.h.b16 %v5436
        %v6151 = vunpack.c.l.b16 %v5437
        %v6152 = vunpack.c.h.b16 %v5437
        %v6153 = vunpack.c.l.b16 %v5438
        %v6154 = vunpack.c.h.b16 %v5438
        %v6155 = vunpack.c.l.b16 %v5439
        %v6156 = vpack.c.b16 %v5715, %v5708
        %v6157 = vpack.c.b16 %v5716, %v5709
        %v6158 = vpack.c.b16 %v5717, %v5710
        %v6159 = vpack.c.b16 %v5718, %v5711
        %v6160 = vpack.c.b16 %v5719, %v5712
        %v6161 = vpack.c.b16 %v5720, %v5713
        %v6162 = vpack.c.b16 %v5721, %v5714
        %v6163 = vpack.c.b16 %v5729, %v5722
        %v6164 = vpack.c.b16 %v5730, %v5723
        %v6165 = vpack.c.b16 %v5731, %v5724
        %v6166 = vpack.c.b16 %v5732, %v5725
        %v6167 = vpack.c.b16 %v5733, %v5726
        %v6168 = vpack.c.b16 %v5734, %v5727
        %v6169 = vpack.c.b16 %v5735, %v5728
        %v6170 = vpack.c.b16 %v5743, %v5736
        %v6171 = vpack.c.b16 %v5744, %v5737
        %v6172 = vpack.c.b16 %v5745, %v5738
        %v6173 = vpack.c.b16 %v5746, %v5739
        %v6174 = vpack.c.b16 %v5747, %v5740
        %v6175 = vpack.c.b16 %v5748, %v5741
        %v6176 = vpack.c.b16 %v5749, %v5742
        %v6177 = vpack.c.b16 %v5757, %v5750
        %v6178 = vpack.c.b16 %v5758, %v5751
        %v6179 = vpack.c.b16 %v5759, %v5752
        %v6180 = vpack.c.b16 %v5760, %v5753
        %v6181 = vpack.c.b16 %v5761, %v5754
        %v6182 = vpack.c.b16 %v5762, %v5755
        %v6183 = vpack.c.b16 %v5763, %v5756
        %v6184 = vpack.c.b16 %v5771, %v5764
        %v6185 = vpack.c.b16 %v5772, %v5765
        %v6186 = vpack.c.b16 %v5773, %v5766
        %v6187 = vpack.c.b16 %v5774, %v5767
        %v6188 = vpack.c.b16 %v5775, %v5768
        %v6189 = vpack.c.b16 %v5776, %v5769
        %v6190 = vpack.c.b16 %v5777, %v5770
        %v6191 = vpack.c.b16 %v5785, %v5778
        %v6192 = vpack.c.b16 %v5786, %v5779
        %v6193 = vpack.c.b16 %v5787, %v5780
        %v6194 = vpack.c.b16 %v5788, %v5781
        %v6195 = vpack.c.b16 %v5789, %v5782
        %v6196 = vpack.c.b16 %v5790, %v5783
        %v6197 = vpack.c.b16 %v5791, %v5784
        %v6198 = vpack.c.b16 %v5799, %v5792
        %v6199 = vpack.c.b16 %v5800, %v5793
        %v6200 = vpack.c.b16 %v5801, %v5794
        %v6201 = vpack.c.b16 %v5802, %v5795
        %v6202 = vpack.c.b16 %v5803, %v5796
        %v6203 = vpack.c.b16 %v5804, %v5797
        %v6204 = vpack.c.b16 %v5805, %v5798
        %v6205 = vpack.c.b16 %v5813, %v5806
        %v6206 = vpack.c.b16 %v5814, %v5807
        %v6207 = vpack.c.b16 %v5815, %v5808
        %v6208 = vpack.c.b16 %v5816, %v5809
        %v6209 = vpack.c.b16 %v5817, %v5810
        %v6210 = vpack.c.b16 %v5818, %v5811
        %v6211 = vpack.c.b16 %v5819, %v5812
        %v6212 = vpack.c.b16 %v5827, %v5820
        %v6213 = vpack.c.b16 %v5828, %v5821
        %v6214 = vpack.c.b16 %v5829, %v5822
        %v6215 = vpack.c.b16 %v5830, %v5823
        %v6216 = vpack.c.b16 %v5831, %v5824
        %v6217 = vpack.c.b16 %v5832, %v5825
        %v6218 = vpack.c.b16 %v5833, %v5826
        %v6219 = vpack.c.b16 %v5841, %v5834
        %v6220 = vpack.c.b16 %v5842, %v5835
        %v6221 = vpack.c.b16 %v5843, %v5836
        %v6222 = vpack.c.b16 %v5844, %v5837
        %v6223 = vpack.c.b16 %v5845, %v5838
        %v6224 = vpack.c.b16 %v5846, %v5839
        %v6225 = vpack.c.b16 %v5847, %v5840
        %v6226 = vpack.c.b16 %v5855, %v5848
        %v6227 = vpack.c.b16 %v5856, %v5849
        %v6228 = vpack.c.b16 %v5857, %v5850
        %v6229 = vpack.c.b16 %v5858, %v5851
        %v6230 = vpack.c.b16 %v5859, %v5852
        %v6231 = vpack.c.b16 %v5860, %v5853
        %v6232 = vpack.c.b16 %v5861, %v5854
        %v6233 = vpack.c.b16 %v5869, %v5862
        %v6234 = vpack.c.b16 %v5870, %v5863
        %v6235 = vpack.c.b16 %v5871, %v5864
        %v6236 = vpack.c.b16 %v5872, %v5865
        %v6237 = vpack.c.b16 %v5873, %v5866
        %v6238 = vpack.c.b16 %v5874, %v5867
        %v6239 = vpack.c.b16 %v5875, %v5868
        %v6240 = vpack.c.b16 %v5883, %v5876
        %v6241 = vpack.c.b16 %v5884, %v5877
        %v6242 = vpack.c.b16 %v5885, %v5878
        %v6243 = vpack.c.b16 %v5886, %v5879
        %v6244 = vpack.c.b16 %v5887, %v5880
        %v6245 = vpack.c.b16 %v5888, %v5881
        %v6246 = vpack.c.b16 %v5889, %v5882
        %v6247 = vpack.c.b16 %v5897, %v5890
        %v6248 = vpack.c.b16 %v5898, %v5891
        %v6249 = vpack.c.b16 %v5899, %v5892
        %v6250 = vpack.c.b16 %v5900, %v5893
        %v6251 = vpack.c.b16 %v5901, %v5894
        %v6252 = vpack.c.b16 %v5902, %v5895
        %v6253 = vpack.c.b16 %v5903, %v5896
        %v6254 = vpack.c.b16 %v5911, %v5904
        %v6255 = vpack.c.b16 %v5912, %v5905
        %v6256 = vpack.c.b16 %v5913, %v5906
        %v6257 = vpack.c.b16 %v5914, %v5907
        %v6258 = vpack.c.b16 %v5915, %v5908
        %v6259 = vpack.c.b16 %v5916, %v5909
        %v6260 = vpack.c.b16 %v5917, %v5910
        %v6261 = vpack.c.b16 %v5925, %v5918
        %v6262 = vpack.c.b16 %v5926, %v5919
        %v6263 = vpack.c.b16 %v5927, %v5920
        %v6264 = vpack.c.b16 %v5928, %v5921
        %v6265 = vpack.c.b16 %v5929, %v5922
        %v6266 = vpack.c.b16 %v5930, %v5923
        %v6267 = vpack.c.b16 %v5931, %v5924
        %v6268 = vpack.c.b16 %v5939, %v5932
        %v6269 = vpack.c.b16 %v5940, %v5933
        %v6270 = vpack.c.b16 %v5941, %v5934
        %v6271 = vpack.c.b16 %v5942, %v5935
        %v6272 = vpack.c.b16 %v5943, %v5936
        %v6273 = vpack.c.b16 %v5944, %v5937
        %v6274 = vpack.c.b16 %v5945, %v5938
        %v6275 = vpack.c.b16 %v5953, %v5946
        %v6276 = vpack.c.b16 %v5954, %v5947
        %v6277 = vpack.c.b16 %v5955, %v5948
        %v6278 = vpack.c.b16 %v5956, %v5949
        %v6279 = vpack.c.b16 %v5957, %v5950
        %v6280 = vpack.c.b16 %v5958, %v5951
        %v6281 = vpack.c.b16 %v5959, %v5952
        %v6282 = vpack.c.b16 %v5967, %v5960
        %v6283 = vpack.c.b16 %v5968, %v5961
        %v6284 = vpack.c.b16 %v5969, %v5962
        %v6285 = vpack.c.b16 %v5970, %v5963
        %v6286 = vpack.c.b16 %v5971, %v5964
        %v6287 = vpack.c.b16 %v5972, %v5965
        %v6288 = vpack.c.b16 %v5973, %v5966
        %v6289 = vpack.c.b16 %v5981, %v5974
        %v6290 = vpack.c.b16 %v5982, %v5975
        %v6291 = vpack.c.b16 %v5983, %v5976
        %v6292 = vpack.c.b16 %v5984, %v5977
        %v6293 = vpack.c.b16 %v5985, %v5978
        %v6294 = vpack.c.b16 %v5986, %v5979
        %v6295 = vpack.c.b16 %v5987, %v5980
        %v6296 = vpack.c.b16 %v5995, %v5988
        %v6297 = vpack.c.b16 %v5996, %v5989
        %v6298 = vpack.c.b16 %v5997, %v5990
        %v6299 = vpack.c.b16 %v5998, %v5991
        %v6300 = vpack.c.b16 %v5999, %v5992
        %v6301 = vpack.c.b16 %v6000, %v5993
        %v6302 = vpack.c.b16 %v6001, %v5994
        %v6303 = vpack.c.b16 %v6009, %v6002
        %v6304 = vpack.c.b16 %v6010, %v6003
        %v6305 = vpack.c.b16 %v6011, %v6004
        %v6306 = vpack.c.b16 %v6012, %v6005
        %v6307 = vpack.c.b16 %v6013, %v6006
        %v6308 = vpack.c.b16 %v6014, %v6007
        %v6309 = vpack.c.b16 %v6015, %v6008
        %v6310 = vpack.c.b16 %v6023, %v6016
        %v6311 = vpack.c.b16 %v6024, %v6017
        %v6312 = vpack.c.b16 %v6025, %v6018
        %v6313 = vpack.c.b16 %v6026, %v6019
        %v6314 = vpack.c.b16 %v6027, %v6020
        %v6315 = vpack.c.b16 %v6028, %v6021
        %v6316 = vpack.c.b16 %v6029, %v6022
        %v6317 = vpack.c.b16 %v6037, %v6030
        %v6318 = vpack.c.b16 %v6038, %v6031
        %v6319 = vpack.c.b16 %v6039, %v6032
        %v6320 = vpack.c.b16 %v6040, %v6033
        %v6321 = vpack.c.b16 %v6041, %v6034
        %v6322 = vpack.c.b16 %v6042, %v6035
        %v6323 = vpack.c.b16 %v6043, %v6036
        %v6324 = vpack.c.b16 %v6051, %v6044
        %v6325 = vpack.c.b16 %v6052, %v6045
        %v6326 = vpack.c.b16 %v6053, %v6046
        %v6327 = vpack.c.b16 %v6054, %v6047
        %v6328 = vpack.c.b16 %v6055, %v6048
        %v6329 = vpack.c.b16 %v6056, %v6049
        %v6330 = vpack.c.b16 %v6057, %v6050
        %v6331 = vpack.c.b16 %v6065, %v6058
        %v6332 = vpack.c.b16 %v6066, %v6059
        %v6333 = vpack.c.b16 %v6067, %v6060
        %v6334 = vpack.c.b16 %v6068, %v6061
        %v6335 = vpack.c.b16 %v6069, %v6062
        %v6336 = vpack.c.b16 %v6070, %v6063
        %v6337 = vpack.c.b16 %v6071, %v6064
        %v6338 = vpack.c.b16 %v6079, %v6072
        %v6339 = vpack.c.b16 %v6080, %v6073
        %v6340 = vpack.c.b16 %v6081, %v6074
        %v6341 = vpack.c.b16 %v6082, %v6075
        %v6342 = vpack.c.b16 %v6083, %v6076
        %v6343 = vpack.c.b16 %v6084, %v6077
        %v6344 = vpack.c.b16 %v6085, %v6078
        %v6345 = vpack.c.b16 %v6093, %v6086
        %v6346 = vpack.c.b16 %v6094, %v6087
        %v6347 = vpack.c.b16 %v6095, %v6088
        %v6348 = vpack.c.b16 %v6096, %v6089
        %v6349 = vpack.c.b16 %v6097, %v6090
        %v6350 = vpack.c.b16 %v6098, %v6091
        %v6351 = vpack.c.b16 %v6099, %v6092
        %v6352 = vpack.c.b16 %v6107, %v6100
        %v6353 = vpack.c.b16 %v6108, %v6101
        %v6354 = vpack.c.b16 %v6109, %v6102
        %v6355 = vpack.c.b16 %v6110, %v6103
        %v6356 = vpack.c.b16 %v6111, %v6104
        %v6357 = vpack.c.b16 %v6112, %v6105
        %v6358 = vpack.c.b16 %v6113, %v6106
        %v6359 = vpack.c.b16 %v6121, %v6114
        %v6360 = vpack.c.b16 %v6122, %v6115
        %v6361 = vpack.c.b16 %v6123, %v6116
        %v6362 = vpack.c.b16 %v6124, %v6117
        %v6363 = vpack.c.b16 %v6125, %v6118
        %v6364 = vpack.c.b16 %v6126, %v6119
        %v6365 = vpack.c.b16 %v6127, %v6120
        %v6366 = vpack.c.b16 %v6135, %v6128
        %v6367 = vpack.c.b16 %v6136, %v6129
        %v6368 = vpack.c.b16 %v6137, %v6130
        %v6369 = vpack.c.b16 %v6138, %v6131
        %v6370 = vpack.c.b16 %v6139, %v6132
        %v6371 = vpack.c.b16 %v6140, %v6133
        %v6372 = vpack.c.b16 %v6141, %v6134
        %v6373 = vpack.c.b16 %v6149, %v6142
        %v6374 = vpack.c.b16 %v6150, %v6143
        %v6375 = vpack.c.b16 %v6151, %v6144
        %v6376 = vpack.c.b16 %v6152, %v6145
        %v6377 = vpack.c.b16 %v6153, %v6146
        %v6378 = vpack.c.b16 %v6154, %v6147
        %v6379 = vpack.c.b16 %v6155, %v6148
        %6604 = vmatprep.subr.bf16.mxu0 %v6157
        %6605 = vmatpush1.bf16.msra.mxu0 %v6156
        %6606 = vmatprep.subr.bf16.mxu0 %v6164
        %6607 = vmatpush1.bf16.msra.mxu0 %v6163
        %6608 = vmatprep.subr.bf16.mxu0 %v6171
        %6609 = vmatpush1.bf16.msra.mxu0 %v6170
        %6610 = vmatprep.subr.bf16.mxu0 %v6178
        %6611 = vmatpush1.bf16.msra.mxu0 %v6177
        %6612 = vmatprep.subr.bf16.mxu0 %v6185
        %6613 = vmatpush1.bf16.msra.mxu0 %v6184
        %6614 = vmatprep.subr.bf16.mxu0 %v6192
        %6615 = vmatpush1.bf16.msra.mxu0 %v6191
        %6616 = vmatprep.subr.bf16.mxu0 %v6199
        %6617 = vmatpush1.bf16.msra.mxu0 %v6198
        %6618 = vmatprep.subr.bf16.mxu0 %v6206
        %6619 = vmatpush1.bf16.msra.mxu0 %v6205
        %6620 = vmatprep.subr.bf16.mxu0 %v6213
        %6621 = vmatpush1.bf16.msra.mxu0 %v6212
        %6622 = vmatprep.subr.bf16.mxu0 %v6220
        %6623 = vmatpush1.bf16.msra.mxu0 %v6219
        %6624 = vmatprep.subr.bf16.mxu0 %v6227
        %6625 = vmatpush1.bf16.msra.mxu0 %v6226
        %6626 = vmatprep.subr.bf16.mxu0 %v6234
        %6627 = vmatpush1.bf16.msra.mxu0 %v6233
        %6628 = vmatprep.subr.bf16.mxu0 %v6241
        %6629 = vmatpush1.bf16.msra.mxu0 %v6240
        %6630 = vmatprep.subr.bf16.mxu0 %v6248
        %6631 = vmatpush1.bf16.msra.mxu0 %v6247
        %6632 = vmatprep.subr.bf16.mxu0 %v6255
        %6633 = vmatpush1.bf16.msra.mxu0 %v6254
        %6634 = vmatprep.subr.bf16.mxu0 %v6262
        %6635 = vmatpush1.bf16.msra.mxu0 %v6261
        %6636 = vmatprep.mubr.bf16.mxu0 %v5445
        %6637 = vmatmul.mubr.bf16.gmra.mrb[0].mxu0 %v5444
        %v6638 = vpop.f32.mrb[0].mxu0
        %v6639 = vadd.f32 0.0, %v6638
        %v6640 = vpop.f32.mrb[0].mxu0
        %v6641 = vadd.f32 0.0, %v6640
        %v6642 = vpop.f32.mrb[0].mxu0
        %v6643 = vpop.f32.mrb[0].mxu0
        %6644 = vdwg.mxu0
        %6645 = vmatprep.subr.bf16.mxu0 %v6269
        %6646 = vmatpush1.bf16.msra.mxu0 %v6268
        %6647 = vmatprep.subr.bf16.mxu0 %v6276
        %6648 = vmatpush1.bf16.msra.mxu0 %v6275
        %6649 = vmatprep.subr.bf16.mxu0 %v6283
        %6650 = vmatpush1.bf16.msra.mxu0 %v6282
        %6651 = vmatprep.subr.bf16.mxu0 %v6290
        %6652 = vmatpush1.bf16.msra.mxu0 %v6289
        %6653 = vmatprep.subr.bf16.mxu0 %v6297
        %6654 = vmatpush1.bf16.msra.mxu0 %v6296
        %6655 = vmatprep.subr.bf16.mxu0 %v6304
        %6656 = vmatpush1.bf16.msra.mxu0 %v6303
        %6657 = vmatprep.subr.bf16.mxu0 %v6311
        %6658 = vmatpush1.bf16.msra.mxu0 %v6310
        %6659 = vmatprep.subr.bf16.mxu0 %v6318
        %6660 = vmatpush1.bf16.msra.mxu0 %v6317
        %6661 = vmatprep.subr.bf16.mxu0 %v6325
        %6662 = vmatpush1.bf16.msra.mxu0 %v6324
        %6663 = vmatprep.subr.bf16.mxu0 %v6332
        %6664 = vmatpush1.bf16.msra.mxu0 %v6331
        %6665 = vmatprep.subr.bf16.mxu0 %v6339
        %6666 = vmatpush1.bf16.msra.mxu0 %v6338
        %6667 = vmatprep.subr.bf16.mxu0 %v6346
        %6668 = vmatpush1.bf16.msra.mxu0 %v6345
        %6669 = vmatprep.subr.bf16.mxu0 %v6353
        %6670 = vmatpush1.bf16.msra.mxu0 %v6352
        %6671 = vmatprep.subr.bf16.mxu0 %v6360
        %6672 = vmatpush1.bf16.msra.mxu0 %v6359
        %6673 = vmatprep.subr.bf16.mxu0 %v6367
        %6674 = vmatpush1.bf16.msra.mxu0 %v6366
        %6675 = vmatprep.subr.bf16.mxu0 %v6374
        %6676 = vmatpush1.bf16.msra.mxu0 %v6373
        %6677 = vmatprep.mubr.bf16.mxu0 %v5447
        %6678 = vmatmul.mubr.bf16.gmra.mrb[0].mxu0 %v5446
        %v6679 = vpop.f32.mrb[0].mxu0
        %v6680 = vadd.f32 %v6639, %v6679
        %v6681 = vpop.f32.mrb[0].mxu0
        %v6682 = vadd.f32 %v6641, %v6681
        %v6683 = vpop.f32.mrb[0].mxu0
        %v6684 = vpop.f32.mrb[0].mxu0
        %6685 = vdwg.mxu0
        %6686 = vmatprep.subr.bf16.mxu0 %v6159
        %6687 = vmatpush1.bf16.msra.mxu0 %v6158
        %6688 = vmatprep.subr.bf16.mxu0 %v6166
        %6689 = vmatpush1.bf16.msra.mxu0 %v6165
        %6690 = vmatprep.subr.bf16.mxu0 %v6173
        %6691 = vmatpush1.bf16.msra.mxu0 %v6172
        %6692 = vmatprep.subr.bf16.mxu0 %v6180
        %6693 = vmatpush1.bf16.msra.mxu0 %v6179
        %6694 = vmatprep.subr.bf16.mxu0 %v6187
        %6695 = vmatpush1.bf16.msra.mxu0 %v6186
        %6696 = vmatprep.subr.bf16.mxu0 %v6194
        %6697 = vmatpush1.bf16.msra.mxu0 %v6193
        %6698 = vmatprep.subr.bf16.mxu0 %v6201
        %6699 = vmatpush1.bf16.msra.mxu0 %v6200
        %6700 = vmatprep.subr.bf16.mxu0 %v6208
        %6701 = vmatpush1.bf16.msra.mxu0 %v6207
        %6702 = vmatprep.subr.bf16.mxu0 %v6215
        %6703 = vmatpush1.bf16.msra.mxu0 %v6214
        %6704 = vmatprep.subr.bf16.mxu0 %v6222
        %6705 = vmatpush1.bf16.msra.mxu0 %v6221
        %6706 = vmatprep.subr.bf16.mxu0 %v6229
        %6707 = vmatpush1.bf16.msra.mxu0 %v6228
        %6708 = vmatprep.subr.bf16.mxu0 %v6236
        %6709 = vmatpush1.bf16.msra.mxu0 %v6235
        %6710 = vmatprep.subr.bf16.mxu0 %v6243
        %6711 = vmatpush1.bf16.msra.mxu0 %v6242
        %6712 = vmatprep.subr.bf16.mxu0 %v6250
        %6713 = vmatpush1.bf16.msra.mxu0 %v6249
        %6714 = vmatprep.subr.bf16.mxu0 %v6257
        %6715 = vmatpush1.bf16.msra.mxu0 %v6256
        %6716 = vmatprep.subr.bf16.mxu0 %v6264
        %6717 = vmatpush1.bf16.msra.mxu0 %v6263
        %6718 = vmatprep.mubr.bf16.mxu0 %v5445
        %6719 = vmatmul.mubr.bf16.gmra.mrb[0].mxu0 %v5444
        %v6720 = vpop.f32.mrb[0].mxu0
        %v6721 = vadd.f32 0.0, %v6720
        %v6722 = vpop.f32.mrb[0].mxu0
        %v6723 = vadd.f32 0.0, %v6722
        %v6724 = vpop.f32.mrb[0].mxu0
        %v6725 = vpop.f32.mrb[0].mxu0
        %6726 = vdwg.mxu0
        %6727 = vmatprep.subr.bf16.mxu0 %v6271
        %6728 = vmatpush1.bf16.msra.mxu0 %v6270
        %6729 = vmatprep.subr.bf16.mxu0 %v6278
        %6730 = vmatpush1.bf16.msra.mxu0 %v6277
        %6731 = vmatprep.subr.bf16.mxu0 %v6285
        %6732 = vmatpush1.bf16.msra.mxu0 %v6284
        %6733 = vmatprep.subr.bf16.mxu0 %v6292
        %6734 = vmatpush1.bf16.msra.mxu0 %v6291
        %6735 = vmatprep.subr.bf16.mxu0 %v6299
        %6736 = vmatpush1.bf16.msra.mxu0 %v6298
        %6737 = vmatprep.subr.bf16.mxu0 %v6306
        %6738 = vmatpush1.bf16.msra.mxu0 %v6305
        %6739 = vmatprep.subr.bf16.mxu0 %v6313
        %6740 = vmatpush1.bf16.msra.mxu0 %v6312
        %6741 = vmatprep.subr.bf16.mxu0 %v6320
        %6742 = vmatpush1.bf16.msra.mxu0 %v6319
        %6743 = vmatprep.subr.bf16.mxu0 %v6327
        %6744 = vmatpush1.bf16.msra.mxu0 %v6326
        %6745 = vmatprep.subr.bf16.mxu0 %v6334
        %6746 = vmatpush1.bf16.msra.mxu0 %v6333
        %6747 = vmatprep.subr.bf16.mxu0 %v6341
        %6748 = vmatpush1.bf16.msra.mxu0 %v6340
        %6749 = vmatprep.subr.bf16.mxu0 %v6348
        %6750 = vmatpush1.bf16.msra.mxu0 %v6347
        %6751 = vmatprep.subr.bf16.mxu0 %v6355
        %6752 = vmatpush1.bf16.msra.mxu0 %v6354
        %6753 = vmatprep.subr.bf16.mxu0 %v6362
        %6754 = vmatpush1.bf16.msra.mxu0 %v6361
        %6755 = vmatprep.subr.bf16.mxu0 %v6369
        %6756 = vmatpush1.bf16.msra.mxu0 %v6368
        %6757 = vmatprep.subr.bf16.mxu0 %v6376
        %6758 = vmatpush1.bf16.msra.mxu0 %v6375
        %6759 = vmatprep.mubr.bf16.mxu0 %v5447
        %6760 = vmatmul.mubr.bf16.gmra.mrb[0].mxu0 %v5446
        %v6761 = vpop.f32.mrb[0].mxu0
        %v6762 = vadd.f32 %v6721, %v6761
        %v6763 = vpop.f32.mrb[0].mxu0
        %v6764 = vadd.f32 %v6723, %v6763
        %v6765 = vpop.f32.mrb[0].mxu0
        %v6766 = vpop.f32.mrb[0].mxu0
        %6767 = vdwg.mxu0
        %6768 = vmatprep.subr.bf16.mxu0 %v6161
        %6769 = vmatpush1.bf16.msra.mxu0 %v6160
        %6770 = vmatprep.subr.bf16.mxu0 %v6168
        %6771 = vmatpush1.bf16.msra.mxu0 %v6167
        %6772 = vmatprep.subr.bf16.mxu0 %v6175
        %6773 = vmatpush1.bf16.msra.mxu0 %v6174
        %6774 = vmatprep.subr.bf16.mxu0 %v6182
        %6775 = vmatpush1.bf16.msra.mxu0 %v6181
        %6776 = vmatprep.subr.bf16.mxu0 %v6189
        %6777 = vmatpush1.bf16.msra.mxu0 %v6188
        %6778 = vmatprep.subr.bf16.mxu0 %v6196
        %6779 = vmatpush1.bf16.msra.mxu0 %v6195
        %6780 = vmatprep.subr.bf16.mxu0 %v6203
        %6781 = vmatpush1.bf16.msra.mxu0 %v6202
        %6782 = vmatprep.subr.bf16.mxu0 %v6210
        %6783 = vmatpush1.bf16.msra.mxu0 %v6209
        %6784 = vmatprep.subr.bf16.mxu0 %v6217
        %6785 = vmatpush1.bf16.msra.mxu0 %v6216
        %6786 = vmatprep.subr.bf16.mxu0 %v6224
        %6787 = vmatpush1.bf16.msra.mxu0 %v6223
        %6788 = vmatprep.subr.bf16.mxu0 %v6231
        %6789 = vmatpush1.bf16.msra.mxu0 %v6230
        %6790 = vmatprep.subr.bf16.mxu0 %v6238
        %6791 = vmatpush1.bf16.msra.mxu0 %v6237
        %6792 = vmatprep.subr.bf16.mxu0 %v6245
        %6793 = vmatpush1.bf16.msra.mxu0 %v6244
        %6794 = vmatprep.subr.bf16.mxu0 %v6252
        %6795 = vmatpush1.bf16.msra.mxu0 %v6251
        %6796 = vmatprep.subr.bf16.mxu0 %v6259
        %6797 = vmatpush1.bf16.msra.mxu0 %v6258
        %6798 = vmatprep.subr.bf16.mxu0 %v6266
        %6799 = vmatpush1.bf16.msra.mxu0 %v6265
        %6800 = vmatprep.mubr.bf16.mxu0 %v5445
        %6801 = vmatmul.mubr.bf16.gmra.mrb[0].mxu0 %v5444
        %v6802 = vpop.f32.mrb[0].mxu0
        %v6803 = vadd.f32 0.0, %v6802
        %v6804 = vpop.f32.mrb[0].mxu0
        %v6805 = vadd.f32 0.0, %v6804
        %v6806 = vpop.f32.mrb[0].mxu0
        %v6807 = vpop.f32.mrb[0].mxu0
        %6808 = vdwg.mxu0
        %6809 = vmatprep.subr.bf16.mxu0 %v6273
        %6810 = vmatpush1.bf16.msra.mxu0 %v6272
        %6811 = vmatprep.subr.bf16.mxu0 %v6280
        %6812 = vmatpush1.bf16.msra.mxu0 %v6279
        %6813 = vmatprep.subr.bf16.mxu0 %v6287
        %6814 = vmatpush1.bf16.msra.mxu0 %v6286
        %6815 = vmatprep.subr.bf16.mxu0 %v6294
        %6816 = vmatpush1.bf16.msra.mxu0 %v6293
        %6817 = vmatprep.subr.bf16.mxu0 %v6301
        %6818 = vmatpush1.bf16.msra.mxu0 %v6300
        %6819 = vmatprep.subr.bf16.mxu0 %v6308
        %6820 = vmatpush1.bf16.msra.mxu0 %v6307
        %6821 = vmatprep.subr.bf16.mxu0 %v6315
        %6822 = vmatpush1.bf16.msra.mxu0 %v6314
        %6823 = vmatprep.subr.bf16.mxu0 %v6322
        %6824 = vmatpush1.bf16.msra.mxu0 %v6321
        %6825 = vmatprep.subr.bf16.mxu0 %v6329
        %6826 = vmatpush1.bf16.msra.mxu0 %v6328
        %6827 = vmatprep.subr.bf16.mxu0 %v6336
        %6828 = vmatpush1.bf16.msra.mxu0 %v6335
        %6829 = vmatprep.subr.bf16.mxu0 %v6343
        %6830 = vmatpush1.bf16.msra.mxu0 %v6342
        %6831 = vmatprep.subr.bf16.mxu0 %v6350
        %6832 = vmatpush1.bf16.msra.mxu0 %v6349
        %6833 = vmatprep.subr.bf16.mxu0 %v6357
        %6834 = vmatpush1.bf16.msra.mxu0 %v6356
        %6835 = vmatprep.subr.bf16.mxu0 %v6364
        %6836 = vmatpush1.bf16.msra.mxu0 %v6363
        %6837 = vmatprep.subr.bf16.mxu0 %v6371
        %6838 = vmatpush1.bf16.msra.mxu0 %v6370
        %6839 = vmatprep.subr.bf16.mxu0 %v6378
        %6840 = vmatpush1.bf16.msra.mxu0 %v6377
        %6841 = vmatprep.mubr.bf16.mxu0 %v5447
        %6842 = vmatmul.mubr.bf16.gmra.mrb[0].mxu0 %v5446
        %v6843 = vpop.f32.mrb[0].mxu0
        %v6844 = vadd.f32 %v6803, %v6843
        %v6845 = vpop.f32.mrb[0].mxu0
        %v6846 = vadd.f32 %v6805, %v6845
        %v6847 = vpop.f32.mrb[0].mxu0
        %v6848 = vpop.f32.mrb[0].mxu0
        %6849 = vdwg.mxu0
        %6850 = vmatprep.subr.bf16.mxu0 0
        %6851 = vmatpush1.bf16.msra.mxu0 %v6162
        %6852 = vmatprep.subr.bf16.mxu0 0
        %6853 = vmatpush1.bf16.msra.mxu0 %v6169
        %6854 = vmatprep.subr.bf16.mxu0 0
        %6855 = vmatpush1.bf16.msra.mxu0 %v6176
        %6856 = vmatprep.subr.bf16.mxu0 0
        %6857 = vmatpush1.bf16.msra.mxu0 %v6183
        %6858 = vmatprep.subr.bf16.mxu0 0
        %6859 = vmatpush1.bf16.msra.mxu0 %v6190
        %6860 = vmatprep.subr.bf16.mxu0 0
        %6861 = vmatpush1.bf16.msra.mxu0 %v6197
        %6862 = vmatprep.subr.bf16.mxu0 0
        %6863 = vmatpush1.bf16.msra.mxu0 %v6204
        %6864 = vmatprep.subr.bf16.mxu0 0
        %6865 = vmatpush1.bf16.msra.mxu0 %v6211
        %6866 = vmatprep.subr.bf16.mxu0 0
        %6867 = vmatpush1.bf16.msra.mxu0 %v6218
        %6868 = vmatprep.subr.bf16.mxu0 0
        %6869 = vmatpush1.bf16.msra.mxu0 %v6225
        %6870 = vmatprep.subr.bf16.mxu0 0
        %6871 = vmatpush1.bf16.msra.mxu0 %v6232
        %6872 = vmatprep.subr.bf16.mxu0 0
        %6873 = vmatpush1.bf16.msra.mxu0 %v6239
        %6874 = vmatprep.subr.bf16.mxu0 0
        %6875 = vmatpush1.bf16.msra.mxu0 %v6246
        %6876 = vmatprep.subr.bf16.mxu0 0
        %6877 = vmatpush1.bf16.msra.mxu0 %v6253
        %6878 = vmatprep.subr.bf16.mxu0 0
        %6879 = vmatpush1.bf16.msra.mxu0 %v6260
        %6880 = vmatprep.subr.bf16.mxu0 0
        %6881 = vmatpush1.bf16.msra.mxu0 %v6267
        %6882 = vmatprep.mubr.bf16.mxu0 %v5445
        %6883 = vmatmul.mubr.bf16.gmra.mrb[0].mxu0 %v5444
        %v6884 = vpop.f32.mrb[0].mxu0
        %v6885 = vadd.f32 0.0, %v6884
        %v6886 = vpop.f32.mrb[0].mxu0
        %v6887 = vpop.f32.mrb[0].mxu0
        %v6888 = vpop.f32.mrb[0].mxu0
        %6889 = vdwg.mxu0
        %6890 = vmatprep.subr.bf16.mxu0 0
        %6891 = vmatpush1.bf16.msra.mxu0 %v6274
        %6892 = vmatprep.subr.bf16.mxu0 0
        %6893 = vmatpush1.bf16.msra.mxu0 %v6281
        %6894 = vmatprep.subr.bf16.mxu0 0
        %6895 = vmatpush1.bf16.msra.mxu0 %v6288
        %6896 = vmatprep.subr.bf16.mxu0 0
        %6897 = vmatpush1.bf16.msra.mxu0 %v6295
        %6898 = vmatprep.subr.bf16.mxu0 0
        %6899 = vmatpush1.bf16.msra.mxu0 %v6302
        %6900 = vmatprep.subr.bf16.mxu0 0
        %6901 = vmatpush1.bf16.msra.mxu0 %v6309
        %6902 = vmatprep.subr.bf16.mxu0 0
        %6903 = vmatpush1.bf16.msra.mxu0 %v6316
        %6904 = vmatprep.subr.bf16.mxu0 0
        %6905 = vmatpush1.bf16.msra.mxu0 %v6323
        %6906 = vmatprep.subr.bf16.mxu0 0
        %6907 = vmatpush1.bf16.msra.mxu0 %v6330
        %6908 = vmatprep.subr.bf16.mxu0 0
        %6909 = vmatpush1.bf16.msra.mxu0 %v6337
        %6910 = vmatprep.subr.bf16.mxu0 0
        %6911 = vmatpush1.bf16.msra.mxu0 %v6344
        %6912 = vmatprep.subr.bf16.mxu0 0
        %6913 = vmatpush1.bf16.msra.mxu0 %v6351
        %6914 = vmatprep.subr.bf16.mxu0 0
        %6915 = vmatpush1.bf16.msra.mxu0 %v6358
        %6916 = vmatprep.subr.bf16.mxu0 0
        %6917 = vmatpush1.bf16.msra.mxu0 %v6365
        %6918 = vmatprep.subr.bf16.mxu0 0
        %6919 = vmatpush1.bf16.msra.mxu0 %v6372
        %6920 = vmatprep.subr.bf16.mxu0 0
        %6921 = vmatpush1.bf16.msra.mxu0 %v6379
        %6922 = vmatprep.mubr.bf16.mxu0 %v5447
        %6923 = vmatmul.mubr.bf16.gmra.mrb[0].mxu0 %v5446
        %v6924 = vpop.f32.mrb[0].mxu0
        %v6925 = vadd.f32 %v6885, %v6924
        %v6926 = vpop.f32.mrb[0].mxu0
        %v6927 = vpop.f32.mrb[0].mxu0
        %v6928 = vpop.f32.mrb[0].mxu0
        %6929 = vdwg.mxu0
        %v6930 = vadd.f32 %v4921, %v6680
        %v6931 = vadd.f32 %v4923, %v6682
        %v6932 = vadd.f32 %v5003, %v6762
        %v6933 = vadd.f32 %v5005, %v6764
        %v6934 = vadd.f32 %v5085, %v6844
        %v6935 = vadd.f32 %v5087, %v6846
        %v6936 = vadd.f32 %v5166, %v6925
        %v6937 = vld [vmem:[#allocation9] sm:$0xff]
        %v6939 = vlaneseq
        %v6940 = vshrl.u32 %v6939, 7
        %v6941 = vsub.s32 0, %v6940
        %v6942 = vrot.slane %v6937, %v6941
        %v6943 = vlaneseq
        %v6944 = vshrl.u32 %v6943, 7
        %v6945 = vsub.s32 1, %v6944
        %v6946 = vrot.slane %v6937, %v6945
        %v6947 = vlaneseq
        %v6948 = vshrl.u32 %v6947, 7
        %v6949 = vsub.s32 2, %v6948
        %v6950 = vrot.slane %v6937, %v6949
        %v6951 = vlaneseq
        %v6952 = vshrl.u32 %v6951, 7
        %v6953 = vsub.s32 3, %v6952
        %v6954 = vrot.slane %v6937, %v6953
        %v6955 = vlaneseq
        %v6956 = vshrl.u32 %v6955, 7
        %v6957 = vsub.s32 4, %v6956
        %v6958 = vrot.slane %v6937, %v6957
        %v6959 = vlaneseq
        %v6960 = vshrl.u32 %v6959, 7
        %v6961 = vsub.s32 5, %v6960
        %v6962 = vrot.slane %v6937, %v6961
        %v6963 = vlaneseq
        %v6964 = vshrl.u32 %v6963, 7
        %v6965 = vsub.s32 6, %v6964
        %v6966 = vrot.slane %v6937, %v6965
        %v6974 = vadd.f32 %v6930, %v6942
        %v6975 = vadd.f32 %v6931, %v6946
        %v6976 = vadd.f32 %v6932, %v6950
        %v6977 = vadd.f32 %v6933, %v6954
        %v6978 = vadd.f32 %v6934, %v6958
        %v6979 = vadd.f32 %v6935, %v6962
        %v6980 = vadd.f32 %v6936, %v6966
        %v6981 = vmax.f32 %v6974, 0.0
        %v6982 = vmax.f32 %v6975, 0.0
        %v6983 = vmax.f32 %v6976, 0.0
        %v6984 = vmax.f32 %v6977, 0.0
        %v6985 = vmax.f32 %v6978, 0.0
        %v6986 = vmax.f32 %v6979, 0.0
        %v6987 = vmax.f32 %v6980, 0.0
        %v6988 = vmax.f32 %v6982, %v6983
        %v6989 = vmax.f32 %v6984, %v6985
        %v6990 = vmax.f32 %v6986, %v6987
        %v6995 = vrot.slane %v6981, 1
        %v6996 = vrot.slane %v6988, 1
        %v6997 = vrot.slane %v6989, 1
        %v6998 = vrot.slane %v6990, 1
        %v7003 = vmax.f32 %v6981, %v6995
        %v7004 = vmax.f32 %v6988, %v6996
        %v7005 = vmax.f32 %v6989, %v6997
        %v7006 = vmax.f32 %v6990, %v6998
        %v7011 = vrot.slane %v7003, 1
        %v7012 = vrot.slane %v7004, 1
        %v7013 = vrot.slane %v7005, 1
        %v7014 = vrot.slane %v7006, 1
        %v7019 = vrot.slane %v7003, 3
        %v7020 = vrot.slane %v7004, 3
        %v7021 = vrot.slane %v7005, 3
        %v7022 = vrot.slane %v7006, 3
        %v7027 = vrot.slane %v7003, 5
        %v7028 = vrot.slane %v7004, 5
        %v7029 = vrot.slane %v7005, 5
        %v7030 = vrot.slane %v7006, 5
        %v7035 = vpack.c.bf16 %v6981, %v6981
        %v7036 = vpack.c.bf16 %v6988, %v6988
        %v7037 = vpack.c.bf16 %v6989, %v6989
        %v7038 = vpack.c.bf16 %v6990, %v6990
        %v7039 = vpack.c.bf16 %v7011, %v7011
        %v7040 = vpack.c.bf16 %v7012, %v7012
        %v7041 = vpack.c.bf16 %v7013, %v7013
        %v7042 = vpack.c.bf16 %v7014, %v7014
        %v7043 = vpack.c.bf16 %v7019, %v7019
        %v7044 = vpack.c.bf16 %v7020, %v7020
        %v7045 = vpack.c.bf16 %v7021, %v7021
        %v7046 = vpack.c.bf16 %v7022, %v7022
        %v7047 = vpack.c.bf16 %v7027, %v7027
        %v7048 = vpack.c.bf16 %v7028, %v7028
        %v7049 = vpack.c.bf16 %v7029, %v7029
        %v7050 = vpack.c.bf16 %v7030, %v7030
        %v7051 = vld [vmem:[#allocation11] sm:$0xff]
        %v7052 = vld [vmem:[#allocation11 + $0x8] sm:$0xff]
        %v7053 = vld [vmem:[#allocation11 + $0x10] sm:$0xf]
        %v7054 = vld [vmem:[#allocation11 + $0x14] sm:$0xff]
        %v7055 = vld [vmem:[#allocation11 + $0x1c] sm:$0xff]
        %v7056 = vld [vmem:[#allocation11 + $0x24] sm:$0xf]
        %v7057 = vld [vmem:[#allocation11 + $0x28] sm:$0xff]
        %v7058 = vld [vmem:[#allocation11 + $0x30] sm:$0xff]
        %v7059 = vld [vmem:[#allocation11 + $0x38] sm:$0xf]
        %v7060 = vld [vmem:[#allocation11 + $0x3c] sm:$0xff]
        %v7061 = vld [vmem:[#allocation11 + $0x44] sm:$0xff]
        %v7062 = vld [vmem:[#allocation11 + $0x4c] sm:$0xf]
        %v7063 = vld [vmem:[#allocation11 + $0x50] sm:$0xff]
        %v7064 = vld [vmem:[#allocation11 + $0x58] sm:$0xff]
        %v7065 = vld [vmem:[#allocation11 + $0x60] sm:$0xf]
        %v7066 = vld [vmem:[#allocation11 + $0x64] sm:$0xff]
        %v7067 = vld [vmem:[#allocation11 + $0x6c] sm:$0xff]
        %v7068 = vld [vmem:[#allocation11 + $0x74] sm:$0xf]
        %v7069 = vld [vmem:[#allocation11 + $0x78] sm:$0xff]
        %v7070 = vld [vmem:[#allocation11 + $0x80] sm:$0xff]
        %v7071 = vld [vmem:[#allocation11 + $0x88] sm:$0xf]
        %v7072 = vld [vmem:[#allocation11 + $0x8c] sm:$0xff]
        %v7073 = vld [vmem:[#allocation11 + $0x94] sm:$0xff]
        %v7074 = vld [vmem:[#allocation11 + $0x9c] sm:$0xf]
        %v7075 = vld [vmem:[#allocation11 + $0xa0] sm:$0xff]
        %v7076 = vld [vmem:[#allocation11 + $0xa8] sm:$0xff]
        %v7077 = vld [vmem:[#allocation11 + $0xb0] sm:$0xf]
        %v7078 = vld [vmem:[#allocation11 + $0xb4] sm:$0xff]
        %v7079 = vld [vmem:[#allocation11 + $0xbc] sm:$0xff]
        %v7080 = vld [vmem:[#allocation11 + $0xc4] sm:$0xf]
        %v7081 = vld [vmem:[#allocation11 + $0xc8] sm:$0xff]
        %v7082 = vld [vmem:[#allocation11 + $0xd0] sm:$0xff]
        %v7083 = vld [vmem:[#allocation11 + $0xd8] sm:$0xf]
        %v7084 = vld [vmem:[#allocation11 + $0xdc] sm:$0xff]
        %v7085 = vld [vmem:[#allocation11 + $0xe4] sm:$0xff]
        %v7086 = vld [vmem:[#allocation11 + $0xec] sm:$0xf]
        %v7087 = vld [vmem:[#allocation11 + $0xf0] sm:$0xff]
        %v7088 = vld [vmem:[#allocation11 + $0xf8] sm:$0xff]
        %v7089 = vld [vmem:[#allocation11 + $0x100] sm:$0xf]
        %v7090 = vld [vmem:[#allocation11 + $0x104] sm:$0xff]
        %v7091 = vld [vmem:[#allocation11 + $0x10c] sm:$0xff]
        %v7092 = vld [vmem:[#allocation11 + $0x114] sm:$0xf]
        %v7093 = vld [vmem:[#allocation11 + $0x118] sm:$0xff]
        %v7094 = vld [vmem:[#allocation11 + $0x120] sm:$0xff]
        %v7095 = vld [vmem:[#allocation11 + $0x128] sm:$0xf]
        %v7096 = vld [vmem:[#allocation11 + $0x12c] sm:$0xff]
        %v7097 = vld [vmem:[#allocation11 + $0x134] sm:$0xff]
        %v7098 = vld [vmem:[#allocation11 + $0x13c] sm:$0xf]
        %v7099 = vld [vmem:[#allocation11 + $0x140] sm:$0xff]
        %v7100 = vld [vmem:[#allocation11 + $0x148] sm:$0xff]
        %v7101 = vld [vmem:[#allocation11 + $0x150] sm:$0xf]
        %v7102 = vld [vmem:[#allocation11 + $0x154] sm:$0xff]
        %v7103 = vld [vmem:[#allocation11 + $0x15c] sm:$0xff]
        %v7104 = vld [vmem:[#allocation11 + $0x164] sm:$0xf]
        %v7105 = vld [vmem:[#allocation11 + $0x168] sm:$0xff]
        %v7106 = vld [vmem:[#allocation11 + $0x170] sm:$0xff]
        %v7107 = vld [vmem:[#allocation11 + $0x178] sm:$0xf]
        %v7108 = vld [vmem:[#allocation11 + $0x17c] sm:$0xff]
        %v7109 = vld [vmem:[#allocation11 + $0x184] sm:$0xff]
        %v7110 = vld [vmem:[#allocation11 + $0x18c] sm:$0xf]
        %v7111 = vld [vmem:[#allocation11 + $0x190] sm:$0xff]
        %v7112 = vld [vmem:[#allocation11 + $0x198] sm:$0xff]
        %v7113 = vld [vmem:[#allocation11 + $0x1a0] sm:$0xf]
        %v7114 = vld [vmem:[#allocation11 + $0x1a4] sm:$0xff]
        %v7115 = vld [vmem:[#allocation11 + $0x1ac] sm:$0xff]
        %v7116 = vld [vmem:[#allocation11 + $0x1b4] sm:$0xf]
        %v7117 = vld [vmem:[#allocation11 + $0x1b8] sm:$0xff]
        %v7118 = vld [vmem:[#allocation11 + $0x1c0] sm:$0xff]
        %v7119 = vld [vmem:[#allocation11 + $0x1c8] sm:$0xf]
        %v7120 = vld [vmem:[#allocation11 + $0x1cc] sm:$0xff]
        %v7121 = vld [vmem:[#allocation11 + $0x1d4] sm:$0xff]
        %v7122 = vld [vmem:[#allocation11 + $0x1dc] sm:$0xf]
        %v7123 = vld [vmem:[#allocation11 + $0x1e0] sm:$0xff]
        %v7124 = vld [vmem:[#allocation11 + $0x1e8] sm:$0xff]
        %v7125 = vld [vmem:[#allocation11 + $0x1f0] sm:$0xf]
        %v7126 = vld [vmem:[#allocation11 + $0x1f4] sm:$0xff]
        %v7127 = vld [vmem:[#allocation11 + $0x1fc] sm:$0xff]
        %v7128 = vld [vmem:[#allocation11 + $0x204] sm:$0xf]
        %v7129 = vld [vmem:[#allocation11 + $0x208] sm:$0xff]
        %v7130 = vld [vmem:[#allocation11 + $0x210] sm:$0xff]
        %v7131 = vld [vmem:[#allocation11 + $0x218] sm:$0xf]
        %v7132 = vld [vmem:[#allocation11 + $0x21c] sm:$0xff]
        %v7133 = vld [vmem:[#allocation11 + $0x224] sm:$0xff]
        %v7134 = vld [vmem:[#allocation11 + $0x22c] sm:$0xf]
        %v7135 = vld [vmem:[#allocation11 + $0x230] sm:$0xff]
        %v7136 = vld [vmem:[#allocation11 + $0x238] sm:$0xff]
        %v7137 = vld [vmem:[#allocation11 + $0x240] sm:$0xf]
        %v7138 = vld [vmem:[#allocation11 + $0x244] sm:$0xff]
        %v7139 = vld [vmem:[#allocation11 + $0x24c] sm:$0xff]
        %v7140 = vld [vmem:[#allocation11 + $0x254] sm:$0xf]
        %v7141 = vld [vmem:[#allocation11 + $0x258] sm:$0xff]
        %v7142 = vld [vmem:[#allocation11 + $0x260] sm:$0xff]
        %v7143 = vld [vmem:[#allocation11 + $0x268] sm:$0xf]
        %v7144 = vld [vmem:[#allocation11 + $0x26c] sm:$0xff]
        %v7145 = vld [vmem:[#allocation11 + $0x274] sm:$0xff]
        %v7146 = vld [vmem:[#allocation11 + $0x27c] sm:$0xf]
        %v7147 = vld [vmem:[#allocation11 + $0x280] sm:$0xff]
        %v7148 = vld [vmem:[#allocation11 + $0x288] sm:$0xff]
        %v7149 = vld [vmem:[#allocation11 + $0x290] sm:$0xf]
        %v7150 = vld [vmem:[#allocation11 + $0x294] sm:$0xff]
        %v7151 = vld [vmem:[#allocation11 + $0x29c] sm:$0xff]
        %v7152 = vld [vmem:[#allocation11 + $0x2a4] sm:$0xf]
        %v7153 = vld [vmem:[#allocation11 + $0x2a8] sm:$0xff]
        %v7154 = vld [vmem:[#allocation11 + $0x2b0] sm:$0xff]
        %v7155 = vld [vmem:[#allocation11 + $0x2b8] sm:$0xf]
        %v7156 = vld [vmem:[#allocation11 + $0x2bc] sm:$0xff]
        %v7157 = vld [vmem:[#allocation11 + $0x2c4] sm:$0xff]
        %v7158 = vld [vmem:[#allocation11 + $0x2cc] sm:$0xf]
        %v7159 = vld [vmem:[#allocation11 + $0x2d0] sm:$0xff]
        %v7160 = vld [vmem:[#allocation11 + $0x2d8] sm:$0xff]
        %v7161 = vld [vmem:[#allocation11 + $0x2e0] sm:$0xf]
        %v7162 = vld [vmem:[#allocation11 + $0x2e4] sm:$0xff]
        %v7163 = vld [vmem:[#allocation11 + $0x2ec] sm:$0xff]
        %v7164 = vld [vmem:[#allocation11 + $0x2f4] sm:$0xf]
        %v7165 = vld [vmem:[#allocation11 + $0x2f8] sm:$0xff]
        %v7166 = vld [vmem:[#allocation11 + $0x300] sm:$0xff]
        %v7167 = vld [vmem:[#allocation11 + $0x308] sm:$0xf]
        %v7168 = vld [vmem:[#allocation11 + $0x30c] sm:$0xff]
        %v7169 = vld [vmem:[#allocation11 + $0x314] sm:$0xff]
        %v7170 = vld [vmem:[#allocation11 + $0x31c] sm:$0xf]
        %v7171 = vld [vmem:[#allocation11 + $0x320] sm:$0xff]
        %v7172 = vld [vmem:[#allocation11 + $0x328] sm:$0xff]
        %v7173 = vld [vmem:[#allocation11 + $0x330] sm:$0xf]
        %v7174 = vld [vmem:[#allocation11 + $0x334] sm:$0xff]
        %v7175 = vld [vmem:[#allocation11 + $0x33c] sm:$0xff]
        %v7176 = vld [vmem:[#allocation11 + $0x344] sm:$0xf]
        %v7177 = vld [vmem:[#allocation11 + $0x348] sm:$0xff]
        %v7178 = vld [vmem:[#allocation11 + $0x350] sm:$0xff]
        %v7179 = vld [vmem:[#allocation11 + $0x358] sm:$0xf]
        %v7180 = vld [vmem:[#allocation11 + $0x35c] sm:$0xff]
        %v7181 = vld [vmem:[#allocation11 + $0x364] sm:$0xff]
        %v7182 = vld [vmem:[#allocation11 + $0x36c] sm:$0xf]
        %v7183 = vld [vmem:[#allocation11 + $0x370] sm:$0xff]
        %v7184 = vld [vmem:[#allocation11 + $0x378] sm:$0xff]
        %v7185 = vld [vmem:[#allocation11 + $0x380] sm:$0xf]
        %v7186 = vld [vmem:[#allocation11 + $0x384] sm:$0xff]
        %v7187 = vld [vmem:[#allocation11 + $0x38c] sm:$0xff]
        %v7188 = vld [vmem:[#allocation11 + $0x394] sm:$0xf]
        %v7189 = vld [vmem:[#allocation11 + $0x398] sm:$0xff]
        %v7190 = vld [vmem:[#allocation11 + $0x3a0] sm:$0xff]
        %v7191 = vld [vmem:[#allocation11 + $0x3a8] sm:$0xf]
        %v7192 = vld [vmem:[#allocation11 + $0x3ac] sm:$0xff]
        %v7193 = vld [vmem:[#allocation11 + $0x3b4] sm:$0xff]
        %v7194 = vld [vmem:[#allocation11 + $0x3bc] sm:$0xf]
        %v7195 = vld [vmem:[#allocation11 + $0x3c0] sm:$0xff]
        %v7196 = vld [vmem:[#allocation11 + $0x3c8] sm:$0xff]
        %v7197 = vld [vmem:[#allocation11 + $0x3d0] sm:$0xf]
        %v7198 = vld [vmem:[#allocation11 + $0x3d4] sm:$0xff]
        %v7199 = vld [vmem:[#allocation11 + $0x3dc] sm:$0xff]
        %v7200 = vld [vmem:[#allocation11 + $0x3e4] sm:$0xf]
        %v7201 = vld [vmem:[#allocation11 + $0x3e8] sm:$0xff]
        %v7202 = vld [vmem:[#allocation11 + $0x3f0] sm:$0xff]
        %v7203 = vld [vmem:[#allocation11 + $0x3f8] sm:$0xf]
        %v7204 = vld [vmem:[#allocation11 + $0x3fc] sm:$0xff]
        %v7205 = vld [vmem:[#allocation11 + $0x404] sm:$0xff]
        %v7206 = vld [vmem:[#allocation11 + $0x40c] sm:$0xf]
        %v7207 = vld [vmem:[#allocation11 + $0x410] sm:$0xff]
        %v7208 = vld [vmem:[#allocation11 + $0x418] sm:$0xff]
        %v7209 = vld [vmem:[#allocation11 + $0x420] sm:$0xf]
        %v7210 = vld [vmem:[#allocation11 + $0x424] sm:$0xff]
        %v7211 = vld [vmem:[#allocation11 + $0x42c] sm:$0xff]
        %v7212 = vld [vmem:[#allocation11 + $0x434] sm:$0xf]
        %v7213 = vld [vmem:[#allocation11 + $0x438] sm:$0xff]
        %v7214 = vld [vmem:[#allocation11 + $0x440] sm:$0xff]
        %v7215 = vld [vmem:[#allocation11 + $0x448] sm:$0xf]
        %v7216 = vld [vmem:[#allocation11 + $0x44c] sm:$0xff]
        %v7217 = vld [vmem:[#allocation11 + $0x454] sm:$0xff]
        %v7218 = vld [vmem:[#allocation11 + $0x45c] sm:$0xf]
        %v7219 = vld [vmem:[#allocation11 + $0x460] sm:$0xff]
        %v7220 = vld [vmem:[#allocation11 + $0x468] sm:$0xff]
        %v7221 = vld [vmem:[#allocation11 + $0x470] sm:$0xf]
        %v7222 = vld [vmem:[#allocation11 + $0x474] sm:$0xff]
        %v7223 = vld [vmem:[#allocation11 + $0x47c] sm:$0xff]
        %v7224 = vld [vmem:[#allocation11 + $0x484] sm:$0xf]
        %v7225 = vld [vmem:[#allocation11 + $0x488] sm:$0xff]
        %v7226 = vld [vmem:[#allocation11 + $0x490] sm:$0xff]
        %v7227 = vld [vmem:[#allocation11 + $0x498] sm:$0xf]
        %v7228 = vld [vmem:[#allocation11 + $0x49c] sm:$0xff]
        %v7229 = vld [vmem:[#allocation11 + $0x4a4] sm:$0xff]
        %v7230 = vld [vmem:[#allocation11 + $0x4ac] sm:$0xf]
        %v7231 = vld [vmem:[#allocation11 + $0x4b0] sm:$0xff]
        %v7232 = vld [vmem:[#allocation11 + $0x4b8] sm:$0xff]
        %v7233 = vld [vmem:[#allocation11 + $0x4c0] sm:$0xf]
        %v7234 = vld [vmem:[#allocation11 + $0x4c4] sm:$0xff]
        %v7235 = vld [vmem:[#allocation11 + $0x4cc] sm:$0xff]
        %v7236 = vld [vmem:[#allocation11 + $0x4d4] sm:$0xf]
        %v7237 = vld [vmem:[#allocation11 + $0x4d8] sm:$0xff]
        %v7238 = vld [vmem:[#allocation11 + $0x4e0] sm:$0xff]
        %v7239 = vld [vmem:[#allocation11 + $0x4e8] sm:$0xf]
        %v7240 = vld [vmem:[#allocation11 + $0x4ec] sm:$0xff]
        %v7241 = vld [vmem:[#allocation11 + $0x4f4] sm:$0xff]
        %v7242 = vld [vmem:[#allocation11 + $0x4fc] sm:$0xf]
        %v7243 = vld [vmem:[#allocation11 + $0x500] sm:$0xff]
        %v7244 = vld [vmem:[#allocation11 + $0x508] sm:$0xff]
        %v7245 = vld [vmem:[#allocation11 + $0x510] sm:$0xf]
        %v7246 = vld [vmem:[#allocation11 + $0x514] sm:$0xff]
        %v7247 = vld [vmem:[#allocation11 + $0x51c] sm:$0xff]
        %v7248 = vld [vmem:[#allocation11 + $0x524] sm:$0xf]
        %v7249 = vld [vmem:[#allocation11 + $0x528] sm:$0xff]
        %v7250 = vld [vmem:[#allocation11 + $0x530] sm:$0xff]
        %v7251 = vld [vmem:[#allocation11 + $0x538] sm:$0xf]
        %v7252 = vld [vmem:[#allocation11 + $0x53c] sm:$0xff]
        %v7253 = vld [vmem:[#allocation11 + $0x544] sm:$0xff]
        %v7254 = vld [vmem:[#allocation11 + $0x54c] sm:$0xf]
        %v7255 = vld [vmem:[#allocation11 + $0x550] sm:$0xff]
        %v7256 = vld [vmem:[#allocation11 + $0x558] sm:$0xff]
        %v7257 = vld [vmem:[#allocation11 + $0x560] sm:$0xf]
        %v7258 = vld [vmem:[#allocation11 + $0x564] sm:$0xff]
        %v7259 = vld [vmem:[#allocation11 + $0x56c] sm:$0xff]
        %v7260 = vld [vmem:[#allocation11 + $0x574] sm:$0xf]
        %v7261 = vld [vmem:[#allocation11 + $0x578] sm:$0xff]
        %v7262 = vld [vmem:[#allocation11 + $0x580] sm:$0xff]
        %v7263 = vld [vmem:[#allocation11 + $0x588] sm:$0xf]
        %v7264 = vld [vmem:[#allocation11 + $0x58c] sm:$0xff]
        %v7265 = vld [vmem:[#allocation11 + $0x594] sm:$0xff]
        %v7266 = vld [vmem:[#allocation11 + $0x59c] sm:$0xf]
        %v7267 = vld [vmem:[#allocation11 + $0x5a0] sm:$0xff]
        %v7268 = vld [vmem:[#allocation11 + $0x5a8] sm:$0xff]
        %v7269 = vld [vmem:[#allocation11 + $0x5b0] sm:$0xf]
        %v7270 = vld [vmem:[#allocation11 + $0x5b4] sm:$0xff]
        %v7271 = vld [vmem:[#allocation11 + $0x5bc] sm:$0xff]
        %v7272 = vld [vmem:[#allocation11 + $0x5c4] sm:$0xf]
        %v7273 = vld [vmem:[#allocation11 + $0x5c8] sm:$0xff]
        %v7274 = vld [vmem:[#allocation11 + $0x5d0] sm:$0xff]
        %v7275 = vld [vmem:[#allocation11 + $0x5d8] sm:$0xf]
        %v7276 = vld [vmem:[#allocation11 + $0x5dc] sm:$0xff]
        %v7277 = vld [vmem:[#allocation11 + $0x5e4] sm:$0xff]
        %v7278 = vld [vmem:[#allocation11 + $0x5ec] sm:$0xf]
        %v7279 = vld [vmem:[#allocation11 + $0x5f0] sm:$0xff]
        %v7280 = vld [vmem:[#allocation11 + $0x5f8] sm:$0xff]
        %v7281 = vld [vmem:[#allocation11 + $0x600] sm:$0xf]
        %v7282 = vld [vmem:[#allocation11 + $0x604] sm:$0xff]
        %v7283 = vld [vmem:[#allocation11 + $0x60c] sm:$0xff]
        %v7284 = vld [vmem:[#allocation11 + $0x614] sm:$0xf]
        %v7285 = vld [vmem:[#allocation11 + $0x618] sm:$0xff]
        %v7286 = vld [vmem:[#allocation11 + $0x620] sm:$0xff]
        %v7287 = vld [vmem:[#allocation11 + $0x628] sm:$0xf]
        %v7288 = vld [vmem:[#allocation11 + $0x62c] sm:$0xff]
        %v7289 = vld [vmem:[#allocation11 + $0x634] sm:$0xff]
        %v7290 = vld [vmem:[#allocation11 + $0x63c] sm:$0xf]
        %v7291 = vld [vmem:[#allocation11 + $0x640] sm:$0xff]
        %v7292 = vld [vmem:[#allocation11 + $0x648] sm:$0xff]
        %v7293 = vld [vmem:[#allocation11 + $0x650] sm:$0xf]
        %v7294 = vld [vmem:[#allocation11 + $0x654] sm:$0xff]
        %v7295 = vld [vmem:[#allocation11 + $0x65c] sm:$0xff]
        %v7296 = vld [vmem:[#allocation11 + $0x664] sm:$0xf]
        %v7297 = vld [vmem:[#allocation11 + $0x668] sm:$0xff]
        %v7298 = vld [vmem:[#allocation11 + $0x670] sm:$0xff]
        %v7299 = vld [vmem:[#allocation11 + $0x678] sm:$0xf]
        %v7300 = vld [vmem:[#allocation11 + $0x67c] sm:$0xff]
        %v7301 = vld [vmem:[#allocation11 + $0x684] sm:$0xff]
        %v7302 = vld [vmem:[#allocation11 + $0x68c] sm:$0xf]
        %v7303 = vld [vmem:[#allocation11 + $0x690] sm:$0xff]
        %v7304 = vld [vmem:[#allocation11 + $0x698] sm:$0xff]
        %v7305 = vld [vmem:[#allocation11 + $0x6a0] sm:$0xf]
        %v7306 = vld [vmem:[#allocation11 + $0x6a4] sm:$0xff]
        %v7307 = vld [vmem:[#allocation11 + $0x6ac] sm:$0xff]
        %v7308 = vld [vmem:[#allocation11 + $0x6b4] sm:$0xf]
        %v7309 = vld [vmem:[#allocation11 + $0x6b8] sm:$0xff]
        %v7310 = vld [vmem:[#allocation11 + $0x6c0] sm:$0xff]
        %v7311 = vld [vmem:[#allocation11 + $0x6c8] sm:$0xf]
        %v7312 = vld [vmem:[#allocation11 + $0x6cc] sm:$0xff]
        %v7313 = vld [vmem:[#allocation11 + $0x6d4] sm:$0xff]
        %v7314 = vld [vmem:[#allocation11 + $0x6dc] sm:$0xf]
        %v7315 = vld [vmem:[#allocation11 + $0x6e0] sm:$0xff]
        %v7316 = vld [vmem:[#allocation11 + $0x6e8] sm:$0xff]
        %v7317 = vld [vmem:[#allocation11 + $0x6f0] sm:$0xf]
        %v7318 = vld [vmem:[#allocation11 + $0x6f4] sm:$0xff]
        %v7319 = vld [vmem:[#allocation11 + $0x6fc] sm:$0xff]
        %v7320 = vld [vmem:[#allocation11 + $0x704] sm:$0xf]
        %v7321 = vld [vmem:[#allocation11 + $0x708] sm:$0xff]
        %v7322 = vld [vmem:[#allocation11 + $0x710] sm:$0xff]
        %v7323 = vld [vmem:[#allocation11 + $0x718] sm:$0xf]
        %v7324 = vld [vmem:[#allocation11 + $0x71c] sm:$0xff]
        %v7325 = vld [vmem:[#allocation11 + $0x724] sm:$0xff]
        %v7326 = vld [vmem:[#allocation11 + $0x72c] sm:$0xf]
        %v7327 = vld [vmem:[#allocation11 + $0x730] sm:$0xff]
        %v7328 = vld [vmem:[#allocation11 + $0x738] sm:$0xff]
        %v7329 = vld [vmem:[#allocation11 + $0x740] sm:$0xf]
        %v7330 = vld [vmem:[#allocation11 + $0x744] sm:$0xff]
        %v7331 = vld [vmem:[#allocation11 + $0x74c] sm:$0xff]
        %v7332 = vld [vmem:[#allocation11 + $0x754] sm:$0xf]
        %v7333 = vld [vmem:[#allocation11 + $0x758] sm:$0xff]
        %v7334 = vld [vmem:[#allocation11 + $0x760] sm:$0xff]
        %v7335 = vld [vmem:[#allocation11 + $0x768] sm:$0xf]
        %v7336 = vld [vmem:[#allocation11 + $0x76c] sm:$0xff]
        %v7337 = vld [vmem:[#allocation11 + $0x774] sm:$0xff]
        %v7338 = vld [vmem:[#allocation11 + $0x77c] sm:$0xf]
        %v7339 = vld [vmem:[#allocation11 + $0x780] sm:$0xff]
        %v7340 = vld [vmem:[#allocation11 + $0x788] sm:$0xff]
        %v7341 = vld [vmem:[#allocation11 + $0x790] sm:$0xf]
        %v7342 = vld [vmem:[#allocation11 + $0x794] sm:$0xff]
        %v7343 = vld [vmem:[#allocation11 + $0x79c] sm:$0xff]
        %v7344 = vld [vmem:[#allocation11 + $0x7a4] sm:$0xf]
        %v7345 = vld [vmem:[#allocation11 + $0x7a8] sm:$0xff]
        %v7346 = vld [vmem:[#allocation11 + $0x7b0] sm:$0xff]
        %v7347 = vld [vmem:[#allocation11 + $0x7b8] sm:$0xf]
        %v7348 = vld [vmem:[#allocation11 + $0x7bc] sm:$0xff]
        %v7349 = vld [vmem:[#allocation11 + $0x7c4] sm:$0xff]
        %v7350 = vld [vmem:[#allocation11 + $0x7cc] sm:$0xf]
        %v7351 = vld [vmem:[#allocation11 + $0x7d0] sm:$0xff]
        %v7352 = vld [vmem:[#allocation11 + $0x7d8] sm:$0xff]
        %v7353 = vld [vmem:[#allocation11 + $0x7e0] sm:$0xf]
        %v7354 = vld [vmem:[#allocation11 + $0x7e4] sm:$0xff]
        %v7355 = vld [vmem:[#allocation11 + $0x7ec] sm:$0xff]
        %v7356 = vld [vmem:[#allocation11 + $0x7f4] sm:$0xf]
        %v7357 = vld [vmem:[#allocation11 + $0x7f8] sm:$0xff]
        %v7358 = vld [vmem:[#allocation11 + $0x800] sm:$0xff]
        %v7359 = vld [vmem:[#allocation11 + $0x808] sm:$0xf]
        %v7360 = vld [vmem:[#allocation11 + $0x80c] sm:$0xff]
        %v7361 = vld [vmem:[#allocation11 + $0x814] sm:$0xff]
        %v7362 = vld [vmem:[#allocation11 + $0x81c] sm:$0xf]
        %v7363 = vld [vmem:[#allocation11 + $0x820] sm:$0xff]
        %v7364 = vld [vmem:[#allocation11 + $0x828] sm:$0xff]
        %v7365 = vld [vmem:[#allocation11 + $0x830] sm:$0xf]
        %v7366 = vld [vmem:[#allocation11 + $0x834] sm:$0xff]
        %v7367 = vld [vmem:[#allocation11 + $0x83c] sm:$0xff]
        %v7368 = vld [vmem:[#allocation11 + $0x844] sm:$0xf]
        %v7369 = vld [vmem:[#allocation11 + $0x848] sm:$0xff]
        %v7370 = vld [vmem:[#allocation11 + $0x850] sm:$0xff]
        %v7371 = vld [vmem:[#allocation11 + $0x858] sm:$0xf]
        %v7372 = vld [vmem:[#allocation11 + $0x85c] sm:$0xff]
        %v7373 = vld [vmem:[#allocation11 + $0x864] sm:$0xff]
        %v7374 = vld [vmem:[#allocation11 + $0x86c] sm:$0xf]
        %v7375 = vld [vmem:[#allocation11 + $0x870] sm:$0xff]
        %v7376 = vld [vmem:[#allocation11 + $0x878] sm:$0xff]
        %v7377 = vld [vmem:[#allocation11 + $0x880] sm:$0xf]
        %v7378 = vld [vmem:[#allocation11 + $0x884] sm:$0xff]
        %v7379 = vld [vmem:[#allocation11 + $0x88c] sm:$0xff]
        %v7380 = vld [vmem:[#allocation11 + $0x894] sm:$0xf]
        %v7381 = vld [vmem:[#allocation11 + $0x898] sm:$0xff]
        %v7382 = vld [vmem:[#allocation11 + $0x8a0] sm:$0xff]
        %v7383 = vld [vmem:[#allocation11 + $0x8a8] sm:$0xf]
        %v7384 = vld [vmem:[#allocation11 + $0x8ac] sm:$0xff]
        %v7385 = vld [vmem:[#allocation11 + $0x8b4] sm:$0xff]
        %v7386 = vld [vmem:[#allocation11 + $0x8bc] sm:$0xf]
        %v7387 = vld [vmem:[#allocation11 + $0x8c0] sm:$0xff]
        %v7388 = vld [vmem:[#allocation11 + $0x8c8] sm:$0xff]
        %v7389 = vld [vmem:[#allocation11 + $0x8d0] sm:$0xf]
        %v7390 = vld [vmem:[#allocation11 + $0x8d4] sm:$0xff]
        %v7391 = vld [vmem:[#allocation11 + $0x8dc] sm:$0xff]
        %v7392 = vld [vmem:[#allocation11 + $0x8e4] sm:$0xf]
        %v7393 = vld [vmem:[#allocation11 + $0x8e8] sm:$0xff]
        %v7394 = vld [vmem:[#allocation11 + $0x8f0] sm:$0xff]
        %v7395 = vld [vmem:[#allocation11 + $0x8f8] sm:$0xf]
        %v7396 = vld [vmem:[#allocation11 + $0x8fc] sm:$0xff]
        %v7397 = vld [vmem:[#allocation11 + $0x904] sm:$0xff]
        %v7398 = vld [vmem:[#allocation11 + $0x90c] sm:$0xf]
        %v7399 = vld [vmem:[#allocation11 + $0x910] sm:$0xff]
        %v7400 = vld [vmem:[#allocation11 + $0x918] sm:$0xff]
        %v7401 = vld [vmem:[#allocation11 + $0x920] sm:$0xf]
        %v7402 = vld [vmem:[#allocation11 + $0x924] sm:$0xff]
        %v7403 = vld [vmem:[#allocation11 + $0x92c] sm:$0xff]
        %v7404 = vld [vmem:[#allocation11 + $0x934] sm:$0xf]
        %v7405 = vld [vmem:[#allocation11 + $0x938] sm:$0xff]
        %v7406 = vld [vmem:[#allocation11 + $0x940] sm:$0xff]
        %v7407 = vld [vmem:[#allocation11 + $0x948] sm:$0xf]
        %v7408 = vld [vmem:[#allocation11 + $0x94c] sm:$0xff]
        %v7409 = vld [vmem:[#allocation11 + $0x954] sm:$0xff]
        %v7410 = vld [vmem:[#allocation11 + $0x95c] sm:$0xf]
        %v7411 = vld [vmem:[#allocation11 + $0x960] sm:$0xff]
        %v7412 = vld [vmem:[#allocation11 + $0x968] sm:$0xff]
        %v7413 = vld [vmem:[#allocation11 + $0x970] sm:$0xf]
        %v7414 = vld [vmem:[#allocation11 + $0x974] sm:$0xff]
        %v7415 = vld [vmem:[#allocation11 + $0x97c] sm:$0xff]
        %v7416 = vld [vmem:[#allocation11 + $0x984] sm:$0xf]
        %v7417 = vld [vmem:[#allocation11 + $0x988] sm:$0xff]
        %v7418 = vld [vmem:[#allocation11 + $0x990] sm:$0xff]
        %v7419 = vld [vmem:[#allocation11 + $0x998] sm:$0xf]
        %v7420 = vld [vmem:[#allocation11 + $0x99c] sm:$0xff]
        %v7421 = vld [vmem:[#allocation11 + $0x9a4] sm:$0xff]
        %v7422 = vld [vmem:[#allocation11 + $0x9ac] sm:$0xf]
        %v7423 = vld [vmem:[#allocation11 + $0x9b0] sm:$0xff]
        %v7424 = vld [vmem:[#allocation11 + $0x9b8] sm:$0xff]
        %v7425 = vld [vmem:[#allocation11 + $0x9c0] sm:$0xf]
        %v7426 = vld [vmem:[#allocation11 + $0x9c4] sm:$0xff]
        %v7427 = vld [vmem:[#allocation11 + $0x9cc] sm:$0xff]
        %v7428 = vld [vmem:[#allocation11 + $0x9d4] sm:$0xf]
        %v7429 = vld [vmem:[#allocation11 + $0x9d8] sm:$0xff]
        %v7430 = vld [vmem:[#allocation11 + $0x9e0] sm:$0xff]
        %v7431 = vld [vmem:[#allocation11 + $0x9e8] sm:$0xf]
        %v7432 = vld [vmem:[#allocation11 + $0x9ec] sm:$0xff]
        %v7433 = vld [vmem:[#allocation11 + $0x9f4] sm:$0xff]
        %v7434 = vld [vmem:[#allocation11 + $0x9fc] sm:$0xf]
        %v7435 = vld [vmem:[#allocation11 + $0xa00] sm:$0xff]
        %v7436 = vld [vmem:[#allocation11 + $0xa08] sm:$0xff]
        %v7437 = vld [vmem:[#allocation11 + $0xa10] sm:$0xf]
        %v7438 = vld [vmem:[#allocation11 + $0xa14] sm:$0xff]
        %v7439 = vld [vmem:[#allocation11 + $0xa1c] sm:$0xff]
        %v7440 = vld [vmem:[#allocation11 + $0xa24] sm:$0xf]
        %v7441 = vld [vmem:[#allocation11 + $0xa28] sm:$0xff]
        %v7442 = vld [vmem:[#allocation11 + $0xa30] sm:$0xff]
        %v7443 = vld [vmem:[#allocation11 + $0xa38] sm:$0xf]
        %v7444 = vld [vmem:[#allocation11 + $0xa3c] sm:$0xff]
        %v7445 = vld [vmem:[#allocation11 + $0xa44] sm:$0xff]
        %v7446 = vld [vmem:[#allocation11 + $0xa4c] sm:$0xf]
        %v7447 = vld [vmem:[#allocation11 + $0xa50] sm:$0xff]
        %v7448 = vld [vmem:[#allocation11 + $0xa58] sm:$0xff]
        %v7449 = vld [vmem:[#allocation11 + $0xa60] sm:$0xf]
        %v7450 = vld [vmem:[#allocation11 + $0xa64] sm:$0xff]
        %v7451 = vld [vmem:[#allocation11 + $0xa6c] sm:$0xff]
        %v7452 = vld [vmem:[#allocation11 + $0xa74] sm:$0xf]
        %v7453 = vld [vmem:[#allocation11 + $0xa78] sm:$0xff]
        %v7454 = vld [vmem:[#allocation11 + $0xa80] sm:$0xff]
        %v7455 = vld [vmem:[#allocation11 + $0xa88] sm:$0xf]
        %v7456 = vld [vmem:[#allocation11 + $0xa8c] sm:$0xff]
        %v7457 = vld [vmem:[#allocation11 + $0xa94] sm:$0xff]
        %v7458 = vld [vmem:[#allocation11 + $0xa9c] sm:$0xf]
        %v7459 = vld [vmem:[#allocation11 + $0xaa0] sm:$0xff]
        %v7460 = vld [vmem:[#allocation11 + $0xaa8] sm:$0xff]
        %v7461 = vld [vmem:[#allocation11 + $0xab0] sm:$0xf]
        %v7462 = vld [vmem:[#allocation11 + $0xab4] sm:$0xff]
        %v7463 = vld [vmem:[#allocation11 + $0xabc] sm:$0xff]
        %v7464 = vld [vmem:[#allocation11 + $0xac4] sm:$0xf]
        %v7465 = vld [vmem:[#allocation11 + $0xac8] sm:$0xff]
        %v7466 = vld [vmem:[#allocation11 + $0xad0] sm:$0xff]
        %v7467 = vld [vmem:[#allocation11 + $0xad8] sm:$0xf]
        %v7468 = vld [vmem:[#allocation11 + $0xadc] sm:$0xff]
        %v7469 = vld [vmem:[#allocation11 + $0xae4] sm:$0xff]
        %v7470 = vld [vmem:[#allocation11 + $0xaec] sm:$0xf]
        %v7471 = vld [vmem:[#allocation11 + $0xaf0] sm:$0xff]
        %v7472 = vld [vmem:[#allocation11 + $0xaf8] sm:$0xff]
        %v7473 = vld [vmem:[#allocation11 + $0xb00] sm:$0xf]
        %v7474 = vld [vmem:[#allocation11 + $0xb04] sm:$0xff]
        %v7475 = vld [vmem:[#allocation11 + $0xb0c] sm:$0xff]
        %v7476 = vld [vmem:[#allocation11 + $0xb14] sm:$0xf]
        %v7477 = vld [vmem:[#allocation11 + $0xb18] sm:$0xff]
        %v7478 = vld [vmem:[#allocation11 + $0xb20] sm:$0xff]
        %v7479 = vld [vmem:[#allocation11 + $0xb28] sm:$0xf]
        %v7480 = vld [vmem:[#allocation11 + $0xb2c] sm:$0xff]
        %v7481 = vld [vmem:[#allocation11 + $0xb34] sm:$0xff]
        %v7482 = vld [vmem:[#allocation11 + $0xb3c] sm:$0xf]
        %v7483 = vld [vmem:[#allocation11 + $0xb40] sm:$0xff]
        %v7484 = vld [vmem:[#allocation11 + $0xb48] sm:$0xff]
        %v7485 = vld [vmem:[#allocation11 + $0xb50] sm:$0xf]
        %v7486 = vld [vmem:[#allocation11 + $0xb54] sm:$0xff]
        %v7487 = vld [vmem:[#allocation11 + $0xb5c] sm:$0xff]
        %v7488 = vld [vmem:[#allocation11 + $0xb64] sm:$0xf]
        %v7489 = vld [vmem:[#allocation11 + $0xb68] sm:$0xff]
        %v7490 = vld [vmem:[#allocation11 + $0xb70] sm:$0xff]
        %v7491 = vld [vmem:[#allocation11 + $0xb78] sm:$0xf]
        %v7492 = vld [vmem:[#allocation11 + $0xb7c] sm:$0xff]
        %v7493 = vld [vmem:[#allocation11 + $0xb84] sm:$0xff]
        %v7494 = vld [vmem:[#allocation11 + $0xb8c] sm:$0xf]
        %v7495 = vld [vmem:[#allocation11 + $0xb90] sm:$0xff]
        %v7496 = vld [vmem:[#allocation11 + $0xb98] sm:$0xff]
        %v7497 = vld [vmem:[#allocation11 + $0xba0] sm:$0xf]
        %v7498 = vld [vmem:[#allocation11 + $0xba4] sm:$0xff]
        %v7499 = vld [vmem:[#allocation11 + $0xbac] sm:$0xff]
        %v7500 = vld [vmem:[#allocation11 + $0xbb4] sm:$0xf]
        %v7501 = vld [vmem:[#allocation11 + $0xbb8] sm:$0xff]
        %v7502 = vld [vmem:[#allocation11 + $0xbc0] sm:$0xff]
        %v7503 = vld [vmem:[#allocation11 + $0xbc8] sm:$0xf]
        %v7504 = vld [vmem:[#allocation11 + $0xbcc] sm:$0xff]
        %v7505 = vld [vmem:[#allocation11 + $0xbd4] sm:$0xff]
        %v7506 = vld [vmem:[#allocation11 + $0xbdc] sm:$0xf]
        %v7507 = vld [vmem:[#allocation11 + $0xbe0] sm:$0xff]
        %v7508 = vld [vmem:[#allocation11 + $0xbe8] sm:$0xff]
        %v7509 = vld [vmem:[#allocation11 + $0xbf0] sm:$0xf]
        %v7510 = vld [vmem:[#allocation11 + $0xbf4] sm:$0xff]
        %v7511 = vld [vmem:[#allocation11 + $0xbfc] sm:$0xff]
        %v7512 = vld [vmem:[#allocation11 + $0xc04] sm:$0xf]
        %v7513 = vld [vmem:[#allocation11 + $0xc08] sm:$0xff]
        %v7514 = vld [vmem:[#allocation11 + $0xc10] sm:$0xff]
        %v7515 = vld [vmem:[#allocation11 + $0xc18] sm:$0xf]
        %v7516 = vld [vmem:[#allocation11 + $0xc1c] sm:$0xff]
        %v7517 = vld [vmem:[#allocation11 + $0xc24] sm:$0xff]
        %v7518 = vld [vmem:[#allocation11 + $0xc2c] sm:$0xf]
        %v7519 = vld [vmem:[#allocation11 + $0xc30] sm:$0xff]
        %v7520 = vld [vmem:[#allocation11 + $0xc38] sm:$0xff]
        %v7521 = vld [vmem:[#allocation11 + $0xc40] sm:$0xf]
        %v7522 = vld [vmem:[#allocation11 + $0xc44] sm:$0xff]
        %v7523 = vld [vmem:[#allocation11 + $0xc4c] sm:$0xff]
        %v7524 = vld [vmem:[#allocation11 + $0xc54] sm:$0xf]
        %v7525 = vld [vmem:[#allocation11 + $0xc58] sm:$0xff]
        %v7526 = vld [vmem:[#allocation11 + $0xc60] sm:$0xff]
        %v7527 = vld [vmem:[#allocation11 + $0xc68] sm:$0xf]
        %v7528 = vld [vmem:[#allocation11 + $0xc6c] sm:$0xff]
        %v7529 = vld [vmem:[#allocation11 + $0xc74] sm:$0xff]
        %v7530 = vld [vmem:[#allocation11 + $0xc7c] sm:$0xf]
        %v7531 = vld [vmem:[#allocation11 + $0xc80] sm:$0xff]
        %v7532 = vld [vmem:[#allocation11 + $0xc88] sm:$0xff]
        %v7533 = vld [vmem:[#allocation11 + $0xc90] sm:$0xf]
        %v7534 = vld [vmem:[#allocation11 + $0xc94] sm:$0xff]
        %v7535 = vld [vmem:[#allocation11 + $0xc9c] sm:$0xff]
        %v7536 = vld [vmem:[#allocation11 + $0xca4] sm:$0xf]
        %v7537 = vld [vmem:[#allocation11 + $0xca8] sm:$0xff]
        %v7538 = vld [vmem:[#allocation11 + $0xcb0] sm:$0xff]
        %v7539 = vld [vmem:[#allocation11 + $0xcb8] sm:$0xf]
        %v7540 = vld [vmem:[#allocation11 + $0xcbc] sm:$0xff]
        %v7541 = vld [vmem:[#allocation11 + $0xcc4] sm:$0xff]
        %v7542 = vld [vmem:[#allocation11 + $0xccc] sm:$0xf]
        %v7543 = vld [vmem:[#allocation11 + $0xcd0] sm:$0xff]
        %v7544 = vld [vmem:[#allocation11 + $0xcd8] sm:$0xff]
        %v7545 = vld [vmem:[#allocation11 + $0xce0] sm:$0xf]
        %v7546 = vld [vmem:[#allocation11 + $0xce4] sm:$0xff]
        %v7547 = vld [vmem:[#allocation11 + $0xcec] sm:$0xff]
        %v7548 = vld [vmem:[#allocation11 + $0xcf4] sm:$0xf]
        %v7549 = vld [vmem:[#allocation11 + $0xcf8] sm:$0xff]
        %v7550 = vld [vmem:[#allocation11 + $0xd00] sm:$0xff]
        %v7551 = vld [vmem:[#allocation11 + $0xd08] sm:$0xf]
        %v7552 = vld [vmem:[#allocation11 + $0xd0c] sm:$0xff]
        %v7553 = vld [vmem:[#allocation11 + $0xd14] sm:$0xff]
        %v7554 = vld [vmem:[#allocation11 + $0xd1c] sm:$0xf]
        %v7555 = vld [vmem:[#allocation11 + $0xd20] sm:$0xff]
        %v7556 = vld [vmem:[#allocation11 + $0xd28] sm:$0xff]
        %v7557 = vld [vmem:[#allocation11 + $0xd30] sm:$0xf]
        %v7558 = vld [vmem:[#allocation11 + $0xd34] sm:$0xff]
        %v7559 = vld [vmem:[#allocation11 + $0xd3c] sm:$0xff]
        %v7560 = vld [vmem:[#allocation11 + $0xd44] sm:$0xf]
        %v7561 = vld [vmem:[#allocation11 + $0xd48] sm:$0xff]
        %v7562 = vld [vmem:[#allocation11 + $0xd50] sm:$0xff]
        %v7563 = vld [vmem:[#allocation11 + $0xd58] sm:$0xf]
        %v7564 = vld [vmem:[#allocation11 + $0xd5c] sm:$0xff]
        %v7565 = vld [vmem:[#allocation11 + $0xd64] sm:$0xff]
        %v7566 = vld [vmem:[#allocation11 + $0xd6c] sm:$0xf]
        %v7567 = vld [vmem:[#allocation11 + $0xd70] sm:$0xff]
        %v7568 = vld [vmem:[#allocation11 + $0xd78] sm:$0xff]
        %v7569 = vld [vmem:[#allocation11 + $0xd80] sm:$0xf]
        %v7570 = vld [vmem:[#allocation11 + $0xd84] sm:$0xff]
        %v7571 = vld [vmem:[#allocation11 + $0xd8c] sm:$0xff]
        %v7572 = vld [vmem:[#allocation11 + $0xd94] sm:$0xf]
        %v7573 = vld [vmem:[#allocation11 + $0xd98] sm:$0xff]
        %v7574 = vld [vmem:[#allocation11 + $0xda0] sm:$0xff]
        %v7575 = vld [vmem:[#allocation11 + $0xda8] sm:$0xf]
        %v7576 = vld [vmem:[#allocation11 + $0xdac] sm:$0xff]
        %v7577 = vld [vmem:[#allocation11 + $0xdb4] sm:$0xff]
        %v7578 = vld [vmem:[#allocation11 + $0xdbc] sm:$0xf]
        %v7579 = vld [vmem:[#allocation11 + $0xdc0] sm:$0xff]
        %v7580 = vld [vmem:[#allocation11 + $0xdc8] sm:$0xff]
        %v7581 = vld [vmem:[#allocation11 + $0xdd0] sm:$0xf]
        %v7582 = vld [vmem:[#allocation11 + $0xdd4] sm:$0xff]
        %v7583 = vld [vmem:[#allocation11 + $0xddc] sm:$0xff]
        %v7584 = vld [vmem:[#allocation11 + $0xde4] sm:$0xf]
        %v7585 = vld [vmem:[#allocation11 + $0xde8] sm:$0xff]
        %v7586 = vld [vmem:[#allocation11 + $0xdf0] sm:$0xff]
        %v7587 = vld [vmem:[#allocation11 + $0xdf8] sm:$0xf]
        %v7588 = vld [vmem:[#allocation11 + $0xdfc] sm:$0xff]
        %v7589 = vld [vmem:[#allocation11 + $0xe04] sm:$0xff]
        %v7590 = vld [vmem:[#allocation11 + $0xe0c] sm:$0xf]
        %v7591 = vld [vmem:[#allocation11 + $0xe10] sm:$0xff]
        %v7592 = vld [vmem:[#allocation11 + $0xe18] sm:$0xff]
        %v7593 = vld [vmem:[#allocation11 + $0xe20] sm:$0xf]
        %v7594 = vld [vmem:[#allocation11 + $0xe24] sm:$0xff]
        %v7595 = vld [vmem:[#allocation11 + $0xe2c] sm:$0xff]
        %v7596 = vld [vmem:[#allocation11 + $0xe34] sm:$0xf]
        %v7597 = vld [vmem:[#allocation11 + $0xe38] sm:$0xff]
        %v7598 = vld [vmem:[#allocation11 + $0xe40] sm:$0xff]
        %v7599 = vld [vmem:[#allocation11 + $0xe48] sm:$0xf]
        %v7600 = vld [vmem:[#allocation11 + $0xe4c] sm:$0xff]
        %v7601 = vld [vmem:[#allocation11 + $0xe54] sm:$0xff]
        %v7602 = vld [vmem:[#allocation11 + $0xe5c] sm:$0xf]
        %v7603 = vld [vmem:[#allocation11 + $0xe60] sm:$0xff]
        %v7604 = vld [vmem:[#allocation11 + $0xe68] sm:$0xff]
        %v7605 = vld [vmem:[#allocation11 + $0xe70] sm:$0xf]
        %v7606 = vld [vmem:[#allocation11 + $0xe74] sm:$0xff]
        %v7607 = vld [vmem:[#allocation11 + $0xe7c] sm:$0xff]
        %v7608 = vld [vmem:[#allocation11 + $0xe84] sm:$0xf]
        %v7609 = vld [vmem:[#allocation11 + $0xe88] sm:$0xff]
        %v7610 = vld [vmem:[#allocation11 + $0xe90] sm:$0xff]
        %v7611 = vld [vmem:[#allocation11 + $0xe98] sm:$0xf]
        %v7612 = vld [vmem:[#allocation11 + $0xe9c] sm:$0xff]
        %v7613 = vld [vmem:[#allocation11 + $0xea4] sm:$0xff]
        %v7614 = vld [vmem:[#allocation11 + $0xeac] sm:$0xf]
        %v7615 = vld [vmem:[#allocation11 + $0xeb0] sm:$0xff]
        %v7616 = vld [vmem:[#allocation11 + $0xeb8] sm:$0xff]
        %v7617 = vld [vmem:[#allocation11 + $0xec0] sm:$0xf]
        %v7618 = vld [vmem:[#allocation11 + $0xec4] sm:$0xff]
        %v7619 = vld [vmem:[#allocation11 + $0xecc] sm:$0xff]
        %v7620 = vld [vmem:[#allocation11 + $0xed4] sm:$0xf]
        %v7621 = vld [vmem:[#allocation11 + $0xed8] sm:$0xff]
        %v7622 = vld [vmem:[#allocation11 + $0xee0] sm:$0xff]
        %v7623 = vld [vmem:[#allocation11 + $0xee8] sm:$0xf]
        %v7624 = vld [vmem:[#allocation11 + $0xeec] sm:$0xff]
        %v7625 = vld [vmem:[#allocation11 + $0xef4] sm:$0xff]
        %v7626 = vld [vmem:[#allocation11 + $0xefc] sm:$0xf]
        %v7627 = vld [vmem:[#allocation11 + $0xf00] sm:$0xff]
        %v7628 = vld [vmem:[#allocation11 + $0xf08] sm:$0xff]
        %v7629 = vld [vmem:[#allocation11 + $0xf10] sm:$0xf]
        %v7630 = vld [vmem:[#allocation11 + $0xf14] sm:$0xff]
        %v7631 = vld [vmem:[#allocation11 + $0xf1c] sm:$0xff]
        %v7632 = vld [vmem:[#allocation11 + $0xf24] sm:$0xf]
        %v7633 = vld [vmem:[#allocation11 + $0xf28] sm:$0xff]
        %v7634 = vld [vmem:[#allocation11 + $0xf30] sm:$0xff]
        %v7635 = vld [vmem:[#allocation11 + $0xf38] sm:$0xf]
        %v7636 = vld [vmem:[#allocation11 + $0xf3c] sm:$0xff]
        %v7637 = vld [vmem:[#allocation11 + $0xf44] sm:$0xff]
        %v7638 = vld [vmem:[#allocation11 + $0xf4c] sm:$0xf]
        %v7639 = vld [vmem:[#allocation11 + $0xf50] sm:$0xff]
        %v7640 = vld [vmem:[#allocation11 + $0xf58] sm:$0xff]
        %v7641 = vld [vmem:[#allocation11 + $0xf60] sm:$0xf]
        %v7642 = vld [vmem:[#allocation11 + $0xf64] sm:$0xff]
        %v7643 = vld [vmem:[#allocation11 + $0xf6c] sm:$0xff]
        %v7644 = vld [vmem:[#allocation11 + $0xf74] sm:$0xf]
        %v7645 = vld [vmem:[#allocation11 + $0xf78] sm:$0xff]
        %v7646 = vld [vmem:[#allocation11 + $0xf80] sm:$0xff]
        %v7647 = vld [vmem:[#allocation11 + $0xf88] sm:$0xf]
        %v7648 = vld [vmem:[#allocation11 + $0xf8c] sm:$0xff]
        %v7649 = vld [vmem:[#allocation11 + $0xf94] sm:$0xff]
        %v7650 = vld [vmem:[#allocation11 + $0xf9c] sm:$0xf]
        %v7651 = vld [vmem:[#allocation11 + $0xfa0] sm:$0xff]
        %v7652 = vld [vmem:[#allocation11 + $0xfa8] sm:$0xff]
        %v7653 = vld [vmem:[#allocation11 + $0xfb0] sm:$0xf]
        %v7654 = vld [vmem:[#allocation11 + $0xfb4] sm:$0xff]
        %v7655 = vld [vmem:[#allocation11 + $0xfbc] sm:$0xff]
        %v7656 = vld [vmem:[#allocation11 + $0xfc4] sm:$0xf]
        %v7657 = vld [vmem:[#allocation11 + $0xfc8] sm:$0xff]
        %v7658 = vld [vmem:[#allocation11 + $0xfd0] sm:$0xff]
        %v7659 = vld [vmem:[#allocation11 + $0xfd8] sm:$0xf]
        %v7660 = vld [vmem:[#allocation11 + $0xfdc] sm:$0xff]
        %v7661 = vld [vmem:[#allocation11 + $0xfe4] sm:$0xff]
        %v7662 = vld [vmem:[#allocation11 + $0xfec] sm:$0xf]
        %v7663 = vld [vmem:[#allocation11 + $0xff0] sm:$0xff]
        %v7664 = vld [vmem:[#allocation11 + $0xff8] sm:$0xff]
        %v7665 = vld [vmem:[#allocation11 + $0x1000] sm:$0xf]
        %v7666 = vld [vmem:[#allocation11 + $0x1004] sm:$0xff]
        %v7667 = vld [vmem:[#allocation11 + $0x100c] sm:$0xff]
        %v7668 = vld [vmem:[#allocation11 + $0x1014] sm:$0xf]
        %v7669 = vld [vmem:[#allocation11 + $0x1018] sm:$0xff]
        %v7670 = vld [vmem:[#allocation11 + $0x1020] sm:$0xff]
        %v7671 = vld [vmem:[#allocation11 + $0x1028] sm:$0xf]
        %v7672 = vld [vmem:[#allocation11 + $0x102c] sm:$0xff]
        %v7673 = vld [vmem:[#allocation11 + $0x1034] sm:$0xff]
        %v7674 = vld [vmem:[#allocation11 + $0x103c] sm:$0xf]
        %v7675 = vld [vmem:[#allocation11 + $0x1040] sm:$0xff]
        %v7676 = vld [vmem:[#allocation11 + $0x1048] sm:$0xff]
        %v7677 = vld [vmem:[#allocation11 + $0x1050] sm:$0xf]
        %v7678 = vld [vmem:[#allocation11 + $0x1054] sm:$0xff]
        %v7679 = vld [vmem:[#allocation11 + $0x105c] sm:$0xff]
        %v7680 = vld [vmem:[#allocation11 + $0x1064] sm:$0xf]
        %v7681 = vld [vmem:[#allocation11 + $0x1068] sm:$0xff]
        %v7682 = vld [vmem:[#allocation11 + $0x1070] sm:$0xff]
        %v7683 = vld [vmem:[#allocation11 + $0x1078] sm:$0xf]
        %v7684 = vld [vmem:[#allocation11 + $0x107c] sm:$0xff]
        %v7685 = vld [vmem:[#allocation11 + $0x1084] sm:$0xff]
        %v7686 = vld [vmem:[#allocation11 + $0x108c] sm:$0xf]
        %v7687 = vld [vmem:[#allocation11 + $0x1090] sm:$0xff]
        %v7688 = vld [vmem:[#allocation11 + $0x1098] sm:$0xff]
        %v7689 = vld [vmem:[#allocation11 + $0x10a0] sm:$0xf]
        %v7690 = vld [vmem:[#allocation11 + $0x10a4] sm:$0xff]
        %v7691 = vld [vmem:[#allocation11 + $0x10ac] sm:$0xff]
        %v7692 = vld [vmem:[#allocation11 + $0x10b4] sm:$0xf]
        %v7693 = vld [vmem:[#allocation11 + $0x10b8] sm:$0xff]
        %v7694 = vld [vmem:[#allocation11 + $0x10c0] sm:$0xff]
        %v7695 = vld [vmem:[#allocation11 + $0x10c8] sm:$0xf]
        %v7696 = vld [vmem:[#allocation11 + $0x10cc] sm:$0xff]
        %v7697 = vld [vmem:[#allocation11 + $0x10d4] sm:$0xff]
        %v7698 = vld [vmem:[#allocation11 + $0x10dc] sm:$0xf]
        %v7699 = vld [vmem:[#allocation11 + $0x10e0] sm:$0xff]
        %v7700 = vld [vmem:[#allocation11 + $0x10e8] sm:$0xff]
        %v7701 = vld [vmem:[#allocation11 + $0x10f0] sm:$0xf]
        %v7702 = vld [vmem:[#allocation11 + $0x10f4] sm:$0xff]
        %v7703 = vld [vmem:[#allocation11 + $0x10fc] sm:$0xff]
        %v7704 = vld [vmem:[#allocation11 + $0x1104] sm:$0xf]
        %v7705 = vld [vmem:[#allocation11 + $0x1108] sm:$0xff]
        %v7706 = vld [vmem:[#allocation11 + $0x1110] sm:$0xff]
        %v7707 = vld [vmem:[#allocation11 + $0x1118] sm:$0xf]
        %v7708 = vld [vmem:[#allocation11 + $0x111c] sm:$0xff]
        %v7709 = vld [vmem:[#allocation11 + $0x1124] sm:$0xff]
        %v7710 = vld [vmem:[#allocation11 + $0x112c] sm:$0xf]
        %v7711 = vld [vmem:[#allocation11 + $0x1130] sm:$0xff]
        %v7712 = vld [vmem:[#allocation11 + $0x1138] sm:$0xff]
        %v7713 = vld [vmem:[#allocation11 + $0x1140] sm:$0xf]
        %v7714 = vld [vmem:[#allocation11 + $0x1144] sm:$0xff]
        %v7715 = vld [vmem:[#allocation11 + $0x114c] sm:$0xff]
        %v7716 = vld [vmem:[#allocation11 + $0x1154] sm:$0xf]
        %v7717 = vld [vmem:[#allocation11 + $0x1158] sm:$0xff]
        %v7718 = vld [vmem:[#allocation11 + $0x1160] sm:$0xff]
        %v7719 = vld [vmem:[#allocation11 + $0x1168] sm:$0xf]
        %v7720 = vld [vmem:[#allocation11 + $0x116c] sm:$0xff]
        %v7721 = vld [vmem:[#allocation11 + $0x1174] sm:$0xff]
        %v7722 = vld [vmem:[#allocation11 + $0x117c] sm:$0xf]
        %v7723 = vld [vmem:[#allocation11 + $0x1180] sm:$0xff]
        %v7724 = vld [vmem:[#allocation11 + $0x1188] sm:$0xff]
        %v7725 = vld [vmem:[#allocation11 + $0x1190] sm:$0xf]
        %v7726 = vld [vmem:[#allocation11 + $0x1194] sm:$0xff]
        %v7727 = vld [vmem:[#allocation11 + $0x119c] sm:$0xff]
        %v7728 = vld [vmem:[#allocation11 + $0x11a4] sm:$0xf]
        %v7729 = vld [vmem:[#allocation11 + $0x11a8] sm:$0xff]
        %v7730 = vld [vmem:[#allocation11 + $0x11b0] sm:$0xff]
        %v7731 = vld [vmem:[#allocation11 + $0x11b8] sm:$0xf]
        %v7732 = vld [vmem:[#allocation11 + $0x11bc] sm:$0xff]
        %v7733 = vld [vmem:[#allocation11 + $0x11c4] sm:$0xff]
        %v7734 = vld [vmem:[#allocation11 + $0x11cc] sm:$0xf]
        %v7735 = vld [vmem:[#allocation11 + $0x11d0] sm:$0xff]
        %v7736 = vld [vmem:[#allocation11 + $0x11d8] sm:$0xff]
        %v7737 = vld [vmem:[#allocation11 + $0x11e0] sm:$0xf]
        %v7738 = vld [vmem:[#allocation11 + $0x11e4] sm:$0xff]
        %v7739 = vld [vmem:[#allocation11 + $0x11ec] sm:$0xff]
        %v7740 = vld [vmem:[#allocation11 + $0x11f4] sm:$0xf]
        %v7741 = vld [vmem:[#allocation11 + $0x11f8] sm:$0xff]
        %v7742 = vld [vmem:[#allocation11 + $0x1200] sm:$0xff]
        %v7743 = vld [vmem:[#allocation11 + $0x1208] sm:$0xf]
        %v7744 = vld [vmem:[#allocation11 + $0x120c] sm:$0xff]
        %v7745 = vld [vmem:[#allocation11 + $0x1214] sm:$0xff]
        %v7746 = vld [vmem:[#allocation11 + $0x121c] sm:$0xf]
        %v7747 = vld [vmem:[#allocation11 + $0x1220] sm:$0xff]
        %v7748 = vld [vmem:[#allocation11 + $0x1228] sm:$0xff]
        %v7749 = vld [vmem:[#allocation11 + $0x1230] sm:$0xf]
        %v7750 = vld [vmem:[#allocation11 + $0x1234] sm:$0xff]
        %v7751 = vld [vmem:[#allocation11 + $0x123c] sm:$0xff]
        %v7752 = vld [vmem:[#allocation11 + $0x1244] sm:$0xf]
        %v7753 = vld [vmem:[#allocation11 + $0x1248] sm:$0xff]
        %v7754 = vld [vmem:[#allocation11 + $0x1250] sm:$0xff]
        %v7755 = vld [vmem:[#allocation11 + $0x1258] sm:$0xf]
        %v7756 = vld [vmem:[#allocation11 + $0x125c] sm:$0xff]
        %v7757 = vld [vmem:[#allocation11 + $0x1264] sm:$0xff]
        %v7758 = vld [vmem:[#allocation11 + $0x126c] sm:$0xf]
        %v7759 = vld [vmem:[#allocation11 + $0x1270] sm:$0xff]
        %v7760 = vld [vmem:[#allocation11 + $0x1278] sm:$0xff]
        %v7761 = vld [vmem:[#allocation11 + $0x1280] sm:$0xf]
        %v7762 = vld [vmem:[#allocation11 + $0x1284] sm:$0xff]
        %v7763 = vld [vmem:[#allocation11 + $0x128c] sm:$0xff]
        %v7764 = vld [vmem:[#allocation11 + $0x1294] sm:$0xf]
        %v7765 = vld [vmem:[#allocation11 + $0x1298] sm:$0xff]
        %v7766 = vld [vmem:[#allocation11 + $0x12a0] sm:$0xff]
        %v7767 = vld [vmem:[#allocation11 + $0x12a8] sm:$0xf]
        %v7768 = vld [vmem:[#allocation11 + $0x12ac] sm:$0xff]
        %v7769 = vld [vmem:[#allocation11 + $0x12b4] sm:$0xff]
        %v7770 = vld [vmem:[#allocation11 + $0x12bc] sm:$0xf]
        %v7771 = vld [vmem:[#allocation11 + $0x12c0] sm:$0xff]
        %v7772 = vld [vmem:[#allocation11 + $0x12c8] sm:$0xff]
        %v7773 = vld [vmem:[#allocation11 + $0x12d0] sm:$0xf]
        %v7774 = vld [vmem:[#allocation11 + $0x12d4] sm:$0xff]
        %v7775 = vld [vmem:[#allocation11 + $0x12dc] sm:$0xff]
        %v7776 = vld [vmem:[#allocation11 + $0x12e4] sm:$0xf]
        %v7777 = vld [vmem:[#allocation11 + $0x12e8] sm:$0xff]
        %v7778 = vld [vmem:[#allocation11 + $0x12f0] sm:$0xff]
        %v7779 = vld [vmem:[#allocation11 + $0x12f8] sm:$0xf]
        %v7780 = vld [vmem:[#allocation11 + $0x12fc] sm:$0xff]
        %v7781 = vld [vmem:[#allocation11 + $0x1304] sm:$0xff]
        %v7782 = vld [vmem:[#allocation11 + $0x130c] sm:$0xf]
        %v7783 = vld [vmem:[#allocation11 + $0x1310] sm:$0xff]
        %v7784 = vld [vmem:[#allocation11 + $0x1318] sm:$0xff]
        %v7785 = vld [vmem:[#allocation11 + $0x1320] sm:$0xf]
        %v7786 = vld [vmem:[#allocation11 + $0x1324] sm:$0xff]
        %v7787 = vld [vmem:[#allocation11 + $0x132c] sm:$0xff]
        %v7788 = vld [vmem:[#allocation11 + $0x1334] sm:$0xf]
        %v7789 = vld [vmem:[#allocation11 + $0x1338] sm:$0xff]
        %v7790 = vld [vmem:[#allocation11 + $0x1340] sm:$0xff]
        %v7791 = vld [vmem:[#allocation11 + $0x1348] sm:$0xf]
        %v7792 = vld [vmem:[#allocation11 + $0x134c] sm:$0xff]
        %v7793 = vld [vmem:[#allocation11 + $0x1354] sm:$0xff]
        %v7794 = vld [vmem:[#allocation11 + $0x135c] sm:$0xf]
        %v7795 = vld [vmem:[#allocation11 + $0x1360] sm:$0xff]
        %v7796 = vld [vmem:[#allocation11 + $0x1368] sm:$0xff]
        %v7797 = vld [vmem:[#allocation11 + $0x1370] sm:$0xf]
        %v7798 = vld [vmem:[#allocation11 + $0x1374] sm:$0xff]
        %v7799 = vld [vmem:[#allocation11 + $0x137c] sm:$0xff]
        %v7800 = vld [vmem:[#allocation11 + $0x1384] sm:$0xf]
        %v7801 = vld [vmem:[#allocation11 + $0x1388] sm:$0xff]
        %v7802 = vld [vmem:[#allocation11 + $0x1390] sm:$0xff]
        %v7803 = vld [vmem:[#allocation11 + $0x1398] sm:$0xf]
        %v7804 = vld [vmem:[#allocation11 + $0x139c] sm:$0xff]
        %v7805 = vld [vmem:[#allocation11 + $0x13a4] sm:$0xff]
        %v7806 = vld [vmem:[#allocation11 + $0x13ac] sm:$0xf]
        %v7807 = vld [vmem:[#allocation11 + $0x13b0] sm:$0xff]
        %v7808 = vld [vmem:[#allocation11 + $0x13b8] sm:$0xff]
        %v7809 = vld [vmem:[#allocation11 + $0x13c0] sm:$0xf]
        %v7810 = vld [vmem:[#allocation11 + $0x13c4] sm:$0xff]
        %v7811 = vld [vmem:[#allocation11 + $0x13cc] sm:$0xff]
        %v7812 = vld [vmem:[#allocation11 + $0x13d4] sm:$0xf]
        %v7813 = vld [vmem:[#allocation11 + $0x13d8] sm:$0xff]
        %v7814 = vld [vmem:[#allocation11 + $0x13e0] sm:$0xff]
        %v7815 = vld [vmem:[#allocation11 + $0x13e8] sm:$0xf]
        %v7816 = vld [vmem:[#allocation11 + $0x13ec] sm:$0xff]
        %v7817 = vld [vmem:[#allocation11 + $0x13f4] sm:$0xff]
        %v7818 = vld [vmem:[#allocation11 + $0x13fc] sm:$0xf]
        %v7819 = vld [vmem:[#allocation12] sm:$0x1f]
        %v8588 = vunpack.c.l.b16 %v7051
        %v8589 = vunpack.c.h.b16 %v7051
        %v8590 = vunpack.c.l.b16 %v7052
        %v8591 = vunpack.c.h.b16 %v7052
        %v8592 = vunpack.c.l.b16 %v7053
        %v8593 = vunpack.c.l.b16 %v7054
        %v8594 = vunpack.c.h.b16 %v7054
        %v8595 = vunpack.c.l.b16 %v7055
        %v8596 = vunpack.c.h.b16 %v7055
        %v8597 = vunpack.c.l.b16 %v7056
        %v8598 = vunpack.c.l.b16 %v7057
        %v8599 = vunpack.c.h.b16 %v7057
        %v8600 = vunpack.c.l.b16 %v7058
        %v8601 = vunpack.c.h.b16 %v7058
        %v8602 = vunpack.c.l.b16 %v7059
        %v8603 = vunpack.c.l.b16 %v7060
        %v8604 = vunpack.c.h.b16 %v7060
        %v8605 = vunpack.c.l.b16 %v7061
        %v8606 = vunpack.c.h.b16 %v7061
        %v8607 = vunpack.c.l.b16 %v7062
        %v8608 = vunpack.c.l.b16 %v7063
        %v8609 = vunpack.c.h.b16 %v7063
        %v8610 = vunpack.c.l.b16 %v7064
        %v8611 = vunpack.c.h.b16 %v7064
        %v8612 = vunpack.c.l.b16 %v7065
        %v8613 = vunpack.c.l.b16 %v7066
        %v8614 = vunpack.c.h.b16 %v7066
        %v8615 = vunpack.c.l.b16 %v7067
        %v8616 = vunpack.c.h.b16 %v7067
        %v8617 = vunpack.c.l.b16 %v7068
        %v8618 = vunpack.c.l.b16 %v7069
        %v8619 = vunpack.c.h.b16 %v7069
        %v8620 = vunpack.c.l.b16 %v7070
        %v8621 = vunpack.c.h.b16 %v7070
        %v8622 = vunpack.c.l.b16 %v7071
        %v8623 = vunpack.c.l.b16 %v7072
        %v8624 = vunpack.c.h.b16 %v7072
        %v8625 = vunpack.c.l.b16 %v7073
        %v8626 = vunpack.c.h.b16 %v7073
        %v8627 = vunpack.c.l.b16 %v7074
        %v8628 = vunpack.c.l.b16 %v7075
        %v8629 = vunpack.c.h.b16 %v7075
        %v8630 = vunpack.c.l.b16 %v7076
        %v8631 = vunpack.c.h.b16 %v7076
        %v8632 = vunpack.c.l.b16 %v7077
        %v8633 = vunpack.c.l.b16 %v7078
        %v8634 = vunpack.c.h.b16 %v7078
        %v8635 = vunpack.c.l.b16 %v7079
        %v8636 = vunpack.c.h.b16 %v7079
        %v8637 = vunpack.c.l.b16 %v7080
        %v8638 = vunpack.c.l.b16 %v7081
        %v8639 = vunpack.c.h.b16 %v7081
        %v8640 = vunpack.c.l.b16 %v7082
        %v8641 = vunpack.c.h.b16 %v7082
        %v8642 = vunpack.c.l.b16 %v7083
        %v8643 = vunpack.c.l.b16 %v7084
        %v8644 = vunpack.c.h.b16 %v7084
        %v8645 = vunpack.c.l.b16 %v7085
        %v8646 = vunpack.c.h.b16 %v7085
        %v8647 = vunpack.c.l.b16 %v7086
        %v8648 = vunpack.c.l.b16 %v7087
        %v8649 = vunpack.c.h.b16 %v7087
        %v8650 = vunpack.c.l.b16 %v7088
        %v8651 = vunpack.c.h.b16 %v7088
        %v8652 = vunpack.c.l.b16 %v7089
        %v8653 = vunpack.c.l.b16 %v7090
        %v8654 = vunpack.c.h.b16 %v7090
        %v8655 = vunpack.c.l.b16 %v7091
        %v8656 = vunpack.c.h.b16 %v7091
        %v8657 = vunpack.c.l.b16 %v7092
        %v8658 = vunpack.c.l.b16 %v7093
        %v8659 = vunpack.c.h.b16 %v7093
        %v8660 = vunpack.c.l.b16 %v7094
        %v8661 = vunpack.c.h.b16 %v7094
        %v8662 = vunpack.c.l.b16 %v7095
        %v8663 = vunpack.c.l.b16 %v7096
        %v8664 = vunpack.c.h.b16 %v7096
        %v8665 = vunpack.c.l.b16 %v7097
        %v8666 = vunpack.c.h.b16 %v7097
        %v8667 = vunpack.c.l.b16 %v7098
        %v8668 = vunpack.c.l.b16 %v7099
        %v8669 = vunpack.c.h.b16 %v7099
        %v8670 = vunpack.c.l.b16 %v7100
        %v8671 = vunpack.c.h.b16 %v7100
        %v8672 = vunpack.c.l.b16 %v7101
        %v8673 = vunpack.c.l.b16 %v7102
        %v8674 = vunpack.c.h.b16 %v7102
        %v8675 = vunpack.c.l.b16 %v7103
        %v8676 = vunpack.c.h.b16 %v7103
        %v8677 = vunpack.c.l.b16 %v7104
        %v8678 = vunpack.c.l.b16 %v7105
        %v8679 = vunpack.c.h.b16 %v7105
        %v8680 = vunpack.c.l.b16 %v7106
        %v8681 = vunpack.c.h.b16 %v7106
        %v8682 = vunpack.c.l.b16 %v7107
        %v8683 = vunpack.c.l.b16 %v7108
        %v8684 = vunpack.c.h.b16 %v7108
        %v8685 = vunpack.c.l.b16 %v7109
        %v8686 = vunpack.c.h.b16 %v7109
        %v8687 = vunpack.c.l.b16 %v7110
        %v8688 = vunpack.c.l.b16 %v7111
        %v8689 = vunpack.c.h.b16 %v7111
        %v8690 = vunpack.c.l.b16 %v7112
        %v8691 = vunpack.c.h.b16 %v7112
        %v8692 = vunpack.c.l.b16 %v7113
        %v8693 = vunpack.c.l.b16 %v7114
        %v8694 = vunpack.c.h.b16 %v7114
        %v8695 = vunpack.c.l.b16 %v7115
        %v8696 = vunpack.c.h.b16 %v7115
        %v8697 = vunpack.c.l.b16 %v7116
        %v8698 = vunpack.c.l.b16 %v7117
        %v8699 = vunpack.c.h.b16 %v7117
        %v8700 = vunpack.c.l.b16 %v7118
        %v8701 = vunpack.c.h.b16 %v7118
        %v8702 = vunpack.c.l.b16 %v7119
        %v8703 = vunpack.c.l.b16 %v7120
        %v8704 = vunpack.c.h.b16 %v7120
        %v8705 = vunpack.c.l.b16 %v7121
        %v8706 = vunpack.c.h.b16 %v7121
        %v8707 = vunpack.c.l.b16 %v7122
        %v8708 = vunpack.c.l.b16 %v7123
        %v8709 = vunpack.c.h.b16 %v7123
        %v8710 = vunpack.c.l.b16 %v7124
        %v8711 = vunpack.c.h.b16 %v7124
        %v8712 = vunpack.c.l.b16 %v7125
        %v8713 = vunpack.c.l.b16 %v7126
        %v8714 = vunpack.c.h.b16 %v7126
        %v8715 = vunpack.c.l.b16 %v7127
        %v8716 = vunpack.c.h.b16 %v7127
        %v8717 = vunpack.c.l.b16 %v7128
        %v8718 = vunpack.c.l.b16 %v7129
        %v8719 = vunpack.c.h.b16 %v7129
        %v8720 = vunpack.c.l.b16 %v7130
        %v8721 = vunpack.c.h.b16 %v7130
        %v8722 = vunpack.c.l.b16 %v7131
        %v8723 = vunpack.c.l.b16 %v7132
        %v8724 = vunpack.c.h.b16 %v7132
        %v8725 = vunpack.c.l.b16 %v7133
        %v8726 = vunpack.c.h.b16 %v7133
        %v8727 = vunpack.c.l.b16 %v7134
        %v8728 = vunpack.c.l.b16 %v7135
        %v8729 = vunpack.c.h.b16 %v7135
        %v8730 = vunpack.c.l.b16 %v7136
        %v8731 = vunpack.c.h.b16 %v7136
        %v8732 = vunpack.c.l.b16 %v7137
        %v8733 = vunpack.c.l.b16 %v7138
        %v8734 = vunpack.c.h.b16 %v7138
        %v8735 = vunpack.c.l.b16 %v7139
        %v8736 = vunpack.c.h.b16 %v7139
        %v8737 = vunpack.c.l.b16 %v7140
        %v8738 = vunpack.c.l.b16 %v7141
        %v8739 = vunpack.c.h.b16 %v7141
        %v8740 = vunpack.c.l.b16 %v7142
        %v8741 = vunpack.c.h.b16 %v7142
        %v8742 = vunpack.c.l.b16 %v7143
        %v8743 = vunpack.c.l.b16 %v7144
        %v8744 = vunpack.c.h.b16 %v7144
        %v8745 = vunpack.c.l.b16 %v7145
        %v8746 = vunpack.c.h.b16 %v7145
        %v8747 = vunpack.c.l.b16 %v7146
        %v8748 = vunpack.c.l.b16 %v7147
        %v8749 = vunpack.c.h.b16 %v7147
        %v8750 = vunpack.c.l.b16 %v7148
        %v8751 = vunpack.c.h.b16 %v7148
        %v8752 = vunpack.c.l.b16 %v7149
        %v8753 = vunpack.c.l.b16 %v7150
        %v8754 = vunpack.c.h.b16 %v7150
        %v8755 = vunpack.c.l.b16 %v7151
        %v8756 = vunpack.c.h.b16 %v7151
        %v8757 = vunpack.c.l.b16 %v7152
        %v8758 = vunpack.c.l.b16 %v7153
        %v8759 = vunpack.c.h.b16 %v7153
        %v8760 = vunpack.c.l.b16 %v7154
        %v8761 = vunpack.c.h.b16 %v7154
        %v8762 = vunpack.c.l.b16 %v7155
        %v8763 = vunpack.c.l.b16 %v7156
        %v8764 = vunpack.c.h.b16 %v7156
        %v8765 = vunpack.c.l.b16 %v7157
        %v8766 = vunpack.c.h.b16 %v7157
        %v8767 = vunpack.c.l.b16 %v7158
        %v8768 = vunpack.c.l.b16 %v7159
        %v8769 = vunpack.c.h.b16 %v7159
        %v8770 = vunpack.c.l.b16 %v7160
        %v8771 = vunpack.c.h.b16 %v7160
        %v8772 = vunpack.c.l.b16 %v7161
        %v8773 = vunpack.c.l.b16 %v7162
        %v8774 = vunpack.c.h.b16 %v7162
        %v8775 = vunpack.c.l.b16 %v7163
        %v8776 = vunpack.c.h.b16 %v7163
        %v8777 = vunpack.c.l.b16 %v7164
        %v8778 = vunpack.c.l.b16 %v7165
        %v8779 = vunpack.c.h.b16 %v7165
        %v8780 = vunpack.c.l.b16 %v7166
        %v8781 = vunpack.c.h.b16 %v7166
        %v8782 = vunpack.c.l.b16 %v7167
        %v8783 = vunpack.c.l.b16 %v7168
        %v8784 = vunpack.c.h.b16 %v7168
        %v8785 = vunpack.c.l.b16 %v7169
        %v8786 = vunpack.c.h.b16 %v7169
        %v8787 = vunpack.c.l.b16 %v7170
        %v8788 = vunpack.c.l.b16 %v7171
        %v8789 = vunpack.c.h.b16 %v7171
        %v8790 = vunpack.c.l.b16 %v7172
        %v8791 = vunpack.c.h.b16 %v7172
        %v8792 = vunpack.c.l.b16 %v7173
        %v8793 = vunpack.c.l.b16 %v7174
        %v8794 = vunpack.c.h.b16 %v7174
        %v8795 = vunpack.c.l.b16 %v7175
        %v8796 = vunpack.c.h.b16 %v7175
        %v8797 = vunpack.c.l.b16 %v7176
        %v8798 = vunpack.c.l.b16 %v7177
        %v8799 = vunpack.c.h.b16 %v7177
        %v8800 = vunpack.c.l.b16 %v7178
        %v8801 = vunpack.c.h.b16 %v7178
        %v8802 = vunpack.c.l.b16 %v7179
        %v8803 = vunpack.c.l.b16 %v7180
        %v8804 = vunpack.c.h.b16 %v7180
        %v8805 = vunpack.c.l.b16 %v7181
        %v8806 = vunpack.c.h.b16 %v7181
        %v8807 = vunpack.c.l.b16 %v7182
        %v8808 = vunpack.c.l.b16 %v7183
        %v8809 = vunpack.c.h.b16 %v7183
        %v8810 = vunpack.c.l.b16 %v7184
        %v8811 = vunpack.c.h.b16 %v7184
        %v8812 = vunpack.c.l.b16 %v7185
        %v8813 = vunpack.c.l.b16 %v7186
        %v8814 = vunpack.c.h.b16 %v7186
        %v8815 = vunpack.c.l.b16 %v7187
        %v8816 = vunpack.c.h.b16 %v7187
        %v8817 = vunpack.c.l.b16 %v7188
        %v8818 = vunpack.c.l.b16 %v7189
        %v8819 = vunpack.c.h.b16 %v7189
        %v8820 = vunpack.c.l.b16 %v7190
        %v8821 = vunpack.c.h.b16 %v7190
        %v8822 = vunpack.c.l.b16 %v7191
        %v8823 = vunpack.c.l.b16 %v7192
        %v8824 = vunpack.c.h.b16 %v7192
        %v8825 = vunpack.c.l.b16 %v7193
        %v8826 = vunpack.c.h.b16 %v7193
        %v8827 = vunpack.c.l.b16 %v7194
        %v8828 = vunpack.c.l.b16 %v7195
        %v8829 = vunpack.c.h.b16 %v7195
        %v8830 = vunpack.c.l.b16 %v7196
        %v8831 = vunpack.c.h.b16 %v7196
        %v8832 = vunpack.c.l.b16 %v7197
        %v8833 = vunpack.c.l.b16 %v7198
        %v8834 = vunpack.c.h.b16 %v7198
        %v8835 = vunpack.c.l.b16 %v7199
        %v8836 = vunpack.c.h.b16 %v7199
        %v8837 = vunpack.c.l.b16 %v7200
        %v8838 = vunpack.c.l.b16 %v7201
        %v8839 = vunpack.c.h.b16 %v7201
        %v8840 = vunpack.c.l.b16 %v7202
        %v8841 = vunpack.c.h.b16 %v7202
        %v8842 = vunpack.c.l.b16 %v7203
        %v8843 = vunpack.c.l.b16 %v7204
        %v8844 = vunpack.c.h.b16 %v7204
        %v8845 = vunpack.c.l.b16 %v7205
        %v8846 = vunpack.c.h.b16 %v7205
        %v8847 = vunpack.c.l.b16 %v7206
        %v8848 = vunpack.c.l.b16 %v7207
        %v8849 = vunpack.c.h.b16 %v7207
        %v8850 = vunpack.c.l.b16 %v7208
        %v8851 = vunpack.c.h.b16 %v7208
        %v8852 = vunpack.c.l.b16 %v7209
        %v8853 = vunpack.c.l.b16 %v7210
        %v8854 = vunpack.c.h.b16 %v7210
        %v8855 = vunpack.c.l.b16 %v7211
        %v8856 = vunpack.c.h.b16 %v7211
        %v8857 = vunpack.c.l.b16 %v7212
        %v8858 = vunpack.c.l.b16 %v7213
        %v8859 = vunpack.c.h.b16 %v7213
        %v8860 = vunpack.c.l.b16 %v7214
        %v8861 = vunpack.c.h.b16 %v7214
        %v8862 = vunpack.c.l.b16 %v7215
        %v8863 = vunpack.c.l.b16 %v7216
        %v8864 = vunpack.c.h.b16 %v7216
        %v8865 = vunpack.c.l.b16 %v7217
        %v8866 = vunpack.c.h.b16 %v7217
        %v8867 = vunpack.c.l.b16 %v7218
        %v8868 = vunpack.c.l.b16 %v7219
        %v8869 = vunpack.c.h.b16 %v7219
        %v8870 = vunpack.c.l.b16 %v7220
        %v8871 = vunpack.c.h.b16 %v7220
        %v8872 = vunpack.c.l.b16 %v7221
        %v8873 = vunpack.c.l.b16 %v7222
        %v8874 = vunpack.c.h.b16 %v7222
        %v8875 = vunpack.c.l.b16 %v7223
        %v8876 = vunpack.c.h.b16 %v7223
        %v8877 = vunpack.c.l.b16 %v7224
        %v8878 = vunpack.c.l.b16 %v7225
        %v8879 = vunpack.c.h.b16 %v7225
        %v8880 = vunpack.c.l.b16 %v7226
        %v8881 = vunpack.c.h.b16 %v7226
        %v8882 = vunpack.c.l.b16 %v7227
        %v8883 = vunpack.c.l.b16 %v7228
        %v8884 = vunpack.c.h.b16 %v7228
        %v8885 = vunpack.c.l.b16 %v7229
        %v8886 = vunpack.c.h.b16 %v7229
        %v8887 = vunpack.c.l.b16 %v7230
        %v8888 = vunpack.c.l.b16 %v7231
        %v8889 = vunpack.c.h.b16 %v7231
        %v8890 = vunpack.c.l.b16 %v7232
        %v8891 = vunpack.c.h.b16 %v7232
        %v8892 = vunpack.c.l.b16 %v7233
        %v8893 = vunpack.c.l.b16 %v7234
        %v8894 = vunpack.c.h.b16 %v7234
        %v8895 = vunpack.c.l.b16 %v7235
        %v8896 = vunpack.c.h.b16 %v7235
        %v8897 = vunpack.c.l.b16 %v7236
        %v8898 = vunpack.c.l.b16 %v7237
        %v8899 = vunpack.c.h.b16 %v7237
        %v8900 = vunpack.c.l.b16 %v7238
        %v8901 = vunpack.c.h.b16 %v7238
        %v8902 = vunpack.c.l.b16 %v7239
        %v8903 = vunpack.c.l.b16 %v7240
        %v8904 = vunpack.c.h.b16 %v7240
        %v8905 = vunpack.c.l.b16 %v7241
        %v8906 = vunpack.c.h.b16 %v7241
        %v8907 = vunpack.c.l.b16 %v7242
        %v8908 = vunpack.c.l.b16 %v7243
        %v8909 = vunpack.c.h.b16 %v7243
        %v8910 = vunpack.c.l.b16 %v7244
        %v8911 = vunpack.c.h.b16 %v7244
        %v8912 = vunpack.c.l.b16 %v7245
        %v8913 = vunpack.c.l.b16 %v7246
        %v8914 = vunpack.c.h.b16 %v7246
        %v8915 = vunpack.c.l.b16 %v7247
        %v8916 = vunpack.c.h.b16 %v7247
        %v8917 = vunpack.c.l.b16 %v7248
        %v8918 = vunpack.c.l.b16 %v7249
        %v8919 = vunpack.c.h.b16 %v7249
        %v8920 = vunpack.c.l.b16 %v7250
        %v8921 = vunpack.c.h.b16 %v7250
        %v8922 = vunpack.c.l.b16 %v7251
        %v8923 = vunpack.c.l.b16 %v7252
        %v8924 = vunpack.c.h.b16 %v7252
        %v8925 = vunpack.c.l.b16 %v7253
        %v8926 = vunpack.c.h.b16 %v7253
        %v8927 = vunpack.c.l.b16 %v7254
        %v8928 = vunpack.c.l.b16 %v7255
        %v8929 = vunpack.c.h.b16 %v7255
        %v8930 = vunpack.c.l.b16 %v7256
        %v8931 = vunpack.c.h.b16 %v7256
        %v8932 = vunpack.c.l.b16 %v7257
        %v8933 = vunpack.c.l.b16 %v7258
        %v8934 = vunpack.c.h.b16 %v7258
        %v8935 = vunpack.c.l.b16 %v7259
        %v8936 = vunpack.c.h.b16 %v7259
        %v8937 = vunpack.c.l.b16 %v7260
        %v8938 = vunpack.c.l.b16 %v7261
        %v8939 = vunpack.c.h.b16 %v7261
        %v8940 = vunpack.c.l.b16 %v7262
        %v8941 = vunpack.c.h.b16 %v7262
        %v8942 = vunpack.c.l.b16 %v7263
        %v8943 = vunpack.c.l.b16 %v7264
        %v8944 = vunpack.c.h.b16 %v7264
        %v8945 = vunpack.c.l.b16 %v7265
        %v8946 = vunpack.c.h.b16 %v7265
        %v8947 = vunpack.c.l.b16 %v7266
        %v8948 = vunpack.c.l.b16 %v7267
        %v8949 = vunpack.c.h.b16 %v7267
        %v8950 = vunpack.c.l.b16 %v7268
        %v8951 = vunpack.c.h.b16 %v7268
        %v8952 = vunpack.c.l.b16 %v7269
        %v8953 = vunpack.c.l.b16 %v7270
        %v8954 = vunpack.c.h.b16 %v7270
        %v8955 = vunpack.c.l.b16 %v7271
        %v8956 = vunpack.c.h.b16 %v7271
        %v8957 = vunpack.c.l.b16 %v7272
        %v8958 = vunpack.c.l.b16 %v7273
        %v8959 = vunpack.c.h.b16 %v7273
        %v8960 = vunpack.c.l.b16 %v7274
        %v8961 = vunpack.c.h.b16 %v7274
        %v8962 = vunpack.c.l.b16 %v7275
        %v8963 = vunpack.c.l.b16 %v7276
        %v8964 = vunpack.c.h.b16 %v7276
        %v8965 = vunpack.c.l.b16 %v7277
        %v8966 = vunpack.c.h.b16 %v7277
        %v8967 = vunpack.c.l.b16 %v7278
        %v8968 = vunpack.c.l.b16 %v7279
        %v8969 = vunpack.c.h.b16 %v7279
        %v8970 = vunpack.c.l.b16 %v7280
        %v8971 = vunpack.c.h.b16 %v7280
        %v8972 = vunpack.c.l.b16 %v7281
        %v8973 = vunpack.c.l.b16 %v7282
        %v8974 = vunpack.c.h.b16 %v7282
        %v8975 = vunpack.c.l.b16 %v7283
        %v8976 = vunpack.c.h.b16 %v7283
        %v8977 = vunpack.c.l.b16 %v7284
        %v8978 = vunpack.c.l.b16 %v7285
        %v8979 = vunpack.c.h.b16 %v7285
        %v8980 = vunpack.c.l.b16 %v7286
        %v8981 = vunpack.c.h.b16 %v7286
        %v8982 = vunpack.c.l.b16 %v7287
        %v8983 = vunpack.c.l.b16 %v7288
        %v8984 = vunpack.c.h.b16 %v7288
        %v8985 = vunpack.c.l.b16 %v7289
        %v8986 = vunpack.c.h.b16 %v7289
        %v8987 = vunpack.c.l.b16 %v7290
        %v8988 = vunpack.c.l.b16 %v7291
        %v8989 = vunpack.c.h.b16 %v7291
        %v8990 = vunpack.c.l.b16 %v7292
        %v8991 = vunpack.c.h.b16 %v7292
        %v8992 = vunpack.c.l.b16 %v7293
        %v8993 = vunpack.c.l.b16 %v7294
        %v8994 = vunpack.c.h.b16 %v7294
        %v8995 = vunpack.c.l.b16 %v7295
        %v8996 = vunpack.c.h.b16 %v7295
        %v8997 = vunpack.c.l.b16 %v7296
        %v8998 = vunpack.c.l.b16 %v7297
        %v8999 = vunpack.c.h.b16 %v7297
        %v9000 = vunpack.c.l.b16 %v7298
        %v9001 = vunpack.c.h.b16 %v7298
        %v9002 = vunpack.c.l.b16 %v7299
        %v9003 = vunpack.c.l.b16 %v7300
        %v9004 = vunpack.c.h.b16 %v7300
        %v9005 = vunpack.c.l.b16 %v7301
        %v9006 = vunpack.c.h.b16 %v7301
        %v9007 = vunpack.c.l.b16 %v7302
        %v9008 = vunpack.c.l.b16 %v7303
        %v9009 = vunpack.c.h.b16 %v7303
        %v9010 = vunpack.c.l.b16 %v7304
        %v9011 = vunpack.c.h.b16 %v7304
        %v9012 = vunpack.c.l.b16 %v7305
        %v9013 = vunpack.c.l.b16 %v7306
        %v9014 = vunpack.c.h.b16 %v7306
        %v9015 = vunpack.c.l.b16 %v7307
        %v9016 = vunpack.c.h.b16 %v7307
        %v9017 = vunpack.c.l.b16 %v7308
        %v9018 = vunpack.c.l.b16 %v7309
        %v9019 = vunpack.c.h.b16 %v7309
        %v9020 = vunpack.c.l.b16 %v7310
        %v9021 = vunpack.c.h.b16 %v7310
        %v9022 = vunpack.c.l.b16 %v7311
        %v9023 = vunpack.c.l.b16 %v7312
        %v9024 = vunpack.c.h.b16 %v7312
        %v9025 = vunpack.c.l.b16 %v7313
        %v9026 = vunpack.c.h.b16 %v7313
        %v9027 = vunpack.c.l.b16 %v7314
        %v9028 = vunpack.c.l.b16 %v7315
        %v9029 = vunpack.c.h.b16 %v7315
        %v9030 = vunpack.c.l.b16 %v7316
        %v9031 = vunpack.c.h.b16 %v7316
        %v9032 = vunpack.c.l.b16 %v7317
        %v9033 = vunpack.c.l.b16 %v7318
        %v9034 = vunpack.c.h.b16 %v7318
        %v9035 = vunpack.c.l.b16 %v7319
        %v9036 = vunpack.c.h.b16 %v7319
        %v9037 = vunpack.c.l.b16 %v7320
        %v9038 = vunpack.c.l.b16 %v7321
        %v9039 = vunpack.c.h.b16 %v7321
        %v9040 = vunpack.c.l.b16 %v7322
        %v9041 = vunpack.c.h.b16 %v7322
        %v9042 = vunpack.c.l.b16 %v7323
        %v9043 = vunpack.c.l.b16 %v7324
        %v9044 = vunpack.c.h.b16 %v7324
        %v9045 = vunpack.c.l.b16 %v7325
        %v9046 = vunpack.c.h.b16 %v7325
        %v9047 = vunpack.c.l.b16 %v7326
        %v9048 = vunpack.c.l.b16 %v7327
        %v9049 = vunpack.c.h.b16 %v7327
        %v9050 = vunpack.c.l.b16 %v7328
        %v9051 = vunpack.c.h.b16 %v7328
        %v9052 = vunpack.c.l.b16 %v7329
        %v9053 = vunpack.c.l.b16 %v7330
        %v9054 = vunpack.c.h.b16 %v7330
        %v9055 = vunpack.c.l.b16 %v7331
        %v9056 = vunpack.c.h.b16 %v7331
        %v9057 = vunpack.c.l.b16 %v7332
        %v9058 = vunpack.c.l.b16 %v7333
        %v9059 = vunpack.c.h.b16 %v7333
        %v9060 = vunpack.c.l.b16 %v7334
        %v9061 = vunpack.c.h.b16 %v7334
        %v9062 = vunpack.c.l.b16 %v7335
        %v9063 = vunpack.c.l.b16 %v7336
        %v9064 = vunpack.c.h.b16 %v7336
        %v9065 = vunpack.c.l.b16 %v7337
        %v9066 = vunpack.c.h.b16 %v7337
        %v9067 = vunpack.c.l.b16 %v7338
        %v9068 = vunpack.c.l.b16 %v7339
        %v9069 = vunpack.c.h.b16 %v7339
        %v9070 = vunpack.c.l.b16 %v7340
        %v9071 = vunpack.c.h.b16 %v7340
        %v9072 = vunpack.c.l.b16 %v7341
        %v9073 = vunpack.c.l.b16 %v7342
        %v9074 = vunpack.c.h.b16 %v7342
        %v9075 = vunpack.c.l.b16 %v7343
        %v9076 = vunpack.c.h.b16 %v7343
        %v9077 = vunpack.c.l.b16 %v7344
        %v9078 = vunpack.c.l.b16 %v7345
        %v9079 = vunpack.c.h.b16 %v7345
        %v9080 = vunpack.c.l.b16 %v7346
        %v9081 = vunpack.c.h.b16 %v7346
        %v9082 = vunpack.c.l.b16 %v7347
        %v9083 = vunpack.c.l.b16 %v7348
        %v9084 = vunpack.c.h.b16 %v7348
        %v9085 = vunpack.c.l.b16 %v7349
        %v9086 = vunpack.c.h.b16 %v7349
        %v9087 = vunpack.c.l.b16 %v7350
        %v9088 = vunpack.c.l.b16 %v7351
        %v9089 = vunpack.c.h.b16 %v7351
        %v9090 = vunpack.c.l.b16 %v7352
        %v9091 = vunpack.c.h.b16 %v7352
        %v9092 = vunpack.c.l.b16 %v7353
        %v9093 = vunpack.c.l.b16 %v7354
        %v9094 = vunpack.c.h.b16 %v7354
        %v9095 = vunpack.c.l.b16 %v7355
        %v9096 = vunpack.c.h.b16 %v7355
        %v9097 = vunpack.c.l.b16 %v7356
        %v9098 = vunpack.c.l.b16 %v7357
        %v9099 = vunpack.c.h.b16 %v7357
        %v9100 = vunpack.c.l.b16 %v7358
        %v9101 = vunpack.c.h.b16 %v7358
        %v9102 = vunpack.c.l.b16 %v7359
        %v9103 = vunpack.c.l.b16 %v7360
        %v9104 = vunpack.c.h.b16 %v7360
        %v9105 = vunpack.c.l.b16 %v7361
        %v9106 = vunpack.c.h.b16 %v7361
        %v9107 = vunpack.c.l.b16 %v7362
        %v9108 = vunpack.c.l.b16 %v7363
        %v9109 = vunpack.c.h.b16 %v7363
        %v9110 = vunpack.c.l.b16 %v7364
        %v9111 = vunpack.c.h.b16 %v7364
        %v9112 = vunpack.c.l.b16 %v7365
        %v9113 = vunpack.c.l.b16 %v7366
        %v9114 = vunpack.c.h.b16 %v7366
        %v9115 = vunpack.c.l.b16 %v7367
        %v9116 = vunpack.c.h.b16 %v7367
        %v9117 = vunpack.c.l.b16 %v7368
        %v9118 = vunpack.c.l.b16 %v7369
        %v9119 = vunpack.c.h.b16 %v7369
        %v9120 = vunpack.c.l.b16 %v7370
        %v9121 = vunpack.c.h.b16 %v7370
        %v9122 = vunpack.c.l.b16 %v7371
        %v9123 = vunpack.c.l.b16 %v7372
        %v9124 = vunpack.c.h.b16 %v7372
        %v9125 = vunpack.c.l.b16 %v7373
        %v9126 = vunpack.c.h.b16 %v7373
        %v9127 = vunpack.c.l.b16 %v7374
        %v9128 = vunpack.c.l.b16 %v7375
        %v9129 = vunpack.c.h.b16 %v7375
        %v9130 = vunpack.c.l.b16 %v7376
        %v9131 = vunpack.c.h.b16 %v7376
        %v9132 = vunpack.c.l.b16 %v7377
        %v9133 = vunpack.c.l.b16 %v7378
        %v9134 = vunpack.c.h.b16 %v7378
        %v9135 = vunpack.c.l.b16 %v7379
        %v9136 = vunpack.c.h.b16 %v7379
        %v9137 = vunpack.c.l.b16 %v7380
        %v9138 = vunpack.c.l.b16 %v7381
        %v9139 = vunpack.c.h.b16 %v7381
        %v9140 = vunpack.c.l.b16 %v7382
        %v9141 = vunpack.c.h.b16 %v7382
        %v9142 = vunpack.c.l.b16 %v7383
        %v9143 = vunpack.c.l.b16 %v7384
        %v9144 = vunpack.c.h.b16 %v7384
        %v9145 = vunpack.c.l.b16 %v7385
        %v9146 = vunpack.c.h.b16 %v7385
        %v9147 = vunpack.c.l.b16 %v7386
        %v9148 = vunpack.c.l.b16 %v7387
        %v9149 = vunpack.c.h.b16 %v7387
        %v9150 = vunpack.c.l.b16 %v7388
        %v9151 = vunpack.c.h.b16 %v7388
        %v9152 = vunpack.c.l.b16 %v7389
        %v9153 = vunpack.c.l.b16 %v7390
        %v9154 = vunpack.c.h.b16 %v7390
        %v9155 = vunpack.c.l.b16 %v7391
        %v9156 = vunpack.c.h.b16 %v7391
        %v9157 = vunpack.c.l.b16 %v7392
        %v9158 = vunpack.c.l.b16 %v7393
        %v9159 = vunpack.c.h.b16 %v7393
        %v9160 = vunpack.c.l.b16 %v7394
        %v9161 = vunpack.c.h.b16 %v7394
        %v9162 = vunpack.c.l.b16 %v7395
        %v9163 = vunpack.c.l.b16 %v7396
        %v9164 = vunpack.c.h.b16 %v7396
        %v9165 = vunpack.c.l.b16 %v7397
        %v9166 = vunpack.c.h.b16 %v7397
        %v9167 = vunpack.c.l.b16 %v7398
        %v9168 = vunpack.c.l.b16 %v7399
        %v9169 = vunpack.c.h.b16 %v7399
        %v9170 = vunpack.c.l.b16 %v7400
        %v9171 = vunpack.c.h.b16 %v7400
        %v9172 = vunpack.c.l.b16 %v7401
        %v9173 = vunpack.c.l.b16 %v7402
        %v9174 = vunpack.c.h.b16 %v7402
        %v9175 = vunpack.c.l.b16 %v7403
        %v9176 = vunpack.c.h.b16 %v7403
        %v9177 = vunpack.c.l.b16 %v7404
        %v9178 = vunpack.c.l.b16 %v7405
        %v9179 = vunpack.c.h.b16 %v7405
        %v9180 = vunpack.c.l.b16 %v7406
        %v9181 = vunpack.c.h.b16 %v7406
        %v9182 = vunpack.c.l.b16 %v7407
        %v9183 = vunpack.c.l.b16 %v7408
        %v9184 = vunpack.c.h.b16 %v7408
        %v9185 = vunpack.c.l.b16 %v7409
        %v9186 = vunpack.c.h.b16 %v7409
        %v9187 = vunpack.c.l.b16 %v7410
        %v9188 = vunpack.c.l.b16 %v7411
        %v9189 = vunpack.c.h.b16 %v7411
        %v9190 = vunpack.c.l.b16 %v7412
        %v9191 = vunpack.c.h.b16 %v7412
        %v9192 = vunpack.c.l.b16 %v7413
        %v9193 = vunpack.c.l.b16 %v7414
        %v9194 = vunpack.c.h.b16 %v7414
        %v9195 = vunpack.c.l.b16 %v7415
        %v9196 = vunpack.c.h.b16 %v7415
        %v9197 = vunpack.c.l.b16 %v7416
        %v9198 = vunpack.c.l.b16 %v7417
        %v9199 = vunpack.c.h.b16 %v7417
        %v9200 = vunpack.c.l.b16 %v7418
        %v9201 = vunpack.c.h.b16 %v7418
        %v9202 = vunpack.c.l.b16 %v7419
        %v9203 = vunpack.c.l.b16 %v7420
        %v9204 = vunpack.c.h.b16 %v7420
        %v9205 = vunpack.c.l.b16 %v7421
        %v9206 = vunpack.c.h.b16 %v7421
        %v9207 = vunpack.c.l.b16 %v7422
        %v9208 = vunpack.c.l.b16 %v7423
        %v9209 = vunpack.c.h.b16 %v7423
        %v9210 = vunpack.c.l.b16 %v7424
        %v9211 = vunpack.c.h.b16 %v7424
        %v9212 = vunpack.c.l.b16 %v7425
        %v9213 = vunpack.c.l.b16 %v7426
        %v9214 = vunpack.c.h.b16 %v7426
        %v9215 = vunpack.c.l.b16 %v7427
        %v9216 = vunpack.c.h.b16 %v7427
        %v9217 = vunpack.c.l.b16 %v7428
        %v9218 = vunpack.c.l.b16 %v7429
        %v9219 = vunpack.c.h.b16 %v7429
        %v9220 = vunpack.c.l.b16 %v7430
        %v9221 = vunpack.c.h.b16 %v7430
        %v9222 = vunpack.c.l.b16 %v7431
        %v9223 = vunpack.c.l.b16 %v7432
        %v9224 = vunpack.c.h.b16 %v7432
        %v9225 = vunpack.c.l.b16 %v7433
        %v9226 = vunpack.c.h.b16 %v7433
        %v9227 = vunpack.c.l.b16 %v7434
        %v9228 = vunpack.c.l.b16 %v7435
        %v9229 = vunpack.c.h.b16 %v7435
        %v9230 = vunpack.c.l.b16 %v7436
        %v9231 = vunpack.c.h.b16 %v7436
        %v9232 = vunpack.c.l.b16 %v7437
        %v9233 = vunpack.c.l.b16 %v7438
        %v9234 = vunpack.c.h.b16 %v7438
        %v9235 = vunpack.c.l.b16 %v7439
        %v9236 = vunpack.c.h.b16 %v7439
        %v9237 = vunpack.c.l.b16 %v7440
        %v9238 = vunpack.c.l.b16 %v7441
        %v9239 = vunpack.c.h.b16 %v7441
        %v9240 = vunpack.c.l.b16 %v7442
        %v9241 = vunpack.c.h.b16 %v7442
        %v9242 = vunpack.c.l.b16 %v7443
        %v9243 = vunpack.c.l.b16 %v7444
        %v9244 = vunpack.c.h.b16 %v7444
        %v9245 = vunpack.c.l.b16 %v7445
        %v9246 = vunpack.c.h.b16 %v7445
        %v9247 = vunpack.c.l.b16 %v7446
        %v9248 = vunpack.c.l.b16 %v7447
        %v9249 = vunpack.c.h.b16 %v7447
        %v9250 = vunpack.c.l.b16 %v7448
        %v9251 = vunpack.c.h.b16 %v7448
        %v9252 = vunpack.c.l.b16 %v7449
        %v9253 = vunpack.c.l.b16 %v7450
        %v9254 = vunpack.c.h.b16 %v7450
        %v9255 = vunpack.c.l.b16 %v7451
        %v9256 = vunpack.c.h.b16 %v7451
        %v9257 = vunpack.c.l.b16 %v7452
        %v9258 = vunpack.c.l.b16 %v7453
        %v9259 = vunpack.c.h.b16 %v7453
        %v9260 = vunpack.c.l.b16 %v7454
        %v9261 = vunpack.c.h.b16 %v7454
        %v9262 = vunpack.c.l.b16 %v7455
        %v9263 = vunpack.c.l.b16 %v7456
        %v9264 = vunpack.c.h.b16 %v7456
        %v9265 = vunpack.c.l.b16 %v7457
        %v9266 = vunpack.c.h.b16 %v7457
        %v9267 = vunpack.c.l.b16 %v7458
        %v9268 = vunpack.c.l.b16 %v7459
        %v9269 = vunpack.c.h.b16 %v7459
        %v9270 = vunpack.c.l.b16 %v7460
        %v9271 = vunpack.c.h.b16 %v7460
        %v9272 = vunpack.c.l.b16 %v7461
        %v9273 = vunpack.c.l.b16 %v7462
        %v9274 = vunpack.c.h.b16 %v7462
        %v9275 = vunpack.c.l.b16 %v7463
        %v9276 = vunpack.c.h.b16 %v7463
        %v9277 = vunpack.c.l.b16 %v7464
        %v9278 = vunpack.c.l.b16 %v7465
        %v9279 = vunpack.c.h.b16 %v7465
        %v9280 = vunpack.c.l.b16 %v7466
        %v9281 = vunpack.c.h.b16 %v7466
        %v9282 = vunpack.c.l.b16 %v7467
        %v9283 = vunpack.c.l.b16 %v7468
        %v9284 = vunpack.c.h.b16 %v7468
        %v9285 = vunpack.c.l.b16 %v7469
        %v9286 = vunpack.c.h.b16 %v7469
        %v9287 = vunpack.c.l.b16 %v7470
        %v9288 = vunpack.c.l.b16 %v7471
        %v9289 = vunpack.c.h.b16 %v7471
        %v9290 = vunpack.c.l.b16 %v7472
        %v9291 = vunpack.c.h.b16 %v7472
        %v9292 = vunpack.c.l.b16 %v7473
        %v9293 = vunpack.c.l.b16 %v7474
        %v9294 = vunpack.c.h.b16 %v7474
        %v9295 = vunpack.c.l.b16 %v7475
        %v9296 = vunpack.c.h.b16 %v7475
        %v9297 = vunpack.c.l.b16 %v7476
        %v9298 = vunpack.c.l.b16 %v7477
        %v9299 = vunpack.c.h.b16 %v7477
        %v9300 = vunpack.c.l.b16 %v7478
        %v9301 = vunpack.c.h.b16 %v7478
        %v9302 = vunpack.c.l.b16 %v7479
        %v9303 = vunpack.c.l.b16 %v7480
        %v9304 = vunpack.c.h.b16 %v7480
        %v9305 = vunpack.c.l.b16 %v7481
        %v9306 = vunpack.c.h.b16 %v7481
        %v9307 = vunpack.c.l.b16 %v7482
        %v9308 = vunpack.c.l.b16 %v7483
        %v9309 = vunpack.c.h.b16 %v7483
        %v9310 = vunpack.c.l.b16 %v7484
        %v9311 = vunpack.c.h.b16 %v7484
        %v9312 = vunpack.c.l.b16 %v7485
        %v9313 = vunpack.c.l.b16 %v7486
        %v9314 = vunpack.c.h.b16 %v7486
        %v9315 = vunpack.c.l.b16 %v7487
        %v9316 = vunpack.c.h.b16 %v7487
        %v9317 = vunpack.c.l.b16 %v7488
        %v9318 = vunpack.c.l.b16 %v7489
        %v9319 = vunpack.c.h.b16 %v7489
        %v9320 = vunpack.c.l.b16 %v7490
        %v9321 = vunpack.c.h.b16 %v7490
        %v9322 = vunpack.c.l.b16 %v7491
        %v9323 = vunpack.c.l.b16 %v7492
        %v9324 = vunpack.c.h.b16 %v7492
        %v9325 = vunpack.c.l.b16 %v7493
        %v9326 = vunpack.c.h.b16 %v7493
        %v9327 = vunpack.c.l.b16 %v7494
        %v9328 = vunpack.c.l.b16 %v7495
        %v9329 = vunpack.c.h.b16 %v7495
        %v9330 = vunpack.c.l.b16 %v7496
        %v9331 = vunpack.c.h.b16 %v7496
        %v9332 = vunpack.c.l.b16 %v7497
        %v9333 = vunpack.c.l.b16 %v7498
        %v9334 = vunpack.c.h.b16 %v7498
        %v9335 = vunpack.c.l.b16 %v7499
        %v9336 = vunpack.c.h.b16 %v7499
        %v9337 = vunpack.c.l.b16 %v7500
        %v9338 = vunpack.c.l.b16 %v7501
        %v9339 = vunpack.c.h.b16 %v7501
        %v9340 = vunpack.c.l.b16 %v7502
        %v9341 = vunpack.c.h.b16 %v7502
        %v9342 = vunpack.c.l.b16 %v7503
        %v9343 = vunpack.c.l.b16 %v7504
        %v9344 = vunpack.c.h.b16 %v7504
        %v9345 = vunpack.c.l.b16 %v7505
        %v9346 = vunpack.c.h.b16 %v7505
        %v9347 = vunpack.c.l.b16 %v7506
        %v9348 = vunpack.c.l.b16 %v7507
        %v9349 = vunpack.c.h.b16 %v7507
        %v9350 = vunpack.c.l.b16 %v7508
        %v9351 = vunpack.c.h.b16 %v7508
        %v9352 = vunpack.c.l.b16 %v7509
        %v9353 = vunpack.c.l.b16 %v7510
        %v9354 = vunpack.c.h.b16 %v7510
        %v9355 = vunpack.c.l.b16 %v7511
        %v9356 = vunpack.c.h.b16 %v7511
        %v9357 = vunpack.c.l.b16 %v7512
        %v9358 = vunpack.c.l.b16 %v7513
        %v9359 = vunpack.c.h.b16 %v7513
        %v9360 = vunpack.c.l.b16 %v7514
        %v9361 = vunpack.c.h.b16 %v7514
        %v9362 = vunpack.c.l.b16 %v7515
        %v9363 = vunpack.c.l.b16 %v7516
        %v9364 = vunpack.c.h.b16 %v7516
        %v9365 = vunpack.c.l.b16 %v7517
        %v9366 = vunpack.c.h.b16 %v7517
        %v9367 = vunpack.c.l.b16 %v7518
        %v9368 = vunpack.c.l.b16 %v7519
        %v9369 = vunpack.c.h.b16 %v7519
        %v9370 = vunpack.c.l.b16 %v7520
        %v9371 = vunpack.c.h.b16 %v7520
        %v9372 = vunpack.c.l.b16 %v7521
        %v9373 = vunpack.c.l.b16 %v7522
        %v9374 = vunpack.c.h.b16 %v7522
        %v9375 = vunpack.c.l.b16 %v7523
        %v9376 = vunpack.c.h.b16 %v7523
        %v9377 = vunpack.c.l.b16 %v7524
        %v9378 = vunpack.c.l.b16 %v7525
        %v9379 = vunpack.c.h.b16 %v7525
        %v9380 = vunpack.c.l.b16 %v7526
        %v9381 = vunpack.c.h.b16 %v7526
        %v9382 = vunpack.c.l.b16 %v7527
        %v9383 = vunpack.c.l.b16 %v7528
        %v9384 = vunpack.c.h.b16 %v7528
        %v9385 = vunpack.c.l.b16 %v7529
        %v9386 = vunpack.c.h.b16 %v7529
        %v9387 = vunpack.c.l.b16 %v7530
        %v9388 = vunpack.c.l.b16 %v7531
        %v9389 = vunpack.c.h.b16 %v7531
        %v9390 = vunpack.c.l.b16 %v7532
        %v9391 = vunpack.c.h.b16 %v7532
        %v9392 = vunpack.c.l.b16 %v7533
        %v9393 = vunpack.c.l.b16 %v7534
        %v9394 = vunpack.c.h.b16 %v7534
        %v9395 = vunpack.c.l.b16 %v7535
        %v9396 = vunpack.c.h.b16 %v7535
        %v9397 = vunpack.c.l.b16 %v7536
        %v9398 = vunpack.c.l.b16 %v7537
        %v9399 = vunpack.c.h.b16 %v7537
        %v9400 = vunpack.c.l.b16 %v7538
        %v9401 = vunpack.c.h.b16 %v7538
        %v9402 = vunpack.c.l.b16 %v7539
        %v9403 = vunpack.c.l.b16 %v7540
        %v9404 = vunpack.c.h.b16 %v7540
        %v9405 = vunpack.c.l.b16 %v7541
        %v9406 = vunpack.c.h.b16 %v7541
        %v9407 = vunpack.c.l.b16 %v7542
        %v9408 = vunpack.c.l.b16 %v7543
        %v9409 = vunpack.c.h.b16 %v7543
        %v9410 = vunpack.c.l.b16 %v7544
        %v9411 = vunpack.c.h.b16 %v7544
        %v9412 = vunpack.c.l.b16 %v7545
        %v9413 = vunpack.c.l.b16 %v7546
        %v9414 = vunpack.c.h.b16 %v7546
        %v9415 = vunpack.c.l.b16 %v7547
        %v9416 = vunpack.c.h.b16 %v7547
        %v9417 = vunpack.c.l.b16 %v7548
        %v9418 = vunpack.c.l.b16 %v7549
        %v9419 = vunpack.c.h.b16 %v7549
        %v9420 = vunpack.c.l.b16 %v7550
        %v9421 = vunpack.c.h.b16 %v7550
        %v9422 = vunpack.c.l.b16 %v7551
        %v9423 = vunpack.c.l.b16 %v7552
        %v9424 = vunpack.c.h.b16 %v7552
        %v9425 = vunpack.c.l.b16 %v7553
        %v9426 = vunpack.c.h.b16 %v7553
        %v9427 = vunpack.c.l.b16 %v7554
        %v9428 = vunpack.c.l.b16 %v7555
        %v9429 = vunpack.c.h.b16 %v7555
        %v9430 = vunpack.c.l.b16 %v7556
        %v9431 = vunpack.c.h.b16 %v7556
        %v9432 = vunpack.c.l.b16 %v7557
        %v9433 = vunpack.c.l.b16 %v7558
        %v9434 = vunpack.c.h.b16 %v7558
        %v9435 = vunpack.c.l.b16 %v7559
        %v9436 = vunpack.c.h.b16 %v7559
        %v9437 = vunpack.c.l.b16 %v7560
        %v9438 = vunpack.c.l.b16 %v7561
        %v9439 = vunpack.c.h.b16 %v7561
        %v9440 = vunpack.c.l.b16 %v7562
        %v9441 = vunpack.c.h.b16 %v7562
        %v9442 = vunpack.c.l.b16 %v7563
        %v9443 = vunpack.c.l.b16 %v7564
        %v9444 = vunpack.c.h.b16 %v7564
        %v9445 = vunpack.c.l.b16 %v7565
        %v9446 = vunpack.c.h.b16 %v7565
        %v9447 = vunpack.c.l.b16 %v7566
        %v9448 = vunpack.c.l.b16 %v7567
        %v9449 = vunpack.c.h.b16 %v7567
        %v9450 = vunpack.c.l.b16 %v7568
        %v9451 = vunpack.c.h.b16 %v7568
        %v9452 = vunpack.c.l.b16 %v7569
        %v9453 = vunpack.c.l.b16 %v7570
        %v9454 = vunpack.c.h.b16 %v7570
        %v9455 = vunpack.c.l.b16 %v7571
        %v9456 = vunpack.c.h.b16 %v7571
        %v9457 = vunpack.c.l.b16 %v7572
        %v9458 = vunpack.c.l.b16 %v7573
        %v9459 = vunpack.c.h.b16 %v7573
        %v9460 = vunpack.c.l.b16 %v7574
        %v9461 = vunpack.c.h.b16 %v7574
        %v9462 = vunpack.c.l.b16 %v7575
        %v9463 = vunpack.c.l.b16 %v7576
        %v9464 = vunpack.c.h.b16 %v7576
        %v9465 = vunpack.c.l.b16 %v7577
        %v9466 = vunpack.c.h.b16 %v7577
        %v9467 = vunpack.c.l.b16 %v7578
        %v9468 = vunpack.c.l.b16 %v7579
        %v9469 = vunpack.c.h.b16 %v7579
        %v9470 = vunpack.c.l.b16 %v7580
        %v9471 = vunpack.c.h.b16 %v7580
        %v9472 = vunpack.c.l.b16 %v7581
        %v9473 = vunpack.c.l.b16 %v7582
        %v9474 = vunpack.c.h.b16 %v7582
        %v9475 = vunpack.c.l.b16 %v7583
        %v9476 = vunpack.c.h.b16 %v7583
        %v9477 = vunpack.c.l.b16 %v7584
        %v9478 = vunpack.c.l.b16 %v7585
        %v9479 = vunpack.c.h.b16 %v7585
        %v9480 = vunpack.c.l.b16 %v7586
        %v9481 = vunpack.c.h.b16 %v7586
        %v9482 = vunpack.c.l.b16 %v7587
        %v9483 = vunpack.c.l.b16 %v7588
        %v9484 = vunpack.c.h.b16 %v7588
        %v9485 = vunpack.c.l.b16 %v7589
        %v9486 = vunpack.c.h.b16 %v7589
        %v9487 = vunpack.c.l.b16 %v7590
        %v9488 = vunpack.c.l.b16 %v7591
        %v9489 = vunpack.c.h.b16 %v7591
        %v9490 = vunpack.c.l.b16 %v7592
        %v9491 = vunpack.c.h.b16 %v7592
        %v9492 = vunpack.c.l.b16 %v7593
        %v9493 = vunpack.c.l.b16 %v7594
        %v9494 = vunpack.c.h.b16 %v7594
        %v9495 = vunpack.c.l.b16 %v7595
        %v9496 = vunpack.c.h.b16 %v7595
        %v9497 = vunpack.c.l.b16 %v7596
        %v9498 = vunpack.c.l.b16 %v7597
        %v9499 = vunpack.c.h.b16 %v7597
        %v9500 = vunpack.c.l.b16 %v7598
        %v9501 = vunpack.c.h.b16 %v7598
        %v9502 = vunpack.c.l.b16 %v7599
        %v9503 = vunpack.c.l.b16 %v7600
        %v9504 = vunpack.c.h.b16 %v7600
        %v9505 = vunpack.c.l.b16 %v7601
        %v9506 = vunpack.c.h.b16 %v7601
        %v9507 = vunpack.c.l.b16 %v7602
        %v9508 = vunpack.c.l.b16 %v7603
        %v9509 = vunpack.c.h.b16 %v7603
        %v9510 = vunpack.c.l.b16 %v7604
        %v9511 = vunpack.c.h.b16 %v7604
        %v9512 = vunpack.c.l.b16 %v7605
        %v9513 = vunpack.c.l.b16 %v7606
        %v9514 = vunpack.c.h.b16 %v7606
        %v9515 = vunpack.c.l.b16 %v7607
        %v9516 = vunpack.c.h.b16 %v7607
        %v9517 = vunpack.c.l.b16 %v7608
        %v9518 = vunpack.c.l.b16 %v7609
        %v9519 = vunpack.c.h.b16 %v7609
        %v9520 = vunpack.c.l.b16 %v7610
        %v9521 = vunpack.c.h.b16 %v7610
        %v9522 = vunpack.c.l.b16 %v7611
        %v9523 = vunpack.c.l.b16 %v7612
        %v9524 = vunpack.c.h.b16 %v7612
        %v9525 = vunpack.c.l.b16 %v7613
        %v9526 = vunpack.c.h.b16 %v7613
        %v9527 = vunpack.c.l.b16 %v7614
        %v9528 = vunpack.c.l.b16 %v7615
        %v9529 = vunpack.c.h.b16 %v7615
        %v9530 = vunpack.c.l.b16 %v7616
        %v9531 = vunpack.c.h.b16 %v7616
        %v9532 = vunpack.c.l.b16 %v7617
        %v9533 = vunpack.c.l.b16 %v7618
        %v9534 = vunpack.c.h.b16 %v7618
        %v9535 = vunpack.c.l.b16 %v7619
        %v9536 = vunpack.c.h.b16 %v7619
        %v9537 = vunpack.c.l.b16 %v7620
        %v9538 = vunpack.c.l.b16 %v7621
        %v9539 = vunpack.c.h.b16 %v7621
        %v9540 = vunpack.c.l.b16 %v7622
        %v9541 = vunpack.c.h.b16 %v7622
        %v9542 = vunpack.c.l.b16 %v7623
        %v9543 = vunpack.c.l.b16 %v7624
        %v9544 = vunpack.c.h.b16 %v7624
        %v9545 = vunpack.c.l.b16 %v7625
        %v9546 = vunpack.c.h.b16 %v7625
        %v9547 = vunpack.c.l.b16 %v7626
        %v9548 = vunpack.c.l.b16 %v7627
        %v9549 = vunpack.c.h.b16 %v7627
        %v9550 = vunpack.c.l.b16 %v7628
        %v9551 = vunpack.c.h.b16 %v7628
        %v9552 = vunpack.c.l.b16 %v7629
        %v9553 = vunpack.c.l.b16 %v7630
        %v9554 = vunpack.c.h.b16 %v7630
        %v9555 = vunpack.c.l.b16 %v7631
        %v9556 = vunpack.c.h.b16 %v7631
        %v9557 = vunpack.c.l.b16 %v7632
        %v9558 = vunpack.c.l.b16 %v7633
        %v9559 = vunpack.c.h.b16 %v7633
        %v9560 = vunpack.c.l.b16 %v7634
        %v9561 = vunpack.c.h.b16 %v7634
        %v9562 = vunpack.c.l.b16 %v7635
        %v9563 = vunpack.c.l.b16 %v7636
        %v9564 = vunpack.c.h.b16 %v7636
        %v9565 = vunpack.c.l.b16 %v7637
        %v9566 = vunpack.c.h.b16 %v7637
        %v9567 = vunpack.c.l.b16 %v7638
        %v9568 = vunpack.c.l.b16 %v7639
        %v9569 = vunpack.c.h.b16 %v7639
        %v9570 = vunpack.c.l.b16 %v7640
        %v9571 = vunpack.c.h.b16 %v7640
        %v9572 = vunpack.c.l.b16 %v7641
        %v9573 = vunpack.c.l.b16 %v7642
        %v9574 = vunpack.c.h.b16 %v7642
        %v9575 = vunpack.c.l.b16 %v7643
        %v9576 = vunpack.c.h.b16 %v7643
        %v9577 = vunpack.c.l.b16 %v7644
        %v9578 = vunpack.c.l.b16 %v7645
        %v9579 = vunpack.c.h.b16 %v7645
        %v9580 = vunpack.c.l.b16 %v7646
        %v9581 = vunpack.c.h.b16 %v7646
        %v9582 = vunpack.c.l.b16 %v7647
        %v9583 = vunpack.c.l.b16 %v7648
        %v9584 = vunpack.c.h.b16 %v7648
        %v9585 = vunpack.c.l.b16 %v7649
        %v9586 = vunpack.c.h.b16 %v7649
        %v9587 = vunpack.c.l.b16 %v7650
        %v9588 = vunpack.c.l.b16 %v7651
        %v9589 = vunpack.c.h.b16 %v7651
        %v9590 = vunpack.c.l.b16 %v7652
        %v9591 = vunpack.c.h.b16 %v7652
        %v9592 = vunpack.c.l.b16 %v7653
        %v9593 = vunpack.c.l.b16 %v7654
        %v9594 = vunpack.c.h.b16 %v7654
        %v9595 = vunpack.c.l.b16 %v7655
        %v9596 = vunpack.c.h.b16 %v7655
        %v9597 = vunpack.c.l.b16 %v7656
        %v9598 = vunpack.c.l.b16 %v7657
        %v9599 = vunpack.c.h.b16 %v7657
        %v9600 = vunpack.c.l.b16 %v7658
        %v9601 = vunpack.c.h.b16 %v7658
        %v9602 = vunpack.c.l.b16 %v7659
        %v9603 = vunpack.c.l.b16 %v7660
        %v9604 = vunpack.c.h.b16 %v7660
        %v9605 = vunpack.c.l.b16 %v7661
        %v9606 = vunpack.c.h.b16 %v7661
        %v9607 = vunpack.c.l.b16 %v7662
        %v9608 = vunpack.c.l.b16 %v7663
        %v9609 = vunpack.c.h.b16 %v7663
        %v9610 = vunpack.c.l.b16 %v7664
        %v9611 = vunpack.c.h.b16 %v7664
        %v9612 = vunpack.c.l.b16 %v7665
        %v9613 = vunpack.c.l.b16 %v7666
        %v9614 = vunpack.c.h.b16 %v7666
        %v9615 = vunpack.c.l.b16 %v7667
        %v9616 = vunpack.c.h.b16 %v7667
        %v9617 = vunpack.c.l.b16 %v7668
        %v9618 = vunpack.c.l.b16 %v7669
        %v9619 = vunpack.c.h.b16 %v7669
        %v9620 = vunpack.c.l.b16 %v7670
        %v9621 = vunpack.c.h.b16 %v7670
        %v9622 = vunpack.c.l.b16 %v7671
        %v9623 = vunpack.c.l.b16 %v7672
        %v9624 = vunpack.c.h.b16 %v7672
        %v9625 = vunpack.c.l.b16 %v7673
        %v9626 = vunpack.c.h.b16 %v7673
        %v9627 = vunpack.c.l.b16 %v7674
        %v9628 = vunpack.c.l.b16 %v7675
        %v9629 = vunpack.c.h.b16 %v7675
        %v9630 = vunpack.c.l.b16 %v7676
        %v9631 = vunpack.c.h.b16 %v7676
        %v9632 = vunpack.c.l.b16 %v7677
        %v9633 = vunpack.c.l.b16 %v7678
        %v9634 = vunpack.c.h.b16 %v7678
        %v9635 = vunpack.c.l.b16 %v7679
        %v9636 = vunpack.c.h.b16 %v7679
        %v9637 = vunpack.c.l.b16 %v7680
        %v9638 = vunpack.c.l.b16 %v7681
        %v9639 = vunpack.c.h.b16 %v7681
        %v9640 = vunpack.c.l.b16 %v7682
        %v9641 = vunpack.c.h.b16 %v7682
        %v9642 = vunpack.c.l.b16 %v7683
        %v9643 = vunpack.c.l.b16 %v7684
        %v9644 = vunpack.c.h.b16 %v7684
        %v9645 = vunpack.c.l.b16 %v7685
        %v9646 = vunpack.c.h.b16 %v7685
        %v9647 = vunpack.c.l.b16 %v7686
        %v9648 = vunpack.c.l.b16 %v7687
        %v9649 = vunpack.c.h.b16 %v7687
        %v9650 = vunpack.c.l.b16 %v7688
        %v9651 = vunpack.c.h.b16 %v7688
        %v9652 = vunpack.c.l.b16 %v7689
        %v9653 = vunpack.c.l.b16 %v7690
        %v9654 = vunpack.c.h.b16 %v7690
        %v9655 = vunpack.c.l.b16 %v7691
        %v9656 = vunpack.c.h.b16 %v7691
        %v9657 = vunpack.c.l.b16 %v7692
        %v9658 = vunpack.c.l.b16 %v7693
        %v9659 = vunpack.c.h.b16 %v7693
        %v9660 = vunpack.c.l.b16 %v7694
        %v9661 = vunpack.c.h.b16 %v7694
        %v9662 = vunpack.c.l.b16 %v7695
        %v9663 = vunpack.c.l.b16 %v7696
        %v9664 = vunpack.c.h.b16 %v7696
        %v9665 = vunpack.c.l.b16 %v7697
        %v9666 = vunpack.c.h.b16 %v7697
        %v9667 = vunpack.c.l.b16 %v7698
        %v9668 = vunpack.c.l.b16 %v7699
        %v9669 = vunpack.c.h.b16 %v7699
        %v9670 = vunpack.c.l.b16 %v7700
        %v9671 = vunpack.c.h.b16 %v7700
        %v9672 = vunpack.c.l.b16 %v7701
        %v9673 = vunpack.c.l.b16 %v7702
        %v9674 = vunpack.c.h.b16 %v7702
        %v9675 = vunpack.c.l.b16 %v7703
        %v9676 = vunpack.c.h.b16 %v7703
        %v9677 = vunpack.c.l.b16 %v7704
        %v9678 = vunpack.c.l.b16 %v7705
        %v9679 = vunpack.c.h.b16 %v7705
        %v9680 = vunpack.c.l.b16 %v7706
        %v9681 = vunpack.c.h.b16 %v7706
        %v9682 = vunpack.c.l.b16 %v7707
        %v9683 = vunpack.c.l.b16 %v7708
        %v9684 = vunpack.c.h.b16 %v7708
        %v9685 = vunpack.c.l.b16 %v7709
        %v9686 = vunpack.c.h.b16 %v7709
        %v9687 = vunpack.c.l.b16 %v7710
        %v9688 = vunpack.c.l.b16 %v7711
        %v9689 = vunpack.c.h.b16 %v7711
        %v9690 = vunpack.c.l.b16 %v7712
        %v9691 = vunpack.c.h.b16 %v7712
        %v9692 = vunpack.c.l.b16 %v7713
        %v9693 = vunpack.c.l.b16 %v7714
        %v9694 = vunpack.c.h.b16 %v7714
        %v9695 = vunpack.c.l.b16 %v7715
        %v9696 = vunpack.c.h.b16 %v7715
        %v9697 = vunpack.c.l.b16 %v7716
        %v9698 = vunpack.c.l.b16 %v7717
        %v9699 = vunpack.c.h.b16 %v7717
        %v9700 = vunpack.c.l.b16 %v7718
        %v9701 = vunpack.c.h.b16 %v7718
        %v9702 = vunpack.c.l.b16 %v7719
        %v9703 = vunpack.c.l.b16 %v7720
        %v9704 = vunpack.c.h.b16 %v7720
        %v9705 = vunpack.c.l.b16 %v7721
        %v9706 = vunpack.c.h.b16 %v7721
        %v9707 = vunpack.c.l.b16 %v7722
        %v9708 = vunpack.c.l.b16 %v7723
        %v9709 = vunpack.c.h.b16 %v7723
        %v9710 = vunpack.c.l.b16 %v7724
        %v9711 = vunpack.c.h.b16 %v7724
        %v9712 = vunpack.c.l.b16 %v7725
        %v9713 = vunpack.c.l.b16 %v7726
        %v9714 = vunpack.c.h.b16 %v7726
        %v9715 = vunpack.c.l.b16 %v7727
        %v9716 = vunpack.c.h.b16 %v7727
        %v9717 = vunpack.c.l.b16 %v7728
        %v9718 = vunpack.c.l.b16 %v7729
        %v9719 = vunpack.c.h.b16 %v7729
        %v9720 = vunpack.c.l.b16 %v7730
        %v9721 = vunpack.c.h.b16 %v7730
        %v9722 = vunpack.c.l.b16 %v7731
        %v9723 = vunpack.c.l.b16 %v7732
        %v9724 = vunpack.c.h.b16 %v7732
        %v9725 = vunpack.c.l.b16 %v7733
        %v9726 = vunpack.c.h.b16 %v7733
        %v9727 = vunpack.c.l.b16 %v7734
        %v9728 = vunpack.c.l.b16 %v7735
        %v9729 = vunpack.c.h.b16 %v7735
        %v9730 = vunpack.c.l.b16 %v7736
        %v9731 = vunpack.c.h.b16 %v7736
        %v9732 = vunpack.c.l.b16 %v7737
        %v9733 = vunpack.c.l.b16 %v7738
        %v9734 = vunpack.c.h.b16 %v7738
        %v9735 = vunpack.c.l.b16 %v7739
        %v9736 = vunpack.c.h.b16 %v7739
        %v9737 = vunpack.c.l.b16 %v7740
        %v9738 = vunpack.c.l.b16 %v7741
        %v9739 = vunpack.c.h.b16 %v7741
        %v9740 = vunpack.c.l.b16 %v7742
        %v9741 = vunpack.c.h.b16 %v7742
        %v9742 = vunpack.c.l.b16 %v7743
        %v9743 = vunpack.c.l.b16 %v7744
        %v9744 = vunpack.c.h.b16 %v7744
        %v9745 = vunpack.c.l.b16 %v7745
        %v9746 = vunpack.c.h.b16 %v7745
        %v9747 = vunpack.c.l.b16 %v7746
        %v9748 = vunpack.c.l.b16 %v7747
        %v9749 = vunpack.c.h.b16 %v7747
        %v9750 = vunpack.c.l.b16 %v7748
        %v9751 = vunpack.c.h.b16 %v7748
        %v9752 = vunpack.c.l.b16 %v7749
        %v9753 = vunpack.c.l.b16 %v7750
        %v9754 = vunpack.c.h.b16 %v7750
        %v9755 = vunpack.c.l.b16 %v7751
        %v9756 = vunpack.c.h.b16 %v7751
        %v9757 = vunpack.c.l.b16 %v7752
        %v9758 = vunpack.c.l.b16 %v7753
        %v9759 = vunpack.c.h.b16 %v7753
        %v9760 = vunpack.c.l.b16 %v7754
        %v9761 = vunpack.c.h.b16 %v7754
        %v9762 = vunpack.c.l.b16 %v7755
        %v9763 = vunpack.c.l.b16 %v7756
        %v9764 = vunpack.c.h.b16 %v7756
        %v9765 = vunpack.c.l.b16 %v7757
        %v9766 = vunpack.c.h.b16 %v7757
        %v9767 = vunpack.c.l.b16 %v7758
        %v9768 = vunpack.c.l.b16 %v7759
        %v9769 = vunpack.c.h.b16 %v7759
        %v9770 = vunpack.c.l.b16 %v7760
        %v9771 = vunpack.c.h.b16 %v7760
        %v9772 = vunpack.c.l.b16 %v7761
        %v9773 = vunpack.c.l.b16 %v7762
        %v9774 = vunpack.c.h.b16 %v7762
        %v9775 = vunpack.c.l.b16 %v7763
        %v9776 = vunpack.c.h.b16 %v7763
        %v9777 = vunpack.c.l.b16 %v7764
        %v9778 = vunpack.c.l.b16 %v7765
        %v9779 = vunpack.c.h.b16 %v7765
        %v9780 = vunpack.c.l.b16 %v7766
        %v9781 = vunpack.c.h.b16 %v7766
        %v9782 = vunpack.c.l.b16 %v7767
        %v9783 = vunpack.c.l.b16 %v7768
        %v9784 = vunpack.c.h.b16 %v7768
        %v9785 = vunpack.c.l.b16 %v7769
        %v9786 = vunpack.c.h.b16 %v7769
        %v9787 = vunpack.c.l.b16 %v7770
        %v9788 = vunpack.c.l.b16 %v7771
        %v9789 = vunpack.c.h.b16 %v7771
        %v9790 = vunpack.c.l.b16 %v7772
        %v9791 = vunpack.c.h.b16 %v7772
        %v9792 = vunpack.c.l.b16 %v7773
        %v9793 = vunpack.c.l.b16 %v7774
        %v9794 = vunpack.c.h.b16 %v7774
        %v9795 = vunpack.c.l.b16 %v7775
        %v9796 = vunpack.c.h.b16 %v7775
        %v9797 = vunpack.c.l.b16 %v7776
        %v9798 = vunpack.c.l.b16 %v7777
        %v9799 = vunpack.c.h.b16 %v7777
        %v9800 = vunpack.c.l.b16 %v7778
        %v9801 = vunpack.c.h.b16 %v7778
        %v9802 = vunpack.c.l.b16 %v7779
        %v9803 = vunpack.c.l.b16 %v7780
        %v9804 = vunpack.c.h.b16 %v7780
        %v9805 = vunpack.c.l.b16 %v7781
        %v9806 = vunpack.c.h.b16 %v7781
        %v9807 = vunpack.c.l.b16 %v7782
        %v9808 = vunpack.c.l.b16 %v7783
        %v9809 = vunpack.c.h.b16 %v7783
        %v9810 = vunpack.c.l.b16 %v7784
        %v9811 = vunpack.c.h.b16 %v7784
        %v9812 = vunpack.c.l.b16 %v7785
        %v9813 = vunpack.c.l.b16 %v7786
        %v9814 = vunpack.c.h.b16 %v7786
        %v9815 = vunpack.c.l.b16 %v7787
        %v9816 = vunpack.c.h.b16 %v7787
        %v9817 = vunpack.c.l.b16 %v7788
        %v9818 = vunpack.c.l.b16 %v7789
        %v9819 = vunpack.c.h.b16 %v7789
        %v9820 = vunpack.c.l.b16 %v7790
        %v9821 = vunpack.c.h.b16 %v7790
        %v9822 = vunpack.c.l.b16 %v7791
        %v9823 = vunpack.c.l.b16 %v7792
        %v9824 = vunpack.c.h.b16 %v7792
        %v9825 = vunpack.c.l.b16 %v7793
        %v9826 = vunpack.c.h.b16 %v7793
        %v9827 = vunpack.c.l.b16 %v7794
        %v9828 = vunpack.c.l.b16 %v7795
        %v9829 = vunpack.c.h.b16 %v7795
        %v9830 = vunpack.c.l.b16 %v7796
        %v9831 = vunpack.c.h.b16 %v7796
        %v9832 = vunpack.c.l.b16 %v7797
        %v9833 = vunpack.c.l.b16 %v7798
        %v9834 = vunpack.c.h.b16 %v7798
        %v9835 = vunpack.c.l.b16 %v7799
        %v9836 = vunpack.c.h.b16 %v7799
        %v9837 = vunpack.c.l.b16 %v7800
        %v9838 = vunpack.c.l.b16 %v7801
        %v9839 = vunpack.c.h.b16 %v7801
        %v9840 = vunpack.c.l.b16 %v7802
        %v9841 = vunpack.c.h.b16 %v7802
        %v9842 = vunpack.c.l.b16 %v7803
        %v9843 = vunpack.c.l.b16 %v7804
        %v9844 = vunpack.c.h.b16 %v7804
        %v9845 = vunpack.c.l.b16 %v7805
        %v9846 = vunpack.c.h.b16 %v7805
        %v9847 = vunpack.c.l.b16 %v7806
        %v9848 = vunpack.c.l.b16 %v7807
        %v9849 = vunpack.c.h.b16 %v7807
        %v9850 = vunpack.c.l.b16 %v7808
        %v9851 = vunpack.c.h.b16 %v7808
        %v9852 = vunpack.c.l.b16 %v7809
        %v9853 = vunpack.c.l.b16 %v7810
        %v9854 = vunpack.c.h.b16 %v7810
        %v9855 = vunpack.c.l.b16 %v7811
        %v9856 = vunpack.c.h.b16 %v7811
        %v9857 = vunpack.c.l.b16 %v7812
        %v9858 = vunpack.c.l.b16 %v7813
        %v9859 = vunpack.c.h.b16 %v7813
        %v9860 = vunpack.c.l.b16 %v7814
        %v9861 = vunpack.c.h.b16 %v7814
        %v9862 = vunpack.c.l.b16 %v7815
        %v9863 = vunpack.c.l.b16 %v7816
        %v9864 = vunpack.c.h.b16 %v7816
        %v9865 = vunpack.c.l.b16 %v7817
        %v9866 = vunpack.c.h.b16 %v7817
        %v9867 = vunpack.c.l.b16 %v7818
        %v9868 = vpack.c.b16 %v8593, %v8588
        %v9869 = vpack.c.b16 %v8594, %v8589
        %v9870 = vpack.c.b16 %v8595, %v8590
        %v9871 = vpack.c.b16 %v8596, %v8591
        %v9872 = vpack.c.b16 %v8597, %v8592
        %v9873 = vpack.c.b16 %v8603, %v8598
        %v9874 = vpack.c.b16 %v8604, %v8599
        %v9875 = vpack.c.b16 %v8605, %v8600
        %v9876 = vpack.c.b16 %v8606, %v8601
        %v9877 = vpack.c.b16 %v8607, %v8602
        %v9878 = vpack.c.b16 %v8613, %v8608
        %v9879 = vpack.c.b16 %v8614, %v8609
        %v9880 = vpack.c.b16 %v8615, %v8610
        %v9881 = vpack.c.b16 %v8616, %v8611
        %v9882 = vpack.c.b16 %v8617, %v8612
        %v9883 = vpack.c.b16 %v8623, %v8618
        %v9884 = vpack.c.b16 %v8624, %v8619
        %v9885 = vpack.c.b16 %v8625, %v8620
        %v9886 = vpack.c.b16 %v8626, %v8621
        %v9887 = vpack.c.b16 %v8627, %v8622
        %v9888 = vpack.c.b16 %v8633, %v8628
        %v9889 = vpack.c.b16 %v8634, %v8629
        %v9890 = vpack.c.b16 %v8635, %v8630
        %v9891 = vpack.c.b16 %v8636, %v8631
        %v9892 = vpack.c.b16 %v8637, %v8632
        %v9893 = vpack.c.b16 %v8643, %v8638
        %v9894 = vpack.c.b16 %v8644, %v8639
        %v9895 = vpack.c.b16 %v8645, %v8640
        %v9896 = vpack.c.b16 %v8646, %v8641
        %v9897 = vpack.c.b16 %v8647, %v8642
        %v9898 = vpack.c.b16 %v8653, %v8648
        %v9899 = vpack.c.b16 %v8654, %v8649
        %v9900 = vpack.c.b16 %v8655, %v8650
        %v9901 = vpack.c.b16 %v8656, %v8651
        %v9902 = vpack.c.b16 %v8657, %v8652
        %v9903 = vpack.c.b16 %v8663, %v8658
        %v9904 = vpack.c.b16 %v8664, %v8659
        %v9905 = vpack.c.b16 %v8665, %v8660
        %v9906 = vpack.c.b16 %v8666, %v8661
        %v9907 = vpack.c.b16 %v8667, %v8662
        %v9908 = vpack.c.b16 %v8673, %v8668
        %v9909 = vpack.c.b16 %v8674, %v8669
        %v9910 = vpack.c.b16 %v8675, %v8670
        %v9911 = vpack.c.b16 %v8676, %v8671
        %v9912 = vpack.c.b16 %v8677, %v8672
        %v9913 = vpack.c.b16 %v8683, %v8678
        %v9914 = vpack.c.b16 %v8684, %v8679
        %v9915 = vpack.c.b16 %v8685, %v8680
        %v9916 = vpack.c.b16 %v8686, %v8681
        %v9917 = vpack.c.b16 %v8687, %v8682
        %v9918 = vpack.c.b16 %v8693, %v8688
        %v9919 = vpack.c.b16 %v8694, %v8689
        %v9920 = vpack.c.b16 %v8695, %v8690
        %v9921 = vpack.c.b16 %v8696, %v8691
        %v9922 = vpack.c.b16 %v8697, %v8692
        %v9923 = vpack.c.b16 %v8703, %v8698
        %v9924 = vpack.c.b16 %v8704, %v8699
        %v9925 = vpack.c.b16 %v8705, %v8700
        %v9926 = vpack.c.b16 %v8706, %v8701
        %v9927 = vpack.c.b16 %v8707, %v8702
        %v9928 = vpack.c.b16 %v8713, %v8708
        %v9929 = vpack.c.b16 %v8714, %v8709
        %v9930 = vpack.c.b16 %v8715, %v8710
        %v9931 = vpack.c.b16 %v8716, %v8711
        %v9932 = vpack.c.b16 %v8717, %v8712
        %v9933 = vpack.c.b16 %v8723, %v8718
        %v9934 = vpack.c.b16 %v8724, %v8719
        %v9935 = vpack.c.b16 %v8725, %v8720
        %v9936 = vpack.c.b16 %v8726, %v8721
        %v9937 = vpack.c.b16 %v8727, %v8722
        %v9938 = vpack.c.b16 %v8733, %v8728
        %v9939 = vpack.c.b16 %v8734, %v8729
        %v9940 = vpack.c.b16 %v8735, %v8730
        %v9941 = vpack.c.b16 %v8736, %v8731
        %v9942 = vpack.c.b16 %v8737, %v8732
        %v9943 = vpack.c.b16 %v8743, %v8738
        %v9944 = vpack.c.b16 %v8744, %v8739
        %v9945 = vpack.c.b16 %v8745, %v8740
        %v9946 = vpack.c.b16 %v8746, %v8741
        %v9947 = vpack.c.b16 %v8747, %v8742
        %v9948 = vpack.c.b16 %v8753, %v8748
        %v9949 = vpack.c.b16 %v8754, %v8749
        %v9950 = vpack.c.b16 %v8755, %v8750
        %v9951 = vpack.c.b16 %v8756, %v8751
        %v9952 = vpack.c.b16 %v8757, %v8752
        %v9953 = vpack.c.b16 %v8763, %v8758
        %v9954 = vpack.c.b16 %v8764, %v8759
        %v9955 = vpack.c.b16 %v8765, %v8760
        %v9956 = vpack.c.b16 %v8766, %v8761
        %v9957 = vpack.c.b16 %v8767, %v8762
        %v9958 = vpack.c.b16 %v8773, %v8768
        %v9959 = vpack.c.b16 %v8774, %v8769
        %v9960 = vpack.c.b16 %v8775, %v8770
        %v9961 = vpack.c.b16 %v8776, %v8771
        %v9962 = vpack.c.b16 %v8777, %v8772
        %v9963 = vpack.c.b16 %v8783, %v8778
        %v9964 = vpack.c.b16 %v8784, %v8779
        %v9965 = vpack.c.b16 %v8785, %v8780
        %v9966 = vpack.c.b16 %v8786, %v8781
        %v9967 = vpack.c.b16 %v8787, %v8782
        %v9968 = vpack.c.b16 %v8793, %v8788
        %v9969 = vpack.c.b16 %v8794, %v8789
        %v9970 = vpack.c.b16 %v8795, %v8790
        %v9971 = vpack.c.b16 %v8796, %v8791
        %v9972 = vpack.c.b16 %v8797, %v8792
        %v9973 = vpack.c.b16 %v8803, %v8798
        %v9974 = vpack.c.b16 %v8804, %v8799
        %v9975 = vpack.c.b16 %v8805, %v8800
        %v9976 = vpack.c.b16 %v8806, %v8801
        %v9977 = vpack.c.b16 %v8807, %v8802
        %v9978 = vpack.c.b16 %v8813, %v8808
        %v9979 = vpack.c.b16 %v8814, %v8809
        %v9980 = vpack.c.b16 %v8815, %v8810
        %v9981 = vpack.c.b16 %v8816, %v8811
        %v9982 = vpack.c.b16 %v8817, %v8812
        %v9983 = vpack.c.b16 %v8823, %v8818
        %v9984 = vpack.c.b16 %v8824, %v8819
        %v9985 = vpack.c.b16 %v8825, %v8820
        %v9986 = vpack.c.b16 %v8826, %v8821
        %v9987 = vpack.c.b16 %v8827, %v8822
        %v9988 = vpack.c.b16 %v8833, %v8828
        %v9989 = vpack.c.b16 %v8834, %v8829
        %v9990 = vpack.c.b16 %v8835, %v8830
        %v9991 = vpack.c.b16 %v8836, %v8831
        %v9992 = vpack.c.b16 %v8837, %v8832
        %v9993 = vpack.c.b16 %v8843, %v8838
        %v9994 = vpack.c.b16 %v8844, %v8839
        %v9995 = vpack.c.b16 %v8845, %v8840
        %v9996 = vpack.c.b16 %v8846, %v8841
        %v9997 = vpack.c.b16 %v8847, %v8842
        %v9998 = vpack.c.b16 %v8853, %v8848
        %v9999 = vpack.c.b16 %v8854, %v8849
        %v10000 = vpack.c.b16 %v8855, %v8850
        %v10001 = vpack.c.b16 %v8856, %v8851
        %v10002 = vpack.c.b16 %v8857, %v8852
        %v10003 = vpack.c.b16 %v8863, %v8858
        %v10004 = vpack.c.b16 %v8864, %v8859
        %v10005 = vpack.c.b16 %v8865, %v8860
        %v10006 = vpack.c.b16 %v8866, %v8861
        %v10007 = vpack.c.b16 %v8867, %v8862
        %v10008 = vpack.c.b16 %v8873, %v8868
        %v10009 = vpack.c.b16 %v8874, %v8869
        %v10010 = vpack.c.b16 %v8875, %v8870
        %v10011 = vpack.c.b16 %v8876, %v8871
        %v10012 = vpack.c.b16 %v8877, %v8872
        %v10013 = vpack.c.b16 %v8883, %v8878
        %v10014 = vpack.c.b16 %v8884, %v8879
        %v10015 = vpack.c.b16 %v8885, %v8880
        %v10016 = vpack.c.b16 %v8886, %v8881
        %v10017 = vpack.c.b16 %v8887, %v8882
        %v10018 = vpack.c.b16 %v8893, %v8888
        %v10019 = vpack.c.b16 %v8894, %v8889
        %v10020 = vpack.c.b16 %v8895, %v8890
        %v10021 = vpack.c.b16 %v8896, %v8891
        %v10022 = vpack.c.b16 %v8897, %v8892
        %v10023 = vpack.c.b16 %v8903, %v8898
        %v10024 = vpack.c.b16 %v8904, %v8899
        %v10025 = vpack.c.b16 %v8905, %v8900
        %v10026 = vpack.c.b16 %v8906, %v8901
        %v10027 = vpack.c.b16 %v8907, %v8902
        %v10028 = vpack.c.b16 %v8913, %v8908
        %v10029 = vpack.c.b16 %v8914, %v8909
        %v10030 = vpack.c.b16 %v8915, %v8910
        %v10031 = vpack.c.b16 %v8916, %v8911
        %v10032 = vpack.c.b16 %v8917, %v8912
        %v10033 = vpack.c.b16 %v8923, %v8918
        %v10034 = vpack.c.b16 %v8924, %v8919
        %v10035 = vpack.c.b16 %v8925, %v8920
        %v10036 = vpack.c.b16 %v8926, %v8921
        %v10037 = vpack.c.b16 %v8927, %v8922
        %v10038 = vpack.c.b16 %v8933, %v8928
        %v10039 = vpack.c.b16 %v8934, %v8929
        %v10040 = vpack.c.b16 %v8935, %v8930
        %v10041 = vpack.c.b16 %v8936, %v8931
        %v10042 = vpack.c.b16 %v8937, %v8932
        %v10043 = vpack.c.b16 %v8943, %v8938
        %v10044 = vpack.c.b16 %v8944, %v8939
        %v10045 = vpack.c.b16 %v8945, %v8940
        %v10046 = vpack.c.b16 %v8946, %v8941
        %v10047 = vpack.c.b16 %v8947, %v8942
        %v10048 = vpack.c.b16 %v8953, %v8948
        %v10049 = vpack.c.b16 %v8954, %v8949
        %v10050 = vpack.c.b16 %v8955, %v8950
        %v10051 = vpack.c.b16 %v8956, %v8951
        %v10052 = vpack.c.b16 %v8957, %v8952
        %v10053 = vpack.c.b16 %v8963, %v8958
        %v10054 = vpack.c.b16 %v8964, %v8959
        %v10055 = vpack.c.b16 %v8965, %v8960
        %v10056 = vpack.c.b16 %v8966, %v8961
        %v10057 = vpack.c.b16 %v8967, %v8962
        %v10058 = vpack.c.b16 %v8973, %v8968
        %v10059 = vpack.c.b16 %v8974, %v8969
        %v10060 = vpack.c.b16 %v8975, %v8970
        %v10061 = vpack.c.b16 %v8976, %v8971
        %v10062 = vpack.c.b16 %v8977, %v8972
        %v10063 = vpack.c.b16 %v8983, %v8978
        %v10064 = vpack.c.b16 %v8984, %v8979
        %v10065 = vpack.c.b16 %v8985, %v8980
        %v10066 = vpack.c.b16 %v8986, %v8981
        %v10067 = vpack.c.b16 %v8987, %v8982
        %v10068 = vpack.c.b16 %v8993, %v8988
        %v10069 = vpack.c.b16 %v8994, %v8989
        %v10070 = vpack.c.b16 %v8995, %v8990
        %v10071 = vpack.c.b16 %v8996, %v8991
        %v10072 = vpack.c.b16 %v8997, %v8992
        %v10073 = vpack.c.b16 %v9003, %v8998
        %v10074 = vpack.c.b16 %v9004, %v8999
        %v10075 = vpack.c.b16 %v9005, %v9000
        %v10076 = vpack.c.b16 %v9006, %v9001
        %v10077 = vpack.c.b16 %v9007, %v9002
        %v10078 = vpack.c.b16 %v9013, %v9008
        %v10079 = vpack.c.b16 %v9014, %v9009
        %v10080 = vpack.c.b16 %v9015, %v9010
        %v10081 = vpack.c.b16 %v9016, %v9011
        %v10082 = vpack.c.b16 %v9017, %v9012
        %v10083 = vpack.c.b16 %v9023, %v9018
        %v10084 = vpack.c.b16 %v9024, %v9019
        %v10085 = vpack.c.b16 %v9025, %v9020
        %v10086 = vpack.c.b16 %v9026, %v9021
        %v10087 = vpack.c.b16 %v9027, %v9022
        %v10088 = vpack.c.b16 %v9033, %v9028
        %v10089 = vpack.c.b16 %v9034, %v9029
        %v10090 = vpack.c.b16 %v9035, %v9030
        %v10091 = vpack.c.b16 %v9036, %v9031
        %v10092 = vpack.c.b16 %v9037, %v9032
        %v10093 = vpack.c.b16 %v9043, %v9038
        %v10094 = vpack.c.b16 %v9044, %v9039
        %v10095 = vpack.c.b16 %v9045, %v9040
        %v10096 = vpack.c.b16 %v9046, %v9041
        %v10097 = vpack.c.b16 %v9047, %v9042
        %v10098 = vpack.c.b16 %v9053, %v9048
        %v10099 = vpack.c.b16 %v9054, %v9049
        %v10100 = vpack.c.b16 %v9055, %v9050
        %v10101 = vpack.c.b16 %v9056, %v9051
        %v10102 = vpack.c.b16 %v9057, %v9052
        %v10103 = vpack.c.b16 %v9063, %v9058
        %v10104 = vpack.c.b16 %v9064, %v9059
        %v10105 = vpack.c.b16 %v9065, %v9060
        %v10106 = vpack.c.b16 %v9066, %v9061
        %v10107 = vpack.c.b16 %v9067, %v9062
        %v10108 = vpack.c.b16 %v9073, %v9068
        %v10109 = vpack.c.b16 %v9074, %v9069
        %v10110 = vpack.c.b16 %v9075, %v9070
        %v10111 = vpack.c.b16 %v9076, %v9071
        %v10112 = vpack.c.b16 %v9077, %v9072
        %v10113 = vpack.c.b16 %v9083, %v9078
        %v10114 = vpack.c.b16 %v9084, %v9079
        %v10115 = vpack.c.b16 %v9085, %v9080
        %v10116 = vpack.c.b16 %v9086, %v9081
        %v10117 = vpack.c.b16 %v9087, %v9082
        %v10118 = vpack.c.b16 %v9093, %v9088
        %v10119 = vpack.c.b16 %v9094, %v9089
        %v10120 = vpack.c.b16 %v9095, %v9090
        %v10121 = vpack.c.b16 %v9096, %v9091
        %v10122 = vpack.c.b16 %v9097, %v9092
        %v10123 = vpack.c.b16 %v9103, %v9098
        %v10124 = vpack.c.b16 %v9104, %v9099
        %v10125 = vpack.c.b16 %v9105, %v9100
        %v10126 = vpack.c.b16 %v9106, %v9101
        %v10127 = vpack.c.b16 %v9107, %v9102
        %v10128 = vpack.c.b16 %v9113, %v9108
        %v10129 = vpack.c.b16 %v9114, %v9109
        %v10130 = vpack.c.b16 %v9115, %v9110
        %v10131 = vpack.c.b16 %v9116, %v9111
        %v10132 = vpack.c.b16 %v9117, %v9112
        %v10133 = vpack.c.b16 %v9123, %v9118
        %v10134 = vpack.c.b16 %v9124, %v9119
        %v10135 = vpack.c.b16 %v9125, %v9120
        %v10136 = vpack.c.b16 %v9126, %v9121
        %v10137 = vpack.c.b16 %v9127, %v9122
        %v10138 = vpack.c.b16 %v9133, %v9128
        %v10139 = vpack.c.b16 %v9134, %v9129
        %v10140 = vpack.c.b16 %v9135, %v9130
        %v10141 = vpack.c.b16 %v9136, %v9131
        %v10142 = vpack.c.b16 %v9137, %v9132
        %v10143 = vpack.c.b16 %v9143, %v9138
        %v10144 = vpack.c.b16 %v9144, %v9139
        %v10145 = vpack.c.b16 %v9145, %v9140
        %v10146 = vpack.c.b16 %v9146, %v9141
        %v10147 = vpack.c.b16 %v9147, %v9142
        %v10148 = vpack.c.b16 %v9153, %v9148
        %v10149 = vpack.c.b16 %v9154, %v9149
        %v10150 = vpack.c.b16 %v9155, %v9150
        %v10151 = vpack.c.b16 %v9156, %v9151
        %v10152 = vpack.c.b16 %v9157, %v9152
        %v10153 = vpack.c.b16 %v9163, %v9158
        %v10154 = vpack.c.b16 %v9164, %v9159
        %v10155 = vpack.c.b16 %v9165, %v9160
        %v10156 = vpack.c.b16 %v9166, %v9161
        %v10157 = vpack.c.b16 %v9167, %v9162
        %v10158 = vpack.c.b16 %v9173, %v9168
        %v10159 = vpack.c.b16 %v9174, %v9169
        %v10160 = vpack.c.b16 %v9175, %v9170
        %v10161 = vpack.c.b16 %v9176, %v9171
        %v10162 = vpack.c.b16 %v9177, %v9172
        %v10163 = vpack.c.b16 %v9183, %v9178
        %v10164 = vpack.c.b16 %v9184, %v9179
        %v10165 = vpack.c.b16 %v9185, %v9180
        %v10166 = vpack.c.b16 %v9186, %v9181
        %v10167 = vpack.c.b16 %v9187, %v9182
        %v10168 = vpack.c.b16 %v9193, %v9188
        %v10169 = vpack.c.b16 %v9194, %v9189
        %v10170 = vpack.c.b16 %v9195, %v9190
        %v10171 = vpack.c.b16 %v9196, %v9191
        %v10172 = vpack.c.b16 %v9197, %v9192
        %v10173 = vpack.c.b16 %v9203, %v9198
        %v10174 = vpack.c.b16 %v9204, %v9199
        %v10175 = vpack.c.b16 %v9205, %v9200
        %v10176 = vpack.c.b16 %v9206, %v9201
        %v10177 = vpack.c.b16 %v9207, %v9202
        %v10178 = vpack.c.b16 %v9213, %v9208
        %v10179 = vpack.c.b16 %v9214, %v9209
        %v10180 = vpack.c.b16 %v9215, %v9210
        %v10181 = vpack.c.b16 %v9216, %v9211
        %v10182 = vpack.c.b16 %v9217, %v9212
        %v10183 = vpack.c.b16 %v9223, %v9218
        %v10184 = vpack.c.b16 %v9224, %v9219
        %v10185 = vpack.c.b16 %v9225, %v9220
        %v10186 = vpack.c.b16 %v9226, %v9221
        %v10187 = vpack.c.b16 %v9227, %v9222
        %v10188 = vpack.c.b16 %v9233, %v9228
        %v10189 = vpack.c.b16 %v9234, %v9229
        %v10190 = vpack.c.b16 %v9235, %v9230
        %v10191 = vpack.c.b16 %v9236, %v9231
        %v10192 = vpack.c.b16 %v9237, %v9232
        %v10193 = vpack.c.b16 %v9243, %v9238
        %v10194 = vpack.c.b16 %v9244, %v9239
        %v10195 = vpack.c.b16 %v9245, %v9240
        %v10196 = vpack.c.b16 %v9246, %v9241
        %v10197 = vpack.c.b16 %v9247, %v9242
        %v10198 = vpack.c.b16 %v9253, %v9248
        %v10199 = vpack.c.b16 %v9254, %v9249
        %v10200 = vpack.c.b16 %v9255, %v9250
        %v10201 = vpack.c.b16 %v9256, %v9251
        %v10202 = vpack.c.b16 %v9257, %v9252
        %v10203 = vpack.c.b16 %v9263, %v9258
        %v10204 = vpack.c.b16 %v9264, %v9259
        %v10205 = vpack.c.b16 %v9265, %v9260
        %v10206 = vpack.c.b16 %v9266, %v9261
        %v10207 = vpack.c.b16 %v9267, %v9262
        %v10208 = vpack.c.b16 %v9273, %v9268
        %v10209 = vpack.c.b16 %v9274, %v9269
        %v10210 = vpack.c.b16 %v9275, %v9270
        %v10211 = vpack.c.b16 %v9276, %v9271
        %v10212 = vpack.c.b16 %v9277, %v9272
        %v10213 = vpack.c.b16 %v9283, %v9278
        %v10214 = vpack.c.b16 %v9284, %v9279
        %v10215 = vpack.c.b16 %v9285, %v9280
        %v10216 = vpack.c.b16 %v9286, %v9281
        %v10217 = vpack.c.b16 %v9287, %v9282
        %v10218 = vpack.c.b16 %v9293, %v9288
        %v10219 = vpack.c.b16 %v9294, %v9289
        %v10220 = vpack.c.b16 %v9295, %v9290
        %v10221 = vpack.c.b16 %v9296, %v9291
        %v10222 = vpack.c.b16 %v9297, %v9292
        %v10223 = vpack.c.b16 %v9303, %v9298
        %v10224 = vpack.c.b16 %v9304, %v9299
        %v10225 = vpack.c.b16 %v9305, %v9300
        %v10226 = vpack.c.b16 %v9306, %v9301
        %v10227 = vpack.c.b16 %v9307, %v9302
        %v10228 = vpack.c.b16 %v9313, %v9308
        %v10229 = vpack.c.b16 %v9314, %v9309
        %v10230 = vpack.c.b16 %v9315, %v9310
        %v10231 = vpack.c.b16 %v9316, %v9311
        %v10232 = vpack.c.b16 %v9317, %v9312
        %v10233 = vpack.c.b16 %v9323, %v9318
        %v10234 = vpack.c.b16 %v9324, %v9319
        %v10235 = vpack.c.b16 %v9325, %v9320
        %v10236 = vpack.c.b16 %v9326, %v9321
        %v10237 = vpack.c.b16 %v9327, %v9322
        %v10238 = vpack.c.b16 %v9333, %v9328
        %v10239 = vpack.c.b16 %v9334, %v9329
        %v10240 = vpack.c.b16 %v9335, %v9330
        %v10241 = vpack.c.b16 %v9336, %v9331
        %v10242 = vpack.c.b16 %v9337, %v9332
        %v10243 = vpack.c.b16 %v9343, %v9338
        %v10244 = vpack.c.b16 %v9344, %v9339
        %v10245 = vpack.c.b16 %v9345, %v9340
        %v10246 = vpack.c.b16 %v9346, %v9341
        %v10247 = vpack.c.b16 %v9347, %v9342
        %v10248 = vpack.c.b16 %v9353, %v9348
        %v10249 = vpack.c.b16 %v9354, %v9349
        %v10250 = vpack.c.b16 %v9355, %v9350
        %v10251 = vpack.c.b16 %v9356, %v9351
        %v10252 = vpack.c.b16 %v9357, %v9352
        %v10253 = vpack.c.b16 %v9363, %v9358
        %v10254 = vpack.c.b16 %v9364, %v9359
        %v10255 = vpack.c.b16 %v9365, %v9360
        %v10256 = vpack.c.b16 %v9366, %v9361
        %v10257 = vpack.c.b16 %v9367, %v9362
        %v10258 = vpack.c.b16 %v9373, %v9368
        %v10259 = vpack.c.b16 %v9374, %v9369
        %v10260 = vpack.c.b16 %v9375, %v9370
        %v10261 = vpack.c.b16 %v9376, %v9371
        %v10262 = vpack.c.b16 %v9377, %v9372
        %v10263 = vpack.c.b16 %v9383, %v9378
        %v10264 = vpack.c.b16 %v9384, %v9379
        %v10265 = vpack.c.b16 %v9385, %v9380
        %v10266 = vpack.c.b16 %v9386, %v9381
        %v10267 = vpack.c.b16 %v9387, %v9382
        %v10268 = vpack.c.b16 %v9393, %v9388
        %v10269 = vpack.c.b16 %v9394, %v9389
        %v10270 = vpack.c.b16 %v9395, %v9390
        %v10271 = vpack.c.b16 %v9396, %v9391
        %v10272 = vpack.c.b16 %v9397, %v9392
        %v10273 = vpack.c.b16 %v9403, %v9398
        %v10274 = vpack.c.b16 %v9404, %v9399
        %v10275 = vpack.c.b16 %v9405, %v9400
        %v10276 = vpack.c.b16 %v9406, %v9401
        %v10277 = vpack.c.b16 %v9407, %v9402
        %v10278 = vpack.c.b16 %v9413, %v9408
        %v10279 = vpack.c.b16 %v9414, %v9409
        %v10280 = vpack.c.b16 %v9415, %v9410
        %v10281 = vpack.c.b16 %v9416, %v9411
        %v10282 = vpack.c.b16 %v9417, %v9412
        %v10283 = vpack.c.b16 %v9423, %v9418
        %v10284 = vpack.c.b16 %v9424, %v9419
        %v10285 = vpack.c.b16 %v9425, %v9420
        %v10286 = vpack.c.b16 %v9426, %v9421
        %v10287 = vpack.c.b16 %v9427, %v9422
        %v10288 = vpack.c.b16 %v9433, %v9428
        %v10289 = vpack.c.b16 %v9434, %v9429
        %v10290 = vpack.c.b16 %v9435, %v9430
        %v10291 = vpack.c.b16 %v9436, %v9431
        %v10292 = vpack.c.b16 %v9437, %v9432
        %v10293 = vpack.c.b16 %v9443, %v9438
        %v10294 = vpack.c.b16 %v9444, %v9439
        %v10295 = vpack.c.b16 %v9445, %v9440
        %v10296 = vpack.c.b16 %v9446, %v9441
        %v10297 = vpack.c.b16 %v9447, %v9442
        %v10298 = vpack.c.b16 %v9453, %v9448
        %v10299 = vpack.c.b16 %v9454, %v9449
        %v10300 = vpack.c.b16 %v9455, %v9450
        %v10301 = vpack.c.b16 %v9456, %v9451
        %v10302 = vpack.c.b16 %v9457, %v9452
        %v10303 = vpack.c.b16 %v9463, %v9458
        %v10304 = vpack.c.b16 %v9464, %v9459
        %v10305 = vpack.c.b16 %v9465, %v9460
        %v10306 = vpack.c.b16 %v9466, %v9461
        %v10307 = vpack.c.b16 %v9467, %v9462
        %v10308 = vpack.c.b16 %v9473, %v9468
        %v10309 = vpack.c.b16 %v9474, %v9469
        %v10310 = vpack.c.b16 %v9475, %v9470
        %v10311 = vpack.c.b16 %v9476, %v9471
        %v10312 = vpack.c.b16 %v9477, %v9472
        %v10313 = vpack.c.b16 %v9483, %v9478
        %v10314 = vpack.c.b16 %v9484, %v9479
        %v10315 = vpack.c.b16 %v9485, %v9480
        %v10316 = vpack.c.b16 %v9486, %v9481
        %v10317 = vpack.c.b16 %v9487, %v9482
        %v10318 = vpack.c.b16 %v9493, %v9488
        %v10319 = vpack.c.b16 %v9494, %v9489
        %v10320 = vpack.c.b16 %v9495, %v9490
        %v10321 = vpack.c.b16 %v9496, %v9491
        %v10322 = vpack.c.b16 %v9497, %v9492
        %v10323 = vpack.c.b16 %v9503, %v9498
        %v10324 = vpack.c.b16 %v9504, %v9499
        %v10325 = vpack.c.b16 %v9505, %v9500
        %v10326 = vpack.c.b16 %v9506, %v9501
        %v10327 = vpack.c.b16 %v9507, %v9502
        %v10328 = vpack.c.b16 %v9513, %v9508
        %v10329 = vpack.c.b16 %v9514, %v9509
        %v10330 = vpack.c.b16 %v9515, %v9510
        %v10331 = vpack.c.b16 %v9516, %v9511
        %v10332 = vpack.c.b16 %v9517, %v9512
        %v10333 = vpack.c.b16 %v9523, %v9518
        %v10334 = vpack.c.b16 %v9524, %v9519
        %v10335 = vpack.c.b16 %v9525, %v9520
        %v10336 = vpack.c.b16 %v9526, %v9521
        %v10337 = vpack.c.b16 %v9527, %v9522
        %v10338 = vpack.c.b16 %v9533, %v9528
        %v10339 = vpack.c.b16 %v9534, %v9529
        %v10340 = vpack.c.b16 %v9535, %v9530
        %v10341 = vpack.c.b16 %v9536, %v9531
        %v10342 = vpack.c.b16 %v9537, %v9532
        %v10343 = vpack.c.b16 %v9543, %v9538
        %v10344 = vpack.c.b16 %v9544, %v9539
        %v10345 = vpack.c.b16 %v9545, %v9540
        %v10346 = vpack.c.b16 %v9546, %v9541
        %v10347 = vpack.c.b16 %v9547, %v9542
        %v10348 = vpack.c.b16 %v9553, %v9548
        %v10349 = vpack.c.b16 %v9554, %v9549
        %v10350 = vpack.c.b16 %v9555, %v9550
        %v10351 = vpack.c.b16 %v9556, %v9551
        %v10352 = vpack.c.b16 %v9557, %v9552
        %v10353 = vpack.c.b16 %v9563, %v9558
        %v10354 = vpack.c.b16 %v9564, %v9559
        %v10355 = vpack.c.b16 %v9565, %v9560
        %v10356 = vpack.c.b16 %v9566, %v9561
        %v10357 = vpack.c.b16 %v9567, %v9562
        %v10358 = vpack.c.b16 %v9573, %v9568
        %v10359 = vpack.c.b16 %v9574, %v9569
        %v10360 = vpack.c.b16 %v9575, %v9570
        %v10361 = vpack.c.b16 %v9576, %v9571
        %v10362 = vpack.c.b16 %v9577, %v9572
        %v10363 = vpack.c.b16 %v9583, %v9578
        %v10364 = vpack.c.b16 %v9584, %v9579
        %v10365 = vpack.c.b16 %v9585, %v9580
        %v10366 = vpack.c.b16 %v9586, %v9581
        %v10367 = vpack.c.b16 %v9587, %v9582
        %v10368 = vpack.c.b16 %v9593, %v9588
        %v10369 = vpack.c.b16 %v9594, %v9589
        %v10370 = vpack.c.b16 %v9595, %v9590
        %v10371 = vpack.c.b16 %v9596, %v9591
        %v10372 = vpack.c.b16 %v9597, %v9592
        %v10373 = vpack.c.b16 %v9603, %v9598
        %v10374 = vpack.c.b16 %v9604, %v9599
        %v10375 = vpack.c.b16 %v9605, %v9600
        %v10376 = vpack.c.b16 %v9606, %v9601
        %v10377 = vpack.c.b16 %v9607, %v9602
        %v10378 = vpack.c.b16 %v9613, %v9608
        %v10379 = vpack.c.b16 %v9614, %v9609
        %v10380 = vpack.c.b16 %v9615, %v9610
        %v10381 = vpack.c.b16 %v9616, %v9611
        %v10382 = vpack.c.b16 %v9617, %v9612
        %v10383 = vpack.c.b16 %v9623, %v9618
        %v10384 = vpack.c.b16 %v9624, %v9619
        %v10385 = vpack.c.b16 %v9625, %v9620
        %v10386 = vpack.c.b16 %v9626, %v9621
        %v10387 = vpack.c.b16 %v9627, %v9622
        %v10388 = vpack.c.b16 %v9633, %v9628
        %v10389 = vpack.c.b16 %v9634, %v9629
        %v10390 = vpack.c.b16 %v9635, %v9630
        %v10391 = vpack.c.b16 %v9636, %v9631
        %v10392 = vpack.c.b16 %v9637, %v9632
        %v10393 = vpack.c.b16 %v9643, %v9638
        %v10394 = vpack.c.b16 %v9644, %v9639
        %v10395 = vpack.c.b16 %v9645, %v9640
        %v10396 = vpack.c.b16 %v9646, %v9641
        %v10397 = vpack.c.b16 %v9647, %v9642
        %v10398 = vpack.c.b16 %v9653, %v9648
        %v10399 = vpack.c.b16 %v9654, %v9649
        %v10400 = vpack.c.b16 %v9655, %v9650
        %v10401 = vpack.c.b16 %v9656, %v9651
        %v10402 = vpack.c.b16 %v9657, %v9652
        %v10403 = vpack.c.b16 %v9663, %v9658
        %v10404 = vpack.c.b16 %v9664, %v9659
        %v10405 = vpack.c.b16 %v9665, %v9660
        %v10406 = vpack.c.b16 %v9666, %v9661
        %v10407 = vpack.c.b16 %v9667, %v9662
        %v10408 = vpack.c.b16 %v9673, %v9668
        %v10409 = vpack.c.b16 %v9674, %v9669
        %v10410 = vpack.c.b16 %v9675, %v9670
        %v10411 = vpack.c.b16 %v9676, %v9671
        %v10412 = vpack.c.b16 %v9677, %v9672
        %v10413 = vpack.c.b16 %v9683, %v9678
        %v10414 = vpack.c.b16 %v9684, %v9679
        %v10415 = vpack.c.b16 %v9685, %v9680
        %v10416 = vpack.c.b16 %v9686, %v9681
        %v10417 = vpack.c.b16 %v9687, %v9682
        %v10418 = vpack.c.b16 %v9693, %v9688
        %v10419 = vpack.c.b16 %v9694, %v9689
        %v10420 = vpack.c.b16 %v9695, %v9690
        %v10421 = vpack.c.b16 %v9696, %v9691
        %v10422 = vpack.c.b16 %v9697, %v9692
        %v10423 = vpack.c.b16 %v9703, %v9698
        %v10424 = vpack.c.b16 %v9704, %v9699
        %v10425 = vpack.c.b16 %v9705, %v9700
        %v10426 = vpack.c.b16 %v9706, %v9701
        %v10427 = vpack.c.b16 %v9707, %v9702
        %v10428 = vpack.c.b16 %v9713, %v9708
        %v10429 = vpack.c.b16 %v9714, %v9709
        %v10430 = vpack.c.b16 %v9715, %v9710
        %v10431 = vpack.c.b16 %v9716, %v9711
        %v10432 = vpack.c.b16 %v9717, %v9712
        %v10433 = vpack.c.b16 %v9723, %v9718
        %v10434 = vpack.c.b16 %v9724, %v9719
        %v10435 = vpack.c.b16 %v9725, %v9720
        %v10436 = vpack.c.b16 %v9726, %v9721
        %v10437 = vpack.c.b16 %v9727, %v9722
        %v10438 = vpack.c.b16 %v9733, %v9728
        %v10439 = vpack.c.b16 %v9734, %v9729
        %v10440 = vpack.c.b16 %v9735, %v9730
        %v10441 = vpack.c.b16 %v9736, %v9731
        %v10442 = vpack.c.b16 %v9737, %v9732
        %v10443 = vpack.c.b16 %v9743, %v9738
        %v10444 = vpack.c.b16 %v9744, %v9739
        %v10445 = vpack.c.b16 %v9745, %v9740
        %v10446 = vpack.c.b16 %v9746, %v9741
        %v10447 = vpack.c.b16 %v9747, %v9742
        %v10448 = vpack.c.b16 %v9753, %v9748
        %v10449 = vpack.c.b16 %v9754, %v9749
        %v10450 = vpack.c.b16 %v9755, %v9750
        %v10451 = vpack.c.b16 %v9756, %v9751
        %v10452 = vpack.c.b16 %v9757, %v9752
        %v10453 = vpack.c.b16 %v9763, %v9758
        %v10454 = vpack.c.b16 %v9764, %v9759
        %v10455 = vpack.c.b16 %v9765, %v9760
        %v10456 = vpack.c.b16 %v9766, %v9761
        %v10457 = vpack.c.b16 %v9767, %v9762
        %v10458 = vpack.c.b16 %v9773, %v9768
        %v10459 = vpack.c.b16 %v9774, %v9769
        %v10460 = vpack.c.b16 %v9775, %v9770
        %v10461 = vpack.c.b16 %v9776, %v9771
        %v10462 = vpack.c.b16 %v9777, %v9772
        %v10463 = vpack.c.b16 %v9783, %v9778
        %v10464 = vpack.c.b16 %v9784, %v9779
        %v10465 = vpack.c.b16 %v9785, %v9780
        %v10466 = vpack.c.b16 %v9786, %v9781
        %v10467 = vpack.c.b16 %v9787, %v9782
        %v10468 = vpack.c.b16 %v9793, %v9788
        %v10469 = vpack.c.b16 %v9794, %v9789
        %v10470 = vpack.c.b16 %v9795, %v9790
        %v10471 = vpack.c.b16 %v9796, %v9791
        %v10472 = vpack.c.b16 %v9797, %v9792
        %v10473 = vpack.c.b16 %v9803, %v9798
        %v10474 = vpack.c.b16 %v9804, %v9799
        %v10475 = vpack.c.b16 %v9805, %v9800
        %v10476 = vpack.c.b16 %v9806, %v9801
        %v10477 = vpack.c.b16 %v9807, %v9802
        %v10478 = vpack.c.b16 %v9813, %v9808
        %v10479 = vpack.c.b16 %v9814, %v9809
        %v10480 = vpack.c.b16 %v9815, %v9810
        %v10481 = vpack.c.b16 %v9816, %v9811
        %v10482 = vpack.c.b16 %v9817, %v9812
        %v10483 = vpack.c.b16 %v9823, %v9818
        %v10484 = vpack.c.b16 %v9824, %v9819
        %v10485 = vpack.c.b16 %v9825, %v9820
        %v10486 = vpack.c.b16 %v9826, %v9821
        %v10487 = vpack.c.b16 %v9827, %v9822
        %v10488 = vpack.c.b16 %v9833, %v9828
        %v10489 = vpack.c.b16 %v9834, %v9829
        %v10490 = vpack.c.b16 %v9835, %v9830
        %v10491 = vpack.c.b16 %v9836, %v9831
        %v10492 = vpack.c.b16 %v9837, %v9832
        %v10493 = vpack.c.b16 %v9843, %v9838
        %v10494 = vpack.c.b16 %v9844, %v9839
        %v10495 = vpack.c.b16 %v9845, %v9840
        %v10496 = vpack.c.b16 %v9846, %v9841
        %v10497 = vpack.c.b16 %v9847, %v9842
        %v10498 = vpack.c.b16 %v9853, %v9848
        %v10499 = vpack.c.b16 %v9854, %v9849
        %v10500 = vpack.c.b16 %v9855, %v9850
        %v10501 = vpack.c.b16 %v9856, %v9851
        %v10502 = vpack.c.b16 %v9857, %v9852
        %v10503 = vpack.c.b16 %v9863, %v9858
        %v10504 = vpack.c.b16 %v9864, %v9859
        %v10505 = vpack.c.b16 %v9865, %v9860
        %v10506 = vpack.c.b16 %v9866, %v9861
        %v10507 = vpack.c.b16 %v9867, %v9862
        %v11149 = vlaneseq
        %v11150 = vshrl.u32 %v11149, 7
        %v11151 = vsub.s32 0, %v11150
        %v11152 = vrot.slane %v7819, %v11151
        %v11153 = vlaneseq
        %v11154 = vshrl.u32 %v11153, 7
        %v11155 = vsub.s32 1, %v11154
        %v11156 = vrot.slane %v7819, %v11155
        %v11157 = vlaneseq
        %v11158 = vshrl.u32 %v11157, 7
        %v11159 = vsub.s32 2, %v11158
        %v11160 = vrot.slane %v7819, %v11159
        %v11161 = vlaneseq
        %v11162 = vshrl.u32 %v11161, 7
        %v11163 = vsub.s32 3, %v11162
        %v11164 = vrot.slane %v7819, %v11163
        %v11165 = vlaneseq
        %v11166 = vshrl.u32 %v11165, 7
        %v11167 = vsub.s32 4, %v11166
        %v11168 = vrot.slane %v7819, %v11167
        %11174 = vmatprep.subr.bf16.mxu0 %v9869
        %11175 = vmatpush1.bf16.msra.mxu0 %v9868
        %11176 = vmatprep.subr.bf16.mxu0 %v9874
        %11177 = vmatpush1.bf16.msra.mxu0 %v9873
        %11178 = vmatprep.subr.bf16.mxu0 %v9879
        %11179 = vmatpush1.bf16.msra.mxu0 %v9878
        %11180 = vmatprep.subr.bf16.mxu0 %v9884
        %11181 = vmatpush1.bf16.msra.mxu0 %v9883
        %11182 = vmatprep.subr.bf16.mxu0 %v9889
        %11183 = vmatpush1.bf16.msra.mxu0 %v9888
        %11184 = vmatprep.subr.bf16.mxu0 %v9894
        %11185 = vmatpush1.bf16.msra.mxu0 %v9893
        %11186 = vmatprep.subr.bf16.mxu0 %v9899
        %11187 = vmatpush1.bf16.msra.mxu0 %v9898
        %11188 = vmatprep.subr.bf16.mxu0 %v9904
        %11189 = vmatpush1.bf16.msra.mxu0 %v9903
        %11190 = vmatprep.subr.bf16.mxu0 %v9909
        %11191 = vmatpush1.bf16.msra.mxu0 %v9908
        %11192 = vmatprep.subr.bf16.mxu0 %v9914
        %11193 = vmatpush1.bf16.msra.mxu0 %v9913
        %11194 = vmatprep.subr.bf16.mxu0 %v9919
        %11195 = vmatpush1.bf16.msra.mxu0 %v9918
        %11196 = vmatprep.subr.bf16.mxu0 %v9924
        %11197 = vmatpush1.bf16.msra.mxu0 %v9923
        %11198 = vmatprep.subr.bf16.mxu0 %v9929
        %11199 = vmatpush1.bf16.msra.mxu0 %v9928
        %11200 = vmatprep.subr.bf16.mxu0 %v9934
        %11201 = vmatpush1.bf16.msra.mxu0 %v9933
        %11202 = vmatprep.subr.bf16.mxu0 %v9939
        %11203 = vmatpush1.bf16.msra.mxu0 %v9938
        %11204 = vmatprep.subr.bf16.mxu0 %v9944
        %11205 = vmatpush1.bf16.msra.mxu0 %v9943
        %11206 = vmatprep.mubr.bf16.mxu0 %v7036
        %11207 = vmatmul.mubr.bf16.gmra.mrb[0].mxu0 %v7035
        %v11208 = vpop.f32.mrb[0].mxu0
        %v11209 = vadd.f32 %v11152, %v11208
        %v11210 = vpop.f32.mrb[0].mxu0
        %v11211 = vadd.f32 %v11156, %v11210
        %v11212 = vpop.f32.mrb[0].mxu0
        %v11213 = vpop.f32.mrb[0].mxu0
        %11214 = vdwg.mxu0
        %11215 = vmatprep.subr.bf16.mxu0 %v9949
        %11216 = vmatpush1.bf16.msra.mxu0 %v9948
        %11217 = vmatprep.subr.bf16.mxu0 %v9954
        %11218 = vmatpush1.bf16.msra.mxu0 %v9953
        %11219 = vmatprep.subr.bf16.mxu0 %v9959
        %11220 = vmatpush1.bf16.msra.mxu0 %v9958
        %11221 = vmatprep.subr.bf16.mxu0 %v9964
        %11222 = vmatpush1.bf16.msra.mxu0 %v9963
        %11223 = vmatprep.subr.bf16.mxu0 %v9969
        %11224 = vmatpush1.bf16.msra.mxu0 %v9968
        %11225 = vmatprep.subr.bf16.mxu0 %v9974
        %11226 = vmatpush1.bf16.msra.mxu0 %v9973
        %11227 = vmatprep.subr.bf16.mxu0 %v9979
        %11228 = vmatpush1.bf16.msra.mxu0 %v9978
        %11229 = vmatprep.subr.bf16.mxu0 %v9984
        %11230 = vmatpush1.bf16.msra.mxu0 %v9983
        %11231 = vmatprep.subr.bf16.mxu0 %v9989
        %11232 = vmatpush1.bf16.msra.mxu0 %v9988
        %11233 = vmatprep.subr.bf16.mxu0 %v9994
        %11234 = vmatpush1.bf16.msra.mxu0 %v9993
        %11235 = vmatprep.subr.bf16.mxu0 %v9999
        %11236 = vmatpush1.bf16.msra.mxu0 %v9998
        %11237 = vmatprep.subr.bf16.mxu0 %v10004
        %11238 = vmatpush1.bf16.msra.mxu0 %v10003
        %11239 = vmatprep.subr.bf16.mxu0 %v10009
        %11240 = vmatpush1.bf16.msra.mxu0 %v10008
        %11241 = vmatprep.subr.bf16.mxu0 %v10014
        %11242 = vmatpush1.bf16.msra.mxu0 %v10013
        %11243 = vmatprep.subr.bf16.mxu0 %v10019
        %11244 = vmatpush1.bf16.msra.mxu0 %v10018
        %11245 = vmatprep.subr.bf16.mxu0 %v10024
        %11246 = vmatpush1.bf16.msra.mxu0 %v10023
        %11247 = vmatprep.mubr.bf16.mxu0 %v7038
        %11248 = vmatmul.mubr.bf16.gmra.mrb[0].mxu0 %v7037
        %v11249 = vpop.f32.mrb[0].mxu0
        %v11250 = vadd.f32 %v11209, %v11249
        %v11251 = vpop.f32.mrb[0].mxu0
        %v11252 = vadd.f32 %v11211, %v11251
        %v11253 = vpop.f32.mrb[0].mxu0
        %v11254 = vpop.f32.mrb[0].mxu0
        %11255 = vdwg.mxu0
        %11256 = vmatprep.subr.bf16.mxu0 %v10029
        %11257 = vmatpush1.bf16.msra.mxu0 %v10028
        %11258 = vmatprep.subr.bf16.mxu0 %v10034
        %11259 = vmatpush1.bf16.msra.mxu0 %v10033
        %11260 = vmatprep.subr.bf16.mxu0 %v10039
        %11261 = vmatpush1.bf16.msra.mxu0 %v10038
        %11262 = vmatprep.subr.bf16.mxu0 %v10044
        %11263 = vmatpush1.bf16.msra.mxu0 %v10043
        %11264 = vmatprep.subr.bf16.mxu0 %v10049
        %11265 = vmatpush1.bf16.msra.mxu0 %v10048
        %11266 = vmatprep.subr.bf16.mxu0 %v10054
        %11267 = vmatpush1.bf16.msra.mxu0 %v10053
        %11268 = vmatprep.subr.bf16.mxu0 %v10059
        %11269 = vmatpush1.bf16.msra.mxu0 %v10058
        %11270 = vmatprep.subr.bf16.mxu0 %v10064
        %11271 = vmatpush1.bf16.msra.mxu0 %v10063
        %11272 = vmatprep.subr.bf16.mxu0 %v10069
        %11273 = vmatpush1.bf16.msra.mxu0 %v10068
        %11274 = vmatprep.subr.bf16.mxu0 %v10074
        %11275 = vmatpush1.bf16.msra.mxu0 %v10073
        %11276 = vmatprep.subr.bf16.mxu0 %v10079
        %11277 = vmatpush1.bf16.msra.mxu0 %v10078
        %11278 = vmatprep.subr.bf16.mxu0 %v10084
        %11279 = vmatpush1.bf16.msra.mxu0 %v10083
        %11280 = vmatprep.subr.bf16.mxu0 %v10089
        %11281 = vmatpush1.bf16.msra.mxu0 %v10088
        %11282 = vmatprep.subr.bf16.mxu0 %v10094
        %11283 = vmatpush1.bf16.msra.mxu0 %v10093
        %11284 = vmatprep.subr.bf16.mxu0 %v10099
        %11285 = vmatpush1.bf16.msra.mxu0 %v10098
        %11286 = vmatprep.subr.bf16.mxu0 %v10104
        %11287 = vmatpush1.bf16.msra.mxu0 %v10103
        %11288 = vmatprep.mubr.bf16.mxu0 %v7040
        %11289 = vmatmul.mubr.bf16.gmra.mrb[0].mxu0 %v7039
        %v11290 = vpop.f32.mrb[0].mxu0
        %v11291 = vadd.f32 %v11250, %v11290
        %v11292 = vpop.f32.mrb[0].mxu0
        %v11293 = vadd.f32 %v11252, %v11292
        %v11294 = vpop.f32.mrb[0].mxu0
        %v11295 = vpop.f32.mrb[0].mxu0
        %11296 = vdwg.mxu0
        %11297 = vmatprep.subr.bf16.mxu0 %v10109
        %11298 = vmatpush1.bf16.msra.mxu0 %v10108
        %11299 = vmatprep.subr.bf16.mxu0 %v10114
        %11300 = vmatpush1.bf16.msra.mxu0 %v10113
        %11301 = vmatprep.subr.bf16.mxu0 %v10119
        %11302 = vmatpush1.bf16.msra.mxu0 %v10118
        %11303 = vmatprep.subr.bf16.mxu0 %v10124
        %11304 = vmatpush1.bf16.msra.mxu0 %v10123
        %11305 = vmatprep.subr.bf16.mxu0 %v10129
        %11306 = vmatpush1.bf16.msra.mxu0 %v10128
        %11307 = vmatprep.subr.bf16.mxu0 %v10134
        %11308 = vmatpush1.bf16.msra.mxu0 %v10133
        %11309 = vmatprep.subr.bf16.mxu0 %v10139
        %11310 = vmatpush1.bf16.msra.mxu0 %v10138
        %11311 = vmatprep.subr.bf16.mxu0 %v10144
        %11312 = vmatpush1.bf16.msra.mxu0 %v10143
        %11313 = vmatprep.subr.bf16.mxu0 %v10149
        %11314 = vmatpush1.bf16.msra.mxu0 %v10148
        %11315 = vmatprep.subr.bf16.mxu0 %v10154
        %11316 = vmatpush1.bf16.msra.mxu0 %v10153
        %11317 = vmatprep.subr.bf16.mxu0 %v10159
        %11318 = vmatpush1.bf16.msra.mxu0 %v10158
        %11319 = vmatprep.subr.bf16.mxu0 %v10164
        %11320 = vmatpush1.bf16.msra.mxu0 %v10163
        %11321 = vmatprep.subr.bf16.mxu0 %v10169
        %11322 = vmatpush1.bf16.msra.mxu0 %v10168
        %11323 = vmatprep.subr.bf16.mxu0 %v10174
        %11324 = vmatpush1.bf16.msra.mxu0 %v10173
        %11325 = vmatprep.subr.bf16.mxu0 %v10179
        %11326 = vmatpush1.bf16.msra.mxu0 %v10178
        %11327 = vmatprep.subr.bf16.mxu0 %v10184
        %11328 = vmatpush1.bf16.msra.mxu0 %v10183
        %11329 = vmatprep.mubr.bf16.mxu0 %v7042
        %11330 = vmatmul.mubr.bf16.gmra.mrb[0].mxu0 %v7041
        %v11331 = vpop.f32.mrb[0].mxu0
        %v11332 = vadd.f32 %v11291, %v11331
        %v11333 = vpop.f32.mrb[0].mxu0
        %v11334 = vadd.f32 %v11293, %v11333
        %v11335 = vpop.f32.mrb[0].mxu0
        %v11336 = vpop.f32.mrb[0].mxu0
        %11337 = vdwg.mxu0
        %11338 = vmatprep.subr.bf16.mxu0 %v10189
        %11339 = vmatpush1.bf16.msra.mxu0 %v10188
        %11340 = vmatprep.subr.bf16.mxu0 %v10194
        %11341 = vmatpush1.bf16.msra.mxu0 %v10193
        %11342 = vmatprep.subr.bf16.mxu0 %v10199
        %11343 = vmatpush1.bf16.msra.mxu0 %v10198
        %11344 = vmatprep.subr.bf16.mxu0 %v10204
        %11345 = vmatpush1.bf16.msra.mxu0 %v10203
        %11346 = vmatprep.subr.bf16.mxu0 %v10209
        %11347 = vmatpush1.bf16.msra.mxu0 %v10208
        %11348 = vmatprep.subr.bf16.mxu0 %v10214
        %11349 = vmatpush1.bf16.msra.mxu0 %v10213
        %11350 = vmatprep.subr.bf16.mxu0 %v10219
        %11351 = vmatpush1.bf16.msra.mxu0 %v10218
        %11352 = vmatprep.subr.bf16.mxu0 %v10224
        %11353 = vmatpush1.bf16.msra.mxu0 %v10223
        %11354 = vmatprep.subr.bf16.mxu0 %v10229
        %11355 = vmatpush1.bf16.msra.mxu0 %v10228
        %11356 = vmatprep.subr.bf16.mxu0 %v10234
        %11357 = vmatpush1.bf16.msra.mxu0 %v10233
        %11358 = vmatprep.subr.bf16.mxu0 %v10239
        %11359 = vmatpush1.bf16.msra.mxu0 %v10238
        %11360 = vmatprep.subr.bf16.mxu0 %v10244
        %11361 = vmatpush1.bf16.msra.mxu0 %v10243
        %11362 = vmatprep.subr.bf16.mxu0 %v10249
        %11363 = vmatpush1.bf16.msra.mxu0 %v10248
        %11364 = vmatprep.subr.bf16.mxu0 %v10254
        %11365 = vmatpush1.bf16.msra.mxu0 %v10253
        %11366 = vmatprep.subr.bf16.mxu0 %v10259
        %11367 = vmatpush1.bf16.msra.mxu0 %v10258
        %11368 = vmatprep.subr.bf16.mxu0 %v10264
        %11369 = vmatpush1.bf16.msra.mxu0 %v10263
        %11370 = vmatprep.mubr.bf16.mxu0 %v7044
        %11371 = vmatmul.mubr.bf16.gmra.mrb[0].mxu0 %v7043
        %v11372 = vpop.f32.mrb[0].mxu0
        %v11373 = vadd.f32 %v11332, %v11372
        %v11374 = vpop.f32.mrb[0].mxu0
        %v11375 = vadd.f32 %v11334, %v11374
        %v11376 = vpop.f32.mrb[0].mxu0
        %v11377 = vpop.f32.mrb[0].mxu0
        %11378 = vdwg.mxu0
        %11379 = vmatprep.subr.bf16.mxu0 %v10269
        %11380 = vmatpush1.bf16.msra.mxu0 %v10268
        %11381 = vmatprep.subr.bf16.mxu0 %v10274
        %11382 = vmatpush1.bf16.msra.mxu0 %v10273
        %11383 = vmatprep.subr.bf16.mxu0 %v10279
        %11384 = vmatpush1.bf16.msra.mxu0 %v10278
        %11385 = vmatprep.subr.bf16.mxu0 %v10284
        %11386 = vmatpush1.bf16.msra.mxu0 %v10283
        %11387 = vmatprep.subr.bf16.mxu0 %v10289
        %11388 = vmatpush1.bf16.msra.mxu0 %v10288
        %11389 = vmatprep.subr.bf16.mxu0 %v10294
        %11390 = vmatpush1.bf16.msra.mxu0 %v10293
        %11391 = vmatprep.subr.bf16.mxu0 %v10299
        %11392 = vmatpush1.bf16.msra.mxu0 %v10298
        %11393 = vmatprep.subr.bf16.mxu0 %v10304
        %11394 = vmatpush1.bf16.msra.mxu0 %v10303
        %11395 = vmatprep.subr.bf16.mxu0 %v10309
        %11396 = vmatpush1.bf16.msra.mxu0 %v10308
        %11397 = vmatprep.subr.bf16.mxu0 %v10314
        %11398 = vmatpush1.bf16.msra.mxu0 %v10313
        %11399 = vmatprep.subr.bf16.mxu0 %v10319
        %11400 = vmatpush1.bf16.msra.mxu0 %v10318
        %11401 = vmatprep.subr.bf16.mxu0 %v10324
        %11402 = vmatpush1.bf16.msra.mxu0 %v10323
        %11403 = vmatprep.subr.bf16.mxu0 %v10329
        %11404 = vmatpush1.bf16.msra.mxu0 %v10328
        %11405 = vmatprep.subr.bf16.mxu0 %v10334
        %11406 = vmatpush1.bf16.msra.mxu0 %v10333
        %11407 = vmatprep.subr.bf16.mxu0 %v10339
        %11408 = vmatpush1.bf16.msra.mxu0 %v10338
        %11409 = vmatprep.subr.bf16.mxu0 %v10344
        %11410 = vmatpush1.bf16.msra.mxu0 %v10343
        %11411 = vmatprep.mubr.bf16.mxu0 %v7046
        %11412 = vmatmul.mubr.bf16.gmra.mrb[0].mxu0 %v7045
        %v11413 = vpop.f32.mrb[0].mxu0
        %v11414 = vadd.f32 %v11373, %v11413
        %v11415 = vpop.f32.mrb[0].mxu0
        %v11416 = vadd.f32 %v11375, %v11415
        %v11417 = vpop.f32.mrb[0].mxu0
        %v11418 = vpop.f32.mrb[0].mxu0
        %11419 = vdwg.mxu0
        %11420 = vmatprep.subr.bf16.mxu0 %v10349
        %11421 = vmatpush1.bf16.msra.mxu0 %v10348
        %11422 = vmatprep.subr.bf16.mxu0 %v10354
        %11423 = vmatpush1.bf16.msra.mxu0 %v10353
        %11424 = vmatprep.subr.bf16.mxu0 %v10359
        %11425 = vmatpush1.bf16.msra.mxu0 %v10358
        %11426 = vmatprep.subr.bf16.mxu0 %v10364
        %11427 = vmatpush1.bf16.msra.mxu0 %v10363
        %11428 = vmatprep.subr.bf16.mxu0 %v10369
        %11429 = vmatpush1.bf16.msra.mxu0 %v10368
        %11430 = vmatprep.subr.bf16.mxu0 %v10374
        %11431 = vmatpush1.bf16.msra.mxu0 %v10373
        %11432 = vmatprep.subr.bf16.mxu0 %v10379
        %11433 = vmatpush1.bf16.msra.mxu0 %v10378
        %11434 = vmatprep.subr.bf16.mxu0 %v10384
        %11435 = vmatpush1.bf16.msra.mxu0 %v10383
        %11436 = vmatprep.subr.bf16.mxu0 %v10389
        %11437 = vmatpush1.bf16.msra.mxu0 %v10388
        %11438 = vmatprep.subr.bf16.mxu0 %v10394
        %11439 = vmatpush1.bf16.msra.mxu0 %v10393
        %11440 = vmatprep.subr.bf16.mxu0 %v10399
        %11441 = vmatpush1.bf16.msra.mxu0 %v10398
        %11442 = vmatprep.subr.bf16.mxu0 %v10404
        %11443 = vmatpush1.bf16.msra.mxu0 %v10403
        %11444 = vmatprep.subr.bf16.mxu0 %v10409
        %11445 = vmatpush1.bf16.msra.mxu0 %v10408
        %11446 = vmatprep.subr.bf16.mxu0 %v10414
        %11447 = vmatpush1.bf16.msra.mxu0 %v10413
        %11448 = vmatprep.subr.bf16.mxu0 %v10419
        %11449 = vmatpush1.bf16.msra.mxu0 %v10418
        %11450 = vmatprep.subr.bf16.mxu0 %v10424
        %11451 = vmatpush1.bf16.msra.mxu0 %v10423
        %11452 = vmatprep.mubr.bf16.mxu0 %v7048
        %11453 = vmatmul.mubr.bf16.gmra.mrb[0].mxu0 %v7047
        %v11454 = vpop.f32.mrb[0].mxu0
        %v11455 = vadd.f32 %v11414, %v11454
        %v11456 = vpop.f32.mrb[0].mxu0
        %v11457 = vadd.f32 %v11416, %v11456
        %v11458 = vpop.f32.mrb[0].mxu0
        %v11459 = vpop.f32.mrb[0].mxu0
        %11460 = vdwg.mxu0
        %11461 = vmatprep.subr.bf16.mxu0 %v10429
        %11462 = vmatpush1.bf16.msra.mxu0 %v10428
        %11463 = vmatprep.subr.bf16.mxu0 %v10434
        %11464 = vmatpush1.bf16.msra.mxu0 %v10433
        %11465 = vmatprep.subr.bf16.mxu0 %v10439
        %11466 = vmatpush1.bf16.msra.mxu0 %v10438
        %11467 = vmatprep.subr.bf16.mxu0 %v10444
        %11468 = vmatpush1.bf16.msra.mxu0 %v10443
        %11469 = vmatprep.subr.bf16.mxu0 %v10449
        %11470 = vmatpush1.bf16.msra.mxu0 %v10448
        %11471 = vmatprep.subr.bf16.mxu0 %v10454
        %11472 = vmatpush1.bf16.msra.mxu0 %v10453
        %11473 = vmatprep.subr.bf16.mxu0 %v10459
        %11474 = vmatpush1.bf16.msra.mxu0 %v10458
        %11475 = vmatprep.subr.bf16.mxu0 %v10464
        %11476 = vmatpush1.bf16.msra.mxu0 %v10463
        %11477 = vmatprep.subr.bf16.mxu0 %v10469
        %11478 = vmatpush1.bf16.msra.mxu0 %v10468
        %11479 = vmatprep.subr.bf16.mxu0 %v10474
        %11480 = vmatpush1.bf16.msra.mxu0 %v10473
        %11481 = vmatprep.subr.bf16.mxu0 %v10479
        %11482 = vmatpush1.bf16.msra.mxu0 %v10478
        %11483 = vmatprep.subr.bf16.mxu0 %v10484
        %11484 = vmatpush1.bf16.msra.mxu0 %v10483
        %11485 = vmatprep.subr.bf16.mxu0 %v10489
        %11486 = vmatpush1.bf16.msra.mxu0 %v10488
        %11487 = vmatprep.subr.bf16.mxu0 %v10494
        %11488 = vmatpush1.bf16.msra.mxu0 %v10493
        %11489 = vmatprep.subr.bf16.mxu0 %v10499
        %11490 = vmatpush1.bf16.msra.mxu0 %v10498
        %11491 = vmatprep.subr.bf16.mxu0 %v10504
        %11492 = vmatpush1.bf16.msra.mxu0 %v10503
        %11493 = vmatprep.mubr.bf16.mxu0 %v7050
        %11494 = vmatmul.mubr.bf16.gmra.mrb[0].mxu0 %v7049
        %v11495 = vpop.f32.mrb[0].mxu0
        %v11496 = vadd.f32 %v11455, %v11495
        %v11497 = vpop.f32.mrb[0].mxu0
        %v11498 = vadd.f32 %v11457, %v11497
        %v11499 = vpop.f32.mrb[0].mxu0
        %v11500 = vpop.f32.mrb[0].mxu0
        %11501 = vdwg.mxu0
        %11502 = vmatprep.subr.bf16.mxu0 %v9871
        %11503 = vmatpush1.bf16.msra.mxu0 %v9870
        %11504 = vmatprep.subr.bf16.mxu0 %v9876
        %11505 = vmatpush1.bf16.msra.mxu0 %v9875
        %11506 = vmatprep.subr.bf16.mxu0 %v9881
        %11507 = vmatpush1.bf16.msra.mxu0 %v9880
        %11508 = vmatprep.subr.bf16.mxu0 %v9886
        %11509 = vmatpush1.bf16.msra.mxu0 %v9885
        %11510 = vmatprep.subr.bf16.mxu0 %v9891
        %11511 = vmatpush1.bf16.msra.mxu0 %v9890
        %11512 = vmatprep.subr.bf16.mxu0 %v9896
        %11513 = vmatpush1.bf16.msra.mxu0 %v9895
        %11514 = vmatprep.subr.bf16.mxu0 %v9901
        %11515 = vmatpush1.bf16.msra.mxu0 %v9900
        %11516 = vmatprep.subr.bf16.mxu0 %v9906
        %11517 = vmatpush1.bf16.msra.mxu0 %v9905
        %11518 = vmatprep.subr.bf16.mxu0 %v9911
        %11519 = vmatpush1.bf16.msra.mxu0 %v9910
        %11520 = vmatprep.subr.bf16.mxu0 %v9916
        %11521 = vmatpush1.bf16.msra.mxu0 %v9915
        %11522 = vmatprep.subr.bf16.mxu0 %v9921
        %11523 = vmatpush1.bf16.msra.mxu0 %v9920
        %11524 = vmatprep.subr.bf16.mxu0 %v9926
        %11525 = vmatpush1.bf16.msra.mxu0 %v9925
        %11526 = vmatprep.subr.bf16.mxu0 %v9931
        %11527 = vmatpush1.bf16.msra.mxu0 %v9930
        %11528 = vmatprep.subr.bf16.mxu0 %v9936
        %11529 = vmatpush1.bf16.msra.mxu0 %v9935
        %11530 = vmatprep.subr.bf16.mxu0 %v9941
        %11531 = vmatpush1.bf16.msra.mxu0 %v9940
        %11532 = vmatprep.subr.bf16.mxu0 %v9946
        %11533 = vmatpush1.bf16.msra.mxu0 %v9945
        %11534 = vmatprep.mubr.bf16.mxu0 %v7036
        %11535 = vmatmul.mubr.bf16.gmra.mrb[0].mxu0 %v7035
        %v11536 = vpop.f32.mrb[0].mxu0
        %v11537 = vadd.f32 %v11160, %v11536
        %v11538 = vpop.f32.mrb[0].mxu0
        %v11539 = vadd.f32 %v11164, %v11538
        %v11540 = vpop.f32.mrb[0].mxu0
        %v11541 = vpop.f32.mrb[0].mxu0
        %11542 = vdwg.mxu0
        %11543 = vmatprep.subr.bf16.mxu0 %v9951
        %11544 = vmatpush1.bf16.msra.mxu0 %v9950
        %11545 = vmatprep.subr.bf16.mxu0 %v9956
        %11546 = vmatpush1.bf16.msra.mxu0 %v9955
        %11547 = vmatprep.subr.bf16.mxu0 %v9961
        %11548 = vmatpush1.bf16.msra.mxu0 %v9960
        %11549 = vmatprep.subr.bf16.mxu0 %v9966
        %11550 = vmatpush1.bf16.msra.mxu0 %v9965
        %11551 = vmatprep.subr.bf16.mxu0 %v9971
        %11552 = vmatpush1.bf16.msra.mxu0 %v9970
        %11553 = vmatprep.subr.bf16.mxu0 %v9976
        %11554 = vmatpush1.bf16.msra.mxu0 %v9975
        %11555 = vmatprep.subr.bf16.mxu0 %v9981
        %11556 = vmatpush1.bf16.msra.mxu0 %v9980
        %11557 = vmatprep.subr.bf16.mxu0 %v9986
        %11558 = vmatpush1.bf16.msra.mxu0 %v9985
        %11559 = vmatprep.subr.bf16.mxu0 %v9991
        %11560 = vmatpush1.bf16.msra.mxu0 %v9990
        %11561 = vmatprep.subr.bf16.mxu0 %v9996
        %11562 = vmatpush1.bf16.msra.mxu0 %v9995
        %11563 = vmatprep.subr.bf16.mxu0 %v10001
        %11564 = vmatpush1.bf16.msra.mxu0 %v10000
        %11565 = vmatprep.subr.bf16.mxu0 %v10006
        %11566 = vmatpush1.bf16.msra.mxu0 %v10005
        %11567 = vmatprep.subr.bf16.mxu0 %v10011
        %11568 = vmatpush1.bf16.msra.mxu0 %v10010
        %11569 = vmatprep.subr.bf16.mxu0 %v10016
        %11570 = vmatpush1.bf16.msra.mxu0 %v10015
        %11571 = vmatprep.subr.bf16.mxu0 %v10021
        %11572 = vmatpush1.bf16.msra.mxu0 %v10020
        %11573 = vmatprep.subr.bf16.mxu0 %v10026
        %11574 = vmatpush1.bf16.msra.mxu0 %v10025
        %11575 = vmatprep.mubr.bf16.mxu0 %v7038
        %11576 = vmatmul.mubr.bf16.gmra.mrb[0].mxu0 %v7037
        %v11577 = vpop.f32.mrb[0].mxu0
        %v11578 = vadd.f32 %v11537, %v11577
        %v11579 = vpop.f32.mrb[0].mxu0
        %v11580 = vadd.f32 %v11539, %v11579
        %v11581 = vpop.f32.mrb[0].mxu0
        %v11582 = vpop.f32.mrb[0].mxu0
        %11583 = vdwg.mxu0
        %11584 = vmatprep.subr.bf16.mxu0 %v10031
        %11585 = vmatpush1.bf16.msra.mxu0 %v10030
        %11586 = vmatprep.subr.bf16.mxu0 %v10036
        %11587 = vmatpush1.bf16.msra.mxu0 %v10035
        %11588 = vmatprep.subr.bf16.mxu0 %v10041
        %11589 = vmatpush1.bf16.msra.mxu0 %v10040
        %11590 = vmatprep.subr.bf16.mxu0 %v10046
        %11591 = vmatpush1.bf16.msra.mxu0 %v10045
        %11592 = vmatprep.subr.bf16.mxu0 %v10051
        %11593 = vmatpush1.bf16.msra.mxu0 %v10050
        %11594 = vmatprep.subr.bf16.mxu0 %v10056
        %11595 = vmatpush1.bf16.msra.mxu0 %v10055
        %11596 = vmatprep.subr.bf16.mxu0 %v10061
        %11597 = vmatpush1.bf16.msra.mxu0 %v10060
        %11598 = vmatprep.subr.bf16.mxu0 %v10066
        %11599 = vmatpush1.bf16.msra.mxu0 %v10065
        %11600 = vmatprep.subr.bf16.mxu0 %v10071
        %11601 = vmatpush1.bf16.msra.mxu0 %v10070
        %11602 = vmatprep.subr.bf16.mxu0 %v10076
        %11603 = vmatpush1.bf16.msra.mxu0 %v10075
        %11604 = vmatprep.subr.bf16.mxu0 %v10081
        %11605 = vmatpush1.bf16.msra.mxu0 %v10080
        %11606 = vmatprep.subr.bf16.mxu0 %v10086
        %11607 = vmatpush1.bf16.msra.mxu0 %v10085
        %11608 = vmatprep.subr.bf16.mxu0 %v10091
        %11609 = vmatpush1.bf16.msra.mxu0 %v10090
        %11610 = vmatprep.subr.bf16.mxu0 %v10096
        %11611 = vmatpush1.bf16.msra.mxu0 %v10095
        %11612 = vmatprep.subr.bf16.mxu0 %v10101
        %11613 = vmatpush1.bf16.msra.mxu0 %v10100
        %11614 = vmatprep.subr.bf16.mxu0 %v10106
        %11615 = vmatpush1.bf16.msra.mxu0 %v10105
        %11616 = vmatprep.mubr.bf16.mxu0 %v7040
        %11617 = vmatmul.mubr.bf16.gmra.mrb[0].mxu0 %v7039
        %v11618 = vpop.f32.mrb[0].mxu0
        %v11619 = vadd.f32 %v11578, %v11618
        %v11620 = vpop.f32.mrb[0].mxu0
        %v11621 = vadd.f32 %v11580, %v11620
        %v11622 = vpop.f32.mrb[0].mxu0
        %v11623 = vpop.f32.mrb[0].mxu0
        %11624 = vdwg.mxu0
        %11625 = vmatprep.subr.bf16.mxu0 %v10111
        %11626 = vmatpush1.bf16.msra.mxu0 %v10110
        %11627 = vmatprep.subr.bf16.mxu0 %v10116
        %11628 = vmatpush1.bf16.msra.mxu0 %v10115
        %11629 = vmatprep.subr.bf16.mxu0 %v10121
        %11630 = vmatpush1.bf16.msra.mxu0 %v10120
        %11631 = vmatprep.subr.bf16.mxu0 %v10126
        %11632 = vmatpush1.bf16.msra.mxu0 %v10125
        %11633 = vmatprep.subr.bf16.mxu0 %v10131
        %11634 = vmatpush1.bf16.msra.mxu0 %v10130
        %11635 = vmatprep.subr.bf16.mxu0 %v10136
        %11636 = vmatpush1.bf16.msra.mxu0 %v10135
        %11637 = vmatprep.subr.bf16.mxu0 %v10141
        %11638 = vmatpush1.bf16.msra.mxu0 %v10140
        %11639 = vmatprep.subr.bf16.mxu0 %v10146
        %11640 = vmatpush1.bf16.msra.mxu0 %v10145
        %11641 = vmatprep.subr.bf16.mxu0 %v10151
        %11642 = vmatpush1.bf16.msra.mxu0 %v10150
        %11643 = vmatprep.subr.bf16.mxu0 %v10156
        %11644 = vmatpush1.bf16.msra.mxu0 %v10155
        %11645 = vmatprep.subr.bf16.mxu0 %v10161
        %11646 = vmatpush1.bf16.msra.mxu0 %v10160
        %11647 = vmatprep.subr.bf16.mxu0 %v10166
        %11648 = vmatpush1.bf16.msra.mxu0 %v10165
        %11649 = vmatprep.subr.bf16.mxu0 %v10171
        %11650 = vmatpush1.bf16.msra.mxu0 %v10170
        %11651 = vmatprep.subr.bf16.mxu0 %v10176
        %11652 = vmatpush1.bf16.msra.mxu0 %v10175
        %11653 = vmatprep.subr.bf16.mxu0 %v10181
        %11654 = vmatpush1.bf16.msra.mxu0 %v10180
        %11655 = vmatprep.subr.bf16.mxu0 %v10186
        %11656 = vmatpush1.bf16.msra.mxu0 %v10185
        %11657 = vmatprep.mubr.bf16.mxu0 %v7042
        %11658 = vmatmul.mubr.bf16.gmra.mrb[0].mxu0 %v7041
        %v11659 = vpop.f32.mrb[0].mxu0
        %v11660 = vadd.f32 %v11619, %v11659
        %v11661 = vpop.f32.mrb[0].mxu0
        %v11662 = vadd.f32 %v11621, %v11661
        %v11663 = vpop.f32.mrb[0].mxu0
        %v11664 = vpop.f32.mrb[0].mxu0
        %11665 = vdwg.mxu0
        %11666 = vmatprep.subr.bf16.mxu0 %v10191
        %11667 = vmatpush1.bf16.msra.mxu0 %v10190
        %11668 = vmatprep.subr.bf16.mxu0 %v10196
        %11669 = vmatpush1.bf16.msra.mxu0 %v10195
        %11670 = vmatprep.subr.bf16.mxu0 %v10201
        %11671 = vmatpush1.bf16.msra.mxu0 %v10200
        %11672 = vmatprep.subr.bf16.mxu0 %v10206
        %11673 = vmatpush1.bf16.msra.mxu0 %v10205
        %11674 = vmatprep.subr.bf16.mxu0 %v10211
        %11675 = vmatpush1.bf16.msra.mxu0 %v10210
        %11676 = vmatprep.subr.bf16.mxu0 %v10216
        %11677 = vmatpush1.bf16.msra.mxu0 %v10215
        %11678 = vmatprep.subr.bf16.mxu0 %v10221
        %11679 = vmatpush1.bf16.msra.mxu0 %v10220
        %11680 = vmatprep.subr.bf16.mxu0 %v10226
        %11681 = vmatpush1.bf16.msra.mxu0 %v10225
        %11682 = vmatprep.subr.bf16.mxu0 %v10231
        %11683 = vmatpush1.bf16.msra.mxu0 %v10230
        %11684 = vmatprep.subr.bf16.mxu0 %v10236
        %11685 = vmatpush1.bf16.msra.mxu0 %v10235
        %11686 = vmatprep.subr.bf16.mxu0 %v10241
        %11687 = vmatpush1.bf16.msra.mxu0 %v10240
        %11688 = vmatprep.subr.bf16.mxu0 %v10246
        %11689 = vmatpush1.bf16.msra.mxu0 %v10245
        %11690 = vmatprep.subr.bf16.mxu0 %v10251
        %11691 = vmatpush1.bf16.msra.mxu0 %v10250
        %11692 = vmatprep.subr.bf16.mxu0 %v10256
        %11693 = vmatpush1.bf16.msra.mxu0 %v10255
        %11694 = vmatprep.subr.bf16.mxu0 %v10261
        %11695 = vmatpush1.bf16.msra.mxu0 %v10260
        %11696 = vmatprep.subr.bf16.mxu0 %v10266
        %11697 = vmatpush1.bf16.msra.mxu0 %v10265
        %11698 = vmatprep.mubr.bf16.mxu0 %v7044
        %11699 = vmatmul.mubr.bf16.gmra.mrb[0].mxu0 %v7043
        %v11700 = vpop.f32.mrb[0].mxu0
        %v11701 = vadd.f32 %v11660, %v11700
        %v11702 = vpop.f32.mrb[0].mxu0
        %v11703 = vadd.f32 %v11662, %v11702
        %v11704 = vpop.f32.mrb[0].mxu0
        %v11705 = vpop.f32.mrb[0].mxu0
        %11706 = vdwg.mxu0
        %11707 = vmatprep.subr.bf16.mxu0 %v10271
        %11708 = vmatpush1.bf16.msra.mxu0 %v10270
        %11709 = vmatprep.subr.bf16.mxu0 %v10276
        %11710 = vmatpush1.bf16.msra.mxu0 %v10275
        %11711 = vmatprep.subr.bf16.mxu0 %v10281
        %11712 = vmatpush1.bf16.msra.mxu0 %v10280
        %11713 = vmatprep.subr.bf16.mxu0 %v10286
        %11714 = vmatpush1.bf16.msra.mxu0 %v10285
        %11715 = vmatprep.subr.bf16.mxu0 %v10291
        %11716 = vmatpush1.bf16.msra.mxu0 %v10290
        %11717 = vmatprep.subr.bf16.mxu0 %v10296
        %11718 = vmatpush1.bf16.msra.mxu0 %v10295
        %11719 = vmatprep.subr.bf16.mxu0 %v10301
        %11720 = vmatpush1.bf16.msra.mxu0 %v10300
        %11721 = vmatprep.subr.bf16.mxu0 %v10306
        %11722 = vmatpush1.bf16.msra.mxu0 %v10305
        %11723 = vmatprep.subr.bf16.mxu0 %v10311
        %11724 = vmatpush1.bf16.msra.mxu0 %v10310
        %11725 = vmatprep.subr.bf16.mxu0 %v10316
        %11726 = vmatpush1.bf16.msra.mxu0 %v10315
        %11727 = vmatprep.subr.bf16.mxu0 %v10321
        %11728 = vmatpush1.bf16.msra.mxu0 %v10320
        %11729 = vmatprep.subr.bf16.mxu0 %v10326
        %11730 = vmatpush1.bf16.msra.mxu0 %v10325
        %11731 = vmatprep.subr.bf16.mxu0 %v10331
        %11732 = vmatpush1.bf16.msra.mxu0 %v10330
        %11733 = vmatprep.subr.bf16.mxu0 %v10336
        %11734 = vmatpush1.bf16.msra.mxu0 %v10335
        %11735 = vmatprep.subr.bf16.mxu0 %v10341
        %11736 = vmatpush1.bf16.msra.mxu0 %v10340
        %11737 = vmatprep.subr.bf16.mxu0 %v10346
        %11738 = vmatpush1.bf16.msra.mxu0 %v10345
        %11739 = vmatprep.mubr.bf16.mxu0 %v7046
        %11740 = vmatmul.mubr.bf16.gmra.mrb[0].mxu0 %v7045
        %v11741 = vpop.f32.mrb[0].mxu0
        %v11742 = vadd.f32 %v11701, %v11741
        %v11743 = vpop.f32.mrb[0].mxu0
        %v11744 = vadd.f32 %v11703, %v11743
        %v11745 = vpop.f32.mrb[0].mxu0
        %v11746 = vpop.f32.mrb[0].mxu0
        %11747 = vdwg.mxu0
        %11748 = vmatprep.subr.bf16.mxu0 %v10351
        %11749 = vmatpush1.bf16.msra.mxu0 %v10350
        %11750 = vmatprep.subr.bf16.mxu0 %v10356
        %11751 = vmatpush1.bf16.msra.mxu0 %v10355
        %11752 = vmatprep.subr.bf16.mxu0 %v10361
        %11753 = vmatpush1.bf16.msra.mxu0 %v10360
        %11754 = vmatprep.subr.bf16.mxu0 %v10366
        %11755 = vmatpush1.bf16.msra.mxu0 %v10365
        %11756 = vmatprep.subr.bf16.mxu0 %v10371
        %11757 = vmatpush1.bf16.msra.mxu0 %v10370
        %11758 = vmatprep.subr.bf16.mxu0 %v10376
        %11759 = vmatpush1.bf16.msra.mxu0 %v10375
        %11760 = vmatprep.subr.bf16.mxu0 %v10381
        %11761 = vmatpush1.bf16.msra.mxu0 %v10380
        %11762 = vmatprep.subr.bf16.mxu0 %v10386
        %11763 = vmatpush1.bf16.msra.mxu0 %v10385
        %11764 = vmatprep.subr.bf16.mxu0 %v10391
        %11765 = vmatpush1.bf16.msra.mxu0 %v10390
        %11766 = vmatprep.subr.bf16.mxu0 %v10396
        %11767 = vmatpush1.bf16.msra.mxu0 %v10395
        %11768 = vmatprep.subr.bf16.mxu0 %v10401
        %11769 = vmatpush1.bf16.msra.mxu0 %v10400
        %11770 = vmatprep.subr.bf16.mxu0 %v10406
        %11771 = vmatpush1.bf16.msra.mxu0 %v10405
        %11772 = vmatprep.subr.bf16.mxu0 %v10411
        %11773 = vmatpush1.bf16.msra.mxu0 %v10410
        %11774 = vmatprep.subr.bf16.mxu0 %v10416
        %11775 = vmatpush1.bf16.msra.mxu0 %v10415
        %11776 = vmatprep.subr.bf16.mxu0 %v10421
        %11777 = vmatpush1.bf16.msra.mxu0 %v10420
        %11778 = vmatprep.subr.bf16.mxu0 %v10426
        %11779 = vmatpush1.bf16.msra.mxu0 %v10425
        %11780 = vmatprep.mubr.bf16.mxu0 %v7048
        %11781 = vmatmul.mubr.bf16.gmra.mrb[0].mxu0 %v7047
        %v11782 = vpop.f32.mrb[0].mxu0
        %v11783 = vadd.f32 %v11742, %v11782
        %v11784 = vpop.f32.mrb[0].mxu0
        %v11785 = vadd.f32 %v11744, %v11784
        %v11786 = vpop.f32.mrb[0].mxu0
        %v11787 = vpop.f32.mrb[0].mxu0
        %11788 = vdwg.mxu0
        %11789 = vmatprep.subr.bf16.mxu0 %v10431
        %11790 = vmatpush1.bf16.msra.mxu0 %v10430
        %11791 = vmatprep.subr.bf16.mxu0 %v10436
        %11792 = vmatpush1.bf16.msra.mxu0 %v10435
        %11793 = vmatprep.subr.bf16.mxu0 %v10441
        %11794 = vmatpush1.bf16.msra.mxu0 %v10440
        %11795 = vmatprep.subr.bf16.mxu0 %v10446
        %11796 = vmatpush1.bf16.msra.mxu0 %v10445
        %11797 = vmatprep.subr.bf16.mxu0 %v10451
        %11798 = vmatpush1.bf16.msra.mxu0 %v10450
        %11799 = vmatprep.subr.bf16.mxu0 %v10456
        %11800 = vmatpush1.bf16.msra.mxu0 %v10455
        %11801 = vmatprep.subr.bf16.mxu0 %v10461
        %11802 = vmatpush1.bf16.msra.mxu0 %v10460
        %11803 = vmatprep.subr.bf16.mxu0 %v10466
        %11804 = vmatpush1.bf16.msra.mxu0 %v10465
        %11805 = vmatprep.subr.bf16.mxu0 %v10471
        %11806 = vmatpush1.bf16.msra.mxu0 %v10470
        %11807 = vmatprep.subr.bf16.mxu0 %v10476
        %11808 = vmatpush1.bf16.msra.mxu0 %v10475
        %11809 = vmatprep.subr.bf16.mxu0 %v10481
        %11810 = vmatpush1.bf16.msra.mxu0 %v10480
        %11811 = vmatprep.subr.bf16.mxu0 %v10486
        %11812 = vmatpush1.bf16.msra.mxu0 %v10485
        %11813 = vmatprep.subr.bf16.mxu0 %v10491
        %11814 = vmatpush1.bf16.msra.mxu0 %v10490
        %11815 = vmatprep.subr.bf16.mxu0 %v10496
        %11816 = vmatpush1.bf16.msra.mxu0 %v10495
        %11817 = vmatprep.subr.bf16.mxu0 %v10501
        %11818 = vmatpush1.bf16.msra.mxu0 %v10500
        %11819 = vmatprep.subr.bf16.mxu0 %v10506
        %11820 = vmatpush1.bf16.msra.mxu0 %v10505
        %11821 = vmatprep.mubr.bf16.mxu0 %v7050
        %11822 = vmatmul.mubr.bf16.gmra.mrb[0].mxu0 %v7049
        %v11823 = vpop.f32.mrb[0].mxu0
        %v11824 = vadd.f32 %v11783, %v11823
        %v11825 = vpop.f32.mrb[0].mxu0
        %v11826 = vadd.f32 %v11785, %v11825
        %v11827 = vpop.f32.mrb[0].mxu0
        %v11828 = vpop.f32.mrb[0].mxu0
        %11829 = vdwg.mxu0
        %11830 = vmatprep.subr.bf16.mxu0 0
        %11831 = vmatpush1.bf16.msra.mxu0 %v9872
        %11832 = vmatprep.subr.bf16.mxu0 0
        %11833 = vmatpush1.bf16.msra.mxu0 %v9877
        %11834 = vmatprep.subr.bf16.mxu0 0
        %11835 = vmatpush1.bf16.msra.mxu0 %v9882
        %11836 = vmatprep.subr.bf16.mxu0 0
        %11837 = vmatpush1.bf16.msra.mxu0 %v9887
        %11838 = vmatprep.subr.bf16.mxu0 0
        %11839 = vmatpush1.bf16.msra.mxu0 %v9892
        %11840 = vmatprep.subr.bf16.mxu0 0
        %11841 = vmatpush1.bf16.msra.mxu0 %v9897
        %11842 = vmatprep.subr.bf16.mxu0 0
        %11843 = vmatpush1.bf16.msra.mxu0 %v9902
        %11844 = vmatprep.subr.bf16.mxu0 0
        %11845 = vmatpush1.bf16.msra.mxu0 %v9907
        %11846 = vmatprep.subr.bf16.mxu0 0
        %11847 = vmatpush1.bf16.msra.mxu0 %v9912
        %11848 = vmatprep.subr.bf16.mxu0 0
        %11849 = vmatpush1.bf16.msra.mxu0 %v9917
        %11850 = vmatprep.subr.bf16.mxu0 0
        %11851 = vmatpush1.bf16.msra.mxu0 %v9922
        %11852 = vmatprep.subr.bf16.mxu0 0
        %11853 = vmatpush1.bf16.msra.mxu0 %v9927
        %11854 = vmatprep.subr.bf16.mxu0 0
        %11855 = vmatpush1.bf16.msra.mxu0 %v9932
        %11856 = vmatprep.subr.bf16.mxu0 0
        %11857 = vmatpush1.bf16.msra.mxu0 %v9937
        %11858 = vmatprep.subr.bf16.mxu0 0
        %11859 = vmatpush1.bf16.msra.mxu0 %v9942
        %11860 = vmatprep.subr.bf16.mxu0 0
        %11861 = vmatpush1.bf16.msra.mxu0 %v9947
        %11862 = vmatprep.mubr.bf16.mxu0 %v7036
        %11863 = vmatmul.mubr.bf16.gmra.mrb[0].mxu0 %v7035
        %v11864 = vpop.f32.mrb[0].mxu0
        %v11865 = vadd.f32 %v11168, %v11864
        %v11866 = vpop.f32.mrb[0].mxu0
        %v11867 = vpop.f32.mrb[0].mxu0
        %v11868 = vpop.f32.mrb[0].mxu0
        %11869 = vdwg.mxu0
        %11870 = vmatprep.subr.bf16.mxu0 0
        %11871 = vmatpush1.bf16.msra.mxu0 %v9952
        %11872 = vmatprep.subr.bf16.mxu0 0
        %11873 = vmatpush1.bf16.msra.mxu0 %v9957
        %11874 = vmatprep.subr.bf16.mxu0 0
        %11875 = vmatpush1.bf16.msra.mxu0 %v9962
        %11876 = vmatprep.subr.bf16.mxu0 0
        %11877 = vmatpush1.bf16.msra.mxu0 %v9967
        %11878 = vmatprep.subr.bf16.mxu0 0
        %11879 = vmatpush1.bf16.msra.mxu0 %v9972
        %11880 = vmatprep.subr.bf16.mxu0 0
        %11881 = vmatpush1.bf16.msra.mxu0 %v9977
        %11882 = vmatprep.subr.bf16.mxu0 0
        %11883 = vmatpush1.bf16.msra.mxu0 %v9982
        %11884 = vmatprep.subr.bf16.mxu0 0
        %11885 = vmatpush1.bf16.msra.mxu0 %v9987
        %11886 = vmatprep.subr.bf16.mxu0 0
        %11887 = vmatpush1.bf16.msra.mxu0 %v9992
        %11888 = vmatprep.subr.bf16.mxu0 0
        %11889 = vmatpush1.bf16.msra.mxu0 %v9997
        %11890 = vmatprep.subr.bf16.mxu0 0
        %11891 = vmatpush1.bf16.msra.mxu0 %v10002
        %11892 = vmatprep.subr.bf16.mxu0 0
        %11893 = vmatpush1.bf16.msra.mxu0 %v10007
        %11894 = vmatprep.subr.bf16.mxu0 0
        %11895 = vmatpush1.bf16.msra.mxu0 %v10012
        %11896 = vmatprep.subr.bf16.mxu0 0
        %11897 = vmatpush1.bf16.msra.mxu0 %v10017
        %11898 = vmatprep.subr.bf16.mxu0 0
        %11899 = vmatpush1.bf16.msra.mxu0 %v10022
        %11900 = vmatprep.subr.bf16.mxu0 0
        %11901 = vmatpush1.bf16.msra.mxu0 %v10027
        %11902 = vmatprep.mubr.bf16.mxu0 %v7038
        %11903 = vmatmul.mubr.bf16.gmra.mrb[0].mxu0 %v7037
        %v11904 = vpop.f32.mrb[0].mxu0
        %v11905 = vadd.f32 %v11865, %v11904
        %v11906 = vpop.f32.mrb[0].mxu0
        %v11907 = vpop.f32.mrb[0].mxu0
        %v11908 = vpop.f32.mrb[0].mxu0
        %11909 = vdwg.mxu0
        %11910 = vmatprep.subr.bf16.mxu0 0
        %11911 = vmatpush1.bf16.msra.mxu0 %v10032
        %11912 = vmatprep.subr.bf16.mxu0 0
        %11913 = vmatpush1.bf16.msra.mxu0 %v10037
        %11914 = vmatprep.subr.bf16.mxu0 0
        %11915 = vmatpush1.bf16.msra.mxu0 %v10042
        %11916 = vmatprep.subr.bf16.mxu0 0
        %11917 = vmatpush1.bf16.msra.mxu0 %v10047
        %11918 = vmatprep.subr.bf16.mxu0 0
        %11919 = vmatpush1.bf16.msra.mxu0 %v10052
        %11920 = vmatprep.subr.bf16.mxu0 0
        %11921 = vmatpush1.bf16.msra.mxu0 %v10057
        %11922 = vmatprep.subr.bf16.mxu0 0
        %11923 = vmatpush1.bf16.msra.mxu0 %v10062
        %11924 = vmatprep.subr.bf16.mxu0 0
        %11925 = vmatpush1.bf16.msra.mxu0 %v10067
        %11926 = vmatprep.subr.bf16.mxu0 0
        %11927 = vmatpush1.bf16.msra.mxu0 %v10072
        %11928 = vmatprep.subr.bf16.mxu0 0
        %11929 = vmatpush1.bf16.msra.mxu0 %v10077
        %11930 = vmatprep.subr.bf16.mxu0 0
        %11931 = vmatpush1.bf16.msra.mxu0 %v10082
        %11932 = vmatprep.subr.bf16.mxu0 0
        %11933 = vmatpush1.bf16.msra.mxu0 %v10087
        %11934 = vmatprep.subr.bf16.mxu0 0
        %11935 = vmatpush1.bf16.msra.mxu0 %v10092
        %11936 = vmatprep.subr.bf16.mxu0 0
        %11937 = vmatpush1.bf16.msra.mxu0 %v10097
        %11938 = vmatprep.subr.bf16.mxu0 0
        %11939 = vmatpush1.bf16.msra.mxu0 %v10102
        %11940 = vmatprep.subr.bf16.mxu0 0
        %11941 = vmatpush1.bf16.msra.mxu0 %v10107
        %11942 = vmatprep.mubr.bf16.mxu0 %v7040
        %11943 = vmatmul.mubr.bf16.gmra.mrb[0].mxu0 %v7039
        %v11944 = vpop.f32.mrb[0].mxu0
        %v11945 = vadd.f32 %v11905, %v11944
        %v11946 = vpop.f32.mrb[0].mxu0
        %v11947 = vpop.f32.mrb[0].mxu0
        %v11948 = vpop.f32.mrb[0].mxu0
        %11949 = vdwg.mxu0
        %11950 = vmatprep.subr.bf16.mxu0 0
        %11951 = vmatpush1.bf16.msra.mxu0 %v10112
        %11952 = vmatprep.subr.bf16.mxu0 0
        %11953 = vmatpush1.bf16.msra.mxu0 %v10117
        %11954 = vmatprep.subr.bf16.mxu0 0
        %11955 = vmatpush1.bf16.msra.mxu0 %v10122
        %11956 = vmatprep.subr.bf16.mxu0 0
        %11957 = vmatpush1.bf16.msra.mxu0 %v10127
        %11958 = vmatprep.subr.bf16.mxu0 0
        %11959 = vmatpush1.bf16.msra.mxu0 %v10132
        %11960 = vmatprep.subr.bf16.mxu0 0
        %11961 = vmatpush1.bf16.msra.mxu0 %v10137
        %11962 = vmatprep.subr.bf16.mxu0 0
        %11963 = vmatpush1.bf16.msra.mxu0 %v10142
        %11964 = vmatprep.subr.bf16.mxu0 0
        %11965 = vmatpush1.bf16.msra.mxu0 %v10147
        %11966 = vmatprep.subr.bf16.mxu0 0
        %11967 = vmatpush1.bf16.msra.mxu0 %v10152
        %11968 = vmatprep.subr.bf16.mxu0 0
        %11969 = vmatpush1.bf16.msra.mxu0 %v10157
        %11970 = vmatprep.subr.bf16.mxu0 0
        %11971 = vmatpush1.bf16.msra.mxu0 %v10162
        %11972 = vmatprep.subr.bf16.mxu0 0
        %11973 = vmatpush1.bf16.msra.mxu0 %v10167
        %11974 = vmatprep.subr.bf16.mxu0 0
        %11975 = vmatpush1.bf16.msra.mxu0 %v10172
        %11976 = vmatprep.subr.bf16.mxu0 0
        %11977 = vmatpush1.bf16.msra.mxu0 %v10177
        %11978 = vmatprep.subr.bf16.mxu0 0
        %11979 = vmatpush1.bf16.msra.mxu0 %v10182
        %11980 = vmatprep.subr.bf16.mxu0 0
        %11981 = vmatpush1.bf16.msra.mxu0 %v10187
        %11982 = vmatprep.mubr.bf16.mxu0 %v7042
        %11983 = vmatmul.mubr.bf16.gmra.mrb[0].mxu0 %v7041
        %v11984 = vpop.f32.mrb[0].mxu0
        %v11985 = vadd.f32 %v11945, %v11984
        %v11986 = vpop.f32.mrb[0].mxu0
        %v11987 = vpop.f32.mrb[0].mxu0
        %v11988 = vpop.f32.mrb[0].mxu0
        %11989 = vdwg.mxu0
        %11990 = vmatprep.subr.bf16.mxu0 0
        %11991 = vmatpush1.bf16.msra.mxu0 %v10192
        %11992 = vmatprep.subr.bf16.mxu0 0
        %11993 = vmatpush1.bf16.msra.mxu0 %v10197
        %11994 = vmatprep.subr.bf16.mxu0 0
        %11995 = vmatpush1.bf16.msra.mxu0 %v10202
        %11996 = vmatprep.subr.bf16.mxu0 0
        %11997 = vmatpush1.bf16.msra.mxu0 %v10207
        %11998 = vmatprep.subr.bf16.mxu0 0
        %11999 = vmatpush1.bf16.msra.mxu0 %v10212
        %12000 = vmatprep.subr.bf16.mxu0 0
        %12001 = vmatpush1.bf16.msra.mxu0 %v10217
        %12002 = vmatprep.subr.bf16.mxu0 0
        %12003 = vmatpush1.bf16.msra.mxu0 %v10222
        %12004 = vmatprep.subr.bf16.mxu0 0
        %12005 = vmatpush1.bf16.msra.mxu0 %v10227
        %12006 = vmatprep.subr.bf16.mxu0 0
        %12007 = vmatpush1.bf16.msra.mxu0 %v10232
        %12008 = vmatprep.subr.bf16.mxu0 0
        %12009 = vmatpush1.bf16.msra.mxu0 %v10237
        %12010 = vmatprep.subr.bf16.mxu0 0
        %12011 = vmatpush1.bf16.msra.mxu0 %v10242
        %12012 = vmatprep.subr.bf16.mxu0 0
        %12013 = vmatpush1.bf16.msra.mxu0 %v10247
        %12014 = vmatprep.subr.bf16.mxu0 0
        %12015 = vmatpush1.bf16.msra.mxu0 %v10252
        %12016 = vmatprep.subr.bf16.mxu0 0
        %12017 = vmatpush1.bf16.msra.mxu0 %v10257
        %12018 = vmatprep.subr.bf16.mxu0 0
        %12019 = vmatpush1.bf16.msra.mxu0 %v10262
        %12020 = vmatprep.subr.bf16.mxu0 0
        %12021 = vmatpush1.bf16.msra.mxu0 %v10267
        %12022 = vmatprep.mubr.bf16.mxu0 %v7044
        %12023 = vmatmul.mubr.bf16.gmra.mrb[0].mxu0 %v7043
        %v12024 = vpop.f32.mrb[0].mxu0
        %v12025 = vadd.f32 %v11985, %v12024
        %v12026 = vpop.f32.mrb[0].mxu0
        %v12027 = vpop.f32.mrb[0].mxu0
        %v12028 = vpop.f32.mrb[0].mxu0
        %12029 = vdwg.mxu0
        %12030 = vmatprep.subr.bf16.mxu0 0
        %12031 = vmatpush1.bf16.msra.mxu0 %v10272
        %12032 = vmatprep.subr.bf16.mxu0 0
        %12033 = vmatpush1.bf16.msra.mxu0 %v10277
        %12034 = vmatprep.subr.bf16.mxu0 0
        %12035 = vmatpush1.bf16.msra.mxu0 %v10282
        %12036 = vmatprep.subr.bf16.mxu0 0
        %12037 = vmatpush1.bf16.msra.mxu0 %v10287
        %12038 = vmatprep.subr.bf16.mxu0 0
        %12039 = vmatpush1.bf16.msra.mxu0 %v10292
        %12040 = vmatprep.subr.bf16.mxu0 0
        %12041 = vmatpush1.bf16.msra.mxu0 %v10297
        %12042 = vmatprep.subr.bf16.mxu0 0
        %12043 = vmatpush1.bf16.msra.mxu0 %v10302
        %12044 = vmatprep.subr.bf16.mxu0 0
        %12045 = vmatpush1.bf16.msra.mxu0 %v10307
        %12046 = vmatprep.subr.bf16.mxu0 0
        %12047 = vmatpush1.bf16.msra.mxu0 %v10312
        %12048 = vmatprep.subr.bf16.mxu0 0
        %12049 = vmatpush1.bf16.msra.mxu0 %v10317
        %12050 = vmatprep.subr.bf16.mxu0 0
        %12051 = vmatpush1.bf16.msra.mxu0 %v10322
        %12052 = vmatprep.subr.bf16.mxu0 0
        %12053 = vmatpush1.bf16.msra.mxu0 %v10327
        %12054 = vmatprep.subr.bf16.mxu0 0
        %12055 = vmatpush1.bf16.msra.mxu0 %v10332
        %12056 = vmatprep.subr.bf16.mxu0 0
        %12057 = vmatpush1.bf16.msra.mxu0 %v10337
        %12058 = vmatprep.subr.bf16.mxu0 0
        %12059 = vmatpush1.bf16.msra.mxu0 %v10342
        %12060 = vmatprep.subr.bf16.mxu0 0
        %12061 = vmatpush1.bf16.msra.mxu0 %v10347
        %12062 = vmatprep.mubr.bf16.mxu0 %v7046
        %12063 = vmatmul.mubr.bf16.gmra.mrb[0].mxu0 %v7045
        %v12064 = vpop.f32.mrb[0].mxu0
        %v12065 = vadd.f32 %v12025, %v12064
        %v12066 = vpop.f32.mrb[0].mxu0
        %v12067 = vpop.f32.mrb[0].mxu0
        %v12068 = vpop.f32.mrb[0].mxu0
        %12069 = vdwg.mxu0
        %12070 = vmatprep.subr.bf16.mxu0 0
        %12071 = vmatpush1.bf16.msra.mxu0 %v10352
        %12072 = vmatprep.subr.bf16.mxu0 0
        %12073 = vmatpush1.bf16.msra.mxu0 %v10357
        %12074 = vmatprep.subr.bf16.mxu0 0
        %12075 = vmatpush1.bf16.msra.mxu0 %v10362
        %12076 = vmatprep.subr.bf16.mxu0 0
        %12077 = vmatpush1.bf16.msra.mxu0 %v10367
        %12078 = vmatprep.subr.bf16.mxu0 0
        %12079 = vmatpush1.bf16.msra.mxu0 %v10372
        %12080 = vmatprep.subr.bf16.mxu0 0
        %12081 = vmatpush1.bf16.msra.mxu0 %v10377
        %12082 = vmatprep.subr.bf16.mxu0 0
        %12083 = vmatpush1.bf16.msra.mxu0 %v10382
        %12084 = vmatprep.subr.bf16.mxu0 0
        %12085 = vmatpush1.bf16.msra.mxu0 %v10387
        %12086 = vmatprep.subr.bf16.mxu0 0
        %12087 = vmatpush1.bf16.msra.mxu0 %v10392
        %12088 = vmatprep.subr.bf16.mxu0 0
        %12089 = vmatpush1.bf16.msra.mxu0 %v10397
        %12090 = vmatprep.subr.bf16.mxu0 0
        %12091 = vmatpush1.bf16.msra.mxu0 %v10402
        %12092 = vmatprep.subr.bf16.mxu0 0
        %12093 = vmatpush1.bf16.msra.mxu0 %v10407
        %12094 = vmatprep.subr.bf16.mxu0 0
        %12095 = vmatpush1.bf16.msra.mxu0 %v10412
        %12096 = vmatprep.subr.bf16.mxu0 0
        %12097 = vmatpush1.bf16.msra.mxu0 %v10417
        %12098 = vmatprep.subr.bf16.mxu0 0
        %12099 = vmatpush1.bf16.msra.mxu0 %v10422
        %12100 = vmatprep.subr.bf16.mxu0 0
        %12101 = vmatpush1.bf16.msra.mxu0 %v10427
        %12102 = vmatprep.mubr.bf16.mxu0 %v7048
        %12103 = vmatmul.mubr.bf16.gmra.mrb[0].mxu0 %v7047
        %v12104 = vpop.f32.mrb[0].mxu0
        %v12105 = vadd.f32 %v12065, %v12104
        %v12106 = vpop.f32.mrb[0].mxu0
        %v12107 = vpop.f32.mrb[0].mxu0
        %v12108 = vpop.f32.mrb[0].mxu0
        %12109 = vdwg.mxu0
        %12110 = vmatprep.subr.bf16.mxu0 0
        %12111 = vmatpush1.bf16.msra.mxu0 %v10432
        %12112 = vmatprep.subr.bf16.mxu0 0
        %12113 = vmatpush1.bf16.msra.mxu0 %v10437
        %12114 = vmatprep.subr.bf16.mxu0 0
        %12115 = vmatpush1.bf16.msra.mxu0 %v10442
        %12116 = vmatprep.subr.bf16.mxu0 0
        %12117 = vmatpush1.bf16.msra.mxu0 %v10447
        %12118 = vmatprep.subr.bf16.mxu0 0
        %12119 = vmatpush1.bf16.msra.mxu0 %v10452
        %12120 = vmatprep.subr.bf16.mxu0 0
        %12121 = vmatpush1.bf16.msra.mxu0 %v10457
        %12122 = vmatprep.subr.bf16.mxu0 0
        %12123 = vmatpush1.bf16.msra.mxu0 %v10462
        %12124 = vmatprep.subr.bf16.mxu0 0
        %12125 = vmatpush1.bf16.msra.mxu0 %v10467
        %12126 = vmatprep.subr.bf16.mxu0 0
        %12127 = vmatpush1.bf16.msra.mxu0 %v10472
        %12128 = vmatprep.subr.bf16.mxu0 0
        %12129 = vmatpush1.bf16.msra.mxu0 %v10477
        %12130 = vmatprep.subr.bf16.mxu0 0
        %12131 = vmatpush1.bf16.msra.mxu0 %v10482
        %12132 = vmatprep.subr.bf16.mxu0 0
        %12133 = vmatpush1.bf16.msra.mxu0 %v10487
        %12134 = vmatprep.subr.bf16.mxu0 0
        %12135 = vmatpush1.bf16.msra.mxu0 %v10492
        %12136 = vmatprep.subr.bf16.mxu0 0
        %12137 = vmatpush1.bf16.msra.mxu0 %v10497
        %12138 = vmatprep.subr.bf16.mxu0 0
        %12139 = vmatpush1.bf16.msra.mxu0 %v10502
        %12140 = vmatprep.subr.bf16.mxu0 0
        %12141 = vmatpush1.bf16.msra.mxu0 %v10507
        %12142 = vmatprep.mubr.bf16.mxu0 %v7050
        %12143 = vmatmul.mubr.bf16.gmra.mrb[0].mxu0 %v7049
        %v12144 = vpop.f32.mrb[0].mxu0
        %v12145 = vadd.f32 %v12105, %v12144
        %v12146 = vpop.f32.mrb[0].mxu0
        %v12147 = vpop.f32.mrb[0].mxu0
        %v12148 = vpop.f32.mrb[0].mxu0
        %12149 = vdwg.mxu0
        %v12150 = vpack.c.bf16 %v11496, %v11496
        %v12151 = vpack.c.bf16 %v11498, %v11498
        %v12152 = vpack.c.bf16 %v11824, %v11824
        %v12153 = vpack.c.bf16 %v11826, %v11826
        %v12154 = vpack.c.bf16 %v12145, %v12145
        %v12155 = vld [vmem:[#allocation14] sm:$0xf]
        %v12156 = vld [vmem:[#allocation14 + $0x4] sm:$0xf]
        %v12157 = vld [vmem:[#allocation14 + $0x8] sm:$0xf]
        %v12158 = vld [vmem:[#allocation14 + $0xc] sm:$0xf]
        %v12159 = vld [vmem:[#allocation14 + $0x10] sm:$0xf]
        %v12160 = vld [vmem:[#allocation14 + $0x14] sm:$0xf]
        %v12161 = vld [vmem:[#allocation14 + $0x18] sm:$0xf]
        %v12162 = vld [vmem:[#allocation14 + $0x1c] sm:$0xf]
        %v12163 = vld [vmem:[#allocation14 + $0x20] sm:$0xf]
        %v12164 = vld [vmem:[#allocation14 + $0x24] sm:$0xf]
        %v12165 = vld [vmem:[#allocation14 + $0x28] sm:$0xf]
        %v12166 = vld [vmem:[#allocation14 + $0x2c] sm:$0xf]
        %v12167 = vld [vmem:[#allocation14 + $0x30] sm:$0xf]
        %v12168 = vld [vmem:[#allocation14 + $0x34] sm:$0xf]
        %v12169 = vld [vmem:[#allocation14 + $0x38] sm:$0xf]
        %v12170 = vld [vmem:[#allocation14 + $0x3c] sm:$0xf]
        %v12171 = vld [vmem:[#allocation14 + $0x40] sm:$0xf]
        %v12172 = vld [vmem:[#allocation14 + $0x44] sm:$0xf]
        %v12173 = vld [vmem:[#allocation14 + $0x48] sm:$0xf]
        %v12174 = vld [vmem:[#allocation14 + $0x4c] sm:$0xf]
        %v12175 = vld [vmem:[#allocation14 + $0x50] sm:$0xf]
        %v12176 = vld [vmem:[#allocation14 + $0x54] sm:$0xf]
        %v12177 = vld [vmem:[#allocation14 + $0x58] sm:$0xf]
        %v12178 = vld [vmem:[#allocation14 + $0x5c] sm:$0xf]
        %v12179 = vld [vmem:[#allocation14 + $0x60] sm:$0xf]
        %v12180 = vld [vmem:[#allocation14 + $0x64] sm:$0xf]
        %v12181 = vld [vmem:[#allocation14 + $0x68] sm:$0xf]
        %v12182 = vld [vmem:[#allocation14 + $0x6c] sm:$0xf]
        %v12183 = vld [vmem:[#allocation14 + $0x70] sm:$0xf]
        %v12184 = vld [vmem:[#allocation14 + $0x74] sm:$0xf]
        %v12185 = vld [vmem:[#allocation14 + $0x78] sm:$0xf]
        %v12186 = vld [vmem:[#allocation14 + $0x7c] sm:$0xf]
        %v12187 = vld [vmem:[#allocation14 + $0x80] sm:$0xf]
        %v12188 = vld [vmem:[#allocation14 + $0x84] sm:$0xf]
        %v12189 = vld [vmem:[#allocation14 + $0x88] sm:$0xf]
        %v12190 = vld [vmem:[#allocation14 + $0x8c] sm:$0xf]
        %v12191 = vld [vmem:[#allocation14 + $0x90] sm:$0xf]
        %v12192 = vld [vmem:[#allocation14 + $0x94] sm:$0xf]
        %v12193 = vld [vmem:[#allocation14 + $0x98] sm:$0xf]
        %v12194 = vld [vmem:[#allocation14 + $0x9c] sm:$0xf]
        %v12195 = vld [vmem:[#allocation14 + $0xa0] sm:$0xf]
        %v12196 = vld [vmem:[#allocation14 + $0xa4] sm:$0xf]
        %v12197 = vld [vmem:[#allocation14 + $0xa8] sm:$0xf]
        %v12198 = vld [vmem:[#allocation14 + $0xac] sm:$0xf]
        %v12199 = vld [vmem:[#allocation14 + $0xb0] sm:$0xf]
        %v12200 = vld [vmem:[#allocation14 + $0xb4] sm:$0xf]
        %v12201 = vld [vmem:[#allocation14 + $0xb8] sm:$0xf]
        %v12202 = vld [vmem:[#allocation14 + $0xbc] sm:$0xf]
        %v12203 = vld [vmem:[#allocation14 + $0xc0] sm:$0xf]
        %v12204 = vld [vmem:[#allocation14 + $0xc4] sm:$0xf]
        %v12205 = vld [vmem:[#allocation14 + $0xc8] sm:$0xf]
        %v12206 = vld [vmem:[#allocation14 + $0xcc] sm:$0xf]
        %v12207 = vld [vmem:[#allocation14 + $0xd0] sm:$0xf]
        %v12208 = vld [vmem:[#allocation14 + $0xd4] sm:$0xf]
        %v12209 = vld [vmem:[#allocation14 + $0xd8] sm:$0xf]
        %v12210 = vld [vmem:[#allocation14 + $0xdc] sm:$0xf]
        %v12211 = vld [vmem:[#allocation14 + $0xe0] sm:$0xf]
        %v12212 = vld [vmem:[#allocation14 + $0xe4] sm:$0xf]
        %v12213 = vld [vmem:[#allocation14 + $0xe8] sm:$0xf]
        %v12214 = vld [vmem:[#allocation14 + $0xec] sm:$0xf]
        %v12215 = vld [vmem:[#allocation14 + $0xf0] sm:$0xf]
        %v12216 = vld [vmem:[#allocation14 + $0xf4] sm:$0xf]
        %v12217 = vld [vmem:[#allocation14 + $0xf8] sm:$0xf]
        %v12218 = vld [vmem:[#allocation14 + $0xfc] sm:$0xf]
        %v12219 = vld [vmem:[#allocation14 + $0x100] sm:$0xf]
        %v12220 = vld [vmem:[#allocation14 + $0x104] sm:$0xf]
        %v12221 = vld [vmem:[#allocation14 + $0x108] sm:$0xf]
        %v12222 = vld [vmem:[#allocation14 + $0x10c] sm:$0xf]
        %v12223 = vld [vmem:[#allocation14 + $0x110] sm:$0xf]
        %v12224 = vld [vmem:[#allocation14 + $0x114] sm:$0xf]
        %v12225 = vld [vmem:[#allocation14 + $0x118] sm:$0xf]
        %v12226 = vld [vmem:[#allocation14 + $0x11c] sm:$0xf]
        %v12227 = vld [vmem:[#allocation14 + $0x120] sm:$0xf]
        %v12228 = vld [vmem:[#allocation14 + $0x124] sm:$0xf]
        %v12229 = vld [vmem:[#allocation14 + $0x128] sm:$0xf]
        %v12230 = vld [vmem:[#allocation14 + $0x12c] sm:$0xf]
        %v12231 = vld [vmem:[#allocation14 + $0x130] sm:$0xf]
        %v12232 = vld [vmem:[#allocation14 + $0x134] sm:$0xf]
        %v12233 = vld [vmem:[#allocation14 + $0x138] sm:$0xf]
        %v12234 = vld [vmem:[#allocation14 + $0x13c] sm:$0xf]
        %v12235 = vld [vmem:[#allocation15] sm:$0x1]
        %v12316 = vunpack.c.l.b16 %v12155
        %v12317 = vunpack.c.l.b16 %v12156
        %v12318 = vunpack.c.l.b16 %v12157
        %v12319 = vunpack.c.l.b16 %v12158
        %v12320 = vunpack.c.l.b16 %v12159
        %v12321 = vunpack.c.l.b16 %v12160
        %v12322 = vunpack.c.l.b16 %v12161
        %v12323 = vunpack.c.l.b16 %v12162
        %v12324 = vunpack.c.l.b16 %v12163
        %v12325 = vunpack.c.l.b16 %v12164
        %v12326 = vunpack.c.l.b16 %v12165
        %v12327 = vunpack.c.l.b16 %v12166
        %v12328 = vunpack.c.l.b16 %v12167
        %v12329 = vunpack.c.l.b16 %v12168
        %v12330 = vunpack.c.l.b16 %v12169
        %v12331 = vunpack.c.l.b16 %v12170
        %v12332 = vunpack.c.l.b16 %v12171
        %v12333 = vunpack.c.l.b16 %v12172
        %v12334 = vunpack.c.l.b16 %v12173
        %v12335 = vunpack.c.l.b16 %v12174
        %v12336 = vunpack.c.l.b16 %v12175
        %v12337 = vunpack.c.l.b16 %v12176
        %v12338 = vunpack.c.l.b16 %v12177
        %v12339 = vunpack.c.l.b16 %v12178
        %v12340 = vunpack.c.l.b16 %v12179
        %v12341 = vunpack.c.l.b16 %v12180
        %v12342 = vunpack.c.l.b16 %v12181
        %v12343 = vunpack.c.l.b16 %v12182
        %v12344 = vunpack.c.l.b16 %v12183
        %v12345 = vunpack.c.l.b16 %v12184
        %v12346 = vunpack.c.l.b16 %v12185
        %v12347 = vunpack.c.l.b16 %v12186
        %v12348 = vunpack.c.l.b16 %v12187
        %v12349 = vunpack.c.l.b16 %v12188
        %v12350 = vunpack.c.l.b16 %v12189
        %v12351 = vunpack.c.l.b16 %v12190
        %v12352 = vunpack.c.l.b16 %v12191
        %v12353 = vunpack.c.l.b16 %v12192
        %v12354 = vunpack.c.l.b16 %v12193
        %v12355 = vunpack.c.l.b16 %v12194
        %v12356 = vunpack.c.l.b16 %v12195
        %v12357 = vunpack.c.l.b16 %v12196
        %v12358 = vunpack.c.l.b16 %v12197
        %v12359 = vunpack.c.l.b16 %v12198
        %v12360 = vunpack.c.l.b16 %v12199
        %v12361 = vunpack.c.l.b16 %v12200
        %v12362 = vunpack.c.l.b16 %v12201
        %v12363 = vunpack.c.l.b16 %v12202
        %v12364 = vunpack.c.l.b16 %v12203
        %v12365 = vunpack.c.l.b16 %v12204
        %v12366 = vunpack.c.l.b16 %v12205
        %v12367 = vunpack.c.l.b16 %v12206
        %v12368 = vunpack.c.l.b16 %v12207
        %v12369 = vunpack.c.l.b16 %v12208
        %v12370 = vunpack.c.l.b16 %v12209
        %v12371 = vunpack.c.l.b16 %v12210
        %v12372 = vunpack.c.l.b16 %v12211
        %v12373 = vunpack.c.l.b16 %v12212
        %v12374 = vunpack.c.l.b16 %v12213
        %v12375 = vunpack.c.l.b16 %v12214
        %v12376 = vunpack.c.l.b16 %v12215
        %v12377 = vunpack.c.l.b16 %v12216
        %v12378 = vunpack.c.l.b16 %v12217
        %v12379 = vunpack.c.l.b16 %v12218
        %v12380 = vunpack.c.l.b16 %v12219
        %v12381 = vunpack.c.l.b16 %v12220
        %v12382 = vunpack.c.l.b16 %v12221
        %v12383 = vunpack.c.l.b16 %v12222
        %v12384 = vunpack.c.l.b16 %v12223
        %v12385 = vunpack.c.l.b16 %v12224
        %v12386 = vunpack.c.l.b16 %v12225
        %v12387 = vunpack.c.l.b16 %v12226
        %v12388 = vunpack.c.l.b16 %v12227
        %v12389 = vunpack.c.l.b16 %v12228
        %v12390 = vunpack.c.l.b16 %v12229
        %v12391 = vunpack.c.l.b16 %v12230
        %v12392 = vunpack.c.l.b16 %v12231
        %v12393 = vunpack.c.l.b16 %v12232
        %v12394 = vunpack.c.l.b16 %v12233
        %v12395 = vunpack.c.l.b16 %v12234
        %v12396 = vpack.c.b16 %v12317, %v12316
        %v12397 = vpack.c.b16 %v12319, %v12318
        %v12398 = vpack.c.b16 %v12321, %v12320
        %v12399 = vpack.c.b16 %v12323, %v12322
        %v12400 = vpack.c.b16 %v12325, %v12324
        %v12401 = vpack.c.b16 %v12327, %v12326
        %v12402 = vpack.c.b16 %v12329, %v12328
        %v12403 = vpack.c.b16 %v12331, %v12330
        %v12404 = vpack.c.b16 %v12333, %v12332
        %v12405 = vpack.c.b16 %v12335, %v12334
        %v12406 = vpack.c.b16 %v12337, %v12336
        %v12407 = vpack.c.b16 %v12339, %v12338
        %v12408 = vpack.c.b16 %v12341, %v12340
        %v12409 = vpack.c.b16 %v12343, %v12342
        %v12410 = vpack.c.b16 %v12345, %v12344
        %v12411 = vpack.c.b16 %v12347, %v12346
        %v12412 = vpack.c.b16 %v12349, %v12348
        %v12413 = vpack.c.b16 %v12351, %v12350
        %v12414 = vpack.c.b16 %v12353, %v12352
        %v12415 = vpack.c.b16 %v12355, %v12354
        %v12416 = vpack.c.b16 %v12357, %v12356
        %v12417 = vpack.c.b16 %v12359, %v12358
        %v12418 = vpack.c.b16 %v12361, %v12360
        %v12419 = vpack.c.b16 %v12363, %v12362
        %v12420 = vpack.c.b16 %v12365, %v12364
        %v12421 = vpack.c.b16 %v12367, %v12366
        %v12422 = vpack.c.b16 %v12369, %v12368
        %v12423 = vpack.c.b16 %v12371, %v12370
        %v12424 = vpack.c.b16 %v12373, %v12372
        %v12425 = vpack.c.b16 %v12375, %v12374
        %v12426 = vpack.c.b16 %v12377, %v12376
        %v12427 = vpack.c.b16 %v12379, %v12378
        %v12428 = vpack.c.b16 %v12381, %v12380
        %v12429 = vpack.c.b16 %v12383, %v12382
        %v12430 = vpack.c.b16 %v12385, %v12384
        %v12431 = vpack.c.b16 %v12387, %v12386
        %v12432 = vpack.c.b16 %v12389, %v12388
        %v12433 = vpack.c.b16 %v12391, %v12390
        %v12434 = vpack.c.b16 %v12393, %v12392
        %v12435 = vpack.c.b16 %v12395, %v12394
        %12476 = vmatprep.subr.bf16.mxu0 0
        %12477 = vmatpush1.bf16.msra.mxu0 %v12396
        %12478 = vmatprep.subr.bf16.mxu0 0
        %12479 = vmatpush1.bf16.msra.mxu0 %v12397
        %12480 = vmatprep.subr.bf16.mxu0 0
        %12481 = vmatpush1.bf16.msra.mxu0 %v12398
        %12482 = vmatprep.subr.bf16.mxu0 0
        %12483 = vmatpush1.bf16.msra.mxu0 %v12399
        %12484 = vmatprep.subr.bf16.mxu0 0
        %12485 = vmatpush1.bf16.msra.mxu0 %v12400
        %12486 = vmatprep.subr.bf16.mxu0 0
        %12487 = vmatpush1.bf16.msra.mxu0 %v12401
        %12488 = vmatprep.subr.bf16.mxu0 0
        %12489 = vmatpush1.bf16.msra.mxu0 %v12402
        %12490 = vmatprep.subr.bf16.mxu0 0
        %12491 = vmatpush1.bf16.msra.mxu0 %v12403
        %12492 = vmatprep.subr.bf16.mxu0 0
        %12493 = vmatpush1.bf16.msra.mxu0 %v12404
        %12494 = vmatprep.subr.bf16.mxu0 0
        %12495 = vmatpush1.bf16.msra.mxu0 %v12405
        %12496 = vmatprep.subr.bf16.mxu0 0
        %12497 = vmatpush1.bf16.msra.mxu0 %v12406
        %12498 = vmatprep.subr.bf16.mxu0 0
        %12499 = vmatpush1.bf16.msra.mxu0 %v12407
        %12500 = vmatprep.subr.bf16.mxu0 0
        %12501 = vmatpush1.bf16.msra.mxu0 %v12408
        %12502 = vmatprep.subr.bf16.mxu0 0
        %12503 = vmatpush1.bf16.msra.mxu0 %v12409
        %12504 = vmatprep.subr.bf16.mxu0 0
        %12505 = vmatpush1.bf16.msra.mxu0 %v12410
        %12506 = vmatprep.subr.bf16.mxu0 0
        %12507 = vmatpush1.bf16.msra.mxu0 %v12411
        %12508 = vmatprep.mubr.bf16.mxu0 %v12151
        %12509 = vmatmul.mubr.bf16.gmra.mrb[0].mxu0 %v12150
        %v12510 = vpop.f32.mrb[0].mxu0
        %v12511 = vadd.f32 %v12235, %v12510
        %v12512 = vpop.f32.mrb[0].mxu0
        %v12513 = vpop.f32.mrb[0].mxu0
        %v12514 = vpop.f32.mrb[0].mxu0
        %12515 = vdwg.mxu0
        %12516 = vmatprep.subr.bf16.mxu0 0
        %12517 = vmatpush1.bf16.msra.mxu0 %v12412
        %12518 = vmatprep.subr.bf16.mxu0 0
        %12519 = vmatpush1.bf16.msra.mxu0 %v12413
        %12520 = vmatprep.subr.bf16.mxu0 0
        %12521 = vmatpush1.bf16.msra.mxu0 %v12414
        %12522 = vmatprep.subr.bf16.mxu0 0
        %12523 = vmatpush1.bf16.msra.mxu0 %v12415
        %12524 = vmatprep.subr.bf16.mxu0 0
        %12525 = vmatpush1.bf16.msra.mxu0 %v12416
        %12526 = vmatprep.subr.bf16.mxu0 0
        %12527 = vmatpush1.bf16.msra.mxu0 %v12417
        %12528 = vmatprep.subr.bf16.mxu0 0
        %12529 = vmatpush1.bf16.msra.mxu0 %v12418
        %12530 = vmatprep.subr.bf16.mxu0 0
        %12531 = vmatpush1.bf16.msra.mxu0 %v12419
        %12532 = vmatprep.subr.bf16.mxu0 0
        %12533 = vmatpush1.bf16.msra.mxu0 %v12420
        %12534 = vmatprep.subr.bf16.mxu0 0
        %12535 = vmatpush1.bf16.msra.mxu0 %v12421
        %12536 = vmatprep.subr.bf16.mxu0 0
        %12537 = vmatpush1.bf16.msra.mxu0 %v12422
        %12538 = vmatprep.subr.bf16.mxu0 0
        %12539 = vmatpush1.bf16.msra.mxu0 %v12423
        %12540 = vmatprep.subr.bf16.mxu0 0
        %12541 = vmatpush1.bf16.msra.mxu0 %v12424
        %12542 = vmatprep.subr.bf16.mxu0 0
        %12543 = vmatpush1.bf16.msra.mxu0 %v12425
        %12544 = vmatprep.subr.bf16.mxu0 0
        %12545 = vmatpush1.bf16.msra.mxu0 %v12426
        %12546 = vmatprep.subr.bf16.mxu0 0
        %12547 = vmatpush1.bf16.msra.mxu0 %v12427
        %12548 = vmatprep.mubr.bf16.mxu0 %v12153
        %12549 = vmatmul.mubr.bf16.gmra.mrb[0].mxu0 %v12152
        %v12550 = vpop.f32.mrb[0].mxu0
        %v12551 = vadd.f32 %v12511, %v12550
        %v12552 = vpop.f32.mrb[0].mxu0
        %v12553 = vpop.f32.mrb[0].mxu0
        %v12554 = vpop.f32.mrb[0].mxu0
        %12555 = vdwg.mxu0
        %12556 = vmatprep.subr.bf16.mxu0 0
        %12557 = vmatpush1.bf16.msra.mxu0 %v12428
        %12558 = vmatprep.subr.bf16.mxu0 0
        %12559 = vmatpush1.bf16.msra.mxu0 %v12429
        %12560 = vmatprep.subr.bf16.mxu0 0
        %12561 = vmatpush1.bf16.msra.mxu0 %v12430
        %12562 = vmatprep.subr.bf16.mxu0 0
        %12563 = vmatpush1.bf16.msra.mxu0 %v12431
        %12564 = vmatprep.subr.bf16.mxu0 0
        %12565 = vmatpush1.bf16.msra.mxu0 %v12432
        %12566 = vmatprep.subr.bf16.mxu0 0
        %12567 = vmatpush1.bf16.msra.mxu0 %v12433
        %12568 = vmatprep.subr.bf16.mxu0 0
        %12569 = vmatpush1.bf16.msra.mxu0 %v12434
        %12570 = vmatprep.subr.bf16.mxu0 0
        %12571 = vmatpush1.bf16.msra.mxu0 %v12435
        %12572 = vmatprep.subr.bf16.mxu0 0
        %12573 = vmatpush1.bf16.msra.mxu0 0
        %12574 = vmatprep.subr.bf16.mxu0 0
        %12575 = vmatpush1.bf16.msra.mxu0 0
        %12576 = vmatprep.subr.bf16.mxu0 0
        %12577 = vmatpush1.bf16.msra.mxu0 0
        %12578 = vmatprep.subr.bf16.mxu0 0
        %12579 = vmatpush1.bf16.msra.mxu0 0
        %12580 = vmatprep.subr.bf16.mxu0 0
        %12581 = vmatpush1.bf16.msra.mxu0 0
        %12582 = vmatprep.subr.bf16.mxu0 0
        %12583 = vmatpush1.bf16.msra.mxu0 0
        %12584 = vmatprep.subr.bf16.mxu0 0
        %12585 = vmatpush1.bf16.msra.mxu0 0
        %12586 = vmatprep.subr.bf16.mxu0 0
        %12587 = vmatpush1.bf16.msra.mxu0 0
        %12588 = vmatprep.mubr.bf16.mxu0 0
        %12589 = vmatmul.mubr.bf16.gmra.mrb[0].mxu0 %v12154
        %v12590 = vpop.f32.mrb[0].mxu0
        %v12591 = vadd.f32 %v12551, %v12590
        %v12592 = vpop.f32.mrb[0].mxu0
        %v12593 = vpop.f32.mrb[0].mxu0
        %v12594 = vpop.f32.mrb[0].mxu0
        %12595 = vdwg.mxu0
        %12596 = vst [vmem:[%s475] sm:$0x1] %v12591
        %s12597 = sand.u32 %s257, 1
        %s12598 = scalar_lea.sflag [#allocation5], %s12597
        %s12599 = sand.u32 %s257, 1
        %s12600 = scalar_lea.vmem [#allocation17], %s12599
        // Predicated region
        $region93: #{cnn_forward.1} parent=59 // pred_check
          %p12601 = pneg %p267
        $region94: #{cnn_forward.1} parent=59 // pred_check_branch
          %12603 = sbr.rel (%p12601) target = $region96
        $region95: #{cnn_forward.1} parent=59 // pred_region
          %s12605 = ssub.s32 16, 16
          %12606 = vsyncadd %s12598, %s12605
          %s12607 = smul.addr %s29, 16
          %s12608 = scalar_lea.hbm %s10, %s12607
          %s12610 = sshll.u32 %s12600, 4
          %s12611 = int_to_ptr.vmem [resolvable:$true] %s12610
          %12613 = dma.vmem_to_hbm [thread:$0]  %s12611, 16, %s12608, %s12598
        $region96: #{cnn_forward.1} parent=59 // pred_fallthru
          _
      $region60: #{cnn_forward.1} parent=5 // pred_fallthru
        _
      %p12614 = scmp.le.s32.totalorder 2, %s24
      // Predicated region
      $region97: #{cnn_forward.1} parent=5 // pred_check
        %p12615 = pneg %p12614
      $region98: #{cnn_forward.1} parent=5 // pred_check_branch
        %12617 = sbr.rel (%p12615) target = $region100
      $region99: #{cnn_forward.1} parent=5 // pred_region
        %s12618 = ssub.s32 %s24, 2
        // Predicated region
        $region101: #{cnn_forward.1} parent=99 // pred_check
          %p12619 = pneg %p273
        $region102: #{cnn_forward.1} parent=99 // pred_check_branch
          %12621 = sbr.rel (%p12619) target = $region104
        $region103: #{cnn_forward.1} parent=99 // pred_region
          %s12622 = sand.u32 %s258, 1
          %s12623 = scalar_lea.sflag [#allocation5], %s12622
          %s12624 = sand.u32 %s258, 1
          %s12625 = scalar_lea.vmem [#allocation17], %s12624
          %12626 = dma.done %s12623, 16
        $region104: #{cnn_forward.1} parent=99 // pred_fallthru
          _
      $region100: #{cnn_forward.1} parent=5 // pred_fallthru
        _
    $region6: #{cnn_forward.1} parent=1 // loop_footer
      %s28 = sadd.s32 1, %s24
    $region7: #{cnn_forward.1} parent=1 // loop_footer_branch
      %23 = sbr.rel target = $region3
    $region8: #{cnn_forward.1} parent=1 // loop_exit
      _
    %12627 = vsyncpa [#allocation4], 1
    %s12628 = scalar_lea.sflag [#allocation4], 1
    %12629 = vsyncpa %s12628, 1
    %12630 = vsyncpa [#allocation7], 1
    %12631 = vsyncpa [#allocation10], 1
    %12632 = vsyncpa [#allocation13], 1
    %12633 = vsyncpa [#allocation16], 1
    %12634 = vsyncpa [#allocation5], 1
    %s12635 = scalar_lea.sflag [#allocation5], 1
    %12636 = vsyncpa %s12635, 1

</llo_original>
